<compile_context>
chip_gen: v6e
topology: v6e:2x2x1
jax: 0.10.0
libtpu: 0.0.40
codegen_flags: <defaults>
</compile_context>

<pallas_src>
import numpy as np
import jax
import jax.numpy as jnp
from jax.experimental import pallas as pl
from jax.experimental.pallas import tpu as pltpu

EPS = 1e-5


# ---------------------------------------------------------------------------
# Fused kernel (one grid step == one 512-channel output half):
#   x_ref : (M, C)        bf16   full input activations (channels-last)
#   w1_ref: (C, CH)       bf16   1x1 conv weight columns for this half
#   g1/b1 : (1, CH)       f32    BN76 affine for this half
#   sm_ref: (9, M, M)     bf16   0/1 spatial shift matrices (shared)
#   w2_ref: (SB, 9*128, 128) bf16 block-diagonal grouped 3x3 weights, taps folded
#   g2/b2 : (1, CH)       f32    BN77 affine for this half
#   o_ref : (M, CH)       f32
# ---------------------------------------------------------------------------
def _fused_kernel(x_ref, w1_ref, g1_ref, b1_ref, sm_ref, w2_ref, g2_ref, b2_ref,
                  o_ref):
    m = x_ref.shape[0]
    inv_m = 1.0 / m

    # ---- stage 1: relu70 -> 1x1 conv (matmul) -> BN76 -> relu73 ------------
    x = jnp.maximum(x_ref[...], 0)                                   # relu70 (bf16)
    acc1 = jnp.dot(x, w1_ref[...], preferred_element_type=jnp.float32)  # (M, CH) f32
    mean1 = jnp.sum(acc1, axis=0, keepdims=True) * inv_m             # single-pass BN
    var1 = jnp.sum(acc1 * acc1, axis=0, keepdims=True) * inv_m - mean1 * mean1
    y = (acc1 - mean1) * jax.lax.rsqrt(var1 + EPS) * g1_ref[...] + b1_ref[...]
    y = jnp.maximum(y, 0.0).astype(jnp.bfloat16)                     # relu73, MXU feed

    # ---- im2col in VMEM: 9 exact 0/1 shift-matrix matmuls ------------------
    # tap_t[m] = y[m + offset_t] (zero outside the padded image), exactly.
    taps = [jnp.dot(sm_ref[t], y, preferred_element_type=jnp.float32)
            .astype(jnp.bfloat16) for t in range(9)]                 # 9 x (M, CH) bf16

    # ---- stage 2: grouped 3x3 conv per 128-lane super-group + BN77 ---------
    n_sb = w2_ref.shape[0]
    for s in range(n_sb):
        lo = s * 128
        # fold the 9 taps into the contraction axis: (M, 9*128) @ (9*128, 128)
        tcat = jnp.concatenate([tp[:, lo:lo + 128] for tp in taps], axis=1)
        acc2 = jnp.dot(tcat, w2_ref[s], preferred_element_type=jnp.float32)  # (M,128)
        mean2 = jnp.sum(acc2, axis=0, keepdims=True) * inv_m
        var2 = jnp.sum(acc2 * acc2, axis=0, keepdims=True) * inv_m - mean2 * mean2
        o_ref[:, lo:lo + 128] = ((acc2 - mean2) * jax.lax.rsqrt(var2 + EPS)
                                 * g2_ref[:, lo:lo + 128] + b2_ref[:, lo:lo + 128])


# ---------------------------------------------------------------------------
# 0/1 shift matrices: S_t @ y implements the zero-padded spatial shift for
# 3x3 tap t on the flattened (M, C) channels-last activations.
# ---------------------------------------------------------------------------
def _shift_matrices(N, H, W):
    HW = H * W
    M = N * HW
    mats = np.zeros((9, M, M), np.float32)
    for kh in range(3):
        for kw in range(3):
            t = kh * 3 + kw
            for h in range(H):
                hh = h + kh - 1
                if not (0 <= hh < H):
                    continue
                for w in range(W):
                    ww = w + kw - 1
                    if not (0 <= ww < W):
                        continue
                    for n in range(N):
                        mats[t, n * HW + h * W + w, n * HW + hh * W + ww] = 1.0
    return jnp.asarray(mats, dtype=jnp.bfloat16)


# ---------------------------------------------------------------------------
# Wrapper: layout glue (transpose, weight folding) + the single pallas_call.
# ---------------------------------------------------------------------------
def forward(x_nchw, w1, gamma1, beta1, w2, gamma2, beta2, groups=64):
    N, C, H, W = x_nchw.shape
    G = groups
    Cg = C // G                    # 16 channels per group
    PACK = 128 // Cg               # 8 groups per super-group -> 128-lane blocks
    S = G // PACK                  # 8 super-groups
    M = N * H * W
    P = 2                          # output-channel halves (v7x megacore axis)
    CH = C // P
    SB = S // P                    # super-groups per half

    # channels-last activations; the bf16 cast commutes with relu.
    x_mc = jnp.transpose(x_nchw, (0, 2, 3, 1)).reshape(M, C).astype(jnp.bfloat16)
    # 1x1 conv weight -> (Cin, Cout) bf16
    w1_mat = jnp.transpose(w1[:, :, 0, 0], (1, 0)).astype(jnp.bfloat16)

    shift_mats = _shift_matrices(N, H, W)                            # (9, M, M) bf16

    # grouped 3x3 weights -> block-diagonal per super-group, 9 taps folded into
    # the contraction axis: (S, 9*128, 128) bf16
    w2_g = jnp.transpose(w2.reshape(G, Cg, Cg, 3, 3), (0, 3, 4, 2, 1))  # (G,kh,kw,in,out)
    w2_g = w2_g.reshape(S, PACK, 9, Cg, Cg)                             # (s,j,t,in,out)
    eye = jnp.eye(PACK, dtype=w2.dtype)
    w2_bd = jnp.einsum('sjtio,jk->stjiko', w2_g, eye)                   # (s,t,j,i,k,o)
    w2_fold = w2_bd.reshape(S, 9 * PACK * Cg, PACK * Cg).astype(jnp.bfloat16)

    z = pl.pallas_call(
        _fused_kernel,
        out_shape=jax.ShapeDtypeStruct((M, C), jnp.float32),
        grid=(P,),
        in_specs=[
            pl.BlockSpec((M, C), lambda p: (0, 0)),                  # x (shared)
            pl.BlockSpec((C, CH), lambda p: (0, p)),                 # w1 half
            pl.BlockSpec((1, CH), lambda p: (0, p)),                 # gamma1 half
            pl.BlockSpec((1, CH), lambda p: (0, p)),                 # beta1 half
            pl.BlockSpec((9, M, M), lambda p: (0, 0, 0)),            # shift mats
            pl.BlockSpec((SB, 9 * 128, 128), lambda p: (p, 0, 0)),   # w2 folded half
            pl.BlockSpec((1, CH), lambda p: (0, p)),                 # gamma2 half
            pl.BlockSpec((1, CH), lambda p: (0, p)),                 # beta2 half
        ],
        out_specs=pl.BlockSpec((M, CH), lambda p: (0, p)),           # lane-dense stores
        compiler_params=pltpu.CompilerParams(dimension_semantics=("parallel",)),
    )(x_mc, w1_mat, gamma1.reshape(1, C), beta1.reshape(1, C),
      shift_mats, w2_fold, gamma2.reshape(1, C), beta2.reshape(1, C))

    # (M, C) channels-last -> (N, C, H, W)
    return jnp.transpose(z.reshape(N, H, W, C), (0, 3, 1, 2))


# ---------------------------------------------------------------------------
# Pure-JAX reference (sanity check only).
# ---------------------------------------------------------------------------
def _bn_train(x, gamma, beta):
    mean = jnp.mean(x, axis=(0, 2, 3), keepdims=True)
    var = jnp.mean((x - mean) ** 2, axis=(0, 2, 3), keepdims=True)
    return (x - mean) * jax.lax.rsqrt(var + EPS) * gamma[None, :, None, None] \
        + beta[None, :, None, None]


def reference(x, w1, gamma1, beta1, w2, gamma2, beta2, groups=64):
    x = jnp.maximum(x, 0.0)
    y = jax.lax.conv_general_dilated(x, w1, (1, 1), 'VALID',
                                     dimension_numbers=('NCHW', 'OIHW', 'NCHW'),
                                     precision=jax.lax.Precision.HIGHEST)
    y = jnp.maximum(_bn_train(y, gamma1, beta1), 0.0)
    z = jax.lax.conv_general_dilated(y, w2, (1, 1), ((1, 1), (1, 1)),
                                     dimension_numbers=('NCHW', 'OIHW', 'NCHW'),
                                     feature_group_count=groups,
                                     precision=jax.lax.Precision.HIGHEST)
    return _bn_train(z, gamma2, beta2)


if __name__ == "__main__":
    # Channel count (1024) and groups (64) are fixed by the module; spatial kept small.
    N, C, H, W = 1, 1024, 8, 8
    G, Cg = 64, 1024 // 64

    key = jax.random.PRNGKey(0)
    k = jax.random.split(key, 7)
    x = jax.random.normal(k[0], (N, C, H, W), jnp.float32)
    w1 = jax.random.normal(k[1], (C, C, 1, 1), jnp.float32) * 0.03       # conv2d76 weight
    w2 = jax.random.normal(k[2], (C, Cg, 3, 3), jnp.float32) * 0.05      # conv2d77 weight
    gamma1 = 1.0 + 0.1 * jax.random.normal(k[3], (C,), jnp.float32)      # bn76 gamma
    beta1 = 0.1 * jax.random.normal(k[4], (C,), jnp.float32)             # bn76 beta
    gamma2 = 1.0 + 0.1 * jax.random.normal(k[5], (C,), jnp.float32)      # bn77 gamma
    beta2 = 0.1 * jax.random.normal(k[6], (C,), jnp.float32)             # bn77 beta

    out = jax.block_until_ready(
        jax.jit(forward)(x, w1, gamma1, beta1, w2, gamma2, beta2))
    assert out.shape == (N, C, H, W) and out.dtype == jnp.float32

    ref = jax.block_until_ready(
        jax.jit(reference)(x, w1, gamma1, beta1, w2, gamma2, beta2))
    if not bool(jnp.allclose(out, ref, rtol=2e-2, atol=2e-2)):
        raise AssertionError(
            f"mismatch: max abs diff {float(jnp.max(jnp.abs(out - ref)))}")

    print("KERNEL_OK")
</pallas_src>

<mosaic_0001>
module attributes {stable_mosaic.version = 11 : i64} {
  func.func @_fused_kernel(%arg0: i32, %arg1: memref<64x1024xbf16, #tpu.memory_space<vmem>>, %arg2: memref<1024x512xbf16, #tpu.memory_space<vmem>>, %arg3: memref<1x512xf32, #tpu.memory_space<vmem>>, %arg4: memref<1x512xf32, #tpu.memory_space<vmem>>, %arg5: memref<9x64x64xbf16, #tpu.memory_space<vmem>>, %arg6: memref<4x1152x128xbf16, #tpu.memory_space<vmem>>, %arg7: memref<1x512xf32, #tpu.memory_space<vmem>>, %arg8: memref<1x512xf32, #tpu.memory_space<vmem>>, %arg9: memref<64x512xf32, #tpu.memory_space<vmem>>) attributes {dimension_semantics = [#tpu.dimension_semantics<parallel>], iteration_bounds = array<i64: 2>, scalar_prefetch = 0 : i64, scratch_operands = 0 : i64, tpu.core_type = #tpu.core_type<tc>, window_params = [{pipeline_mode = #tpu.pipeline_mode<synchronous>, transform_indices = @transform_0, window_bounds = array<i64: 64, 1024>}, {transform_indices = @transform_1, window_bounds = array<i64: 1024, 512>}, {transform_indices = @transform_2, window_bounds = array<i64: 1, 512>}, {transform_indices = @transform_3, window_bounds = array<i64: 1, 512>}, {pipeline_mode = #tpu.pipeline_mode<synchronous>, transform_indices = @transform_4, window_bounds = array<i64: 9, 64, 64>}, {transform_indices = @transform_5, window_bounds = array<i64: 4, 1152, 128>}, {transform_indices = @transform_6, window_bounds = array<i64: 1, 512>}, {transform_indices = @transform_7, window_bounds = array<i64: 1, 512>}, {transform_indices = @transform_8, window_bounds = array<i64: 64, 512>}]} {
    %c0 = arith.constant 0 : index
    %c0_0 = arith.constant 0 : index
    %0 = vector.load %arg1[%c0, %c0_0] : memref<64x1024xbf16, #tpu.memory_space<vmem>>, vector<64x1024xbf16>
    %cst = arith.constant 0.000000e+00 : bf16
    %1 = vector.broadcast %cst : bf16 to vector<64x1024xbf16>
    %2 = arith.maximumf %0, %1 : vector<64x1024xbf16>
    %c0_1 = arith.constant 0 : index
    %c0_2 = arith.constant 0 : index
    %3 = vector.load %arg2[%c0_1, %c0_2] : memref<1024x512xbf16, #tpu.memory_space<vmem>>, vector<1024x512xbf16>
    %cst_3 = arith.constant dense<0.000000e+00> : vector<64x512xf32>
    %4 = tpu.matmul %2, %3, %cst_3 {dimension_numbers = #tpu.dot_dimension_numbers<[1], [0], [0], [1], [0, 0, 1, 1], [], []>} : vector<64x1024xbf16>, vector<1024x512xbf16>, vector<64x512xf32> -> vector<64x512xf32>
    %cst_4 = arith.constant dense<0.000000e+00> : vector<512xf32>
    %5 = vector.multi_reduction <add>, %4, %cst_4 [0] : vector<64x512xf32> to vector<512xf32>
    %6 = vector.shape_cast %5 : vector<512xf32> to vector<1x512xf32>
    %cst_5 = arith.constant 1.562500e-02 : f32
    %7 = vector.broadcast %cst_5 : f32 to vector<1x512xf32>
    %8 = arith.mulf %6, %7 : vector<1x512xf32>
    %9 = arith.mulf %4, %4 : vector<64x512xf32>
    %cst_6 = arith.constant dense<0.000000e+00> : vector<512xf32>
    %10 = vector.multi_reduction <add>, %9, %cst_6 [0] : vector<64x512xf32> to vector<512xf32>
    %11 = vector.shape_cast %10 : vector<512xf32> to vector<1x512xf32>
    %cst_7 = arith.constant 1.562500e-02 : f32
    %12 = vector.broadcast %cst_7 : f32 to vector<1x512xf32>
    %13 = arith.mulf %11, %12 : vector<1x512xf32>
    %14 = arith.mulf %8, %8 : vector<1x512xf32>
    %15 = arith.subf %13, %14 : vector<1x512xf32>
    %16 = vector.broadcast %8 : vector<1x512xf32> to vector<64x512xf32>
    %17 = arith.subf %4, %16 : vector<64x512xf32>
    %cst_8 = arith.constant 9.99999974E-6 : f32
    %18 = vector.broadcast %cst_8 : f32 to vector<1x512xf32>
    %19 = arith.addf %15, %18 : vector<1x512xf32>
    %20 = math.rsqrt %19 : vector<1x512xf32>
    %21 = vector.broadcast %20 : vector<1x512xf32> to vector<64x512xf32>
    %22 = arith.mulf %17, %21 : vector<64x512xf32>
    %c0_9 = arith.constant 0 : index
    %c0_10 = arith.constant 0 : index
    %23 = vector.load %arg3[%c0_9, %c0_10] : memref<1x512xf32, #tpu.memory_space<vmem>>, vector<1x512xf32>
    %24 = vector.broadcast %23 : vector<1x512xf32> to vector<64x512xf32>
    %25 = arith.mulf %22, %24 : vector<64x512xf32>
    %c0_11 = arith.constant 0 : index
    %c0_12 = arith.constant 0 : index
    %26 = vector.load %arg4[%c0_11, %c0_12] : memref<1x512xf32, #tpu.memory_space<vmem>>, vector<1x512xf32>
    %27 = vector.broadcast %26 : vector<1x512xf32> to vector<64x512xf32>
    %28 = arith.addf %25, %27 : vector<64x512xf32>
    %cst_13 = arith.constant 0.000000e+00 : f32
    %29 = vector.broadcast %cst_13 : f32 to vector<64x512xf32>
    %30 = arith.maximumf %28, %29 : vector<64x512xf32>
    %31 = arith.truncf %30 : vector<64x512xf32> to vector<64x512xbf16>
    %c0_14 = arith.constant 0 : index
    %c0_15 = arith.constant 0 : index
    %c0_16 = arith.constant 0 : index
    %32 = vector.load %arg5[%c0_14, %c0_15, %c0_16] : memref<9x64x64xbf16, #tpu.memory_space<vmem>>, vector<1x64x64xbf16>
    %33 = vector.shape_cast %32 : vector<1x64x64xbf16> to vector<64x64xbf16>
    %cst_17 = arith.constant dense<0.000000e+00> : vector<64x512xf32>
    %34 = tpu.matmul %33, %31, %cst_17 {dimension_numbers = #tpu.dot_dimension_numbers<[1], [0], [0], [1], [0, 0, 1, 1], [], []>} : vector<64x64xbf16>, vector<64x512xbf16>, vector<64x512xf32> -> vector<64x512xf32>
    %35 = arith.truncf %34 : vector<64x512xf32> to vector<64x512xbf16>
    %c1 = arith.constant 1 : index
    %c0_18 = arith.constant 0 : index
    %c0_19 = arith.constant 0 : index
    %36 = vector.load %arg5[%c1, %c0_18, %c0_19] : memref<9x64x64xbf16, #tpu.memory_space<vmem>>, vector<1x64x64xbf16>
    %37 = vector.shape_cast %36 : vector<1x64x64xbf16> to vector<64x64xbf16>
    %cst_20 = arith.constant dense<0.000000e+00> : vector<64x512xf32>
    %38 = tpu.matmul %37, %31, %cst_20 {dimension_numbers = #tpu.dot_dimension_numbers<[1], [0], [0], [1], [0, 0, 1, 1], [], []>} : vector<64x64xbf16>, vector<64x512xbf16>, vector<64x512xf32> -> vector<64x512xf32>
    %39 = arith.truncf %38 : vector<64x512xf32> to vector<64x512xbf16>
    %c2 = arith.constant 2 : index
    %c0_21 = arith.constant 0 : index
    %c0_22 = arith.constant 0 : index
    %40 = vector.load %arg5[%c2, %c0_21, %c0_22] : memref<9x64x64xbf16, #tpu.memory_space<vmem>>, vector<1x64x64xbf16>
    %41 = vector.shape_cast %40 : vector<1x64x64xbf16> to vector<64x64xbf16>
    %cst_23 = arith.constant dense<0.000000e+00> : vector<64x512xf32>
    %42 = tpu.matmul %41, %31, %cst_23 {dimension_numbers = #tpu.dot_dimension_numbers<[1], [0], [0], [1], [0, 0, 1, 1], [], []>} : vector<64x64xbf16>, vector<64x512xbf16>, vector<64x512xf32> -> vector<64x512xf32>
    %43 = arith.truncf %42 : vector<64x512xf32> to vector<64x512xbf16>
    %c3 = arith.constant 3 : index
    %c0_24 = arith.constant 0 : index
    %c0_25 = arith.constant 0 : index
    %44 = vector.load %arg5[%c3, %c0_24, %c0_25] : memref<9x64x64xbf16, #tpu.memory_space<vmem>>, vector<1x64x64xbf16>
    %45 = vector.shape_cast %44 : vector<1x64x64xbf16> to vector<64x64xbf16>
    %cst_26 = arith.constant dense<0.000000e+00> : vector<64x512xf32>
    %46 = tpu.matmul %45, %31, %cst_26 {dimension_numbers = #tpu.dot_dimension_numbers<[1], [0], [0], [1], [0, 0, 1, 1], [], []>} : vector<64x64xbf16>, vector<64x512xbf16>, vector<64x512xf32> -> vector<64x512xf32>
    %47 = arith.truncf %46 : vector<64x512xf32> to vector<64x512xbf16>
    %c4 = arith.constant 4 : index
    %c0_27 = arith.constant 0 : index
    %c0_28 = arith.constant 0 : index
    %48 = vector.load %arg5[%c4, %c0_27, %c0_28] : memref<9x64x64xbf16, #tpu.memory_space<vmem>>, vector<1x64x64xbf16>
    %49 = vector.shape_cast %48 : vector<1x64x64xbf16> to vector<64x64xbf16>
    %cst_29 = arith.constant dense<0.000000e+00> : vector<64x512xf32>
    %50 = tpu.matmul %49, %31, %cst_29 {dimension_numbers = #tpu.dot_dimension_numbers<[1], [0], [0], [1], [0, 0, 1, 1], [], []>} : vector<64x64xbf16>, vector<64x512xbf16>, vector<64x512xf32> -> vector<64x512xf32>
    %51 = arith.truncf %50 : vector<64x512xf32> to vector<64x512xbf16>
    %c5 = arith.constant 5 : index
    %c0_30 = arith.constant 0 : index
    %c0_31 = arith.constant 0 : index
    %52 = vector.load %arg5[%c5, %c0_30, %c0_31] : memref<9x64x64xbf16, #tpu.memory_space<vmem>>, vector<1x64x64xbf16>
    %53 = vector.shape_cast %52 : vector<1x64x64xbf16> to vector<64x64xbf16>
    %cst_32 = arith.constant dense<0.000000e+00> : vector<64x512xf32>
    %54 = tpu.matmul %53, %31, %cst_32 {dimension_numbers = #tpu.dot_dimension_numbers<[1], [0], [0], [1], [0, 0, 1, 1], [], []>} : vector<64x64xbf16>, vector<64x512xbf16>, vector<64x512xf32> -> vector<64x512xf32>
    %55 = arith.truncf %54 : vector<64x512xf32> to vector<64x512xbf16>
    %c6 = arith.constant 6 : index
    %c0_33 = arith.constant 0 : index
    %c0_34 = arith.constant 0 : index
    %56 = vector.load %arg5[%c6, %c0_33, %c0_34] : memref<9x64x64xbf16, #tpu.memory_space<vmem>>, vector<1x64x64xbf16>
    %57 = vector.shape_cast %56 : vector<1x64x64xbf16> to vector<64x64xbf16>
    %cst_35 = arith.constant dense<0.000000e+00> : vector<64x512xf32>
    %58 = tpu.matmul %57, %31, %cst_35 {dimension_numbers = #tpu.dot_dimension_numbers<[1], [0], [0], [1], [0, 0, 1, 1], [], []>} : vector<64x64xbf16>, vector<64x512xbf16>, vector<64x512xf32> -> vector<64x512xf32>
    %59 = arith.truncf %58 : vector<64x512xf32> to vector<64x512xbf16>
    %c7 = arith.constant 7 : index
    %c0_36 = arith.constant 0 : index
    %c0_37 = arith.constant 0 : index
    %60 = vector.load %arg5[%c7, %c0_36, %c0_37] : memref<9x64x64xbf16, #tpu.memory_space<vmem>>, vector<1x64x64xbf16>
    %61 = vector.shape_cast %60 : vector<1x64x64xbf16> to vector<64x64xbf16>
    %cst_38 = arith.constant dense<0.000000e+00> : vector<64x512xf32>
    %62 = tpu.matmul %61, %31, %cst_38 {dimension_numbers = #tpu.dot_dimension_numbers<[1], [0], [0], [1], [0, 0, 1, 1], [], []>} : vector<64x64xbf16>, vector<64x512xbf16>, vector<64x512xf32> -> vector<64x512xf32>
    %63 = arith.truncf %62 : vector<64x512xf32> to vector<64x512xbf16>
    %c8 = arith.constant 8 : index
    %c0_39 = arith.constant 0 : index
    %c0_40 = arith.constant 0 : index
    %64 = vector.load %arg5[%c8, %c0_39, %c0_40] : memref<9x64x64xbf16, #tpu.memory_space<vmem>>, vector<1x64x64xbf16>
    %65 = vector.shape_cast %64 : vector<1x64x64xbf16> to vector<64x64xbf16>
    %cst_41 = arith.constant dense<0.000000e+00> : vector<64x512xf32>
    %66 = tpu.matmul %65, %31, %cst_41 {dimension_numbers = #tpu.dot_dimension_numbers<[1], [0], [0], [1], [0, 0, 1, 1], [], []>} : vector<64x64xbf16>, vector<64x512xbf16>, vector<64x512xf32> -> vector<64x512xf32>
    %67 = arith.truncf %66 : vector<64x512xf32> to vector<64x512xbf16>
    %68 = vector.extract_strided_slice %35 {offsets = [0, 0], sizes = [64, 128], strides = [1, 1]} : vector<64x512xbf16> to vector<64x128xbf16>
    %69 = vector.extract_strided_slice %39 {offsets = [0, 0], sizes = [64, 128], strides = [1, 1]} : vector<64x512xbf16> to vector<64x128xbf16>
    %70 = vector.extract_strided_slice %43 {offsets = [0, 0], sizes = [64, 128], strides = [1, 1]} : vector<64x512xbf16> to vector<64x128xbf16>
    %71 = vector.extract_strided_slice %47 {offsets = [0, 0], sizes = [64, 128], strides = [1, 1]} : vector<64x512xbf16> to vector<64x128xbf16>
    %72 = vector.extract_strided_slice %51 {offsets = [0, 0], sizes = [64, 128], strides = [1, 1]} : vector<64x512xbf16> to vector<64x128xbf16>
    %73 = vector.extract_strided_slice %55 {offsets = [0, 0], sizes = [64, 128], strides = [1, 1]} : vector<64x512xbf16> to vector<64x128xbf16>
    %74 = vector.extract_strided_slice %59 {offsets = [0, 0], sizes = [64, 128], strides = [1, 1]} : vector<64x512xbf16> to vector<64x128xbf16>
    %75 = vector.extract_strided_slice %63 {offsets = [0, 0], sizes = [64, 128], strides = [1, 1]} : vector<64x512xbf16> to vector<64x128xbf16>
    %76 = vector.extract_strided_slice %67 {offsets = [0, 0], sizes = [64, 128], strides = [1, 1]} : vector<64x512xbf16> to vector<64x128xbf16>
    %77 = tpu.concatenate %68, %69, %70, %71, %72, %73, %74, %75, %76 in 1 : vector<64x128xbf16>, vector<64x128xbf16>, vector<64x128xbf16>, vector<64x128xbf16>, vector<64x128xbf16>, vector<64x128xbf16>, vector<64x128xbf16>, vector<64x128xbf16>, vector<64x128xbf16> -> vector<64x1152xbf16>
    %c0_42 = arith.constant 0 : index
    %c0_43 = arith.constant 0 : index
    %c0_44 = arith.constant 0 : index
    %78 = vector.load %arg6[%c0_42, %c0_43, %c0_44] : memref<4x1152x128xbf16, #tpu.memory_space<vmem>>, vector<1x1152x128xbf16>
    %79 = vector.shape_cast %78 : vector<1x1152x128xbf16> to vector<1152x128xbf16>
    %cst_45 = arith.constant dense<0.000000e+00> : vector<64x128xf32>
    %80 = tpu.matmul %77, %79, %cst_45 {dimension_numbers = #tpu.dot_dimension_numbers<[1], [0], [0], [1], [0, 0, 1, 1], [], []>} : vector<64x1152xbf16>, vector<1152x128xbf16>, vector<64x128xf32> -> vector<64x128xf32>
    %cst_46 = arith.constant dense<0.000000e+00> : vector<128xf32>
    %81 = vector.multi_reduction <add>, %80, %cst_46 [0] : vector<64x128xf32> to vector<128xf32>
    %82 = vector.shape_cast %81 : vector<128xf32> to vector<1x128xf32>
    %cst_47 = arith.constant 1.562500e-02 : f32
    %83 = vector.broadcast %cst_47 : f32 to vector<1x128xf32>
    %84 = arith.mulf %82, %83 : vector<1x128xf32>
    %85 = arith.mulf %80, %80 : vector<64x128xf32>
    %cst_48 = arith.constant dense<0.000000e+00> : vector<128xf32>
    %86 = vector.multi_reduction <add>, %85, %cst_48 [0] : vector<64x128xf32> to vector<128xf32>
    %87 = vector.shape_cast %86 : vector<128xf32> to vector<1x128xf32>
    %cst_49 = arith.constant 1.562500e-02 : f32
    %88 = vector.broadcast %cst_49 : f32 to vector<1x128xf32>
    %89 = arith.mulf %87, %88 : vector<1x128xf32>
    %90 = arith.mulf %84, %84 : vector<1x128xf32>
    %91 = arith.subf %89, %90 : vector<1x128xf32>
    %92 = vector.broadcast %84 : vector<1x128xf32> to vector<64x128xf32>
    %93 = arith.subf %80, %92 : vector<64x128xf32>
    %cst_50 = arith.constant 9.99999974E-6 : f32
    %94 = vector.broadcast %cst_50 : f32 to vector<1x128xf32>
    %95 = arith.addf %91, %94 : vector<1x128xf32>
    %96 = math.rsqrt %95 : vector<1x128xf32>
    %97 = vector.broadcast %96 : vector<1x128xf32> to vector<64x128xf32>
    %98 = arith.mulf %93, %97 : vector<64x128xf32>
    %c0_51 = arith.constant 0 : index
    %c0_52 = arith.constant 0 : index
    %99 = vector.load %arg7[%c0_51, %c0_52] : memref<1x512xf32, #tpu.memory_space<vmem>>, vector<1x128xf32>
    %100 = vector.broadcast %99 : vector<1x128xf32> to vector<64x128xf32>
    %101 = arith.mulf %98, %100 : vector<64x128xf32>
    %c0_53 = arith.constant 0 : index
    %c0_54 = arith.constant 0 : index
    %102 = vector.load %arg8[%c0_53, %c0_54] : memref<1x512xf32, #tpu.memory_space<vmem>>, vector<1x128xf32>
    %103 = vector.broadcast %102 : vector<1x128xf32> to vector<64x128xf32>
    %104 = arith.addf %101, %103 : vector<64x128xf32>
    %c0_55 = arith.constant 0 : index
    %c0_56 = arith.constant 0 : index
    %105 = vector.load %arg9[%c0_55, %c0_56] : memref<64x512xf32, #tpu.memory_space<vmem>>, vector<64x128xf32>
    tpu.vector_store %arg9[%c0_55, %c0_56], %104 {strides = array<i32>} : memref<64x512xf32, #tpu.memory_space<vmem>>, vector<64x128xf32>,
    %106 = vector.extract_strided_slice %35 {offsets = [0, 128], sizes = [64, 128], strides = [1, 1]} : vector<64x512xbf16> to vector<64x128xbf16>
    %107 = vector.extract_strided_slice %39 {offsets = [0, 128], sizes = [64, 128], strides = [1, 1]} : vector<64x512xbf16> to vector<64x128xbf16>
    %108 = vector.extract_strided_slice %43 {offsets = [0, 128], sizes = [64, 128], strides = [1, 1]} : vector<64x512xbf16> to vector<64x128xbf16>
    %109 = vector.extract_strided_slice %47 {offsets = [0, 128], sizes = [64, 128], strides = [1, 1]} : vector<64x512xbf16> to vector<64x128xbf16>
    %110 = vector.extract_strided_slice %51 {offsets = [0, 128], sizes = [64, 128], strides = [1, 1]} : vector<64x512xbf16> to vector<64x128xbf16>
    %111 = vector.extract_strided_slice %55 {offsets = [0, 128], sizes = [64, 128], strides = [1, 1]} : vector<64x512xbf16> to vector<64x128xbf16>
    %112 = vector.extract_strided_slice %59 {offsets = [0, 128], sizes = [64, 128], strides = [1, 1]} : vector<64x512xbf16> to vector<64x128xbf16>
    %113 = vector.extract_strided_slice %63 {offsets = [0, 128], sizes = [64, 128], strides = [1, 1]} : vector<64x512xbf16> to vector<64x128xbf16>
    %114 = vector.extract_strided_slice %67 {offsets = [0, 128], sizes = [64, 128], strides = [1, 1]} : vector<64x512xbf16> to vector<64x128xbf16>
    %115 = tpu.concatenate %106, %107, %108, %109, %110, %111, %112, %113, %114 in 1 : vector<64x128xbf16>, vector<64x128xbf16>, vector<64x128xbf16>, vector<64x128xbf16>, vector<64x128xbf16>, vector<64x128xbf16>, vector<64x128xbf16>, vector<64x128xbf16>, vector<64x128xbf16> -> vector<64x1152xbf16>
    %c1_57 = arith.constant 1 : index
    %c0_58 = arith.constant 0 : index
    %c0_59 = arith.constant 0 : index
    %116 = vector.load %arg6[%c1_57, %c0_58, %c0_59] : memref<4x1152x128xbf16, #tpu.memory_space<vmem>>, vector<1x1152x128xbf16>
    %117 = vector.shape_cast %116 : vector<1x1152x128xbf16> to vector<1152x128xbf16>
    %cst_60 = arith.constant dense<0.000000e+00> : vector<64x128xf32>
    %118 = tpu.matmul %115, %117, %cst_60 {dimension_numbers = #tpu.dot_dimension_numbers<[1], [0], [0], [1], [0, 0, 1, 1], [], []>} : vector<64x1152xbf16>, vector<1152x128xbf16>, vector<64x128xf32> -> vector<64x128xf32>
    %cst_61 = arith.constant dense<0.000000e+00> : vector<128xf32>
    %119 = vector.multi_reduction <add>, %118, %cst_61 [0] : vector<64x128xf32> to vector<128xf32>
    %120 = vector.shape_cast %119 : vector<128xf32> to vector<1x128xf32>
    %cst_62 = arith.constant 1.562500e-02 : f32
    %121 = vector.broadcast %cst_62 : f32 to vector<1x128xf32>
    %122 = arith.mulf %120, %121 : vector<1x128xf32>
    %123 = arith.mulf %118, %118 : vector<64x128xf32>
    %cst_63 = arith.constant dense<0.000000e+00> : vector<128xf32>
    %124 = vector.multi_reduction <add>, %123, %cst_63 [0] : vector<64x128xf32> to vector<128xf32>
    %125 = vector.shape_cast %124 : vector<128xf32> to vector<1x128xf32>
    %cst_64 = arith.constant 1.562500e-02 : f32
    %126 = vector.broadcast %cst_64 : f32 to vector<1x128xf32>
    %127 = arith.mulf %125, %126 : vector<1x128xf32>
    %128 = arith.mulf %122, %122 : vector<1x128xf32>
    %129 = arith.subf %127, %128 : vector<1x128xf32>
    %130 = vector.broadcast %122 : vector<1x128xf32> to vector<64x128xf32>
    %131 = arith.subf %118, %130 : vector<64x128xf32>
    %cst_65 = arith.constant 9.99999974E-6 : f32
    %132 = vector.broadcast %cst_65 : f32 to vector<1x128xf32>
    %133 = arith.addf %129, %132 : vector<1x128xf32>
    %134 = math.rsqrt %133 : vector<1x128xf32>
    %135 = vector.broadcast %134 : vector<1x128xf32> to vector<64x128xf32>
    %136 = arith.mulf %131, %135 : vector<64x128xf32>
    %c0_66 = arith.constant 0 : index
    %c128 = arith.constant 128 : index
    %137 = vector.load %arg7[%c0_66, %c128] : memref<1x512xf32, #tpu.memory_space<vmem>>, vector<1x128xf32>
    %138 = vector.broadcast %137 : vector<1x128xf32> to vector<64x128xf32>
    %139 = arith.mulf %136, %138 : vector<64x128xf32>
    %c0_67 = arith.constant 0 : index
    %c128_68 = arith.constant 128 : index
    %140 = vector.load %arg8[%c0_67, %c128_68] : memref<1x512xf32, #tpu.memory_space<vmem>>, vector<1x128xf32>
    %141 = vector.broadcast %140 : vector<1x128xf32> to vector<64x128xf32>
    %142 = arith.addf %139, %141 : vector<64x128xf32>
    %c0_69 = arith.constant 0 : index
    %c128_70 = arith.constant 128 : index
    %143 = vector.load %arg9[%c0_69, %c128_70] : memref<64x512xf32, #tpu.memory_space<vmem>>, vector<64x128xf32>
    tpu.vector_store %arg9[%c0_69, %c128_70], %142 {strides = array<i32>} : memref<64x512xf32, #tpu.memory_space<vmem>>, vector<64x128xf32>,
    %144 = vector.extract_strided_slice %35 {offsets = [0, 256], sizes = [64, 128], strides = [1, 1]} : vector<64x512xbf16> to vector<64x128xbf16>
    %145 = vector.extract_strided_slice %39 {offsets = [0, 256], sizes = [64, 128], strides = [1, 1]} : vector<64x512xbf16> to vector<64x128xbf16>
    %146 = vector.extract_strided_slice %43 {offsets = [0, 256], sizes = [64, 128], strides = [1, 1]} : vector<64x512xbf16> to vector<64x128xbf16>
    %147 = vector.extract_strided_slice %47 {offsets = [0, 256], sizes = [64, 128], strides = [1, 1]} : vector<64x512xbf16> to vector<64x128xbf16>
    %148 = vector.extract_strided_slice %51 {offsets = [0, 256], sizes = [64, 128], strides = [1, 1]} : vector<64x512xbf16> to vector<64x128xbf16>
    %149 = vector.extract_strided_slice %55 {offsets = [0, 256], sizes = [64, 128], strides = [1, 1]} : vector<64x512xbf16> to vector<64x128xbf16>
    %150 = vector.extract_strided_slice %59 {offsets = [0, 256], sizes = [64, 128], strides = [1, 1]} : vector<64x512xbf16> to vector<64x128xbf16>
    %151 = vector.extract_strided_slice %63 {offsets = [0, 256], sizes = [64, 128], strides = [1, 1]} : vector<64x512xbf16> to vector<64x128xbf16>
    %152 = vector.extract_strided_slice %67 {offsets = [0, 256], sizes = [64, 128], strides = [1, 1]} : vector<64x512xbf16> to vector<64x128xbf16>
    %153 = tpu.concatenate %144, %145, %146, %147, %148, %149, %150, %151, %152 in 1 : vector<64x128xbf16>, vector<64x128xbf16>, vector<64x128xbf16>, vector<64x128xbf16>, vector<64x128xbf16>, vector<64x128xbf16>, vector<64x128xbf16>, vector<64x128xbf16>, vector<64x128xbf16> -> vector<64x1152xbf16>
    %c2_71 = arith.constant 2 : index
    %c0_72 = arith.constant 0 : index
    %c0_73 = arith.constant 0 : index
    %154 = vector.load %arg6[%c2_71, %c0_72, %c0_73] : memref<4x1152x128xbf16, #tpu.memory_space<vmem>>, vector<1x1152x128xbf16>
    %155 = vector.shape_cast %154 : vector<1x1152x128xbf16> to vector<1152x128xbf16>
    %cst_74 = arith.constant dense<0.000000e+00> : vector<64x128xf32>
    %156 = tpu.matmul %153, %155, %cst_74 {dimension_numbers = #tpu.dot_dimension_numbers<[1], [0], [0], [1], [0, 0, 1, 1], [], []>} : vector<64x1152xbf16>, vector<1152x128xbf16>, vector<64x128xf32> -> vector<64x128xf32>
    %cst_75 = arith.constant dense<0.000000e+00> : vector<128xf32>
    %157 = vector.multi_reduction <add>, %156, %cst_75 [0] : vector<64x128xf32> to vector<128xf32>
    %158 = vector.shape_cast %157 : vector<128xf32> to vector<1x128xf32>
    %cst_76 = arith.constant 1.562500e-02 : f32
    %159 = vector.broadcast %cst_76 : f32 to vector<1x128xf32>
    %160 = arith.mulf %158, %159 : vector<1x128xf32>
    %161 = arith.mulf %156, %156 : vector<64x128xf32>
    %cst_77 = arith.constant dense<0.000000e+00> : vector<128xf32>
    %162 = vector.multi_reduction <add>, %161, %cst_77 [0] : vector<64x128xf32> to vector<128xf32>
    %163 = vector.shape_cast %162 : vector<128xf32> to vector<1x128xf32>
    %cst_78 = arith.constant 1.562500e-02 : f32
    %164 = vector.broadcast %cst_78 : f32 to vector<1x128xf32>
    %165 = arith.mulf %163, %164 : vector<1x128xf32>
    %166 = arith.mulf %160, %160 : vector<1x128xf32>
    %167 = arith.subf %165, %166 : vector<1x128xf32>
    %168 = vector.broadcast %160 : vector<1x128xf32> to vector<64x128xf32>
    %169 = arith.subf %156, %168 : vector<64x128xf32>
    %cst_79 = arith.constant 9.99999974E-6 : f32
    %170 = vector.broadcast %cst_79 : f32 to vector<1x128xf32>
    %171 = arith.addf %167, %170 : vector<1x128xf32>
    %172 = math.rsqrt %171 : vector<1x128xf32>
    %173 = vector.broadcast %172 : vector<1x128xf32> to vector<64x128xf32>
    %174 = arith.mulf %169, %173 : vector<64x128xf32>
    %c0_80 = arith.constant 0 : index
    %c256 = arith.constant 256 : index
    %175 = vector.load %arg7[%c0_80, %c256] : memref<1x512xf32, #tpu.memory_space<vmem>>, vector<1x128xf32>
    %176 = vector.broadcast %175 : vector<1x128xf32> to vector<64x128xf32>
    %177 = arith.mulf %174, %176 : vector<64x128xf32>
    %c0_81 = arith.constant 0 : index
    %c256_82 = arith.constant 256 : index
    %178 = vector.load %arg8[%c0_81, %c256_82] : memref<1x512xf32, #tpu.memory_space<vmem>>, vector<1x128xf32>
    %179 = vector.broadcast %178 : vector<1x128xf32> to vector<64x128xf32>
    %180 = arith.addf %177, %179 : vector<64x128xf32>
    %c0_83 = arith.constant 0 : index
    %c256_84 = arith.constant 256 : index
    %181 = vector.load %arg9[%c0_83, %c256_84] : memref<64x512xf32, #tpu.memory_space<vmem>>, vector<64x128xf32>
    tpu.vector_store %arg9[%c0_83, %c256_84], %180 {strides = array<i32>} : memref<64x512xf32, #tpu.memory_space<vmem>>, vector<64x128xf32>,
    %182 = vector.extract_strided_slice %35 {offsets = [0, 384], sizes = [64, 128], strides = [1, 1]} : vector<64x512xbf16> to vector<64x128xbf16>
    %183 = vector.extract_strided_slice %39 {offsets = [0, 384], sizes = [64, 128], strides = [1, 1]} : vector<64x512xbf16> to vector<64x128xbf16>
    %184 = vector.extract_strided_slice %43 {offsets = [0, 384], sizes = [64, 128], strides = [1, 1]} : vector<64x512xbf16> to vector<64x128xbf16>
    %185 = vector.extract_strided_slice %47 {offsets = [0, 384], sizes = [64, 128], strides = [1, 1]} : vector<64x512xbf16> to vector<64x128xbf16>
    %186 = vector.extract_strided_slice %51 {offsets = [0, 384], sizes = [64, 128], strides = [1, 1]} : vector<64x512xbf16> to vector<64x128xbf16>
    %187 = vector.extract_strided_slice %55 {offsets = [0, 384], sizes = [64, 128], strides = [1, 1]} : vector<64x512xbf16> to vector<64x128xbf16>
    %188 = vector.extract_strided_slice %59 {offsets = [0, 384], sizes = [64, 128], strides = [1, 1]} : vector<64x512xbf16> to vector<64x128xbf16>
    %189 = vector.extract_strided_slice %63 {offsets = [0, 384], sizes = [64, 128], strides = [1, 1]} : vector<64x512xbf16> to vector<64x128xbf16>
    %190 = vector.extract_strided_slice %67 {offsets = [0, 384], sizes = [64, 128], strides = [1, 1]} : vector<64x512xbf16> to vector<64x128xbf16>
    %191 = tpu.concatenate %182, %183, %184, %185, %186, %187, %188, %189, %190 in 1 : vector<64x128xbf16>, vector<64x128xbf16>, vector<64x128xbf16>, vector<64x128xbf16>, vector<64x128xbf16>, vector<64x128xbf16>, vector<64x128xbf16>, vector<64x128xbf16>, vector<64x128xbf16> -> vector<64x1152xbf16>
    %c3_85 = arith.constant 3 : index
    %c0_86 = arith.constant 0 : index
    %c0_87 = arith.constant 0 : index
    %192 = vector.load %arg6[%c3_85, %c0_86, %c0_87] : memref<4x1152x128xbf16, #tpu.memory_space<vmem>>, vector<1x1152x128xbf16>
    %193 = vector.shape_cast %192 : vector<1x1152x128xbf16> to vector<1152x128xbf16>
    %cst_88 = arith.constant dense<0.000000e+00> : vector<64x128xf32>
    %194 = tpu.matmul %191, %193, %cst_88 {dimension_numbers = #tpu.dot_dimension_numbers<[1], [0], [0], [1], [0, 0, 1, 1], [], []>} : vector<64x1152xbf16>, vector<1152x128xbf16>, vector<64x128xf32> -> vector<64x128xf32>
    %cst_89 = arith.constant dense<0.000000e+00> : vector<128xf32>
    %195 = vector.multi_reduction <add>, %194, %cst_89 [0] : vector<64x128xf32> to vector<128xf32>
    %196 = vector.shape_cast %195 : vector<128xf32> to vector<1x128xf32>
    %cst_90 = arith.constant 1.562500e-02 : f32
    %197 = vector.broadcast %cst_90 : f32 to vector<1x128xf32>
    %198 = arith.mulf %196, %197 : vector<1x128xf32>
    %199 = arith.mulf %194, %194 : vector<64x128xf32>
    %cst_91 = arith.constant dense<0.000000e+00> : vector<128xf32>
    %200 = vector.multi_reduction <add>, %199, %cst_91 [0] : vector<64x128xf32> to vector<128xf32>
    %201 = vector.shape_cast %200 : vector<128xf32> to vector<1x128xf32>
    %cst_92 = arith.constant 1.562500e-02 : f32
    %202 = vector.broadcast %cst_92 : f32 to vector<1x128xf32>
    %203 = arith.mulf %201, %202 : vector<1x128xf32>
    %204 = arith.mulf %198, %198 : vector<1x128xf32>
    %205 = arith.subf %203, %204 : vector<1x128xf32>
    %206 = vector.broadcast %198 : vector<1x128xf32> to vector<64x128xf32>
    %207 = arith.subf %194, %206 : vector<64x128xf32>
    %cst_93 = arith.constant 9.99999974E-6 : f32
    %208 = vector.broadcast %cst_93 : f32 to vector<1x128xf32>
    %209 = arith.addf %205, %208 : vector<1x128xf32>
    %210 = math.rsqrt %209 : vector<1x128xf32>
    %211 = vector.broadcast %210 : vector<1x128xf32> to vector<64x128xf32>
    %212 = arith.mulf %207, %211 : vector<64x128xf32>
    %c0_94 = arith.constant 0 : index
    %c384 = arith.constant 384 : index
    %213 = vector.load %arg7[%c0_94, %c384] : memref<1x512xf32, #tpu.memory_space<vmem>>, vector<1x128xf32>
    %214 = vector.broadcast %213 : vector<1x128xf32> to vector<64x128xf32>
    %215 = arith.mulf %212, %214 : vector<64x128xf32>
    %c0_95 = arith.constant 0 : index
    %c384_96 = arith.constant 384 : index
    %216 = vector.load %arg8[%c0_95, %c384_96] : memref<1x512xf32, #tpu.memory_space<vmem>>, vector<1x128xf32>
    %217 = vector.broadcast %216 : vector<1x128xf32> to vector<64x128xf32>
    %218 = arith.addf %215, %217 : vector<64x128xf32>
    %c0_97 = arith.constant 0 : index
    %c384_98 = arith.constant 384 : index
    %219 = vector.load %arg9[%c0_97, %c384_98] : memref<64x512xf32, #tpu.memory_space<vmem>>, vector<64x128xf32>
    tpu.vector_store %arg9[%c0_97, %c384_98], %218 {strides = array<i32>} : memref<64x512xf32, #tpu.memory_space<vmem>>, vector<64x128xf32>,
    return
  }
  func.func @transform_0(%arg0: i32) -> (i32, i32) {
    %c0_i32 = arith.constant 0 : i32
    %c0_i32_0 = arith.constant 0 : i32
    %c0_i32_1 = arith.constant 0 : i32
    return %c0_i32, %c0_i32_0 : i32, i32
  }
  func.func @transform_1(%arg0: i32) -> (i32, i32) {
    %c0_i32 = arith.constant 0 : i32
    %c0_i32_0 = arith.constant 0 : i32
    return %c0_i32, %arg0 : i32, i32
  }
  func.func @transform_2(%arg0: i32) -> (i32, i32) {
    %c0_i32 = arith.constant 0 : i32
    %c0_i32_0 = arith.constant 0 : i32
    return %c0_i32, %arg0 : i32, i32
  }
  func.func @transform_3(%arg0: i32) -> (i32, i32) {
    %c0_i32 = arith.constant 0 : i32
    %c0_i32_0 = arith.constant 0 : i32
    return %c0_i32, %arg0 : i32, i32
  }
  func.func @transform_4(%arg0: i32) -> (i32, i32, i32) {
    %c0_i32 = arith.constant 0 : i32
    %c0_i32_0 = arith.constant 0 : i32
    %c0_i32_1 = arith.constant 0 : i32
    %c0_i32_2 = arith.constant 0 : i32
    return %c0_i32, %c0_i32_0, %c0_i32_1 : i32, i32, i32
  }
  func.func @transform_5(%arg0: i32) -> (i32, i32, i32) {
    %c0_i32 = arith.constant 0 : i32
    %c0_i32_0 = arith.constant 0 : i32
    %c0_i32_1 = arith.constant 0 : i32
    return %arg0, %c0_i32, %c0_i32_0 : i32, i32, i32
  }
  func.func @transform_6(%arg0: i32) -> (i32, i32) {
    %c0_i32 = arith.constant 0 : i32
    %c0_i32_0 = arith.constant 0 : i32
    return %c0_i32, %arg0 : i32, i32
  }
  func.func @transform_7(%arg0: i32) -> (i32, i32) {
    %c0_i32 = arith.constant 0 : i32
    %c0_i32_0 = arith.constant 0 : i32
    return %c0_i32, %arg0 : i32, i32
  }
  func.func @transform_8(%arg0: i32) -> (i32, i32) {
    %c0_i32 = arith.constant 0 : i32
    %c0_i32_0 = arith.constant 0 : i32
    return %c0_i32, %arg0 : i32, i32
  }
}

</mosaic_0001>

<llo_original>
// kernel: forward.1
$region0: #{forward.1}
  #allocation0 [shape = 'u32[]', space=smem, size = 0x4, offset = 0x4, fixed_abs, tag = 'smem constant byte address 0x4 - core index']
  #allocation1 [shape = 'u32[144,128]{1,0:T(1,128)}', space=vmem, size = 0x12000, scoped, tag = 'internal scratch']
  %s0 = inlined_call_operand.vmem [shape: bf16[64,1024], index: 0, kind: input, shape index: {}]
  %s1 = inlined_call_operand.vmem [shape: bf16[1024,1024], index: 1, kind: input, shape index: {}]
  %s2 = inlined_call_operand.vmem [shape: f32[1,1024], index: 2, kind: input, shape index: {}]
  %s3 = inlined_call_operand.vmem [shape: f32[1,1024], index: 3, kind: input, shape index: {}]
  %s4 = inlined_call_operand.vmem [shape: bf16[9,64,64], index: 4, kind: input, shape index: {}]
  %s5 = inlined_call_operand.vmem [shape: bf16[8,1152,128], index: 5, kind: input, shape index: {}]
  %s6 = inlined_call_operand.vmem [shape: f32[1,1024], index: 6, kind: input, shape index: {}]
  %s7 = inlined_call_operand.vmem [shape: f32[1,1024], index: 7, kind: input, shape index: {}]
  %s8 = inlined_call_operand.hbm [shape: f32[64,1024], index: 8, kind: output, shape index: {}]
  %s9 = sld [smem:[#allocation0]]
  $region88: #{forward.1} parent=0
    _
  %s11 = ssub.s32 1, %s9
  %s12 = scalar_select 0, %s11, %s9
  $region1: #{forward.1} parent=0
    #allocation2 [shape = 'u8[2097152]{0}', space=vmem, size = 0x200000, scoped, tag = 'input window, operand 1']
    #allocation3 [shape = 'u8[262144]{0}', space=vmem, size = 0x40000, scoped, tag = 'output window, operand 0']
    #allocation4 [shape = 's32[2]{0}', space=sflag, size = 0x8, scoped, tag = 'scoped memory for forward.1']
    %13 = vsyncpa [#allocation4], 0
    %s14 = scalar_lea.sflag [#allocation4], 1
    %15 = vsyncpa %s14, 0
    loop: start=0, step=1, limit=4
    $region2: #{forward.1} parent=1 // loop_pre_header
      _
    $region3: #{forward.1} parent=1 // loop_header
      %s17 = sphi 0, %s21
      %p18 = scmp.ge.s32.totalorder %s17, 4
      %s25 = sphi 0, %s25
      %s27 = sphi 0, %s25
      %s28 = sphi 0, %s27
      %s42 = sphi 0, %s28
      %s48 = sphi 0, %s50
      %s51 = sphi 0, %s48
      %s52 = sphi 0, %s51
      %s68 = sphi 0, %s52
      %s74 = sphi 0, %s76
      %s77 = sphi 0, %s74
      %s78 = sphi 0, %s77
      %s94 = sphi 0, %s78
      %s100 = sphi 0, %s102
      %s103 = sphi 0, %s100
      %s104 = sphi 0, %s103
      %s120 = sphi 0, %s104
      %s124 = sphi 0, %s124
      %s126 = sphi 0, %s124
      %s127 = sphi 0, %s126
      %s141 = sphi 0, %s127
      %s147 = sphi 0, %s149
      %s150 = sphi 0, %s147
      %s151 = sphi 0, %s150
      %s167 = sphi 0, %s151
      %s173 = sphi 0, %s175
      %s176 = sphi 0, %s173
      %s177 = sphi 0, %s176
      %s193 = sphi 0, %s177
      %s199 = sphi 0, %s201
      %s202 = sphi 0, %s199
      %s203 = sphi 0, %s202
      %s219 = sphi 0, %s203
      %s225 = sphi 0, %s227
      %s228 = sphi 0, %s225
      %s229 = sphi 0, %s228
      %s245 = sphi 0, %s229
    $region4: #{forward.1} parent=1 // loop_header_branch
      %20 = sbr.rel (%p18) target = $region8
    $region5: #{forward.1} parent=1 // loop_body
      %s22 = ssub.s32 %s17, 1
      %s23 = ssub.s32 %s17, 2
      %s24 = sadd.s32 %s17, 1
      %s26 = sadd.s32 %s25, 1
      %p29 = scmp.eq.s32.totalorder %s17, 1
      %p30 = scmp.ne.s32.totalorder %s25, %s27
      %p31 = scmp.eq.s32.totalorder %s17, 0
      %p32 = por %p30, %p31
      %p33 = scmp.ne.s32.totalorder %s25, %s27
      %p34 = scmp.eq.s32.totalorder %s22, 1
      %p35 = por %p33, %p34
      %p36 = scmp.ne.s32.totalorder %s27, %s28
      %p37 = scmp.eq.s32.totalorder %s22, 0
      %p38 = por %p36, %p37
      %p39 = scmp.ne.s32.totalorder %s27, %s28
      %p40 = scmp.eq.s32.totalorder %s23, 1
      %p41 = por %p39, %p40
      %p43 = scmp.ne.s32.totalorder %s28, %s42
      %p44 = scmp.eq.s32.totalorder %s23, 0
      %p45 = por %p43, %p44
      %s46 = ssub.s32 %s17, %s24
      %p47 = scmp.eq.s32.totalorder %s46, 0
      %s49 = sadd.s32 %s48, 1
      %s50 = scalar_select %p47, %s48, %s49
      %p53 = pneg %p47
      %p54 = scmp.eq.s32.totalorder %s17, 1
      %p55 = por %p53, %p54
      %p56 = scmp.ne.s32.totalorder %s48, %s51
      %p57 = scmp.eq.s32.totalorder %s17, 0
      %p58 = por %p56, %p57
      %p59 = scmp.ne.s32.totalorder %s48, %s51
      %p60 = scmp.eq.s32.totalorder %s22, 1
      %p61 = por %p59, %p60
      %p62 = scmp.ne.s32.totalorder %s51, %s52
      %p63 = scmp.eq.s32.totalorder %s22, 0
      %p64 = por %p62, %p63
      %p65 = scmp.ne.s32.totalorder %s51, %s52
      %p66 = scmp.eq.s32.totalorder %s23, 1
      %p67 = por %p65, %p66
      %p69 = scmp.ne.s32.totalorder %s52, %s68
      %p70 = scmp.eq.s32.totalorder %s23, 0
      %p71 = por %p69, %p70
      %s72 = ssub.s32 %s17, %s24
      %p73 = scmp.eq.s32.totalorder %s72, 0
      %s75 = sadd.s32 %s74, 1
      %s76 = scalar_select %p73, %s74, %s75
      %p79 = pneg %p73
      %p80 = scmp.eq.s32.totalorder %s17, 1
      %p81 = por %p79, %p80
      %p82 = scmp.ne.s32.totalorder %s74, %s77
      %p83 = scmp.eq.s32.totalorder %s17, 0
      %p84 = por %p82, %p83
      %p85 = scmp.ne.s32.totalorder %s74, %s77
      %p86 = scmp.eq.s32.totalorder %s22, 1
      %p87 = por %p85, %p86
      %p88 = scmp.ne.s32.totalorder %s77, %s78
      %p89 = scmp.eq.s32.totalorder %s22, 0
      %p90 = por %p88, %p89
      %p91 = scmp.ne.s32.totalorder %s77, %s78
      %p92 = scmp.eq.s32.totalorder %s23, 1
      %p93 = por %p91, %p92
      %p95 = scmp.ne.s32.totalorder %s78, %s94
      %p96 = scmp.eq.s32.totalorder %s23, 0
      %p97 = por %p95, %p96
      %s98 = ssub.s32 %s17, %s24
      %p99 = scmp.eq.s32.totalorder %s98, 0
      %s101 = sadd.s32 %s100, 1
      %s102 = scalar_select %p99, %s100, %s101
      %p105 = pneg %p99
      %p106 = scmp.eq.s32.totalorder %s17, 1
      %p107 = por %p105, %p106
      %p108 = scmp.ne.s32.totalorder %s100, %s103
      %p109 = scmp.eq.s32.totalorder %s17, 0
      %p110 = por %p108, %p109
      %p111 = scmp.ne.s32.totalorder %s100, %s103
      %p112 = scmp.eq.s32.totalorder %s22, 1
      %p113 = por %p111, %p112
      %p114 = scmp.ne.s32.totalorder %s103, %s104
      %p115 = scmp.eq.s32.totalorder %s22, 0
      %p116 = por %p114, %p115
      %p117 = scmp.ne.s32.totalorder %s103, %s104
      %p118 = scmp.eq.s32.totalorder %s23, 1
      %p119 = por %p117, %p118
      %p121 = scmp.ne.s32.totalorder %s104, %s120
      %p122 = scmp.eq.s32.totalorder %s23, 0
      %p123 = por %p121, %p122
      %s125 = sadd.s32 %s124, 1
      %p128 = scmp.eq.s32.totalorder %s17, 1
      %p129 = scmp.ne.s32.totalorder %s124, %s126
      %p130 = scmp.eq.s32.totalorder %s17, 0
      %p131 = por %p129, %p130
      %p132 = scmp.ne.s32.totalorder %s124, %s126
      %p133 = scmp.eq.s32.totalorder %s22, 1
      %p134 = por %p132, %p133
      %p135 = scmp.ne.s32.totalorder %s126, %s127
      %p136 = scmp.eq.s32.totalorder %s22, 0
      %p137 = por %p135, %p136
      %p138 = scmp.ne.s32.totalorder %s126, %s127
      %p139 = scmp.eq.s32.totalorder %s23, 1
      %p140 = por %p138, %p139
      %p142 = scmp.ne.s32.totalorder %s127, %s141
      %p143 = scmp.eq.s32.totalorder %s23, 0
      %p144 = por %p142, %p143
      %s145 = ssub.s32 %s17, %s24
      %p146 = scmp.eq.s32.totalorder %s145, 0
      %s148 = sadd.s32 %s147, 1
      %s149 = scalar_select %p146, %s147, %s148
      %p152 = pneg %p146
      %p153 = scmp.eq.s32.totalorder %s17, 1
      %p154 = por %p152, %p153
      %p155 = scmp.ne.s32.totalorder %s147, %s150
      %p156 = scmp.eq.s32.totalorder %s17, 0
      %p157 = por %p155, %p156
      %p158 = scmp.ne.s32.totalorder %s147, %s150
      %p159 = scmp.eq.s32.totalorder %s22, 1
      %p160 = por %p158, %p159
      %p161 = scmp.ne.s32.totalorder %s150, %s151
      %p162 = scmp.eq.s32.totalorder %s22, 0
      %p163 = por %p161, %p162
      %p164 = scmp.ne.s32.totalorder %s150, %s151
      %p165 = scmp.eq.s32.totalorder %s23, 1
      %p166 = por %p164, %p165
      %p168 = scmp.ne.s32.totalorder %s151, %s167
      %p169 = scmp.eq.s32.totalorder %s23, 0
      %p170 = por %p168, %p169
      %s171 = ssub.s32 %s17, %s24
      %p172 = scmp.eq.s32.totalorder %s171, 0
      %s174 = sadd.s32 %s173, 1
      %s175 = scalar_select %p172, %s173, %s174
      %p178 = pneg %p172
      %p179 = scmp.eq.s32.totalorder %s17, 1
      %p180 = por %p178, %p179
      %p181 = scmp.ne.s32.totalorder %s173, %s176
      %p182 = scmp.eq.s32.totalorder %s17, 0
      %p183 = por %p181, %p182
      %p184 = scmp.ne.s32.totalorder %s173, %s176
      %p185 = scmp.eq.s32.totalorder %s22, 1
      %p186 = por %p184, %p185
      %p187 = scmp.ne.s32.totalorder %s176, %s177
      %p188 = scmp.eq.s32.totalorder %s22, 0
      %p189 = por %p187, %p188
      %p190 = scmp.ne.s32.totalorder %s176, %s177
      %p191 = scmp.eq.s32.totalorder %s23, 1
      %p192 = por %p190, %p191
      %p194 = scmp.ne.s32.totalorder %s177, %s193
      %p195 = scmp.eq.s32.totalorder %s23, 0
      %p196 = por %p194, %p195
      %s197 = ssub.s32 %s17, %s24
      %p198 = scmp.eq.s32.totalorder %s197, 0
      %s200 = sadd.s32 %s199, 1
      %s201 = scalar_select %p198, %s199, %s200
      %p204 = pneg %p198
      %p205 = scmp.eq.s32.totalorder %s17, 1
      %p206 = por %p204, %p205
      %p207 = scmp.ne.s32.totalorder %s199, %s202
      %p208 = scmp.eq.s32.totalorder %s17, 0
      %p209 = por %p207, %p208
      %p210 = scmp.ne.s32.totalorder %s199, %s202
      %p211 = scmp.eq.s32.totalorder %s22, 1
      %p212 = por %p210, %p211
      %p213 = scmp.ne.s32.totalorder %s202, %s203
      %p214 = scmp.eq.s32.totalorder %s22, 0
      %p215 = por %p213, %p214
      %p216 = scmp.ne.s32.totalorder %s202, %s203
      %p217 = scmp.eq.s32.totalorder %s23, 1
      %p218 = por %p216, %p217
      %p220 = scmp.ne.s32.totalorder %s203, %s219
      %p221 = scmp.eq.s32.totalorder %s23, 0
      %p222 = por %p220, %p221
      %s223 = ssub.s32 %s17, %s24
      %p224 = scmp.eq.s32.totalorder %s223, 0
      %s226 = sadd.s32 %s225, 1
      %s227 = scalar_select %p224, %s225, %s226
      %p230 = pneg %p224
      %p231 = scmp.eq.s32.totalorder %s17, 1
      %p232 = por %p230, %p231
      %p233 = scmp.ne.s32.totalorder %s225, %s228
      %p234 = scmp.eq.s32.totalorder %s17, 0
      %p235 = por %p233, %p234
      %p236 = scmp.ne.s32.totalorder %s225, %s228
      %p237 = scmp.eq.s32.totalorder %s22, 1
      %p238 = por %p236, %p237
      %p239 = scmp.ne.s32.totalorder %s228, %s229
      %p240 = scmp.eq.s32.totalorder %s22, 0
      %p241 = por %p239, %p240
      %p242 = scmp.ne.s32.totalorder %s228, %s229
      %p243 = scmp.eq.s32.totalorder %s23, 1
      %p244 = por %p242, %p243
      %p246 = scmp.ne.s32.totalorder %s229, %s245
      %p247 = scmp.eq.s32.totalorder %s23, 0
      %p248 = por %p246, %p247
      %p249 = scmp.le.s32.totalorder 1, %s17
      %p250 = scmp.lt.s32.totalorder %s17, 3
      %p251 = pnand %p249, %p250
      %p252 = pneg %p251
      // Predicated region
      $region9: #{forward.1} parent=5 // pred_check
        _
      $region10: #{forward.1} parent=5 // pred_check_branch
        %254 = sbr.rel (%p251) target = $region12
      $region11: #{forward.1} parent=5 // pred_region
        %s255 = ssub.s32 %s17, 1
        // Predicated region
        $region13: #{forward.1} parent=11 // pred_check
          %p256 = pneg %p38
        $region14: #{forward.1} parent=11 // pred_check_branch
          %258 = sbr.rel (%p256) target = $region16
        $region15: #{forward.1} parent=11 // pred_region
          _
        $region16: #{forward.1} parent=11 // pred_fallthru
          _
        // Predicated region
        $region17: #{forward.1} parent=11 // pred_check
          %p259 = pneg %p137
        $region18: #{forward.1} parent=11 // pred_check_branch
          %261 = sbr.rel (%p259) target = $region20
        $region19: #{forward.1} parent=11 // pred_region
          _
        $region20: #{forward.1} parent=11 // pred_fallthru
          _
      $region12: #{forward.1} parent=5 // pred_fallthru
        _
      %p262 = scmp.lt.s32.totalorder %s17, 2
      // Predicated region
      $region21: #{forward.1} parent=5 // pred_check
        %p263 = pneg %p262
      $region22: #{forward.1} parent=5 // pred_check_branch
        %265 = sbr.rel (%p263) target = $region24
      $region23: #{forward.1} parent=5 // pred_region
        // Predicated region
        $region25: #{forward.1} parent=23 // pred_check
          %p266 = pneg %p58
        $region26: #{forward.1} parent=23 // pred_check_branch
          %268 = sbr.rel (%p266) target = $region28
        $region27: #{forward.1} parent=23 // pred_region
          %s269 = sand.u32 %s48, 1
          %s270 = sand.u32 %s48, 1
          %s271 = smul.addr %s270, 2048
          %s272 = scalar_lea.vmem [#allocation2], %s271
          %s273 = smul.u32 4, %s17
          %s274 = smul.addr %s273, 4
          %s275 = scalar_lea.vmem %s1, %s274
          // Predicated region
          $region29: #{forward.1} parent=27 // pred_check
            _
          $region30: #{forward.1} parent=27 // pred_check_branch
            %277 = sbr.rel (0) target = $region32
          $region31: #{forward.1} parent=27 // pred_region
            // Predicated region
            $region33: #{forward.1} parent=31 // pred_check
              _
            $region34: #{forward.1} parent=31 // pred_check_branch
              %279 = sbr.rel (0) target = $region36
            $region35: #{forward.1} parent=31 // pred_region
              loop: start=0, step=1, limit=1
              $region37: #{forward.1} parent=35 // loop_pre_header
                _
              $region38: #{forward.1} parent=35 // loop_header
                %s281 = sphi 0, %s285
                %p282 = scmp.ge.s32.totalorder %s281, 1
                %s286 = sphi %s275, %s275
                %s287 = sphi %s272, %s272
              $region39: #{forward.1} parent=35 // loop_header_branch
                %284 = sbr.rel (%p282) target = $region43
              $region40: #{forward.1} parent=35 // loop_body
                %v288 = vld [vmem:[%s286] sm:$0xff]
                %289 = vst [vmem:[%s287] sm:$0xff] %v288
                %v290 = vld [vmem:[%s286 + $0x8] sm:$0xff]
                %291 = vst [vmem:[%s287 + $0x8] sm:$0xff] %v290
                %v292 = vld [vmem:[%s286 + $0x20] sm:$0xff]
                %293 = vst [vmem:[%s287 + $0x10] sm:$0xff] %v292
                %v294 = vld [vmem:[%s286 + $0x28] sm:$0xff]
                %295 = vst [vmem:[%s287 + $0x18] sm:$0xff] %v294
                %v296 = vld [vmem:[%s286 + $0x40] sm:$0xff]
                %297 = vst [vmem:[%s287 + $0x20] sm:$0xff] %v296
                %v298 = vld [vmem:[%s286 + $0x48] sm:$0xff]
                %299 = vst [vmem:[%s287 + $0x28] sm:$0xff] %v298
                %v300 = vld [vmem:[%s286 + $0x60] sm:$0xff]
                %301 = vst [vmem:[%s287 + $0x30] sm:$0xff] %v300
                %v302 = vld [vmem:[%s286 + $0x68] sm:$0xff]
                %303 = vst [vmem:[%s287 + $0x38] sm:$0xff] %v302
                %v304 = vld [vmem:[%s286 + $0x80] sm:$0xff]
                %305 = vst [vmem:[%s287 + $0x40] sm:$0xff] %v304
                %v306 = vld [vmem:[%s286 + $0x88] sm:$0xff]
                %307 = vst [vmem:[%s287 + $0x48] sm:$0xff] %v306
                %v308 = vld [vmem:[%s286 + $0xa0] sm:$0xff]
                %309 = vst [vmem:[%s287 + $0x50] sm:$0xff] %v308
                %v310 = vld [vmem:[%s286 + $0xa8] sm:$0xff]
                %311 = vst [vmem:[%s287 + $0x58] sm:$0xff] %v310
                %v312 = vld [vmem:[%s286 + $0xc0] sm:$0xff]
                %313 = vst [vmem:[%s287 + $0x60] sm:$0xff] %v312
                %v314 = vld [vmem:[%s286 + $0xc8] sm:$0xff]
                %315 = vst [vmem:[%s287 + $0x68] sm:$0xff] %v314
                %v316 = vld [vmem:[%s286 + $0xe0] sm:$0xff]
                %317 = vst [vmem:[%s287 + $0x70] sm:$0xff] %v316
                %v318 = vld [vmem:[%s286 + $0xe8] sm:$0xff]
                %319 = vst [vmem:[%s287 + $0x78] sm:$0xff] %v318
                %v320 = vld [vmem:[%s286 + $0x100] sm:$0xff]
                %321 = vst [vmem:[%s287 + $0x80] sm:$0xff] %v320
                %v322 = vld [vmem:[%s286 + $0x108] sm:$0xff]
                %323 = vst [vmem:[%s287 + $0x88] sm:$0xff] %v322
                %v324 = vld [vmem:[%s286 + $0x120] sm:$0xff]
                %325 = vst [vmem:[%s287 + $0x90] sm:$0xff] %v324
                %v326 = vld [vmem:[%s286 + $0x128] sm:$0xff]
                %327 = vst [vmem:[%s287 + $0x98] sm:$0xff] %v326
                %v328 = vld [vmem:[%s286 + $0x140] sm:$0xff]
                %329 = vst [vmem:[%s287 + $0xa0] sm:$0xff] %v328
                %v330 = vld [vmem:[%s286 + $0x148] sm:$0xff]
                %331 = vst [vmem:[%s287 + $0xa8] sm:$0xff] %v330
                %v332 = vld [vmem:[%s286 + $0x160] sm:$0xff]
                %333 = vst [vmem:[%s287 + $0xb0] sm:$0xff] %v332
                %v334 = vld [vmem:[%s286 + $0x168] sm:$0xff]
                %335 = vst [vmem:[%s287 + $0xb8] sm:$0xff] %v334
                %v336 = vld [vmem:[%s286 + $0x180] sm:$0xff]
                %337 = vst [vmem:[%s287 + $0xc0] sm:$0xff] %v336
                %v338 = vld [vmem:[%s286 + $0x188] sm:$0xff]
                %339 = vst [vmem:[%s287 + $0xc8] sm:$0xff] %v338
                %v340 = vld [vmem:[%s286 + $0x1a0] sm:$0xff]
                %341 = vst [vmem:[%s287 + $0xd0] sm:$0xff] %v340
                %v342 = vld [vmem:[%s286 + $0x1a8] sm:$0xff]
                %343 = vst [vmem:[%s287 + $0xd8] sm:$0xff] %v342
                %v344 = vld [vmem:[%s286 + $0x1c0] sm:$0xff]
                %345 = vst [vmem:[%s287 + $0xe0] sm:$0xff] %v344
                %v346 = vld [vmem:[%s286 + $0x1c8] sm:$0xff]
                %347 = vst [vmem:[%s287 + $0xe8] sm:$0xff] %v346
                %v348 = vld [vmem:[%s286 + $0x1e0] sm:$0xff]
                %349 = vst [vmem:[%s287 + $0xf0] sm:$0xff] %v348
                %v350 = vld [vmem:[%s286 + $0x1e8] sm:$0xff]
                %351 = vst [vmem:[%s287 + $0xf8] sm:$0xff] %v350
                %v352 = vld [vmem:[%s286 + $0x200] sm:$0xff]
                %353 = vst [vmem:[%s287 + $0x100] sm:$0xff] %v352
                %v354 = vld [vmem:[%s286 + $0x208] sm:$0xff]
                %355 = vst [vmem:[%s287 + $0x108] sm:$0xff] %v354
                %v356 = vld [vmem:[%s286 + $0x220] sm:$0xff]
                %357 = vst [vmem:[%s287 + $0x110] sm:$0xff] %v356
                %v358 = vld [vmem:[%s286 + $0x228] sm:$0xff]
                %359 = vst [vmem:[%s287 + $0x118] sm:$0xff] %v358
                %v360 = vld [vmem:[%s286 + $0x240] sm:$0xff]
                %361 = vst [vmem:[%s287 + $0x120] sm:$0xff] %v360
                %v362 = vld [vmem:[%s286 + $0x248] sm:$0xff]
                %363 = vst [vmem:[%s287 + $0x128] sm:$0xff] %v362
                %v364 = vld [vmem:[%s286 + $0x260] sm:$0xff]
                %365 = vst [vmem:[%s287 + $0x130] sm:$0xff] %v364
                %v366 = vld [vmem:[%s286 + $0x268] sm:$0xff]
                %367 = vst [vmem:[%s287 + $0x138] sm:$0xff] %v366
                %v368 = vld [vmem:[%s286 + $0x280] sm:$0xff]
                %369 = vst [vmem:[%s287 + $0x140] sm:$0xff] %v368
                %v370 = vld [vmem:[%s286 + $0x288] sm:$0xff]
                %371 = vst [vmem:[%s287 + $0x148] sm:$0xff] %v370
                %v372 = vld [vmem:[%s286 + $0x2a0] sm:$0xff]
                %373 = vst [vmem:[%s287 + $0x150] sm:$0xff] %v372
                %v374 = vld [vmem:[%s286 + $0x2a8] sm:$0xff]
                %375 = vst [vmem:[%s287 + $0x158] sm:$0xff] %v374
                %v376 = vld [vmem:[%s286 + $0x2c0] sm:$0xff]
                %377 = vst [vmem:[%s287 + $0x160] sm:$0xff] %v376
                %v378 = vld [vmem:[%s286 + $0x2c8] sm:$0xff]
                %379 = vst [vmem:[%s287 + $0x168] sm:$0xff] %v378
                %v380 = vld [vmem:[%s286 + $0x2e0] sm:$0xff]
                %381 = vst [vmem:[%s287 + $0x170] sm:$0xff] %v380
                %v382 = vld [vmem:[%s286 + $0x2e8] sm:$0xff]
                %383 = vst [vmem:[%s287 + $0x178] sm:$0xff] %v382
                %v384 = vld [vmem:[%s286 + $0x300] sm:$0xff]
                %385 = vst [vmem:[%s287 + $0x180] sm:$0xff] %v384
                %v386 = vld [vmem:[%s286 + $0x308] sm:$0xff]
                %387 = vst [vmem:[%s287 + $0x188] sm:$0xff] %v386
                %v388 = vld [vmem:[%s286 + $0x320] sm:$0xff]
                %389 = vst [vmem:[%s287 + $0x190] sm:$0xff] %v388
                %v390 = vld [vmem:[%s286 + $0x328] sm:$0xff]
                %391 = vst [vmem:[%s287 + $0x198] sm:$0xff] %v390
                %v392 = vld [vmem:[%s286 + $0x340] sm:$0xff]
                %393 = vst [vmem:[%s287 + $0x1a0] sm:$0xff] %v392
                %v394 = vld [vmem:[%s286 + $0x348] sm:$0xff]
                %395 = vst [vmem:[%s287 + $0x1a8] sm:$0xff] %v394
                %v396 = vld [vmem:[%s286 + $0x360] sm:$0xff]
                %397 = vst [vmem:[%s287 + $0x1b0] sm:$0xff] %v396
                %v398 = vld [vmem:[%s286 + $0x368] sm:$0xff]
                %399 = vst [vmem:[%s287 + $0x1b8] sm:$0xff] %v398
                %v400 = vld [vmem:[%s286 + $0x380] sm:$0xff]
                %401 = vst [vmem:[%s287 + $0x1c0] sm:$0xff] %v400
                %v402 = vld [vmem:[%s286 + $0x388] sm:$0xff]
                %403 = vst [vmem:[%s287 + $0x1c8] sm:$0xff] %v402
                %v404 = vld [vmem:[%s286 + $0x3a0] sm:$0xff]
                %405 = vst [vmem:[%s287 + $0x1d0] sm:$0xff] %v404
                %v406 = vld [vmem:[%s286 + $0x3a8] sm:$0xff]
                %407 = vst [vmem:[%s287 + $0x1d8] sm:$0xff] %v406
                %v408 = vld [vmem:[%s286 + $0x3c0] sm:$0xff]
                %409 = vst [vmem:[%s287 + $0x1e0] sm:$0xff] %v408
                %v410 = vld [vmem:[%s286 + $0x3c8] sm:$0xff]
                %411 = vst [vmem:[%s287 + $0x1e8] sm:$0xff] %v410
                %v412 = vld [vmem:[%s286 + $0x3e0] sm:$0xff]
                %413 = vst [vmem:[%s287 + $0x1f0] sm:$0xff] %v412
                %v414 = vld [vmem:[%s286 + $0x3e8] sm:$0xff]
                %415 = vst [vmem:[%s287 + $0x1f8] sm:$0xff] %v414
                %v416 = vld [vmem:[%s286 + $0x400] sm:$0xff]
                %417 = vst [vmem:[%s287 + $0x200] sm:$0xff] %v416
                %v418 = vld [vmem:[%s286 + $0x408] sm:$0xff]
                %419 = vst [vmem:[%s287 + $0x208] sm:$0xff] %v418
                %v420 = vld [vmem:[%s286 + $0x420] sm:$0xff]
                %421 = vst [vmem:[%s287 + $0x210] sm:$0xff] %v420
                %v422 = vld [vmem:[%s286 + $0x428] sm:$0xff]
                %423 = vst [vmem:[%s287 + $0x218] sm:$0xff] %v422
                %v424 = vld [vmem:[%s286 + $0x440] sm:$0xff]
                %425 = vst [vmem:[%s287 + $0x220] sm:$0xff] %v424
                %v426 = vld [vmem:[%s286 + $0x448] sm:$0xff]
                %427 = vst [vmem:[%s287 + $0x228] sm:$0xff] %v426
                %v428 = vld [vmem:[%s286 + $0x460] sm:$0xff]
                %429 = vst [vmem:[%s287 + $0x230] sm:$0xff] %v428
                %v430 = vld [vmem:[%s286 + $0x468] sm:$0xff]
                %431 = vst [vmem:[%s287 + $0x238] sm:$0xff] %v430
                %v432 = vld [vmem:[%s286 + $0x480] sm:$0xff]
                %433 = vst [vmem:[%s287 + $0x240] sm:$0xff] %v432
                %v434 = vld [vmem:[%s286 + $0x488] sm:$0xff]
                %435 = vst [vmem:[%s287 + $0x248] sm:$0xff] %v434
                %v436 = vld [vmem:[%s286 + $0x4a0] sm:$0xff]
                %437 = vst [vmem:[%s287 + $0x250] sm:$0xff] %v436
                %v438 = vld [vmem:[%s286 + $0x4a8] sm:$0xff]
                %439 = vst [vmem:[%s287 + $0x258] sm:$0xff] %v438
                %v440 = vld [vmem:[%s286 + $0x4c0] sm:$0xff]
                %441 = vst [vmem:[%s287 + $0x260] sm:$0xff] %v440
                %v442 = vld [vmem:[%s286 + $0x4c8] sm:$0xff]
                %443 = vst [vmem:[%s287 + $0x268] sm:$0xff] %v442
                %v444 = vld [vmem:[%s286 + $0x4e0] sm:$0xff]
                %445 = vst [vmem:[%s287 + $0x270] sm:$0xff] %v444
                %v446 = vld [vmem:[%s286 + $0x4e8] sm:$0xff]
                %447 = vst [vmem:[%s287 + $0x278] sm:$0xff] %v446
                %v448 = vld [vmem:[%s286 + $0x500] sm:$0xff]
                %449 = vst [vmem:[%s287 + $0x280] sm:$0xff] %v448
                %v450 = vld [vmem:[%s286 + $0x508] sm:$0xff]
                %451 = vst [vmem:[%s287 + $0x288] sm:$0xff] %v450
                %v452 = vld [vmem:[%s286 + $0x520] sm:$0xff]
                %453 = vst [vmem:[%s287 + $0x290] sm:$0xff] %v452
                %v454 = vld [vmem:[%s286 + $0x528] sm:$0xff]
                %455 = vst [vmem:[%s287 + $0x298] sm:$0xff] %v454
                %v456 = vld [vmem:[%s286 + $0x540] sm:$0xff]
                %457 = vst [vmem:[%s287 + $0x2a0] sm:$0xff] %v456
                %v458 = vld [vmem:[%s286 + $0x548] sm:$0xff]
                %459 = vst [vmem:[%s287 + $0x2a8] sm:$0xff] %v458
                %v460 = vld [vmem:[%s286 + $0x560] sm:$0xff]
                %461 = vst [vmem:[%s287 + $0x2b0] sm:$0xff] %v460
                %v462 = vld [vmem:[%s286 + $0x568] sm:$0xff]
                %463 = vst [vmem:[%s287 + $0x2b8] sm:$0xff] %v462
                %v464 = vld [vmem:[%s286 + $0x580] sm:$0xff]
                %465 = vst [vmem:[%s287 + $0x2c0] sm:$0xff] %v464
                %v466 = vld [vmem:[%s286 + $0x588] sm:$0xff]
                %467 = vst [vmem:[%s287 + $0x2c8] sm:$0xff] %v466
                %v468 = vld [vmem:[%s286 + $0x5a0] sm:$0xff]
                %469 = vst [vmem:[%s287 + $0x2d0] sm:$0xff] %v468
                %v470 = vld [vmem:[%s286 + $0x5a8] sm:$0xff]
                %471 = vst [vmem:[%s287 + $0x2d8] sm:$0xff] %v470
                %v472 = vld [vmem:[%s286 + $0x5c0] sm:$0xff]
                %473 = vst [vmem:[%s287 + $0x2e0] sm:$0xff] %v472
                %v474 = vld [vmem:[%s286 + $0x5c8] sm:$0xff]
                %475 = vst [vmem:[%s287 + $0x2e8] sm:$0xff] %v474
                %v476 = vld [vmem:[%s286 + $0x5e0] sm:$0xff]
                %477 = vst [vmem:[%s287 + $0x2f0] sm:$0xff] %v476
                %v478 = vld [vmem:[%s286 + $0x5e8] sm:$0xff]
                %479 = vst [vmem:[%s287 + $0x2f8] sm:$0xff] %v478
                %v480 = vld [vmem:[%s286 + $0x600] sm:$0xff]
                %481 = vst [vmem:[%s287 + $0x300] sm:$0xff] %v480
                %v482 = vld [vmem:[%s286 + $0x608] sm:$0xff]
                %483 = vst [vmem:[%s287 + $0x308] sm:$0xff] %v482
                %v484 = vld [vmem:[%s286 + $0x620] sm:$0xff]
                %485 = vst [vmem:[%s287 + $0x310] sm:$0xff] %v484
                %v486 = vld [vmem:[%s286 + $0x628] sm:$0xff]
                %487 = vst [vmem:[%s287 + $0x318] sm:$0xff] %v486
                %v488 = vld [vmem:[%s286 + $0x640] sm:$0xff]
                %489 = vst [vmem:[%s287 + $0x320] sm:$0xff] %v488
                %v490 = vld [vmem:[%s286 + $0x648] sm:$0xff]
                %491 = vst [vmem:[%s287 + $0x328] sm:$0xff] %v490
                %v492 = vld [vmem:[%s286 + $0x660] sm:$0xff]
                %493 = vst [vmem:[%s287 + $0x330] sm:$0xff] %v492
                %v494 = vld [vmem:[%s286 + $0x668] sm:$0xff]
                %495 = vst [vmem:[%s287 + $0x338] sm:$0xff] %v494
                %v496 = vld [vmem:[%s286 + $0x680] sm:$0xff]
                %497 = vst [vmem:[%s287 + $0x340] sm:$0xff] %v496
                %v498 = vld [vmem:[%s286 + $0x688] sm:$0xff]
                %499 = vst [vmem:[%s287 + $0x348] sm:$0xff] %v498
                %v500 = vld [vmem:[%s286 + $0x6a0] sm:$0xff]
                %501 = vst [vmem:[%s287 + $0x350] sm:$0xff] %v500
                %v502 = vld [vmem:[%s286 + $0x6a8] sm:$0xff]
                %503 = vst [vmem:[%s287 + $0x358] sm:$0xff] %v502
                %v504 = vld [vmem:[%s286 + $0x6c0] sm:$0xff]
                %505 = vst [vmem:[%s287 + $0x360] sm:$0xff] %v504
                %v506 = vld [vmem:[%s286 + $0x6c8] sm:$0xff]
                %507 = vst [vmem:[%s287 + $0x368] sm:$0xff] %v506
                %v508 = vld [vmem:[%s286 + $0x6e0] sm:$0xff]
                %509 = vst [vmem:[%s287 + $0x370] sm:$0xff] %v508
                %v510 = vld [vmem:[%s286 + $0x6e8] sm:$0xff]
                %511 = vst [vmem:[%s287 + $0x378] sm:$0xff] %v510
                %v512 = vld [vmem:[%s286 + $0x700] sm:$0xff]
                %513 = vst [vmem:[%s287 + $0x380] sm:$0xff] %v512
                %v514 = vld [vmem:[%s286 + $0x708] sm:$0xff]
                %515 = vst [vmem:[%s287 + $0x388] sm:$0xff] %v514
                %v516 = vld [vmem:[%s286 + $0x720] sm:$0xff]
                %517 = vst [vmem:[%s287 + $0x390] sm:$0xff] %v516
                %v518 = vld [vmem:[%s286 + $0x728] sm:$0xff]
                %519 = vst [vmem:[%s287 + $0x398] sm:$0xff] %v518
                %v520 = vld [vmem:[%s286 + $0x740] sm:$0xff]
                %521 = vst [vmem:[%s287 + $0x3a0] sm:$0xff] %v520
                %v522 = vld [vmem:[%s286 + $0x748] sm:$0xff]
                %523 = vst [vmem:[%s287 + $0x3a8] sm:$0xff] %v522
                %v524 = vld [vmem:[%s286 + $0x760] sm:$0xff]
                %525 = vst [vmem:[%s287 + $0x3b0] sm:$0xff] %v524
                %v526 = vld [vmem:[%s286 + $0x768] sm:$0xff]
                %527 = vst [vmem:[%s287 + $0x3b8] sm:$0xff] %v526
                %v528 = vld [vmem:[%s286 + $0x780] sm:$0xff]
                %529 = vst [vmem:[%s287 + $0x3c0] sm:$0xff] %v528
                %v530 = vld [vmem:[%s286 + $0x788] sm:$0xff]
                %531 = vst [vmem:[%s287 + $0x3c8] sm:$0xff] %v530
                %v532 = vld [vmem:[%s286 + $0x7a0] sm:$0xff]
                %533 = vst [vmem:[%s287 + $0x3d0] sm:$0xff] %v532
                %v534 = vld [vmem:[%s286 + $0x7a8] sm:$0xff]
                %535 = vst [vmem:[%s287 + $0x3d8] sm:$0xff] %v534
                %v536 = vld [vmem:[%s286 + $0x7c0] sm:$0xff]
                %537 = vst [vmem:[%s287 + $0x3e0] sm:$0xff] %v536
                %v538 = vld [vmem:[%s286 + $0x7c8] sm:$0xff]
                %539 = vst [vmem:[%s287 + $0x3e8] sm:$0xff] %v538
                %v540 = vld [vmem:[%s286 + $0x7e0] sm:$0xff]
                %541 = vst [vmem:[%s287 + $0x3f0] sm:$0xff] %v540
                %v542 = vld [vmem:[%s286 + $0x7e8] sm:$0xff]
                %543 = vst [vmem:[%s287 + $0x3f8] sm:$0xff] %v542
                %v544 = vld [vmem:[%s286 + $0x800] sm:$0xff]
                %545 = vst [vmem:[%s287 + $0x400] sm:$0xff] %v544
                %v546 = vld [vmem:[%s286 + $0x808] sm:$0xff]
                %547 = vst [vmem:[%s287 + $0x408] sm:$0xff] %v546
                %v548 = vld [vmem:[%s286 + $0x820] sm:$0xff]
                %549 = vst [vmem:[%s287 + $0x410] sm:$0xff] %v548
                %v550 = vld [vmem:[%s286 + $0x828] sm:$0xff]
                %551 = vst [vmem:[%s287 + $0x418] sm:$0xff] %v550
                %v552 = vld [vmem:[%s286 + $0x840] sm:$0xff]
                %553 = vst [vmem:[%s287 + $0x420] sm:$0xff] %v552
                %v554 = vld [vmem:[%s286 + $0x848] sm:$0xff]
                %555 = vst [vmem:[%s287 + $0x428] sm:$0xff] %v554
                %v556 = vld [vmem:[%s286 + $0x860] sm:$0xff]
                %557 = vst [vmem:[%s287 + $0x430] sm:$0xff] %v556
                %v558 = vld [vmem:[%s286 + $0x868] sm:$0xff]
                %559 = vst [vmem:[%s287 + $0x438] sm:$0xff] %v558
                %v560 = vld [vmem:[%s286 + $0x880] sm:$0xff]
                %561 = vst [vmem:[%s287 + $0x440] sm:$0xff] %v560
                %v562 = vld [vmem:[%s286 + $0x888] sm:$0xff]
                %563 = vst [vmem:[%s287 + $0x448] sm:$0xff] %v562
                %v564 = vld [vmem:[%s286 + $0x8a0] sm:$0xff]
                %565 = vst [vmem:[%s287 + $0x450] sm:$0xff] %v564
                %v566 = vld [vmem:[%s286 + $0x8a8] sm:$0xff]
                %567 = vst [vmem:[%s287 + $0x458] sm:$0xff] %v566
                %v568 = vld [vmem:[%s286 + $0x8c0] sm:$0xff]
                %569 = vst [vmem:[%s287 + $0x460] sm:$0xff] %v568
                %v570 = vld [vmem:[%s286 + $0x8c8] sm:$0xff]
                %571 = vst [vmem:[%s287 + $0x468] sm:$0xff] %v570
                %v572 = vld [vmem:[%s286 + $0x8e0] sm:$0xff]
                %573 = vst [vmem:[%s287 + $0x470] sm:$0xff] %v572
                %v574 = vld [vmem:[%s286 + $0x8e8] sm:$0xff]
                %575 = vst [vmem:[%s287 + $0x478] sm:$0xff] %v574
                %v576 = vld [vmem:[%s286 + $0x900] sm:$0xff]
                %577 = vst [vmem:[%s287 + $0x480] sm:$0xff] %v576
                %v578 = vld [vmem:[%s286 + $0x908] sm:$0xff]
                %579 = vst [vmem:[%s287 + $0x488] sm:$0xff] %v578
                %v580 = vld [vmem:[%s286 + $0x920] sm:$0xff]
                %581 = vst [vmem:[%s287 + $0x490] sm:$0xff] %v580
                %v582 = vld [vmem:[%s286 + $0x928] sm:$0xff]
                %583 = vst [vmem:[%s287 + $0x498] sm:$0xff] %v582
                %v584 = vld [vmem:[%s286 + $0x940] sm:$0xff]
                %585 = vst [vmem:[%s287 + $0x4a0] sm:$0xff] %v584
                %v586 = vld [vmem:[%s286 + $0x948] sm:$0xff]
                %587 = vst [vmem:[%s287 + $0x4a8] sm:$0xff] %v586
                %v588 = vld [vmem:[%s286 + $0x960] sm:$0xff]
                %589 = vst [vmem:[%s287 + $0x4b0] sm:$0xff] %v588
                %v590 = vld [vmem:[%s286 + $0x968] sm:$0xff]
                %591 = vst [vmem:[%s287 + $0x4b8] sm:$0xff] %v590
                %v592 = vld [vmem:[%s286 + $0x980] sm:$0xff]
                %593 = vst [vmem:[%s287 + $0x4c0] sm:$0xff] %v592
                %v594 = vld [vmem:[%s286 + $0x988] sm:$0xff]
                %595 = vst [vmem:[%s287 + $0x4c8] sm:$0xff] %v594
                %v596 = vld [vmem:[%s286 + $0x9a0] sm:$0xff]
                %597 = vst [vmem:[%s287 + $0x4d0] sm:$0xff] %v596
                %v598 = vld [vmem:[%s286 + $0x9a8] sm:$0xff]
                %599 = vst [vmem:[%s287 + $0x4d8] sm:$0xff] %v598
                %v600 = vld [vmem:[%s286 + $0x9c0] sm:$0xff]
                %601 = vst [vmem:[%s287 + $0x4e0] sm:$0xff] %v600
                %v602 = vld [vmem:[%s286 + $0x9c8] sm:$0xff]
                %603 = vst [vmem:[%s287 + $0x4e8] sm:$0xff] %v602
                %v604 = vld [vmem:[%s286 + $0x9e0] sm:$0xff]
                %605 = vst [vmem:[%s287 + $0x4f0] sm:$0xff] %v604
                %v606 = vld [vmem:[%s286 + $0x9e8] sm:$0xff]
                %607 = vst [vmem:[%s287 + $0x4f8] sm:$0xff] %v606
                %v608 = vld [vmem:[%s286 + $0xa00] sm:$0xff]
                %609 = vst [vmem:[%s287 + $0x500] sm:$0xff] %v608
                %v610 = vld [vmem:[%s286 + $0xa08] sm:$0xff]
                %611 = vst [vmem:[%s287 + $0x508] sm:$0xff] %v610
                %v612 = vld [vmem:[%s286 + $0xa20] sm:$0xff]
                %613 = vst [vmem:[%s287 + $0x510] sm:$0xff] %v612
                %v614 = vld [vmem:[%s286 + $0xa28] sm:$0xff]
                %615 = vst [vmem:[%s287 + $0x518] sm:$0xff] %v614
                %v616 = vld [vmem:[%s286 + $0xa40] sm:$0xff]
                %617 = vst [vmem:[%s287 + $0x520] sm:$0xff] %v616
                %v618 = vld [vmem:[%s286 + $0xa48] sm:$0xff]
                %619 = vst [vmem:[%s287 + $0x528] sm:$0xff] %v618
                %v620 = vld [vmem:[%s286 + $0xa60] sm:$0xff]
                %621 = vst [vmem:[%s287 + $0x530] sm:$0xff] %v620
                %v622 = vld [vmem:[%s286 + $0xa68] sm:$0xff]
                %623 = vst [vmem:[%s287 + $0x538] sm:$0xff] %v622
                %v624 = vld [vmem:[%s286 + $0xa80] sm:$0xff]
                %625 = vst [vmem:[%s287 + $0x540] sm:$0xff] %v624
                %v626 = vld [vmem:[%s286 + $0xa88] sm:$0xff]
                %627 = vst [vmem:[%s287 + $0x548] sm:$0xff] %v626
                %v628 = vld [vmem:[%s286 + $0xaa0] sm:$0xff]
                %629 = vst [vmem:[%s287 + $0x550] sm:$0xff] %v628
                %v630 = vld [vmem:[%s286 + $0xaa8] sm:$0xff]
                %631 = vst [vmem:[%s287 + $0x558] sm:$0xff] %v630
                %v632 = vld [vmem:[%s286 + $0xac0] sm:$0xff]
                %633 = vst [vmem:[%s287 + $0x560] sm:$0xff] %v632
                %v634 = vld [vmem:[%s286 + $0xac8] sm:$0xff]
                %635 = vst [vmem:[%s287 + $0x568] sm:$0xff] %v634
                %v636 = vld [vmem:[%s286 + $0xae0] sm:$0xff]
                %637 = vst [vmem:[%s287 + $0x570] sm:$0xff] %v636
                %v638 = vld [vmem:[%s286 + $0xae8] sm:$0xff]
                %639 = vst [vmem:[%s287 + $0x578] sm:$0xff] %v638
                %v640 = vld [vmem:[%s286 + $0xb00] sm:$0xff]
                %641 = vst [vmem:[%s287 + $0x580] sm:$0xff] %v640
                %v642 = vld [vmem:[%s286 + $0xb08] sm:$0xff]
                %643 = vst [vmem:[%s287 + $0x588] sm:$0xff] %v642
                %v644 = vld [vmem:[%s286 + $0xb20] sm:$0xff]
                %645 = vst [vmem:[%s287 + $0x590] sm:$0xff] %v644
                %v646 = vld [vmem:[%s286 + $0xb28] sm:$0xff]
                %647 = vst [vmem:[%s287 + $0x598] sm:$0xff] %v646
                %v648 = vld [vmem:[%s286 + $0xb40] sm:$0xff]
                %649 = vst [vmem:[%s287 + $0x5a0] sm:$0xff] %v648
                %v650 = vld [vmem:[%s286 + $0xb48] sm:$0xff]
                %651 = vst [vmem:[%s287 + $0x5a8] sm:$0xff] %v650
                %v652 = vld [vmem:[%s286 + $0xb60] sm:$0xff]
                %653 = vst [vmem:[%s287 + $0x5b0] sm:$0xff] %v652
                %v654 = vld [vmem:[%s286 + $0xb68] sm:$0xff]
                %655 = vst [vmem:[%s287 + $0x5b8] sm:$0xff] %v654
                %v656 = vld [vmem:[%s286 + $0xb80] sm:$0xff]
                %657 = vst [vmem:[%s287 + $0x5c0] sm:$0xff] %v656
                %v658 = vld [vmem:[%s286 + $0xb88] sm:$0xff]
                %659 = vst [vmem:[%s287 + $0x5c8] sm:$0xff] %v658
                %v660 = vld [vmem:[%s286 + $0xba0] sm:$0xff]
                %661 = vst [vmem:[%s287 + $0x5d0] sm:$0xff] %v660
                %v662 = vld [vmem:[%s286 + $0xba8] sm:$0xff]
                %663 = vst [vmem:[%s287 + $0x5d8] sm:$0xff] %v662
                %v664 = vld [vmem:[%s286 + $0xbc0] sm:$0xff]
                %665 = vst [vmem:[%s287 + $0x5e0] sm:$0xff] %v664
                %v666 = vld [vmem:[%s286 + $0xbc8] sm:$0xff]
                %667 = vst [vmem:[%s287 + $0x5e8] sm:$0xff] %v666
                %v668 = vld [vmem:[%s286 + $0xbe0] sm:$0xff]
                %669 = vst [vmem:[%s287 + $0x5f0] sm:$0xff] %v668
                %v670 = vld [vmem:[%s286 + $0xbe8] sm:$0xff]
                %671 = vst [vmem:[%s287 + $0x5f8] sm:$0xff] %v670
                %v672 = vld [vmem:[%s286 + $0xc00] sm:$0xff]
                %673 = vst [vmem:[%s287 + $0x600] sm:$0xff] %v672
                %v674 = vld [vmem:[%s286 + $0xc08] sm:$0xff]
                %675 = vst [vmem:[%s287 + $0x608] sm:$0xff] %v674
                %v676 = vld [vmem:[%s286 + $0xc20] sm:$0xff]
                %677 = vst [vmem:[%s287 + $0x610] sm:$0xff] %v676
                %v678 = vld [vmem:[%s286 + $0xc28] sm:$0xff]
                %679 = vst [vmem:[%s287 + $0x618] sm:$0xff] %v678
                %v680 = vld [vmem:[%s286 + $0xc40] sm:$0xff]
                %681 = vst [vmem:[%s287 + $0x620] sm:$0xff] %v680
                %v682 = vld [vmem:[%s286 + $0xc48] sm:$0xff]
                %683 = vst [vmem:[%s287 + $0x628] sm:$0xff] %v682
                %v684 = vld [vmem:[%s286 + $0xc60] sm:$0xff]
                %685 = vst [vmem:[%s287 + $0x630] sm:$0xff] %v684
                %v686 = vld [vmem:[%s286 + $0xc68] sm:$0xff]
                %687 = vst [vmem:[%s287 + $0x638] sm:$0xff] %v686
                %v688 = vld [vmem:[%s286 + $0xc80] sm:$0xff]
                %689 = vst [vmem:[%s287 + $0x640] sm:$0xff] %v688
                %v690 = vld [vmem:[%s286 + $0xc88] sm:$0xff]
                %691 = vst [vmem:[%s287 + $0x648] sm:$0xff] %v690
                %v692 = vld [vmem:[%s286 + $0xca0] sm:$0xff]
                %693 = vst [vmem:[%s287 + $0x650] sm:$0xff] %v692
                %v694 = vld [vmem:[%s286 + $0xca8] sm:$0xff]
                %695 = vst [vmem:[%s287 + $0x658] sm:$0xff] %v694
                %v696 = vld [vmem:[%s286 + $0xcc0] sm:$0xff]
                %697 = vst [vmem:[%s287 + $0x660] sm:$0xff] %v696
                %v698 = vld [vmem:[%s286 + $0xcc8] sm:$0xff]
                %699 = vst [vmem:[%s287 + $0x668] sm:$0xff] %v698
                %v700 = vld [vmem:[%s286 + $0xce0] sm:$0xff]
                %701 = vst [vmem:[%s287 + $0x670] sm:$0xff] %v700
                %v702 = vld [vmem:[%s286 + $0xce8] sm:$0xff]
                %703 = vst [vmem:[%s287 + $0x678] sm:$0xff] %v702
                %v704 = vld [vmem:[%s286 + $0xd00] sm:$0xff]
                %705 = vst [vmem:[%s287 + $0x680] sm:$0xff] %v704
                %v706 = vld [vmem:[%s286 + $0xd08] sm:$0xff]
                %707 = vst [vmem:[%s287 + $0x688] sm:$0xff] %v706
                %v708 = vld [vmem:[%s286 + $0xd20] sm:$0xff]
                %709 = vst [vmem:[%s287 + $0x690] sm:$0xff] %v708
                %v710 = vld [vmem:[%s286 + $0xd28] sm:$0xff]
                %711 = vst [vmem:[%s287 + $0x698] sm:$0xff] %v710
                %v712 = vld [vmem:[%s286 + $0xd40] sm:$0xff]
                %713 = vst [vmem:[%s287 + $0x6a0] sm:$0xff] %v712
                %v714 = vld [vmem:[%s286 + $0xd48] sm:$0xff]
                %715 = vst [vmem:[%s287 + $0x6a8] sm:$0xff] %v714
                %v716 = vld [vmem:[%s286 + $0xd60] sm:$0xff]
                %717 = vst [vmem:[%s287 + $0x6b0] sm:$0xff] %v716
                %v718 = vld [vmem:[%s286 + $0xd68] sm:$0xff]
                %719 = vst [vmem:[%s287 + $0x6b8] sm:$0xff] %v718
                %v720 = vld [vmem:[%s286 + $0xd80] sm:$0xff]
                %721 = vst [vmem:[%s287 + $0x6c0] sm:$0xff] %v720
                %v722 = vld [vmem:[%s286 + $0xd88] sm:$0xff]
                %723 = vst [vmem:[%s287 + $0x6c8] sm:$0xff] %v722
                %v724 = vld [vmem:[%s286 + $0xda0] sm:$0xff]
                %725 = vst [vmem:[%s287 + $0x6d0] sm:$0xff] %v724
                %v726 = vld [vmem:[%s286 + $0xda8] sm:$0xff]
                %727 = vst [vmem:[%s287 + $0x6d8] sm:$0xff] %v726
                %v728 = vld [vmem:[%s286 + $0xdc0] sm:$0xff]
                %729 = vst [vmem:[%s287 + $0x6e0] sm:$0xff] %v728
                %v730 = vld [vmem:[%s286 + $0xdc8] sm:$0xff]
                %731 = vst [vmem:[%s287 + $0x6e8] sm:$0xff] %v730
                %v732 = vld [vmem:[%s286 + $0xde0] sm:$0xff]
                %733 = vst [vmem:[%s287 + $0x6f0] sm:$0xff] %v732
                %v734 = vld [vmem:[%s286 + $0xde8] sm:$0xff]
                %735 = vst [vmem:[%s287 + $0x6f8] sm:$0xff] %v734
                %v736 = vld [vmem:[%s286 + $0xe00] sm:$0xff]
                %737 = vst [vmem:[%s287 + $0x700] sm:$0xff] %v736
                %v738 = vld [vmem:[%s286 + $0xe08] sm:$0xff]
                %739 = vst [vmem:[%s287 + $0x708] sm:$0xff] %v738
                %v740 = vld [vmem:[%s286 + $0xe20] sm:$0xff]
                %741 = vst [vmem:[%s287 + $0x710] sm:$0xff] %v740
                %v742 = vld [vmem:[%s286 + $0xe28] sm:$0xff]
                %743 = vst [vmem:[%s287 + $0x718] sm:$0xff] %v742
                %v744 = vld [vmem:[%s286 + $0xe40] sm:$0xff]
                %745 = vst [vmem:[%s287 + $0x720] sm:$0xff] %v744
                %v746 = vld [vmem:[%s286 + $0xe48] sm:$0xff]
                %747 = vst [vmem:[%s287 + $0x728] sm:$0xff] %v746
                %v748 = vld [vmem:[%s286 + $0xe60] sm:$0xff]
                %749 = vst [vmem:[%s287 + $0x730] sm:$0xff] %v748
                %v750 = vld [vmem:[%s286 + $0xe68] sm:$0xff]
                %751 = vst [vmem:[%s287 + $0x738] sm:$0xff] %v750
                %v752 = vld [vmem:[%s286 + $0xe80] sm:$0xff]
                %753 = vst [vmem:[%s287 + $0x740] sm:$0xff] %v752
                %v754 = vld [vmem:[%s286 + $0xe88] sm:$0xff]
                %755 = vst [vmem:[%s287 + $0x748] sm:$0xff] %v754
                %v756 = vld [vmem:[%s286 + $0xea0] sm:$0xff]
                %757 = vst [vmem:[%s287 + $0x750] sm:$0xff] %v756
                %v758 = vld [vmem:[%s286 + $0xea8] sm:$0xff]
                %759 = vst [vmem:[%s287 + $0x758] sm:$0xff] %v758
                %v760 = vld [vmem:[%s286 + $0xec0] sm:$0xff]
                %761 = vst [vmem:[%s287 + $0x760] sm:$0xff] %v760
                %v762 = vld [vmem:[%s286 + $0xec8] sm:$0xff]
                %763 = vst [vmem:[%s287 + $0x768] sm:$0xff] %v762
                %v764 = vld [vmem:[%s286 + $0xee0] sm:$0xff]
                %765 = vst [vmem:[%s287 + $0x770] sm:$0xff] %v764
                %v766 = vld [vmem:[%s286 + $0xee8] sm:$0xff]
                %767 = vst [vmem:[%s287 + $0x778] sm:$0xff] %v766
                %v768 = vld [vmem:[%s286 + $0xf00] sm:$0xff]
                %769 = vst [vmem:[%s287 + $0x780] sm:$0xff] %v768
                %v770 = vld [vmem:[%s286 + $0xf08] sm:$0xff]
                %771 = vst [vmem:[%s287 + $0x788] sm:$0xff] %v770
                %v772 = vld [vmem:[%s286 + $0xf20] sm:$0xff]
                %773 = vst [vmem:[%s287 + $0x790] sm:$0xff] %v772
                %v774 = vld [vmem:[%s286 + $0xf28] sm:$0xff]
                %775 = vst [vmem:[%s287 + $0x798] sm:$0xff] %v774
                %v776 = vld [vmem:[%s286 + $0xf40] sm:$0xff]
                %777 = vst [vmem:[%s287 + $0x7a0] sm:$0xff] %v776
                %v778 = vld [vmem:[%s286 + $0xf48] sm:$0xff]
                %779 = vst [vmem:[%s287 + $0x7a8] sm:$0xff] %v778
                %v780 = vld [vmem:[%s286 + $0xf60] sm:$0xff]
                %781 = vst [vmem:[%s287 + $0x7b0] sm:$0xff] %v780
                %v782 = vld [vmem:[%s286 + $0xf68] sm:$0xff]
                %783 = vst [vmem:[%s287 + $0x7b8] sm:$0xff] %v782
                %v784 = vld [vmem:[%s286 + $0xf80] sm:$0xff]
                %785 = vst [vmem:[%s287 + $0x7c0] sm:$0xff] %v784
                %v786 = vld [vmem:[%s286 + $0xf88] sm:$0xff]
                %787 = vst [vmem:[%s287 + $0x7c8] sm:$0xff] %v786
                %v788 = vld [vmem:[%s286 + $0xfa0] sm:$0xff]
                %789 = vst [vmem:[%s287 + $0x7d0] sm:$0xff] %v788
                %v790 = vld [vmem:[%s286 + $0xfa8] sm:$0xff]
                %791 = vst [vmem:[%s287 + $0x7d8] sm:$0xff] %v790
                %v792 = vld [vmem:[%s286 + $0xfc0] sm:$0xff]
                %793 = vst [vmem:[%s287 + $0x7e0] sm:$0xff] %v792
                %v794 = vld [vmem:[%s286 + $0xfc8] sm:$0xff]
                %795 = vst [vmem:[%s287 + $0x7e8] sm:$0xff] %v794
                %v796 = vld [vmem:[%s286 + $0xfe0] sm:$0xff]
                %797 = vst [vmem:[%s287 + $0x7f0] sm:$0xff] %v796
                %v798 = vld [vmem:[%s286 + $0xfe8] sm:$0xff]
                %799 = vst [vmem:[%s287 + $0x7f8] sm:$0xff] %v798
              $region41: #{forward.1} parent=35 // loop_footer
                %s285 = sadd.s32 1, %s281
              $region42: #{forward.1} parent=35 // loop_footer_branch
                %280 = sbr.rel target = $region38
              $region43: #{forward.1} parent=35 // loop_exit
                _
            $region36: #{forward.1} parent=31 // pred_fallthru
              _
            // Predicated region
            $region44: #{forward.1} parent=31 // pred_check
              _
            $region45: #{forward.1} parent=31 // pred_check_branch
              %801 = sbr.rel target = $region47
            $region46: #{forward.1} parent=31 // pred_region
              _
            $region47: #{forward.1} parent=31 // pred_fallthru
              _
          $region32: #{forward.1} parent=27 // pred_fallthru
            _
          %802 = vnop
        $region28: #{forward.1} parent=23 // pred_fallthru
          _
        // Predicated region
        $region48: #{forward.1} parent=23 // pred_check
          %p803 = pneg %p84
        $region49: #{forward.1} parent=23 // pred_check_branch
          %805 = sbr.rel (%p803) target = $region51
        $region50: #{forward.1} parent=23 // pred_region
          %s806 = smul.u32 4, %s17
          %p807 = scmp.lt.s32.totalorder %s806, 7
          %s808 = scalar_select %p807, %s806, 7
          %s809 = scalar_lea.vmem %s2, %s808
          %s810 = smul.u32 4, %s17
        $region51: #{forward.1} parent=23 // pred_fallthru
          _
        // Predicated region
        $region52: #{forward.1} parent=23 // pred_check
          %p811 = pneg %p110
        $region53: #{forward.1} parent=23 // pred_check_branch
          %813 = sbr.rel (%p811) target = $region55
        $region54: #{forward.1} parent=23 // pred_region
          %s814 = smul.u32 4, %s17
          %p815 = scmp.lt.s32.totalorder %s814, 7
          %s816 = scalar_select %p815, %s814, 7
          %s817 = scalar_lea.vmem %s3, %s816
          %s818 = smul.u32 4, %s17
        $region55: #{forward.1} parent=23 // pred_fallthru
          _
        // Predicated region
        $region56: #{forward.1} parent=23 // pred_check
          %p819 = pneg %p157
        $region57: #{forward.1} parent=23 // pred_check_branch
          %821 = sbr.rel (%p819) target = $region59
        $region58: #{forward.1} parent=23 // pred_region
          %s822 = smul.u32 4, %s17
          %p823 = scmp.lt.s32.totalorder %s822, 7
          %s824 = scalar_select %p823, %s822, 7
          %s825 = smul.addr %s824, 144
          %s826 = smul.addr %s825, 4
          %s827 = scalar_lea.vmem %s5, %s826
          %s828 = smul.u32 4, %s17
        $region59: #{forward.1} parent=23 // pred_fallthru
          _
        // Predicated region
        $region60: #{forward.1} parent=23 // pred_check
          %p829 = pneg %p183
        $region61: #{forward.1} parent=23 // pred_check_branch
          %831 = sbr.rel (%p829) target = $region63
        $region62: #{forward.1} parent=23 // pred_region
          %s832 = smul.u32 4, %s17
          %p833 = scmp.lt.s32.totalorder %s832, 7
          %s834 = scalar_select %p833, %s832, 7
          %s835 = scalar_lea.vmem %s6, %s834
          %s836 = smul.u32 4, %s17
        $region63: #{forward.1} parent=23 // pred_fallthru
          _
        // Predicated region
        $region64: #{forward.1} parent=23 // pred_check
          %p837 = pneg %p209
        $region65: #{forward.1} parent=23 // pred_check_branch
          %839 = sbr.rel (%p837) target = $region67
        $region66: #{forward.1} parent=23 // pred_region
          %s840 = smul.u32 4, %s17
          %p841 = scmp.lt.s32.totalorder %s840, 7
          %s842 = scalar_select %p841, %s840, 7
          %s843 = scalar_lea.vmem %s7, %s842
          %s844 = smul.u32 4, %s17
        $region67: #{forward.1} parent=23 // pred_fallthru
          _
      $region24: #{forward.1} parent=5 // pred_fallthru
        _
      %p845 = scmp.le.s32.totalorder 1, %s17
      %p846 = scmp.lt.s32.totalorder %s17, 3
      %p847 = pnand %p845, %p846
      %p848 = pneg %p847
      // Predicated region
      $region68: #{forward.1} parent=5 // pred_check
        _
      $region69: #{forward.1} parent=5 // pred_check_branch
        %850 = sbr.rel (%p847) target = $region71
      $region70: #{forward.1} parent=5 // pred_region
        %s851 = ssub.s32 %s17, 1
        %s852 = sand.u32 %s51, 1
        %s853 = sand.u32 %s51, 1
        %s854 = smul.addr %s853, 2048
        %s855 = scalar_lea.vmem [#allocation2], %s854
        // Predicated region
        $region72: #{forward.1} parent=70 // pred_check
          %p856 = pneg %p64
        $region73: #{forward.1} parent=70 // pred_check_branch
          %858 = sbr.rel (%p856) target = $region75
        $region74: #{forward.1} parent=70 // pred_region
          _
        $region75: #{forward.1} parent=70 // pred_fallthru
          _
        %p859 = pneg %p38
        %p860 = pneg %p35
        %s861 = sand.u32 %s51, 1
        %s862 = sand.u32 %s51, 1
        %s863 = smul.addr %s862, 2048
        %s864 = scalar_lea.vmem [#allocation2], %s863
        %p865 = pneg %p64
        %p866 = pneg %p61
        %s867 = smul.u32 4, %s22
        %p868 = scmp.lt.s32.totalorder %s867, 7
        %s869 = scalar_select %p868, %s867, 7
        %s870 = scalar_lea.vmem %s2, %s869
        %p871 = pneg %p90
        %p872 = pneg %p87
        %s873 = smul.u32 4, %s22
        %p874 = scmp.lt.s32.totalorder %s873, 7
        %s875 = scalar_select %p874, %s873, 7
        %s876 = scalar_lea.vmem %s3, %s875
        %p877 = pneg %p116
        %p878 = pneg %p113
        %p879 = pneg %p137
        %p880 = pneg %p134
        %s881 = smul.u32 4, %s22
        %p882 = scmp.lt.s32.totalorder %s881, 7
        %s883 = scalar_select %p882, %s881, 7
        %s884 = smul.addr %s883, 144
        %s885 = smul.addr %s884, 4
        %s886 = scalar_lea.vmem %s5, %s885
        %p887 = pneg %p163
        %p888 = pneg %p160
        %s889 = smul.u32 4, %s22
        %p890 = scmp.lt.s32.totalorder %s889, 7
        %s891 = scalar_select %p890, %s889, 7
        %s892 = scalar_lea.vmem %s6, %s891
        %p893 = pneg %p189
        %p894 = pneg %p186
        %s895 = smul.u32 4, %s22
        %p896 = scmp.lt.s32.totalorder %s895, 7
        %s897 = scalar_select %p896, %s895, 7
        %s898 = scalar_lea.vmem %s7, %s897
        %p899 = pneg %p215
        %p900 = pneg %p212
        %p901 = pneg %p241
        %p902 = pneg %p238
        %s903 = sand.u32 %s228, 1
        %s904 = scalar_lea.sflag [#allocation4], %s903
        %s905 = sand.u32 %s228, 1
        %s906 = smul.addr %s905, 256
        %s907 = scalar_lea.vmem [#allocation3], %s906
        %s908 = smul.u32 4, %s22
        %s909 = smul.u32 4, %s22
        %p910 = scmp.lt.s32.totalorder %s909, 7
        %s911 = scalar_select %p910, %s909, 7
        %s912 = scalar_lea.vmem %s2, %s911
        %s913 = smul.u32 4, %s22
        %s914 = smul.u32 4, %s22
        %p915 = scmp.lt.s32.totalorder %s914, 7
        %s916 = scalar_select %p915, %s914, 7
        %s917 = scalar_lea.vmem %s3, %s916
        %s918 = smul.u32 4, %s22
        %s919 = smul.u32 4, %s22
        %p920 = scmp.lt.s32.totalorder %s919, 7
        %s921 = scalar_select %p920, %s919, 7
        %s922 = smul.addr %s921, 144
        %s923 = smul.addr %s922, 4
        %s924 = scalar_lea.vmem %s5, %s923
        %s925 = smul.u32 4, %s22
        %s926 = smul.u32 4, %s22
        %p927 = scmp.lt.s32.totalorder %s926, 7
        %s928 = scalar_select %p927, %s926, 7
        %s929 = scalar_lea.vmem %s6, %s928
        %s930 = smul.u32 4, %s22
        %s931 = smul.u32 4, %s22
        %p932 = scmp.lt.s32.totalorder %s931, 7
        %s933 = scalar_select %p932, %s931, 7
        %s934 = scalar_lea.vmem %s7, %s933
        %s935 = smul.u32 4, %s22
        %s936 = smul.u32 4, %s22
        %v938 = vld [vmem:[%s0] sm:$0xff]
        %v939 = vld [vmem:[%s0 + $0x8] sm:$0xff]
        %v940 = vld [vmem:[%s0 + $0x10] sm:$0xff]
        %v941 = vld [vmem:[%s0 + $0x18] sm:$0xff]
        %v942 = vld [vmem:[%s0 + $0x20] sm:$0xff]
        %v943 = vld [vmem:[%s0 + $0x28] sm:$0xff]
        %v944 = vld [vmem:[%s0 + $0x30] sm:$0xff]
        %v945 = vld [vmem:[%s0 + $0x38] sm:$0xff]
        %v946 = vld [vmem:[%s0 + $0x40] sm:$0xff]
        %v947 = vld [vmem:[%s0 + $0x48] sm:$0xff]
        %v948 = vld [vmem:[%s0 + $0x50] sm:$0xff]
        %v949 = vld [vmem:[%s0 + $0x58] sm:$0xff]
        %v950 = vld [vmem:[%s0 + $0x60] sm:$0xff]
        %v951 = vld [vmem:[%s0 + $0x68] sm:$0xff]
        %v952 = vld [vmem:[%s0 + $0x70] sm:$0xff]
        %v953 = vld [vmem:[%s0 + $0x78] sm:$0xff]
        %v954 = vld [vmem:[%s0 + $0x80] sm:$0xff]
        %v955 = vld [vmem:[%s0 + $0x88] sm:$0xff]
        %v956 = vld [vmem:[%s0 + $0x90] sm:$0xff]
        %v957 = vld [vmem:[%s0 + $0x98] sm:$0xff]
        %v958 = vld [vmem:[%s0 + $0xa0] sm:$0xff]
        %v959 = vld [vmem:[%s0 + $0xa8] sm:$0xff]
        %v960 = vld [vmem:[%s0 + $0xb0] sm:$0xff]
        %v961 = vld [vmem:[%s0 + $0xb8] sm:$0xff]
        %v962 = vld [vmem:[%s0 + $0xc0] sm:$0xff]
        %v963 = vld [vmem:[%s0 + $0xc8] sm:$0xff]
        %v964 = vld [vmem:[%s0 + $0xd0] sm:$0xff]
        %v965 = vld [vmem:[%s0 + $0xd8] sm:$0xff]
        %v966 = vld [vmem:[%s0 + $0xe0] sm:$0xff]
        %v967 = vld [vmem:[%s0 + $0xe8] sm:$0xff]
        %v968 = vld [vmem:[%s0 + $0xf0] sm:$0xff]
        %v969 = vld [vmem:[%s0 + $0xf8] sm:$0xff]
        %v970 = vmax.bf16 %v938, 0
        %v971 = vmax.bf16 %v939, 0
        %v972 = vmax.bf16 %v940, 0
        %v973 = vmax.bf16 %v941, 0
        %v974 = vmax.bf16 %v942, 0
        %v975 = vmax.bf16 %v943, 0
        %v976 = vmax.bf16 %v944, 0
        %v977 = vmax.bf16 %v945, 0
        %v978 = vmax.bf16 %v946, 0
        %v979 = vmax.bf16 %v947, 0
        %v980 = vmax.bf16 %v948, 0
        %v981 = vmax.bf16 %v949, 0
        %v982 = vmax.bf16 %v950, 0
        %v983 = vmax.bf16 %v951, 0
        %v984 = vmax.bf16 %v952, 0
        %v985 = vmax.bf16 %v953, 0
        %v986 = vmax.bf16 %v954, 0
        %v987 = vmax.bf16 %v955, 0
        %v988 = vmax.bf16 %v956, 0
        %v989 = vmax.bf16 %v957, 0
        %v990 = vmax.bf16 %v958, 0
        %v991 = vmax.bf16 %v959, 0
        %v992 = vmax.bf16 %v960, 0
        %v993 = vmax.bf16 %v961, 0
        %v994 = vmax.bf16 %v962, 0
        %v995 = vmax.bf16 %v963, 0
        %v996 = vmax.bf16 %v964, 0
        %v997 = vmax.bf16 %v965, 0
        %v998 = vmax.bf16 %v966, 0
        %v999 = vmax.bf16 %v967, 0
        %v1000 = vmax.bf16 %v968, 0
        %v1001 = vmax.bf16 %v969, 0
        %v1002 = vld [vmem:[%s855] sm:$0xff]
        %v1003 = vld [vmem:[%s855 + $0x8] sm:$0xff]
        %v1004 = vld [vmem:[%s855 + $0x10] sm:$0xff]
        %v1005 = vld [vmem:[%s855 + $0x18] sm:$0xff]
        %v1006 = vld [vmem:[%s855 + $0x20] sm:$0xff]
        %v1007 = vld [vmem:[%s855 + $0x28] sm:$0xff]
        %v1008 = vld [vmem:[%s855 + $0x30] sm:$0xff]
        %v1009 = vld [vmem:[%s855 + $0x38] sm:$0xff]
        %v1010 = vld [vmem:[%s855 + $0x40] sm:$0xff]
        %v1011 = vld [vmem:[%s855 + $0x48] sm:$0xff]
        %v1012 = vld [vmem:[%s855 + $0x50] sm:$0xff]
        %v1013 = vld [vmem:[%s855 + $0x58] sm:$0xff]
        %v1014 = vld [vmem:[%s855 + $0x60] sm:$0xff]
        %v1015 = vld [vmem:[%s855 + $0x68] sm:$0xff]
        %v1016 = vld [vmem:[%s855 + $0x70] sm:$0xff]
        %v1017 = vld [vmem:[%s855 + $0x78] sm:$0xff]
        %v1018 = vld [vmem:[%s855 + $0x80] sm:$0xff]
        %v1019 = vld [vmem:[%s855 + $0x88] sm:$0xff]
        %v1020 = vld [vmem:[%s855 + $0x90] sm:$0xff]
        %v1021 = vld [vmem:[%s855 + $0x98] sm:$0xff]
        %v1022 = vld [vmem:[%s855 + $0xa0] sm:$0xff]
        %v1023 = vld [vmem:[%s855 + $0xa8] sm:$0xff]
        %v1024 = vld [vmem:[%s855 + $0xb0] sm:$0xff]
        %v1025 = vld [vmem:[%s855 + $0xb8] sm:$0xff]
        %v1026 = vld [vmem:[%s855 + $0xc0] sm:$0xff]
        %v1027 = vld [vmem:[%s855 + $0xc8] sm:$0xff]
        %v1028 = vld [vmem:[%s855 + $0xd0] sm:$0xff]
        %v1029 = vld [vmem:[%s855 + $0xd8] sm:$0xff]
        %v1030 = vld [vmem:[%s855 + $0xe0] sm:$0xff]
        %v1031 = vld [vmem:[%s855 + $0xe8] sm:$0xff]
        %v1032 = vld [vmem:[%s855 + $0xf0] sm:$0xff]
        %v1033 = vld [vmem:[%s855 + $0xf8] sm:$0xff]
        %v1034 = vld [vmem:[%s855 + $0x100] sm:$0xff]
        %v1035 = vld [vmem:[%s855 + $0x108] sm:$0xff]
        %v1036 = vld [vmem:[%s855 + $0x110] sm:$0xff]
        %v1037 = vld [vmem:[%s855 + $0x118] sm:$0xff]
        %v1038 = vld [vmem:[%s855 + $0x120] sm:$0xff]
        %v1039 = vld [vmem:[%s855 + $0x128] sm:$0xff]
        %v1040 = vld [vmem:[%s855 + $0x130] sm:$0xff]
        %v1041 = vld [vmem:[%s855 + $0x138] sm:$0xff]
        %v1042 = vld [vmem:[%s855 + $0x140] sm:$0xff]
        %v1043 = vld [vmem:[%s855 + $0x148] sm:$0xff]
        %v1044 = vld [vmem:[%s855 + $0x150] sm:$0xff]
        %v1045 = vld [vmem:[%s855 + $0x158] sm:$0xff]
        %v1046 = vld [vmem:[%s855 + $0x160] sm:$0xff]
        %v1047 = vld [vmem:[%s855 + $0x168] sm:$0xff]
        %v1048 = vld [vmem:[%s855 + $0x170] sm:$0xff]
        %v1049 = vld [vmem:[%s855 + $0x178] sm:$0xff]
        %v1050 = vld [vmem:[%s855 + $0x180] sm:$0xff]
        %v1051 = vld [vmem:[%s855 + $0x188] sm:$0xff]
        %v1052 = vld [vmem:[%s855 + $0x190] sm:$0xff]
        %v1053 = vld [vmem:[%s855 + $0x198] sm:$0xff]
        %v1054 = vld [vmem:[%s855 + $0x1a0] sm:$0xff]
        %v1055 = vld [vmem:[%s855 + $0x1a8] sm:$0xff]
        %v1056 = vld [vmem:[%s855 + $0x1b0] sm:$0xff]
        %v1057 = vld [vmem:[%s855 + $0x1b8] sm:$0xff]
        %v1058 = vld [vmem:[%s855 + $0x1c0] sm:$0xff]
        %v1059 = vld [vmem:[%s855 + $0x1c8] sm:$0xff]
        %v1060 = vld [vmem:[%s855 + $0x1d0] sm:$0xff]
        %v1061 = vld [vmem:[%s855 + $0x1d8] sm:$0xff]
        %v1062 = vld [vmem:[%s855 + $0x1e0] sm:$0xff]
        %v1063 = vld [vmem:[%s855 + $0x1e8] sm:$0xff]
        %v1064 = vld [vmem:[%s855 + $0x1f0] sm:$0xff]
        %v1065 = vld [vmem:[%s855 + $0x1f8] sm:$0xff]
        %v1066 = vld [vmem:[%s855 + $0x200] sm:$0xff]
        %v1067 = vld [vmem:[%s855 + $0x208] sm:$0xff]
        %v1068 = vld [vmem:[%s855 + $0x210] sm:$0xff]
        %v1069 = vld [vmem:[%s855 + $0x218] sm:$0xff]
        %v1070 = vld [vmem:[%s855 + $0x220] sm:$0xff]
        %v1071 = vld [vmem:[%s855 + $0x228] sm:$0xff]
        %v1072 = vld [vmem:[%s855 + $0x230] sm:$0xff]
        %v1073 = vld [vmem:[%s855 + $0x238] sm:$0xff]
        %v1074 = vld [vmem:[%s855 + $0x240] sm:$0xff]
        %v1075 = vld [vmem:[%s855 + $0x248] sm:$0xff]
        %v1076 = vld [vmem:[%s855 + $0x250] sm:$0xff]
        %v1077 = vld [vmem:[%s855 + $0x258] sm:$0xff]
        %v1078 = vld [vmem:[%s855 + $0x260] sm:$0xff]
        %v1079 = vld [vmem:[%s855 + $0x268] sm:$0xff]
        %v1080 = vld [vmem:[%s855 + $0x270] sm:$0xff]
        %v1081 = vld [vmem:[%s855 + $0x278] sm:$0xff]
        %v1082 = vld [vmem:[%s855 + $0x280] sm:$0xff]
        %v1083 = vld [vmem:[%s855 + $0x288] sm:$0xff]
        %v1084 = vld [vmem:[%s855 + $0x290] sm:$0xff]
        %v1085 = vld [vmem:[%s855 + $0x298] sm:$0xff]
        %v1086 = vld [vmem:[%s855 + $0x2a0] sm:$0xff]
        %v1087 = vld [vmem:[%s855 + $0x2a8] sm:$0xff]
        %v1088 = vld [vmem:[%s855 + $0x2b0] sm:$0xff]
        %v1089 = vld [vmem:[%s855 + $0x2b8] sm:$0xff]
        %v1090 = vld [vmem:[%s855 + $0x2c0] sm:$0xff]
        %v1091 = vld [vmem:[%s855 + $0x2c8] sm:$0xff]
        %v1092 = vld [vmem:[%s855 + $0x2d0] sm:$0xff]
        %v1093 = vld [vmem:[%s855 + $0x2d8] sm:$0xff]
        %v1094 = vld [vmem:[%s855 + $0x2e0] sm:$0xff]
        %v1095 = vld [vmem:[%s855 + $0x2e8] sm:$0xff]
        %v1096 = vld [vmem:[%s855 + $0x2f0] sm:$0xff]
        %v1097 = vld [vmem:[%s855 + $0x2f8] sm:$0xff]
        %v1098 = vld [vmem:[%s855 + $0x300] sm:$0xff]
        %v1099 = vld [vmem:[%s855 + $0x308] sm:$0xff]
        %v1100 = vld [vmem:[%s855 + $0x310] sm:$0xff]
        %v1101 = vld [vmem:[%s855 + $0x318] sm:$0xff]
        %v1102 = vld [vmem:[%s855 + $0x320] sm:$0xff]
        %v1103 = vld [vmem:[%s855 + $0x328] sm:$0xff]
        %v1104 = vld [vmem:[%s855 + $0x330] sm:$0xff]
        %v1105 = vld [vmem:[%s855 + $0x338] sm:$0xff]
        %v1106 = vld [vmem:[%s855 + $0x340] sm:$0xff]
        %v1107 = vld [vmem:[%s855 + $0x348] sm:$0xff]
        %v1108 = vld [vmem:[%s855 + $0x350] sm:$0xff]
        %v1109 = vld [vmem:[%s855 + $0x358] sm:$0xff]
        %v1110 = vld [vmem:[%s855 + $0x360] sm:$0xff]
        %v1111 = vld [vmem:[%s855 + $0x368] sm:$0xff]
        %v1112 = vld [vmem:[%s855 + $0x370] sm:$0xff]
        %v1113 = vld [vmem:[%s855 + $0x378] sm:$0xff]
        %v1114 = vld [vmem:[%s855 + $0x380] sm:$0xff]
        %v1115 = vld [vmem:[%s855 + $0x388] sm:$0xff]
        %v1116 = vld [vmem:[%s855 + $0x390] sm:$0xff]
        %v1117 = vld [vmem:[%s855 + $0x398] sm:$0xff]
        %v1118 = vld [vmem:[%s855 + $0x3a0] sm:$0xff]
        %v1119 = vld [vmem:[%s855 + $0x3a8] sm:$0xff]
        %v1120 = vld [vmem:[%s855 + $0x3b0] sm:$0xff]
        %v1121 = vld [vmem:[%s855 + $0x3b8] sm:$0xff]
        %v1122 = vld [vmem:[%s855 + $0x3c0] sm:$0xff]
        %v1123 = vld [vmem:[%s855 + $0x3c8] sm:$0xff]
        %v1124 = vld [vmem:[%s855 + $0x3d0] sm:$0xff]
        %v1125 = vld [vmem:[%s855 + $0x3d8] sm:$0xff]
        %v1126 = vld [vmem:[%s855 + $0x3e0] sm:$0xff]
        %v1127 = vld [vmem:[%s855 + $0x3e8] sm:$0xff]
        %v1128 = vld [vmem:[%s855 + $0x3f0] sm:$0xff]
        %v1129 = vld [vmem:[%s855 + $0x3f8] sm:$0xff]
        %v1130 = vld [vmem:[%s855 + $0x400] sm:$0xff]
        %v1131 = vld [vmem:[%s855 + $0x408] sm:$0xff]
        %v1132 = vld [vmem:[%s855 + $0x410] sm:$0xff]
        %v1133 = vld [vmem:[%s855 + $0x418] sm:$0xff]
        %v1134 = vld [vmem:[%s855 + $0x420] sm:$0xff]
        %v1135 = vld [vmem:[%s855 + $0x428] sm:$0xff]
        %v1136 = vld [vmem:[%s855 + $0x430] sm:$0xff]
        %v1137 = vld [vmem:[%s855 + $0x438] sm:$0xff]
        %v1138 = vld [vmem:[%s855 + $0x440] sm:$0xff]
        %v1139 = vld [vmem:[%s855 + $0x448] sm:$0xff]
        %v1140 = vld [vmem:[%s855 + $0x450] sm:$0xff]
        %v1141 = vld [vmem:[%s855 + $0x458] sm:$0xff]
        %v1142 = vld [vmem:[%s855 + $0x460] sm:$0xff]
        %v1143 = vld [vmem:[%s855 + $0x468] sm:$0xff]
        %v1144 = vld [vmem:[%s855 + $0x470] sm:$0xff]
        %v1145 = vld [vmem:[%s855 + $0x478] sm:$0xff]
        %v1146 = vld [vmem:[%s855 + $0x480] sm:$0xff]
        %v1147 = vld [vmem:[%s855 + $0x488] sm:$0xff]
        %v1148 = vld [vmem:[%s855 + $0x490] sm:$0xff]
        %v1149 = vld [vmem:[%s855 + $0x498] sm:$0xff]
        %v1150 = vld [vmem:[%s855 + $0x4a0] sm:$0xff]
        %v1151 = vld [vmem:[%s855 + $0x4a8] sm:$0xff]
        %v1152 = vld [vmem:[%s855 + $0x4b0] sm:$0xff]
        %v1153 = vld [vmem:[%s855 + $0x4b8] sm:$0xff]
        %v1154 = vld [vmem:[%s855 + $0x4c0] sm:$0xff]
        %v1155 = vld [vmem:[%s855 + $0x4c8] sm:$0xff]
        %v1156 = vld [vmem:[%s855 + $0x4d0] sm:$0xff]
        %v1157 = vld [vmem:[%s855 + $0x4d8] sm:$0xff]
        %v1158 = vld [vmem:[%s855 + $0x4e0] sm:$0xff]
        %v1159 = vld [vmem:[%s855 + $0x4e8] sm:$0xff]
        %v1160 = vld [vmem:[%s855 + $0x4f0] sm:$0xff]
        %v1161 = vld [vmem:[%s855 + $0x4f8] sm:$0xff]
        %v1162 = vld [vmem:[%s855 + $0x500] sm:$0xff]
        %v1163 = vld [vmem:[%s855 + $0x508] sm:$0xff]
        %v1164 = vld [vmem:[%s855 + $0x510] sm:$0xff]
        %v1165 = vld [vmem:[%s855 + $0x518] sm:$0xff]
        %v1166 = vld [vmem:[%s855 + $0x520] sm:$0xff]
        %v1167 = vld [vmem:[%s855 + $0x528] sm:$0xff]
        %v1168 = vld [vmem:[%s855 + $0x530] sm:$0xff]
        %v1169 = vld [vmem:[%s855 + $0x538] sm:$0xff]
        %v1170 = vld [vmem:[%s855 + $0x540] sm:$0xff]
        %v1171 = vld [vmem:[%s855 + $0x548] sm:$0xff]
        %v1172 = vld [vmem:[%s855 + $0x550] sm:$0xff]
        %v1173 = vld [vmem:[%s855 + $0x558] sm:$0xff]
        %v1174 = vld [vmem:[%s855 + $0x560] sm:$0xff]
        %v1175 = vld [vmem:[%s855 + $0x568] sm:$0xff]
        %v1176 = vld [vmem:[%s855 + $0x570] sm:$0xff]
        %v1177 = vld [vmem:[%s855 + $0x578] sm:$0xff]
        %v1178 = vld [vmem:[%s855 + $0x580] sm:$0xff]
        %v1179 = vld [vmem:[%s855 + $0x588] sm:$0xff]
        %v1180 = vld [vmem:[%s855 + $0x590] sm:$0xff]
        %v1181 = vld [vmem:[%s855 + $0x598] sm:$0xff]
        %v1182 = vld [vmem:[%s855 + $0x5a0] sm:$0xff]
        %v1183 = vld [vmem:[%s855 + $0x5a8] sm:$0xff]
        %v1184 = vld [vmem:[%s855 + $0x5b0] sm:$0xff]
        %v1185 = vld [vmem:[%s855 + $0x5b8] sm:$0xff]
        %v1186 = vld [vmem:[%s855 + $0x5c0] sm:$0xff]
        %v1187 = vld [vmem:[%s855 + $0x5c8] sm:$0xff]
        %v1188 = vld [vmem:[%s855 + $0x5d0] sm:$0xff]
        %v1189 = vld [vmem:[%s855 + $0x5d8] sm:$0xff]
        %v1190 = vld [vmem:[%s855 + $0x5e0] sm:$0xff]
        %v1191 = vld [vmem:[%s855 + $0x5e8] sm:$0xff]
        %v1192 = vld [vmem:[%s855 + $0x5f0] sm:$0xff]
        %v1193 = vld [vmem:[%s855 + $0x5f8] sm:$0xff]
        %v1194 = vld [vmem:[%s855 + $0x600] sm:$0xff]
        %v1195 = vld [vmem:[%s855 + $0x608] sm:$0xff]
        %v1196 = vld [vmem:[%s855 + $0x610] sm:$0xff]
        %v1197 = vld [vmem:[%s855 + $0x618] sm:$0xff]
        %v1198 = vld [vmem:[%s855 + $0x620] sm:$0xff]
        %v1199 = vld [vmem:[%s855 + $0x628] sm:$0xff]
        %v1200 = vld [vmem:[%s855 + $0x630] sm:$0xff]
        %v1201 = vld [vmem:[%s855 + $0x638] sm:$0xff]
        %v1202 = vld [vmem:[%s855 + $0x640] sm:$0xff]
        %v1203 = vld [vmem:[%s855 + $0x648] sm:$0xff]
        %v1204 = vld [vmem:[%s855 + $0x650] sm:$0xff]
        %v1205 = vld [vmem:[%s855 + $0x658] sm:$0xff]
        %v1206 = vld [vmem:[%s855 + $0x660] sm:$0xff]
        %v1207 = vld [vmem:[%s855 + $0x668] sm:$0xff]
        %v1208 = vld [vmem:[%s855 + $0x670] sm:$0xff]
        %v1209 = vld [vmem:[%s855 + $0x678] sm:$0xff]
        %v1210 = vld [vmem:[%s855 + $0x680] sm:$0xff]
        %v1211 = vld [vmem:[%s855 + $0x688] sm:$0xff]
        %v1212 = vld [vmem:[%s855 + $0x690] sm:$0xff]
        %v1213 = vld [vmem:[%s855 + $0x698] sm:$0xff]
        %v1214 = vld [vmem:[%s855 + $0x6a0] sm:$0xff]
        %v1215 = vld [vmem:[%s855 + $0x6a8] sm:$0xff]
        %v1216 = vld [vmem:[%s855 + $0x6b0] sm:$0xff]
        %v1217 = vld [vmem:[%s855 + $0x6b8] sm:$0xff]
        %v1218 = vld [vmem:[%s855 + $0x6c0] sm:$0xff]
        %v1219 = vld [vmem:[%s855 + $0x6c8] sm:$0xff]
        %v1220 = vld [vmem:[%s855 + $0x6d0] sm:$0xff]
        %v1221 = vld [vmem:[%s855 + $0x6d8] sm:$0xff]
        %v1222 = vld [vmem:[%s855 + $0x6e0] sm:$0xff]
        %v1223 = vld [vmem:[%s855 + $0x6e8] sm:$0xff]
        %v1224 = vld [vmem:[%s855 + $0x6f0] sm:$0xff]
        %v1225 = vld [vmem:[%s855 + $0x6f8] sm:$0xff]
        %v1226 = vld [vmem:[%s855 + $0x700] sm:$0xff]
        %v1227 = vld [vmem:[%s855 + $0x708] sm:$0xff]
        %v1228 = vld [vmem:[%s855 + $0x710] sm:$0xff]
        %v1229 = vld [vmem:[%s855 + $0x718] sm:$0xff]
        %v1230 = vld [vmem:[%s855 + $0x720] sm:$0xff]
        %v1231 = vld [vmem:[%s855 + $0x728] sm:$0xff]
        %v1232 = vld [vmem:[%s855 + $0x730] sm:$0xff]
        %v1233 = vld [vmem:[%s855 + $0x738] sm:$0xff]
        %v1234 = vld [vmem:[%s855 + $0x740] sm:$0xff]
        %v1235 = vld [vmem:[%s855 + $0x748] sm:$0xff]
        %v1236 = vld [vmem:[%s855 + $0x750] sm:$0xff]
        %v1237 = vld [vmem:[%s855 + $0x758] sm:$0xff]
        %v1238 = vld [vmem:[%s855 + $0x760] sm:$0xff]
        %v1239 = vld [vmem:[%s855 + $0x768] sm:$0xff]
        %v1240 = vld [vmem:[%s855 + $0x770] sm:$0xff]
        %v1241 = vld [vmem:[%s855 + $0x778] sm:$0xff]
        %v1242 = vld [vmem:[%s855 + $0x780] sm:$0xff]
        %v1243 = vld [vmem:[%s855 + $0x788] sm:$0xff]
        %v1244 = vld [vmem:[%s855 + $0x790] sm:$0xff]
        %v1245 = vld [vmem:[%s855 + $0x798] sm:$0xff]
        %v1246 = vld [vmem:[%s855 + $0x7a0] sm:$0xff]
        %v1247 = vld [vmem:[%s855 + $0x7a8] sm:$0xff]
        %v1248 = vld [vmem:[%s855 + $0x7b0] sm:$0xff]
        %v1249 = vld [vmem:[%s855 + $0x7b8] sm:$0xff]
        %v1250 = vld [vmem:[%s855 + $0x7c0] sm:$0xff]
        %v1251 = vld [vmem:[%s855 + $0x7c8] sm:$0xff]
        %v1252 = vld [vmem:[%s855 + $0x7d0] sm:$0xff]
        %v1253 = vld [vmem:[%s855 + $0x7d8] sm:$0xff]
        %v1254 = vld [vmem:[%s855 + $0x7e0] sm:$0xff]
        %v1255 = vld [vmem:[%s855 + $0x7e8] sm:$0xff]
        %v1256 = vld [vmem:[%s855 + $0x7f0] sm:$0xff]
        %v1257 = vld [vmem:[%s855 + $0x7f8] sm:$0xff]
        %v1290 = vunpack.c.l.b16 %v970
        %v1291 = vunpack.c.h.b16 %v970
        %v1292 = vunpack.c.l.b16 %v971
        %v1293 = vunpack.c.h.b16 %v971
        %v1294 = vunpack.c.l.b16 %v972
        %v1295 = vunpack.c.h.b16 %v972
        %v1296 = vunpack.c.l.b16 %v973
        %v1297 = vunpack.c.h.b16 %v973
        %v1298 = vunpack.c.l.b16 %v974
        %v1299 = vunpack.c.h.b16 %v974
        %v1300 = vunpack.c.l.b16 %v975
        %v1301 = vunpack.c.h.b16 %v975
        %v1302 = vunpack.c.l.b16 %v976
        %v1303 = vunpack.c.h.b16 %v976
        %v1304 = vunpack.c.l.b16 %v977
        %v1305 = vunpack.c.h.b16 %v977
        %v1306 = vunpack.c.l.b16 %v978
        %v1307 = vunpack.c.h.b16 %v978
        %v1308 = vunpack.c.l.b16 %v979
        %v1309 = vunpack.c.h.b16 %v979
        %v1310 = vunpack.c.l.b16 %v980
        %v1311 = vunpack.c.h.b16 %v980
        %v1312 = vunpack.c.l.b16 %v981
        %v1313 = vunpack.c.h.b16 %v981
        %v1314 = vunpack.c.l.b16 %v982
        %v1315 = vunpack.c.h.b16 %v982
        %v1316 = vunpack.c.l.b16 %v983
        %v1317 = vunpack.c.h.b16 %v983
        %v1318 = vunpack.c.l.b16 %v984
        %v1319 = vunpack.c.h.b16 %v984
        %v1320 = vunpack.c.l.b16 %v985
        %v1321 = vunpack.c.h.b16 %v985
        %v1322 = vunpack.c.l.b16 %v986
        %v1323 = vunpack.c.h.b16 %v986
        %v1324 = vunpack.c.l.b16 %v987
        %v1325 = vunpack.c.h.b16 %v987
        %v1326 = vunpack.c.l.b16 %v988
        %v1327 = vunpack.c.h.b16 %v988
        %v1328 = vunpack.c.l.b16 %v989
        %v1329 = vunpack.c.h.b16 %v989
        %v1330 = vunpack.c.l.b16 %v990
        %v1331 = vunpack.c.h.b16 %v990
        %v1332 = vunpack.c.l.b16 %v991
        %v1333 = vunpack.c.h.b16 %v991
        %v1334 = vunpack.c.l.b16 %v992
        %v1335 = vunpack.c.h.b16 %v992
        %v1336 = vunpack.c.l.b16 %v993
        %v1337 = vunpack.c.h.b16 %v993
        %v1338 = vunpack.c.l.b16 %v994
        %v1339 = vunpack.c.h.b16 %v994
        %v1340 = vunpack.c.l.b16 %v995
        %v1341 = vunpack.c.h.b16 %v995
        %v1342 = vunpack.c.l.b16 %v996
        %v1343 = vunpack.c.h.b16 %v996
        %v1344 = vunpack.c.l.b16 %v997
        %v1345 = vunpack.c.h.b16 %v997
        %v1346 = vunpack.c.l.b16 %v998
        %v1347 = vunpack.c.h.b16 %v998
        %v1348 = vunpack.c.l.b16 %v999
        %v1349 = vunpack.c.h.b16 %v999
        %v1350 = vunpack.c.l.b16 %v1000
        %v1351 = vunpack.c.h.b16 %v1000
        %v1352 = vunpack.c.l.b16 %v1001
        %v1353 = vunpack.c.h.b16 %v1001
        %v1354 = vpack.c.b16 %v1298, %v1290
        %v1355 = vpack.c.b16 %v1299, %v1291
        %v1356 = vpack.c.b16 %v1300, %v1292
        %v1357 = vpack.c.b16 %v1301, %v1293
        %v1358 = vpack.c.b16 %v1302, %v1294
        %v1359 = vpack.c.b16 %v1303, %v1295
        %v1360 = vpack.c.b16 %v1304, %v1296
        %v1361 = vpack.c.b16 %v1305, %v1297
        %v1362 = vpack.c.b16 %v1314, %v1306
        %v1363 = vpack.c.b16 %v1315, %v1307
        %v1364 = vpack.c.b16 %v1316, %v1308
        %v1365 = vpack.c.b16 %v1317, %v1309
        %v1366 = vpack.c.b16 %v1318, %v1310
        %v1367 = vpack.c.b16 %v1319, %v1311
        %v1368 = vpack.c.b16 %v1320, %v1312
        %v1369 = vpack.c.b16 %v1321, %v1313
        %v1370 = vpack.c.b16 %v1330, %v1322
        %v1371 = vpack.c.b16 %v1331, %v1323
        %v1372 = vpack.c.b16 %v1332, %v1324
        %v1373 = vpack.c.b16 %v1333, %v1325
        %v1374 = vpack.c.b16 %v1334, %v1326
        %v1375 = vpack.c.b16 %v1335, %v1327
        %v1376 = vpack.c.b16 %v1336, %v1328
        %v1377 = vpack.c.b16 %v1337, %v1329
        %v1378 = vpack.c.b16 %v1346, %v1338
        %v1379 = vpack.c.b16 %v1347, %v1339
        %v1380 = vpack.c.b16 %v1348, %v1340
        %v1381 = vpack.c.b16 %v1349, %v1341
        %v1382 = vpack.c.b16 %v1350, %v1342
        %v1383 = vpack.c.b16 %v1351, %v1343
        %v1384 = vpack.c.b16 %v1352, %v1344
        %v1385 = vpack.c.b16 %v1353, %v1345
        %v1674 = vunpack.c.l.b16 %v1002
        %v1675 = vunpack.c.h.b16 %v1002
        %v1676 = vunpack.c.l.b16 %v1003
        %v1677 = vunpack.c.h.b16 %v1003
        %v1678 = vunpack.c.l.b16 %v1004
        %v1679 = vunpack.c.h.b16 %v1004
        %v1680 = vunpack.c.l.b16 %v1005
        %v1681 = vunpack.c.h.b16 %v1005
        %v1682 = vunpack.c.l.b16 %v1006
        %v1683 = vunpack.c.h.b16 %v1006
        %v1684 = vunpack.c.l.b16 %v1007
        %v1685 = vunpack.c.h.b16 %v1007
        %v1686 = vunpack.c.l.b16 %v1008
        %v1687 = vunpack.c.h.b16 %v1008
        %v1688 = vunpack.c.l.b16 %v1009
        %v1689 = vunpack.c.h.b16 %v1009
        %v1690 = vunpack.c.l.b16 %v1010
        %v1691 = vunpack.c.h.b16 %v1010
        %v1692 = vunpack.c.l.b16 %v1011
        %v1693 = vunpack.c.h.b16 %v1011
        %v1694 = vunpack.c.l.b16 %v1012
        %v1695 = vunpack.c.h.b16 %v1012
        %v1696 = vunpack.c.l.b16 %v1013
        %v1697 = vunpack.c.h.b16 %v1013
        %v1698 = vunpack.c.l.b16 %v1014
        %v1699 = vunpack.c.h.b16 %v1014
        %v1700 = vunpack.c.l.b16 %v1015
        %v1701 = vunpack.c.h.b16 %v1015
        %v1702 = vunpack.c.l.b16 %v1016
        %v1703 = vunpack.c.h.b16 %v1016
        %v1704 = vunpack.c.l.b16 %v1017
        %v1705 = vunpack.c.h.b16 %v1017
        %v1706 = vunpack.c.l.b16 %v1018
        %v1707 = vunpack.c.h.b16 %v1018
        %v1708 = vunpack.c.l.b16 %v1019
        %v1709 = vunpack.c.h.b16 %v1019
        %v1710 = vunpack.c.l.b16 %v1020
        %v1711 = vunpack.c.h.b16 %v1020
        %v1712 = vunpack.c.l.b16 %v1021
        %v1713 = vunpack.c.h.b16 %v1021
        %v1714 = vunpack.c.l.b16 %v1022
        %v1715 = vunpack.c.h.b16 %v1022
        %v1716 = vunpack.c.l.b16 %v1023
        %v1717 = vunpack.c.h.b16 %v1023
        %v1718 = vunpack.c.l.b16 %v1024
        %v1719 = vunpack.c.h.b16 %v1024
        %v1720 = vunpack.c.l.b16 %v1025
        %v1721 = vunpack.c.h.b16 %v1025
        %v1722 = vunpack.c.l.b16 %v1026
        %v1723 = vunpack.c.h.b16 %v1026
        %v1724 = vunpack.c.l.b16 %v1027
        %v1725 = vunpack.c.h.b16 %v1027
        %v1726 = vunpack.c.l.b16 %v1028
        %v1727 = vunpack.c.h.b16 %v1028
        %v1728 = vunpack.c.l.b16 %v1029
        %v1729 = vunpack.c.h.b16 %v1029
        %v1730 = vunpack.c.l.b16 %v1030
        %v1731 = vunpack.c.h.b16 %v1030
        %v1732 = vunpack.c.l.b16 %v1031
        %v1733 = vunpack.c.h.b16 %v1031
        %v1734 = vunpack.c.l.b16 %v1032
        %v1735 = vunpack.c.h.b16 %v1032
        %v1736 = vunpack.c.l.b16 %v1033
        %v1737 = vunpack.c.h.b16 %v1033
        %v1738 = vunpack.c.l.b16 %v1034
        %v1739 = vunpack.c.h.b16 %v1034
        %v1740 = vunpack.c.l.b16 %v1035
        %v1741 = vunpack.c.h.b16 %v1035
        %v1742 = vunpack.c.l.b16 %v1036
        %v1743 = vunpack.c.h.b16 %v1036
        %v1744 = vunpack.c.l.b16 %v1037
        %v1745 = vunpack.c.h.b16 %v1037
        %v1746 = vunpack.c.l.b16 %v1038
        %v1747 = vunpack.c.h.b16 %v1038
        %v1748 = vunpack.c.l.b16 %v1039
        %v1749 = vunpack.c.h.b16 %v1039
        %v1750 = vunpack.c.l.b16 %v1040
        %v1751 = vunpack.c.h.b16 %v1040
        %v1752 = vunpack.c.l.b16 %v1041
        %v1753 = vunpack.c.h.b16 %v1041
        %v1754 = vunpack.c.l.b16 %v1042
        %v1755 = vunpack.c.h.b16 %v1042
        %v1756 = vunpack.c.l.b16 %v1043
        %v1757 = vunpack.c.h.b16 %v1043
        %v1758 = vunpack.c.l.b16 %v1044
        %v1759 = vunpack.c.h.b16 %v1044
        %v1760 = vunpack.c.l.b16 %v1045
        %v1761 = vunpack.c.h.b16 %v1045
        %v1762 = vunpack.c.l.b16 %v1046
        %v1763 = vunpack.c.h.b16 %v1046
        %v1764 = vunpack.c.l.b16 %v1047
        %v1765 = vunpack.c.h.b16 %v1047
        %v1766 = vunpack.c.l.b16 %v1048
        %v1767 = vunpack.c.h.b16 %v1048
        %v1768 = vunpack.c.l.b16 %v1049
        %v1769 = vunpack.c.h.b16 %v1049
        %v1770 = vunpack.c.l.b16 %v1050
        %v1771 = vunpack.c.h.b16 %v1050
        %v1772 = vunpack.c.l.b16 %v1051
        %v1773 = vunpack.c.h.b16 %v1051
        %v1774 = vunpack.c.l.b16 %v1052
        %v1775 = vunpack.c.h.b16 %v1052
        %v1776 = vunpack.c.l.b16 %v1053
        %v1777 = vunpack.c.h.b16 %v1053
        %v1778 = vunpack.c.l.b16 %v1054
        %v1779 = vunpack.c.h.b16 %v1054
        %v1780 = vunpack.c.l.b16 %v1055
        %v1781 = vunpack.c.h.b16 %v1055
        %v1782 = vunpack.c.l.b16 %v1056
        %v1783 = vunpack.c.h.b16 %v1056
        %v1784 = vunpack.c.l.b16 %v1057
        %v1785 = vunpack.c.h.b16 %v1057
        %v1786 = vunpack.c.l.b16 %v1058
        %v1787 = vunpack.c.h.b16 %v1058
        %v1788 = vunpack.c.l.b16 %v1059
        %v1789 = vunpack.c.h.b16 %v1059
        %v1790 = vunpack.c.l.b16 %v1060
        %v1791 = vunpack.c.h.b16 %v1060
        %v1792 = vunpack.c.l.b16 %v1061
        %v1793 = vunpack.c.h.b16 %v1061
        %v1794 = vunpack.c.l.b16 %v1062
        %v1795 = vunpack.c.h.b16 %v1062
        %v1796 = vunpack.c.l.b16 %v1063
        %v1797 = vunpack.c.h.b16 %v1063
        %v1798 = vunpack.c.l.b16 %v1064
        %v1799 = vunpack.c.h.b16 %v1064
        %v1800 = vunpack.c.l.b16 %v1065
        %v1801 = vunpack.c.h.b16 %v1065
        %v1802 = vunpack.c.l.b16 %v1066
        %v1803 = vunpack.c.h.b16 %v1066
        %v1804 = vunpack.c.l.b16 %v1067
        %v1805 = vunpack.c.h.b16 %v1067
        %v1806 = vunpack.c.l.b16 %v1068
        %v1807 = vunpack.c.h.b16 %v1068
        %v1808 = vunpack.c.l.b16 %v1069
        %v1809 = vunpack.c.h.b16 %v1069
        %v1810 = vunpack.c.l.b16 %v1070
        %v1811 = vunpack.c.h.b16 %v1070
        %v1812 = vunpack.c.l.b16 %v1071
        %v1813 = vunpack.c.h.b16 %v1071
        %v1814 = vunpack.c.l.b16 %v1072
        %v1815 = vunpack.c.h.b16 %v1072
        %v1816 = vunpack.c.l.b16 %v1073
        %v1817 = vunpack.c.h.b16 %v1073
        %v1818 = vunpack.c.l.b16 %v1074
        %v1819 = vunpack.c.h.b16 %v1074
        %v1820 = vunpack.c.l.b16 %v1075
        %v1821 = vunpack.c.h.b16 %v1075
        %v1822 = vunpack.c.l.b16 %v1076
        %v1823 = vunpack.c.h.b16 %v1076
        %v1824 = vunpack.c.l.b16 %v1077
        %v1825 = vunpack.c.h.b16 %v1077
        %v1826 = vunpack.c.l.b16 %v1078
        %v1827 = vunpack.c.h.b16 %v1078
        %v1828 = vunpack.c.l.b16 %v1079
        %v1829 = vunpack.c.h.b16 %v1079
        %v1830 = vunpack.c.l.b16 %v1080
        %v1831 = vunpack.c.h.b16 %v1080
        %v1832 = vunpack.c.l.b16 %v1081
        %v1833 = vunpack.c.h.b16 %v1081
        %v1834 = vunpack.c.l.b16 %v1082
        %v1835 = vunpack.c.h.b16 %v1082
        %v1836 = vunpack.c.l.b16 %v1083
        %v1837 = vunpack.c.h.b16 %v1083
        %v1838 = vunpack.c.l.b16 %v1084
        %v1839 = vunpack.c.h.b16 %v1084
        %v1840 = vunpack.c.l.b16 %v1085
        %v1841 = vunpack.c.h.b16 %v1085
        %v1842 = vunpack.c.l.b16 %v1086
        %v1843 = vunpack.c.h.b16 %v1086
        %v1844 = vunpack.c.l.b16 %v1087
        %v1845 = vunpack.c.h.b16 %v1087
        %v1846 = vunpack.c.l.b16 %v1088
        %v1847 = vunpack.c.h.b16 %v1088
        %v1848 = vunpack.c.l.b16 %v1089
        %v1849 = vunpack.c.h.b16 %v1089
        %v1850 = vunpack.c.l.b16 %v1090
        %v1851 = vunpack.c.h.b16 %v1090
        %v1852 = vunpack.c.l.b16 %v1091
        %v1853 = vunpack.c.h.b16 %v1091
        %v1854 = vunpack.c.l.b16 %v1092
        %v1855 = vunpack.c.h.b16 %v1092
        %v1856 = vunpack.c.l.b16 %v1093
        %v1857 = vunpack.c.h.b16 %v1093
        %v1858 = vunpack.c.l.b16 %v1094
        %v1859 = vunpack.c.h.b16 %v1094
        %v1860 = vunpack.c.l.b16 %v1095
        %v1861 = vunpack.c.h.b16 %v1095
        %v1862 = vunpack.c.l.b16 %v1096
        %v1863 = vunpack.c.h.b16 %v1096
        %v1864 = vunpack.c.l.b16 %v1097
        %v1865 = vunpack.c.h.b16 %v1097
        %v1866 = vunpack.c.l.b16 %v1098
        %v1867 = vunpack.c.h.b16 %v1098
        %v1868 = vunpack.c.l.b16 %v1099
        %v1869 = vunpack.c.h.b16 %v1099
        %v1870 = vunpack.c.l.b16 %v1100
        %v1871 = vunpack.c.h.b16 %v1100
        %v1872 = vunpack.c.l.b16 %v1101
        %v1873 = vunpack.c.h.b16 %v1101
        %v1874 = vunpack.c.l.b16 %v1102
        %v1875 = vunpack.c.h.b16 %v1102
        %v1876 = vunpack.c.l.b16 %v1103
        %v1877 = vunpack.c.h.b16 %v1103
        %v1878 = vunpack.c.l.b16 %v1104
        %v1879 = vunpack.c.h.b16 %v1104
        %v1880 = vunpack.c.l.b16 %v1105
        %v1881 = vunpack.c.h.b16 %v1105
        %v1882 = vunpack.c.l.b16 %v1106
        %v1883 = vunpack.c.h.b16 %v1106
        %v1884 = vunpack.c.l.b16 %v1107
        %v1885 = vunpack.c.h.b16 %v1107
        %v1886 = vunpack.c.l.b16 %v1108
        %v1887 = vunpack.c.h.b16 %v1108
        %v1888 = vunpack.c.l.b16 %v1109
        %v1889 = vunpack.c.h.b16 %v1109
        %v1890 = vunpack.c.l.b16 %v1110
        %v1891 = vunpack.c.h.b16 %v1110
        %v1892 = vunpack.c.l.b16 %v1111
        %v1893 = vunpack.c.h.b16 %v1111
        %v1894 = vunpack.c.l.b16 %v1112
        %v1895 = vunpack.c.h.b16 %v1112
        %v1896 = vunpack.c.l.b16 %v1113
        %v1897 = vunpack.c.h.b16 %v1113
        %v1898 = vunpack.c.l.b16 %v1114
        %v1899 = vunpack.c.h.b16 %v1114
        %v1900 = vunpack.c.l.b16 %v1115
        %v1901 = vunpack.c.h.b16 %v1115
        %v1902 = vunpack.c.l.b16 %v1116
        %v1903 = vunpack.c.h.b16 %v1116
        %v1904 = vunpack.c.l.b16 %v1117
        %v1905 = vunpack.c.h.b16 %v1117
        %v1906 = vunpack.c.l.b16 %v1118
        %v1907 = vunpack.c.h.b16 %v1118
        %v1908 = vunpack.c.l.b16 %v1119
        %v1909 = vunpack.c.h.b16 %v1119
        %v1910 = vunpack.c.l.b16 %v1120
        %v1911 = vunpack.c.h.b16 %v1120
        %v1912 = vunpack.c.l.b16 %v1121
        %v1913 = vunpack.c.h.b16 %v1121
        %v1914 = vunpack.c.l.b16 %v1122
        %v1915 = vunpack.c.h.b16 %v1122
        %v1916 = vunpack.c.l.b16 %v1123
        %v1917 = vunpack.c.h.b16 %v1123
        %v1918 = vunpack.c.l.b16 %v1124
        %v1919 = vunpack.c.h.b16 %v1124
        %v1920 = vunpack.c.l.b16 %v1125
        %v1921 = vunpack.c.h.b16 %v1125
        %v1922 = vunpack.c.l.b16 %v1126
        %v1923 = vunpack.c.h.b16 %v1126
        %v1924 = vunpack.c.l.b16 %v1127
        %v1925 = vunpack.c.h.b16 %v1127
        %v1926 = vunpack.c.l.b16 %v1128
        %v1927 = vunpack.c.h.b16 %v1128
        %v1928 = vunpack.c.l.b16 %v1129
        %v1929 = vunpack.c.h.b16 %v1129
        %v1930 = vunpack.c.l.b16 %v1130
        %v1931 = vunpack.c.h.b16 %v1130
        %v1932 = vunpack.c.l.b16 %v1131
        %v1933 = vunpack.c.h.b16 %v1131
        %v1934 = vunpack.c.l.b16 %v1132
        %v1935 = vunpack.c.h.b16 %v1132
        %v1936 = vunpack.c.l.b16 %v1133
        %v1937 = vunpack.c.h.b16 %v1133
        %v1938 = vunpack.c.l.b16 %v1134
        %v1939 = vunpack.c.h.b16 %v1134
        %v1940 = vunpack.c.l.b16 %v1135
        %v1941 = vunpack.c.h.b16 %v1135
        %v1942 = vunpack.c.l.b16 %v1136
        %v1943 = vunpack.c.h.b16 %v1136
        %v1944 = vunpack.c.l.b16 %v1137
        %v1945 = vunpack.c.h.b16 %v1137
        %v1946 = vunpack.c.l.b16 %v1138
        %v1947 = vunpack.c.h.b16 %v1138
        %v1948 = vunpack.c.l.b16 %v1139
        %v1949 = vunpack.c.h.b16 %v1139
        %v1950 = vunpack.c.l.b16 %v1140
        %v1951 = vunpack.c.h.b16 %v1140
        %v1952 = vunpack.c.l.b16 %v1141
        %v1953 = vunpack.c.h.b16 %v1141
        %v1954 = vunpack.c.l.b16 %v1142
        %v1955 = vunpack.c.h.b16 %v1142
        %v1956 = vunpack.c.l.b16 %v1143
        %v1957 = vunpack.c.h.b16 %v1143
        %v1958 = vunpack.c.l.b16 %v1144
        %v1959 = vunpack.c.h.b16 %v1144
        %v1960 = vunpack.c.l.b16 %v1145
        %v1961 = vunpack.c.h.b16 %v1145
        %v1962 = vunpack.c.l.b16 %v1146
        %v1963 = vunpack.c.h.b16 %v1146
        %v1964 = vunpack.c.l.b16 %v1147
        %v1965 = vunpack.c.h.b16 %v1147
        %v1966 = vunpack.c.l.b16 %v1148
        %v1967 = vunpack.c.h.b16 %v1148
        %v1968 = vunpack.c.l.b16 %v1149
        %v1969 = vunpack.c.h.b16 %v1149
        %v1970 = vunpack.c.l.b16 %v1150
        %v1971 = vunpack.c.h.b16 %v1150
        %v1972 = vunpack.c.l.b16 %v1151
        %v1973 = vunpack.c.h.b16 %v1151
        %v1974 = vunpack.c.l.b16 %v1152
        %v1975 = vunpack.c.h.b16 %v1152
        %v1976 = vunpack.c.l.b16 %v1153
        %v1977 = vunpack.c.h.b16 %v1153
        %v1978 = vunpack.c.l.b16 %v1154
        %v1979 = vunpack.c.h.b16 %v1154
        %v1980 = vunpack.c.l.b16 %v1155
        %v1981 = vunpack.c.h.b16 %v1155
        %v1982 = vunpack.c.l.b16 %v1156
        %v1983 = vunpack.c.h.b16 %v1156
        %v1984 = vunpack.c.l.b16 %v1157
        %v1985 = vunpack.c.h.b16 %v1157
        %v1986 = vunpack.c.l.b16 %v1158
        %v1987 = vunpack.c.h.b16 %v1158
        %v1988 = vunpack.c.l.b16 %v1159
        %v1989 = vunpack.c.h.b16 %v1159
        %v1990 = vunpack.c.l.b16 %v1160
        %v1991 = vunpack.c.h.b16 %v1160
        %v1992 = vunpack.c.l.b16 %v1161
        %v1993 = vunpack.c.h.b16 %v1161
        %v1994 = vunpack.c.l.b16 %v1162
        %v1995 = vunpack.c.h.b16 %v1162
        %v1996 = vunpack.c.l.b16 %v1163
        %v1997 = vunpack.c.h.b16 %v1163
        %v1998 = vunpack.c.l.b16 %v1164
        %v1999 = vunpack.c.h.b16 %v1164
        %v2000 = vunpack.c.l.b16 %v1165
        %v2001 = vunpack.c.h.b16 %v1165
        %v2002 = vunpack.c.l.b16 %v1166
        %v2003 = vunpack.c.h.b16 %v1166
        %v2004 = vunpack.c.l.b16 %v1167
        %v2005 = vunpack.c.h.b16 %v1167
        %v2006 = vunpack.c.l.b16 %v1168
        %v2007 = vunpack.c.h.b16 %v1168
        %v2008 = vunpack.c.l.b16 %v1169
        %v2009 = vunpack.c.h.b16 %v1169
        %v2010 = vunpack.c.l.b16 %v1170
        %v2011 = vunpack.c.h.b16 %v1170
        %v2012 = vunpack.c.l.b16 %v1171
        %v2013 = vunpack.c.h.b16 %v1171
        %v2014 = vunpack.c.l.b16 %v1172
        %v2015 = vunpack.c.h.b16 %v1172
        %v2016 = vunpack.c.l.b16 %v1173
        %v2017 = vunpack.c.h.b16 %v1173
        %v2018 = vunpack.c.l.b16 %v1174
        %v2019 = vunpack.c.h.b16 %v1174
        %v2020 = vunpack.c.l.b16 %v1175
        %v2021 = vunpack.c.h.b16 %v1175
        %v2022 = vunpack.c.l.b16 %v1176
        %v2023 = vunpack.c.h.b16 %v1176
        %v2024 = vunpack.c.l.b16 %v1177
        %v2025 = vunpack.c.h.b16 %v1177
        %v2026 = vunpack.c.l.b16 %v1178
        %v2027 = vunpack.c.h.b16 %v1178
        %v2028 = vunpack.c.l.b16 %v1179
        %v2029 = vunpack.c.h.b16 %v1179
        %v2030 = vunpack.c.l.b16 %v1180
        %v2031 = vunpack.c.h.b16 %v1180
        %v2032 = vunpack.c.l.b16 %v1181
        %v2033 = vunpack.c.h.b16 %v1181
        %v2034 = vunpack.c.l.b16 %v1182
        %v2035 = vunpack.c.h.b16 %v1182
        %v2036 = vunpack.c.l.b16 %v1183
        %v2037 = vunpack.c.h.b16 %v1183
        %v2038 = vunpack.c.l.b16 %v1184
        %v2039 = vunpack.c.h.b16 %v1184
        %v2040 = vunpack.c.l.b16 %v1185
        %v2041 = vunpack.c.h.b16 %v1185
        %v2042 = vunpack.c.l.b16 %v1186
        %v2043 = vunpack.c.h.b16 %v1186
        %v2044 = vunpack.c.l.b16 %v1187
        %v2045 = vunpack.c.h.b16 %v1187
        %v2046 = vunpack.c.l.b16 %v1188
        %v2047 = vunpack.c.h.b16 %v1188
        %v2048 = vunpack.c.l.b16 %v1189
        %v2049 = vunpack.c.h.b16 %v1189
        %v2050 = vunpack.c.l.b16 %v1190
        %v2051 = vunpack.c.h.b16 %v1190
        %v2052 = vunpack.c.l.b16 %v1191
        %v2053 = vunpack.c.h.b16 %v1191
        %v2054 = vunpack.c.l.b16 %v1192
        %v2055 = vunpack.c.h.b16 %v1192
        %v2056 = vunpack.c.l.b16 %v1193
        %v2057 = vunpack.c.h.b16 %v1193
        %v2058 = vunpack.c.l.b16 %v1194
        %v2059 = vunpack.c.h.b16 %v1194
        %v2060 = vunpack.c.l.b16 %v1195
        %v2061 = vunpack.c.h.b16 %v1195
        %v2062 = vunpack.c.l.b16 %v1196
        %v2063 = vunpack.c.h.b16 %v1196
        %v2064 = vunpack.c.l.b16 %v1197
        %v2065 = vunpack.c.h.b16 %v1197
        %v2066 = vunpack.c.l.b16 %v1198
        %v2067 = vunpack.c.h.b16 %v1198
        %v2068 = vunpack.c.l.b16 %v1199
        %v2069 = vunpack.c.h.b16 %v1199
        %v2070 = vunpack.c.l.b16 %v1200
        %v2071 = vunpack.c.h.b16 %v1200
        %v2072 = vunpack.c.l.b16 %v1201
        %v2073 = vunpack.c.h.b16 %v1201
        %v2074 = vunpack.c.l.b16 %v1202
        %v2075 = vunpack.c.h.b16 %v1202
        %v2076 = vunpack.c.l.b16 %v1203
        %v2077 = vunpack.c.h.b16 %v1203
        %v2078 = vunpack.c.l.b16 %v1204
        %v2079 = vunpack.c.h.b16 %v1204
        %v2080 = vunpack.c.l.b16 %v1205
        %v2081 = vunpack.c.h.b16 %v1205
        %v2082 = vunpack.c.l.b16 %v1206
        %v2083 = vunpack.c.h.b16 %v1206
        %v2084 = vunpack.c.l.b16 %v1207
        %v2085 = vunpack.c.h.b16 %v1207
        %v2086 = vunpack.c.l.b16 %v1208
        %v2087 = vunpack.c.h.b16 %v1208
        %v2088 = vunpack.c.l.b16 %v1209
        %v2089 = vunpack.c.h.b16 %v1209
        %v2090 = vunpack.c.l.b16 %v1210
        %v2091 = vunpack.c.h.b16 %v1210
        %v2092 = vunpack.c.l.b16 %v1211
        %v2093 = vunpack.c.h.b16 %v1211
        %v2094 = vunpack.c.l.b16 %v1212
        %v2095 = vunpack.c.h.b16 %v1212
        %v2096 = vunpack.c.l.b16 %v1213
        %v2097 = vunpack.c.h.b16 %v1213
        %v2098 = vunpack.c.l.b16 %v1214
        %v2099 = vunpack.c.h.b16 %v1214
        %v2100 = vunpack.c.l.b16 %v1215
        %v2101 = vunpack.c.h.b16 %v1215
        %v2102 = vunpack.c.l.b16 %v1216
        %v2103 = vunpack.c.h.b16 %v1216
        %v2104 = vunpack.c.l.b16 %v1217
        %v2105 = vunpack.c.h.b16 %v1217
        %v2106 = vunpack.c.l.b16 %v1218
        %v2107 = vunpack.c.h.b16 %v1218
        %v2108 = vunpack.c.l.b16 %v1219
        %v2109 = vunpack.c.h.b16 %v1219
        %v2110 = vunpack.c.l.b16 %v1220
        %v2111 = vunpack.c.h.b16 %v1220
        %v2112 = vunpack.c.l.b16 %v1221
        %v2113 = vunpack.c.h.b16 %v1221
        %v2114 = vunpack.c.l.b16 %v1222
        %v2115 = vunpack.c.h.b16 %v1222
        %v2116 = vunpack.c.l.b16 %v1223
        %v2117 = vunpack.c.h.b16 %v1223
        %v2118 = vunpack.c.l.b16 %v1224
        %v2119 = vunpack.c.h.b16 %v1224
        %v2120 = vunpack.c.l.b16 %v1225
        %v2121 = vunpack.c.h.b16 %v1225
        %v2122 = vunpack.c.l.b16 %v1226
        %v2123 = vunpack.c.h.b16 %v1226
        %v2124 = vunpack.c.l.b16 %v1227
        %v2125 = vunpack.c.h.b16 %v1227
        %v2126 = vunpack.c.l.b16 %v1228
        %v2127 = vunpack.c.h.b16 %v1228
        %v2128 = vunpack.c.l.b16 %v1229
        %v2129 = vunpack.c.h.b16 %v1229
        %v2130 = vunpack.c.l.b16 %v1230
        %v2131 = vunpack.c.h.b16 %v1230
        %v2132 = vunpack.c.l.b16 %v1231
        %v2133 = vunpack.c.h.b16 %v1231
        %v2134 = vunpack.c.l.b16 %v1232
        %v2135 = vunpack.c.h.b16 %v1232
        %v2136 = vunpack.c.l.b16 %v1233
        %v2137 = vunpack.c.h.b16 %v1233
        %v2138 = vunpack.c.l.b16 %v1234
        %v2139 = vunpack.c.h.b16 %v1234
        %v2140 = vunpack.c.l.b16 %v1235
        %v2141 = vunpack.c.h.b16 %v1235
        %v2142 = vunpack.c.l.b16 %v1236
        %v2143 = vunpack.c.h.b16 %v1236
        %v2144 = vunpack.c.l.b16 %v1237
        %v2145 = vunpack.c.h.b16 %v1237
        %v2146 = vunpack.c.l.b16 %v1238
        %v2147 = vunpack.c.h.b16 %v1238
        %v2148 = vunpack.c.l.b16 %v1239
        %v2149 = vunpack.c.h.b16 %v1239
        %v2150 = vunpack.c.l.b16 %v1240
        %v2151 = vunpack.c.h.b16 %v1240
        %v2152 = vunpack.c.l.b16 %v1241
        %v2153 = vunpack.c.h.b16 %v1241
        %v2154 = vunpack.c.l.b16 %v1242
        %v2155 = vunpack.c.h.b16 %v1242
        %v2156 = vunpack.c.l.b16 %v1243
        %v2157 = vunpack.c.h.b16 %v1243
        %v2158 = vunpack.c.l.b16 %v1244
        %v2159 = vunpack.c.h.b16 %v1244
        %v2160 = vunpack.c.l.b16 %v1245
        %v2161 = vunpack.c.h.b16 %v1245
        %v2162 = vunpack.c.l.b16 %v1246
        %v2163 = vunpack.c.h.b16 %v1246
        %v2164 = vunpack.c.l.b16 %v1247
        %v2165 = vunpack.c.h.b16 %v1247
        %v2166 = vunpack.c.l.b16 %v1248
        %v2167 = vunpack.c.h.b16 %v1248
        %v2168 = vunpack.c.l.b16 %v1249
        %v2169 = vunpack.c.h.b16 %v1249
        %v2170 = vunpack.c.l.b16 %v1250
        %v2171 = vunpack.c.h.b16 %v1250
        %v2172 = vunpack.c.l.b16 %v1251
        %v2173 = vunpack.c.h.b16 %v1251
        %v2174 = vunpack.c.l.b16 %v1252
        %v2175 = vunpack.c.h.b16 %v1252
        %v2176 = vunpack.c.l.b16 %v1253
        %v2177 = vunpack.c.h.b16 %v1253
        %v2178 = vunpack.c.l.b16 %v1254
        %v2179 = vunpack.c.h.b16 %v1254
        %v2180 = vunpack.c.l.b16 %v1255
        %v2181 = vunpack.c.h.b16 %v1255
        %v2182 = vunpack.c.l.b16 %v1256
        %v2183 = vunpack.c.h.b16 %v1256
        %v2184 = vunpack.c.l.b16 %v1257
        %v2185 = vunpack.c.h.b16 %v1257
        %v2186 = vpack.c.b16 %v1678, %v1674
        %v2187 = vpack.c.b16 %v1679, %v1675
        %v2188 = vpack.c.b16 %v1680, %v1676
        %v2189 = vpack.c.b16 %v1681, %v1677
        %v2190 = vpack.c.b16 %v1686, %v1682
        %v2191 = vpack.c.b16 %v1687, %v1683
        %v2192 = vpack.c.b16 %v1688, %v1684
        %v2193 = vpack.c.b16 %v1689, %v1685
        %v2194 = vpack.c.b16 %v1694, %v1690
        %v2195 = vpack.c.b16 %v1695, %v1691
        %v2196 = vpack.c.b16 %v1696, %v1692
        %v2197 = vpack.c.b16 %v1697, %v1693
        %v2198 = vpack.c.b16 %v1702, %v1698
        %v2199 = vpack.c.b16 %v1703, %v1699
        %v2200 = vpack.c.b16 %v1704, %v1700
        %v2201 = vpack.c.b16 %v1705, %v1701
        %v2202 = vpack.c.b16 %v1710, %v1706
        %v2203 = vpack.c.b16 %v1711, %v1707
        %v2204 = vpack.c.b16 %v1712, %v1708
        %v2205 = vpack.c.b16 %v1713, %v1709
        %v2206 = vpack.c.b16 %v1718, %v1714
        %v2207 = vpack.c.b16 %v1719, %v1715
        %v2208 = vpack.c.b16 %v1720, %v1716
        %v2209 = vpack.c.b16 %v1721, %v1717
        %v2210 = vpack.c.b16 %v1726, %v1722
        %v2211 = vpack.c.b16 %v1727, %v1723
        %v2212 = vpack.c.b16 %v1728, %v1724
        %v2213 = vpack.c.b16 %v1729, %v1725
        %v2214 = vpack.c.b16 %v1734, %v1730
        %v2215 = vpack.c.b16 %v1735, %v1731
        %v2216 = vpack.c.b16 %v1736, %v1732
        %v2217 = vpack.c.b16 %v1737, %v1733
        %v2218 = vpack.c.b16 %v1742, %v1738
        %v2219 = vpack.c.b16 %v1743, %v1739
        %v2220 = vpack.c.b16 %v1744, %v1740
        %v2221 = vpack.c.b16 %v1745, %v1741
        %v2222 = vpack.c.b16 %v1750, %v1746
        %v2223 = vpack.c.b16 %v1751, %v1747
        %v2224 = vpack.c.b16 %v1752, %v1748
        %v2225 = vpack.c.b16 %v1753, %v1749
        %v2226 = vpack.c.b16 %v1758, %v1754
        %v2227 = vpack.c.b16 %v1759, %v1755
        %v2228 = vpack.c.b16 %v1760, %v1756
        %v2229 = vpack.c.b16 %v1761, %v1757
        %v2230 = vpack.c.b16 %v1766, %v1762
        %v2231 = vpack.c.b16 %v1767, %v1763
        %v2232 = vpack.c.b16 %v1768, %v1764
        %v2233 = vpack.c.b16 %v1769, %v1765
        %v2234 = vpack.c.b16 %v1774, %v1770
        %v2235 = vpack.c.b16 %v1775, %v1771
        %v2236 = vpack.c.b16 %v1776, %v1772
        %v2237 = vpack.c.b16 %v1777, %v1773
        %v2238 = vpack.c.b16 %v1782, %v1778
        %v2239 = vpack.c.b16 %v1783, %v1779
        %v2240 = vpack.c.b16 %v1784, %v1780
        %v2241 = vpack.c.b16 %v1785, %v1781
        %v2242 = vpack.c.b16 %v1790, %v1786
        %v2243 = vpack.c.b16 %v1791, %v1787
        %v2244 = vpack.c.b16 %v1792, %v1788
        %v2245 = vpack.c.b16 %v1793, %v1789
        %v2246 = vpack.c.b16 %v1798, %v1794
        %v2247 = vpack.c.b16 %v1799, %v1795
        %v2248 = vpack.c.b16 %v1800, %v1796
        %v2249 = vpack.c.b16 %v1801, %v1797
        %v2250 = vpack.c.b16 %v1806, %v1802
        %v2251 = vpack.c.b16 %v1807, %v1803
        %v2252 = vpack.c.b16 %v1808, %v1804
        %v2253 = vpack.c.b16 %v1809, %v1805
        %v2254 = vpack.c.b16 %v1814, %v1810
        %v2255 = vpack.c.b16 %v1815, %v1811
        %v2256 = vpack.c.b16 %v1816, %v1812
        %v2257 = vpack.c.b16 %v1817, %v1813
        %v2258 = vpack.c.b16 %v1822, %v1818
        %v2259 = vpack.c.b16 %v1823, %v1819
        %v2260 = vpack.c.b16 %v1824, %v1820
        %v2261 = vpack.c.b16 %v1825, %v1821
        %v2262 = vpack.c.b16 %v1830, %v1826
        %v2263 = vpack.c.b16 %v1831, %v1827
        %v2264 = vpack.c.b16 %v1832, %v1828
        %v2265 = vpack.c.b16 %v1833, %v1829
        %v2266 = vpack.c.b16 %v1838, %v1834
        %v2267 = vpack.c.b16 %v1839, %v1835
        %v2268 = vpack.c.b16 %v1840, %v1836
        %v2269 = vpack.c.b16 %v1841, %v1837
        %v2270 = vpack.c.b16 %v1846, %v1842
        %v2271 = vpack.c.b16 %v1847, %v1843
        %v2272 = vpack.c.b16 %v1848, %v1844
        %v2273 = vpack.c.b16 %v1849, %v1845
        %v2274 = vpack.c.b16 %v1854, %v1850
        %v2275 = vpack.c.b16 %v1855, %v1851
        %v2276 = vpack.c.b16 %v1856, %v1852
        %v2277 = vpack.c.b16 %v1857, %v1853
        %v2278 = vpack.c.b16 %v1862, %v1858
        %v2279 = vpack.c.b16 %v1863, %v1859
        %v2280 = vpack.c.b16 %v1864, %v1860
        %v2281 = vpack.c.b16 %v1865, %v1861
        %v2282 = vpack.c.b16 %v1870, %v1866
        %v2283 = vpack.c.b16 %v1871, %v1867
        %v2284 = vpack.c.b16 %v1872, %v1868
        %v2285 = vpack.c.b16 %v1873, %v1869
        %v2286 = vpack.c.b16 %v1878, %v1874
        %v2287 = vpack.c.b16 %v1879, %v1875
        %v2288 = vpack.c.b16 %v1880, %v1876
        %v2289 = vpack.c.b16 %v1881, %v1877
        %v2290 = vpack.c.b16 %v1886, %v1882
        %v2291 = vpack.c.b16 %v1887, %v1883
        %v2292 = vpack.c.b16 %v1888, %v1884
        %v2293 = vpack.c.b16 %v1889, %v1885
        %v2294 = vpack.c.b16 %v1894, %v1890
        %v2295 = vpack.c.b16 %v1895, %v1891
        %v2296 = vpack.c.b16 %v1896, %v1892
        %v2297 = vpack.c.b16 %v1897, %v1893
        %v2298 = vpack.c.b16 %v1902, %v1898
        %v2299 = vpack.c.b16 %v1903, %v1899
        %v2300 = vpack.c.b16 %v1904, %v1900
        %v2301 = vpack.c.b16 %v1905, %v1901
        %v2302 = vpack.c.b16 %v1910, %v1906
        %v2303 = vpack.c.b16 %v1911, %v1907
        %v2304 = vpack.c.b16 %v1912, %v1908
        %v2305 = vpack.c.b16 %v1913, %v1909
        %v2306 = vpack.c.b16 %v1918, %v1914
        %v2307 = vpack.c.b16 %v1919, %v1915
        %v2308 = vpack.c.b16 %v1920, %v1916
        %v2309 = vpack.c.b16 %v1921, %v1917
        %v2310 = vpack.c.b16 %v1926, %v1922
        %v2311 = vpack.c.b16 %v1927, %v1923
        %v2312 = vpack.c.b16 %v1928, %v1924
        %v2313 = vpack.c.b16 %v1929, %v1925
        %v2314 = vpack.c.b16 %v1934, %v1930
        %v2315 = vpack.c.b16 %v1935, %v1931
        %v2316 = vpack.c.b16 %v1936, %v1932
        %v2317 = vpack.c.b16 %v1937, %v1933
        %v2318 = vpack.c.b16 %v1942, %v1938
        %v2319 = vpack.c.b16 %v1943, %v1939
        %v2320 = vpack.c.b16 %v1944, %v1940
        %v2321 = vpack.c.b16 %v1945, %v1941
        %v2322 = vpack.c.b16 %v1950, %v1946
        %v2323 = vpack.c.b16 %v1951, %v1947
        %v2324 = vpack.c.b16 %v1952, %v1948
        %v2325 = vpack.c.b16 %v1953, %v1949
        %v2326 = vpack.c.b16 %v1958, %v1954
        %v2327 = vpack.c.b16 %v1959, %v1955
        %v2328 = vpack.c.b16 %v1960, %v1956
        %v2329 = vpack.c.b16 %v1961, %v1957
        %v2330 = vpack.c.b16 %v1966, %v1962
        %v2331 = vpack.c.b16 %v1967, %v1963
        %v2332 = vpack.c.b16 %v1968, %v1964
        %v2333 = vpack.c.b16 %v1969, %v1965
        %v2334 = vpack.c.b16 %v1974, %v1970
        %v2335 = vpack.c.b16 %v1975, %v1971
        %v2336 = vpack.c.b16 %v1976, %v1972
        %v2337 = vpack.c.b16 %v1977, %v1973
        %v2338 = vpack.c.b16 %v1982, %v1978
        %v2339 = vpack.c.b16 %v1983, %v1979
        %v2340 = vpack.c.b16 %v1984, %v1980
        %v2341 = vpack.c.b16 %v1985, %v1981
        %v2342 = vpack.c.b16 %v1990, %v1986
        %v2343 = vpack.c.b16 %v1991, %v1987
        %v2344 = vpack.c.b16 %v1992, %v1988
        %v2345 = vpack.c.b16 %v1993, %v1989
        %v2346 = vpack.c.b16 %v1998, %v1994
        %v2347 = vpack.c.b16 %v1999, %v1995
        %v2348 = vpack.c.b16 %v2000, %v1996
        %v2349 = vpack.c.b16 %v2001, %v1997
        %v2350 = vpack.c.b16 %v2006, %v2002
        %v2351 = vpack.c.b16 %v2007, %v2003
        %v2352 = vpack.c.b16 %v2008, %v2004
        %v2353 = vpack.c.b16 %v2009, %v2005
        %v2354 = vpack.c.b16 %v2014, %v2010
        %v2355 = vpack.c.b16 %v2015, %v2011
        %v2356 = vpack.c.b16 %v2016, %v2012
        %v2357 = vpack.c.b16 %v2017, %v2013
        %v2358 = vpack.c.b16 %v2022, %v2018
        %v2359 = vpack.c.b16 %v2023, %v2019
        %v2360 = vpack.c.b16 %v2024, %v2020
        %v2361 = vpack.c.b16 %v2025, %v2021
        %v2362 = vpack.c.b16 %v2030, %v2026
        %v2363 = vpack.c.b16 %v2031, %v2027
        %v2364 = vpack.c.b16 %v2032, %v2028
        %v2365 = vpack.c.b16 %v2033, %v2029
        %v2366 = vpack.c.b16 %v2038, %v2034
        %v2367 = vpack.c.b16 %v2039, %v2035
        %v2368 = vpack.c.b16 %v2040, %v2036
        %v2369 = vpack.c.b16 %v2041, %v2037
        %v2370 = vpack.c.b16 %v2046, %v2042
        %v2371 = vpack.c.b16 %v2047, %v2043
        %v2372 = vpack.c.b16 %v2048, %v2044
        %v2373 = vpack.c.b16 %v2049, %v2045
        %v2374 = vpack.c.b16 %v2054, %v2050
        %v2375 = vpack.c.b16 %v2055, %v2051
        %v2376 = vpack.c.b16 %v2056, %v2052
        %v2377 = vpack.c.b16 %v2057, %v2053
        %v2378 = vpack.c.b16 %v2062, %v2058
        %v2379 = vpack.c.b16 %v2063, %v2059
        %v2380 = vpack.c.b16 %v2064, %v2060
        %v2381 = vpack.c.b16 %v2065, %v2061
        %v2382 = vpack.c.b16 %v2070, %v2066
        %v2383 = vpack.c.b16 %v2071, %v2067
        %v2384 = vpack.c.b16 %v2072, %v2068
        %v2385 = vpack.c.b16 %v2073, %v2069
        %v2386 = vpack.c.b16 %v2078, %v2074
        %v2387 = vpack.c.b16 %v2079, %v2075
        %v2388 = vpack.c.b16 %v2080, %v2076
        %v2389 = vpack.c.b16 %v2081, %v2077
        %v2390 = vpack.c.b16 %v2086, %v2082
        %v2391 = vpack.c.b16 %v2087, %v2083
        %v2392 = vpack.c.b16 %v2088, %v2084
        %v2393 = vpack.c.b16 %v2089, %v2085
        %v2394 = vpack.c.b16 %v2094, %v2090
        %v2395 = vpack.c.b16 %v2095, %v2091
        %v2396 = vpack.c.b16 %v2096, %v2092
        %v2397 = vpack.c.b16 %v2097, %v2093
        %v2398 = vpack.c.b16 %v2102, %v2098
        %v2399 = vpack.c.b16 %v2103, %v2099
        %v2400 = vpack.c.b16 %v2104, %v2100
        %v2401 = vpack.c.b16 %v2105, %v2101
        %v2402 = vpack.c.b16 %v2110, %v2106
        %v2403 = vpack.c.b16 %v2111, %v2107
        %v2404 = vpack.c.b16 %v2112, %v2108
        %v2405 = vpack.c.b16 %v2113, %v2109
        %v2406 = vpack.c.b16 %v2118, %v2114
        %v2407 = vpack.c.b16 %v2119, %v2115
        %v2408 = vpack.c.b16 %v2120, %v2116
        %v2409 = vpack.c.b16 %v2121, %v2117
        %v2410 = vpack.c.b16 %v2126, %v2122
        %v2411 = vpack.c.b16 %v2127, %v2123
        %v2412 = vpack.c.b16 %v2128, %v2124
        %v2413 = vpack.c.b16 %v2129, %v2125
        %v2414 = vpack.c.b16 %v2134, %v2130
        %v2415 = vpack.c.b16 %v2135, %v2131
        %v2416 = vpack.c.b16 %v2136, %v2132
        %v2417 = vpack.c.b16 %v2137, %v2133
        %v2418 = vpack.c.b16 %v2142, %v2138
        %v2419 = vpack.c.b16 %v2143, %v2139
        %v2420 = vpack.c.b16 %v2144, %v2140
        %v2421 = vpack.c.b16 %v2145, %v2141
        %v2422 = vpack.c.b16 %v2150, %v2146
        %v2423 = vpack.c.b16 %v2151, %v2147
        %v2424 = vpack.c.b16 %v2152, %v2148
        %v2425 = vpack.c.b16 %v2153, %v2149
        %v2426 = vpack.c.b16 %v2158, %v2154
        %v2427 = vpack.c.b16 %v2159, %v2155
        %v2428 = vpack.c.b16 %v2160, %v2156
        %v2429 = vpack.c.b16 %v2161, %v2157
        %v2430 = vpack.c.b16 %v2166, %v2162
        %v2431 = vpack.c.b16 %v2167, %v2163
        %v2432 = vpack.c.b16 %v2168, %v2164
        %v2433 = vpack.c.b16 %v2169, %v2165
        %v2434 = vpack.c.b16 %v2174, %v2170
        %v2435 = vpack.c.b16 %v2175, %v2171
        %v2436 = vpack.c.b16 %v2176, %v2172
        %v2437 = vpack.c.b16 %v2177, %v2173
        %v2438 = vpack.c.b16 %v2182, %v2178
        %v2439 = vpack.c.b16 %v2183, %v2179
        %v2440 = vpack.c.b16 %v2184, %v2180
        %v2441 = vpack.c.b16 %v2185, %v2181
        %2698 = vmatprep.subr.bf16.mxu0 %v2215
        %2699 = vmatpush1.bf16.msra.mxu0 %v2214
        %2700 = vmatprep.subr.bf16.mxu0 %v2211
        %2701 = vmatpush1.bf16.msra.mxu0 %v2210
        %2702 = vmatprep.subr.bf16.mxu0 %v2207
        %2703 = vmatpush1.bf16.msra.mxu0 %v2206
        %2704 = vmatprep.subr.bf16.mxu0 %v2203
        %2705 = vmatpush1.bf16.msra.mxu0 %v2202
        %2706 = vmatprep.subr.bf16.mxu0 %v2199
        %2707 = vmatpush1.bf16.msra.mxu0 %v2198
        %2708 = vmatprep.subr.bf16.mxu0 %v2195
        %2709 = vmatpush1.bf16.msra.mxu0 %v2194
        %2710 = vmatprep.subr.bf16.mxu0 %v2191
        %2711 = vmatpush1.bf16.msra.mxu0 %v2190
        %2712 = vmatprep.subr.bf16.mxu0 %v2187
        %2713 = vmatpush1.bf16.msra.mxu0 %v2186
        %2714 = vmatprep.subr.bf16.mxu0 %v2247
        %2715 = vmatpush2.bf16.msra.mxu0 %v2246
        %2716 = vmatprep.subr.bf16.mxu0 %v2243
        %2717 = vmatpush2.bf16.msra.mxu0 %v2242
        %2718 = vmatprep.subr.bf16.mxu0 %v2239
        %2719 = vmatpush2.bf16.msra.mxu0 %v2238
        %2720 = vmatprep.subr.bf16.mxu0 %v2235
        %2721 = vmatpush2.bf16.msra.mxu0 %v2234
        %2722 = vmatprep.subr.bf16.mxu0 %v2231
        %2723 = vmatpush2.bf16.msra.mxu0 %v2230
        %2724 = vmatprep.subr.bf16.mxu0 %v2227
        %2725 = vmatpush2.bf16.msra.mxu0 %v2226
        %2726 = vmatprep.subr.bf16.mxu0 %v2223
        %2727 = vmatpush2.bf16.msra.mxu0 %v2222
        %2728 = vmatprep.subr.bf16.mxu0 %v2219
        %2729 = vmatpush2.bf16.msra.mxu0 %v2218
        %2730 = vmatprep.mubr.bf16.mxu0 %v1355
        %2731 = vmatmul.mubr.bf16.gmra.mxu0 %v1354
        %v2732 = vpop.f32.mrf.mxu0
        %v2733 = vadd.f32 0.0, %v2732
        %v2734 = vpop.f32.mrf.mxu0
        %v2735 = vadd.f32 0.0, %v2734
        %v2736 = vpop.f32.mrf.mxu0
        %v2737 = vadd.f32 0.0, %v2736
        %v2738 = vpop.f32.mrf.mxu0
        %v2739 = vadd.f32 0.0, %v2738
        %2740 = vmatprep.mubr.bf16.mxu0 %v1363
        %2741 = vmatmul.mubr.bf16.gmra.mxu0 %v1362
        %v2742 = vpop.f32.mrf.mxu0
        %v2743 = vadd.f32 0.0, %v2742
        %v2744 = vpop.f32.mrf.mxu0
        %v2745 = vadd.f32 0.0, %v2744
        %v2746 = vpop.f32.mrf.mxu0
        %v2747 = vadd.f32 0.0, %v2746
        %v2748 = vpop.f32.mrf.mxu0
        %v2749 = vadd.f32 0.0, %v2748
        %2750 = vmatprep.mubr.bf16.mxu0 %v1371
        %2751 = vmatmul.mubr.bf16.gmra.mxu0 %v1370
        %v2752 = vpop.f32.mrf.mxu0
        %v2753 = vadd.f32 0.0, %v2752
        %v2754 = vpop.f32.mrf.mxu0
        %v2755 = vadd.f32 0.0, %v2754
        %v2756 = vpop.f32.mrf.mxu0
        %v2757 = vadd.f32 0.0, %v2756
        %v2758 = vpop.f32.mrf.mxu0
        %v2759 = vadd.f32 0.0, %v2758
        %2760 = vmatprep.mubr.bf16.mxu0 %v1379
        %2761 = vmatmul.mubr.bf16.gmra.mxu0 %v1378
        %v2762 = vpop.f32.mrf.mxu0
        %v2763 = vadd.f32 0.0, %v2762
        %v2764 = vpop.f32.mrf.mxu0
        %v2765 = vadd.f32 0.0, %v2764
        %v2766 = vpop.f32.mrf.mxu0
        %v2767 = vadd.f32 0.0, %v2766
        %v2768 = vpop.f32.mrf.mxu0
        %v2769 = vadd.f32 0.0, %v2768
        %2770 = vdwg.mxu0
        %2771 = vmatprep.subr.bf16.mxu0 %v2279
        %2772 = vmatpush1.bf16.msra.mxu0 %v2278
        %2773 = vmatprep.subr.bf16.mxu0 %v2275
        %2774 = vmatpush1.bf16.msra.mxu0 %v2274
        %2775 = vmatprep.subr.bf16.mxu0 %v2271
        %2776 = vmatpush1.bf16.msra.mxu0 %v2270
        %2777 = vmatprep.subr.bf16.mxu0 %v2267
        %2778 = vmatpush1.bf16.msra.mxu0 %v2266
        %2779 = vmatprep.subr.bf16.mxu0 %v2263
        %2780 = vmatpush1.bf16.msra.mxu0 %v2262
        %2781 = vmatprep.subr.bf16.mxu0 %v2259
        %2782 = vmatpush1.bf16.msra.mxu0 %v2258
        %2783 = vmatprep.subr.bf16.mxu0 %v2255
        %2784 = vmatpush1.bf16.msra.mxu0 %v2254
        %2785 = vmatprep.subr.bf16.mxu0 %v2251
        %2786 = vmatpush1.bf16.msra.mxu0 %v2250
        %2787 = vmatprep.subr.bf16.mxu0 %v2311
        %2788 = vmatpush2.bf16.msra.mxu0 %v2310
        %2789 = vmatprep.subr.bf16.mxu0 %v2307
        %2790 = vmatpush2.bf16.msra.mxu0 %v2306
        %2791 = vmatprep.subr.bf16.mxu0 %v2303
        %2792 = vmatpush2.bf16.msra.mxu0 %v2302
        %2793 = vmatprep.subr.bf16.mxu0 %v2299
        %2794 = vmatpush2.bf16.msra.mxu0 %v2298
        %2795 = vmatprep.subr.bf16.mxu0 %v2295
        %2796 = vmatpush2.bf16.msra.mxu0 %v2294
        %2797 = vmatprep.subr.bf16.mxu0 %v2291
        %2798 = vmatpush2.bf16.msra.mxu0 %v2290
        %2799 = vmatprep.subr.bf16.mxu0 %v2287
        %2800 = vmatpush2.bf16.msra.mxu0 %v2286
        %2801 = vmatprep.subr.bf16.mxu0 %v2283
        %2802 = vmatpush2.bf16.msra.mxu0 %v2282
        %2803 = vmatprep.mubr.bf16.mxu0 %v1357
        %2804 = vmatmul.mubr.bf16.gmra.mxu0 %v1356
        %v2805 = vpop.f32.mrf.mxu0
        %v2806 = vadd.f32 %v2733, %v2805
        %v2807 = vpop.f32.mrf.mxu0
        %v2808 = vadd.f32 %v2735, %v2807
        %v2809 = vpop.f32.mrf.mxu0
        %v2810 = vadd.f32 %v2737, %v2809
        %v2811 = vpop.f32.mrf.mxu0
        %v2812 = vadd.f32 %v2739, %v2811
        %2813 = vmatprep.mubr.bf16.mxu0 %v1365
        %2814 = vmatmul.mubr.bf16.gmra.mxu0 %v1364
        %v2815 = vpop.f32.mrf.mxu0
        %v2816 = vadd.f32 %v2743, %v2815
        %v2817 = vpop.f32.mrf.mxu0
        %v2818 = vadd.f32 %v2745, %v2817
        %v2819 = vpop.f32.mrf.mxu0
        %v2820 = vadd.f32 %v2747, %v2819
        %v2821 = vpop.f32.mrf.mxu0
        %v2822 = vadd.f32 %v2749, %v2821
        %2823 = vmatprep.mubr.bf16.mxu0 %v1373
        %2824 = vmatmul.mubr.bf16.gmra.mxu0 %v1372
        %v2825 = vpop.f32.mrf.mxu0
        %v2826 = vadd.f32 %v2753, %v2825
        %v2827 = vpop.f32.mrf.mxu0
        %v2828 = vadd.f32 %v2755, %v2827
        %v2829 = vpop.f32.mrf.mxu0
        %v2830 = vadd.f32 %v2757, %v2829
        %v2831 = vpop.f32.mrf.mxu0
        %v2832 = vadd.f32 %v2759, %v2831
        %2833 = vmatprep.mubr.bf16.mxu0 %v1381
        %2834 = vmatmul.mubr.bf16.gmra.mxu0 %v1380
        %v2835 = vpop.f32.mrf.mxu0
        %v2836 = vadd.f32 %v2763, %v2835
        %v2837 = vpop.f32.mrf.mxu0
        %v2838 = vadd.f32 %v2765, %v2837
        %v2839 = vpop.f32.mrf.mxu0
        %v2840 = vadd.f32 %v2767, %v2839
        %v2841 = vpop.f32.mrf.mxu0
        %v2842 = vadd.f32 %v2769, %v2841
        %2843 = vdwg.mxu0
        %2844 = vmatprep.subr.bf16.mxu0 %v2343
        %2845 = vmatpush1.bf16.msra.mxu0 %v2342
        %2846 = vmatprep.subr.bf16.mxu0 %v2339
        %2847 = vmatpush1.bf16.msra.mxu0 %v2338
        %2848 = vmatprep.subr.bf16.mxu0 %v2335
        %2849 = vmatpush1.bf16.msra.mxu0 %v2334
        %2850 = vmatprep.subr.bf16.mxu0 %v2331
        %2851 = vmatpush1.bf16.msra.mxu0 %v2330
        %2852 = vmatprep.subr.bf16.mxu0 %v2327
        %2853 = vmatpush1.bf16.msra.mxu0 %v2326
        %2854 = vmatprep.subr.bf16.mxu0 %v2323
        %2855 = vmatpush1.bf16.msra.mxu0 %v2322
        %2856 = vmatprep.subr.bf16.mxu0 %v2319
        %2857 = vmatpush1.bf16.msra.mxu0 %v2318
        %2858 = vmatprep.subr.bf16.mxu0 %v2315
        %2859 = vmatpush1.bf16.msra.mxu0 %v2314
        %2860 = vmatprep.subr.bf16.mxu0 %v2375
        %2861 = vmatpush2.bf16.msra.mxu0 %v2374
        %2862 = vmatprep.subr.bf16.mxu0 %v2371
        %2863 = vmatpush2.bf16.msra.mxu0 %v2370
        %2864 = vmatprep.subr.bf16.mxu0 %v2367
        %2865 = vmatpush2.bf16.msra.mxu0 %v2366
        %2866 = vmatprep.subr.bf16.mxu0 %v2363
        %2867 = vmatpush2.bf16.msra.mxu0 %v2362
        %2868 = vmatprep.subr.bf16.mxu0 %v2359
        %2869 = vmatpush2.bf16.msra.mxu0 %v2358
        %2870 = vmatprep.subr.bf16.mxu0 %v2355
        %2871 = vmatpush2.bf16.msra.mxu0 %v2354
        %2872 = vmatprep.subr.bf16.mxu0 %v2351
        %2873 = vmatpush2.bf16.msra.mxu0 %v2350
        %2874 = vmatprep.subr.bf16.mxu0 %v2347
        %2875 = vmatpush2.bf16.msra.mxu0 %v2346
        %2876 = vmatprep.mubr.bf16.mxu0 %v1359
        %2877 = vmatmul.mubr.bf16.gmra.mxu0 %v1358
        %v2878 = vpop.f32.mrf.mxu0
        %v2879 = vadd.f32 %v2806, %v2878
        %v2880 = vpop.f32.mrf.mxu0
        %v2881 = vadd.f32 %v2808, %v2880
        %v2882 = vpop.f32.mrf.mxu0
        %v2883 = vadd.f32 %v2810, %v2882
        %v2884 = vpop.f32.mrf.mxu0
        %v2885 = vadd.f32 %v2812, %v2884
        %2886 = vmatprep.mubr.bf16.mxu0 %v1367
        %2887 = vmatmul.mubr.bf16.gmra.mxu0 %v1366
        %v2888 = vpop.f32.mrf.mxu0
        %v2889 = vadd.f32 %v2816, %v2888
        %v2890 = vpop.f32.mrf.mxu0
        %v2891 = vadd.f32 %v2818, %v2890
        %v2892 = vpop.f32.mrf.mxu0
        %v2893 = vadd.f32 %v2820, %v2892
        %v2894 = vpop.f32.mrf.mxu0
        %v2895 = vadd.f32 %v2822, %v2894
        %2896 = vmatprep.mubr.bf16.mxu0 %v1375
        %2897 = vmatmul.mubr.bf16.gmra.mxu0 %v1374
        %v2898 = vpop.f32.mrf.mxu0
        %v2899 = vadd.f32 %v2826, %v2898
        %v2900 = vpop.f32.mrf.mxu0
        %v2901 = vadd.f32 %v2828, %v2900
        %v2902 = vpop.f32.mrf.mxu0
        %v2903 = vadd.f32 %v2830, %v2902
        %v2904 = vpop.f32.mrf.mxu0
        %v2905 = vadd.f32 %v2832, %v2904
        %2906 = vmatprep.mubr.bf16.mxu0 %v1383
        %2907 = vmatmul.mubr.bf16.gmra.mxu0 %v1382
        %v2908 = vpop.f32.mrf.mxu0
        %v2909 = vadd.f32 %v2836, %v2908
        %v2910 = vpop.f32.mrf.mxu0
        %v2911 = vadd.f32 %v2838, %v2910
        %v2912 = vpop.f32.mrf.mxu0
        %v2913 = vadd.f32 %v2840, %v2912
        %v2914 = vpop.f32.mrf.mxu0
        %v2915 = vadd.f32 %v2842, %v2914
        %2916 = vdwg.mxu0
        %2917 = vmatprep.subr.bf16.mxu0 %v2407
        %2918 = vmatpush1.bf16.msra.mxu0 %v2406
        %2919 = vmatprep.subr.bf16.mxu0 %v2403
        %2920 = vmatpush1.bf16.msra.mxu0 %v2402
        %2921 = vmatprep.subr.bf16.mxu0 %v2399
        %2922 = vmatpush1.bf16.msra.mxu0 %v2398
        %2923 = vmatprep.subr.bf16.mxu0 %v2395
        %2924 = vmatpush1.bf16.msra.mxu0 %v2394
        %2925 = vmatprep.subr.bf16.mxu0 %v2391
        %2926 = vmatpush1.bf16.msra.mxu0 %v2390
        %2927 = vmatprep.subr.bf16.mxu0 %v2387
        %2928 = vmatpush1.bf16.msra.mxu0 %v2386
        %2929 = vmatprep.subr.bf16.mxu0 %v2383
        %2930 = vmatpush1.bf16.msra.mxu0 %v2382
        %2931 = vmatprep.subr.bf16.mxu0 %v2379
        %2932 = vmatpush1.bf16.msra.mxu0 %v2378
        %2933 = vmatprep.subr.bf16.mxu0 %v2439
        %2934 = vmatpush2.bf16.msra.mxu0 %v2438
        %2935 = vmatprep.subr.bf16.mxu0 %v2435
        %2936 = vmatpush2.bf16.msra.mxu0 %v2434
        %2937 = vmatprep.subr.bf16.mxu0 %v2431
        %2938 = vmatpush2.bf16.msra.mxu0 %v2430
        %2939 = vmatprep.subr.bf16.mxu0 %v2427
        %2940 = vmatpush2.bf16.msra.mxu0 %v2426
        %2941 = vmatprep.subr.bf16.mxu0 %v2423
        %2942 = vmatpush2.bf16.msra.mxu0 %v2422
        %2943 = vmatprep.subr.bf16.mxu0 %v2419
        %2944 = vmatpush2.bf16.msra.mxu0 %v2418
        %2945 = vmatprep.subr.bf16.mxu0 %v2415
        %2946 = vmatpush2.bf16.msra.mxu0 %v2414
        %2947 = vmatprep.subr.bf16.mxu0 %v2411
        %2948 = vmatpush2.bf16.msra.mxu0 %v2410
        %2949 = vmatprep.mubr.bf16.mxu0 %v1361
        %2950 = vmatmul.mubr.bf16.gmra.mxu0 %v1360
        %v2951 = vpop.f32.mrf.mxu0
        %v2952 = vadd.f32 %v2879, %v2951
        %v2953 = vpop.f32.mrf.mxu0
        %v2954 = vadd.f32 %v2881, %v2953
        %v2955 = vpop.f32.mrf.mxu0
        %v2956 = vadd.f32 %v2883, %v2955
        %v2957 = vpop.f32.mrf.mxu0
        %v2958 = vadd.f32 %v2885, %v2957
        %2959 = vmatprep.mubr.bf16.mxu0 %v1369
        %2960 = vmatmul.mubr.bf16.gmra.mxu0 %v1368
        %v2961 = vpop.f32.mrf.mxu0
        %v2962 = vadd.f32 %v2889, %v2961
        %v2963 = vpop.f32.mrf.mxu0
        %v2964 = vadd.f32 %v2891, %v2963
        %v2965 = vpop.f32.mrf.mxu0
        %v2966 = vadd.f32 %v2893, %v2965
        %v2967 = vpop.f32.mrf.mxu0
        %v2968 = vadd.f32 %v2895, %v2967
        %2969 = vmatprep.mubr.bf16.mxu0 %v1377
        %2970 = vmatmul.mubr.bf16.gmra.mxu0 %v1376
        %v2971 = vpop.f32.mrf.mxu0
        %v2972 = vadd.f32 %v2899, %v2971
        %v2973 = vpop.f32.mrf.mxu0
        %v2974 = vadd.f32 %v2901, %v2973
        %v2975 = vpop.f32.mrf.mxu0
        %v2976 = vadd.f32 %v2903, %v2975
        %v2977 = vpop.f32.mrf.mxu0
        %v2978 = vadd.f32 %v2905, %v2977
        %2979 = vmatprep.mubr.bf16.mxu0 %v1385
        %2980 = vmatmul.mubr.bf16.gmra.mxu0 %v1384
        %v2981 = vpop.f32.mrf.mxu0
        %v2982 = vadd.f32 %v2909, %v2981
        %v2983 = vpop.f32.mrf.mxu0
        %v2984 = vadd.f32 %v2911, %v2983
        %v2985 = vpop.f32.mrf.mxu0
        %v2986 = vadd.f32 %v2913, %v2985
        %v2987 = vpop.f32.mrf.mxu0
        %v2988 = vadd.f32 %v2915, %v2987
        %2989 = vdwg.mxu0
        %2990 = vmatprep.subr.bf16.mxu0 %v2217
        %2991 = vmatpush1.bf16.msra.mxu0 %v2216
        %2992 = vmatprep.subr.bf16.mxu0 %v2213
        %2993 = vmatpush1.bf16.msra.mxu0 %v2212
        %2994 = vmatprep.subr.bf16.mxu0 %v2209
        %2995 = vmatpush1.bf16.msra.mxu0 %v2208
        %2996 = vmatprep.subr.bf16.mxu0 %v2205
        %2997 = vmatpush1.bf16.msra.mxu0 %v2204
        %2998 = vmatprep.subr.bf16.mxu0 %v2201
        %2999 = vmatpush1.bf16.msra.mxu0 %v2200
        %3000 = vmatprep.subr.bf16.mxu0 %v2197
        %3001 = vmatpush1.bf16.msra.mxu0 %v2196
        %3002 = vmatprep.subr.bf16.mxu0 %v2193
        %3003 = vmatpush1.bf16.msra.mxu0 %v2192
        %3004 = vmatprep.subr.bf16.mxu0 %v2189
        %3005 = vmatpush1.bf16.msra.mxu0 %v2188
        %3006 = vmatprep.subr.bf16.mxu0 %v2249
        %3007 = vmatpush2.bf16.msra.mxu0 %v2248
        %3008 = vmatprep.subr.bf16.mxu0 %v2245
        %3009 = vmatpush2.bf16.msra.mxu0 %v2244
        %3010 = vmatprep.subr.bf16.mxu0 %v2241
        %3011 = vmatpush2.bf16.msra.mxu0 %v2240
        %3012 = vmatprep.subr.bf16.mxu0 %v2237
        %3013 = vmatpush2.bf16.msra.mxu0 %v2236
        %3014 = vmatprep.subr.bf16.mxu0 %v2233
        %3015 = vmatpush2.bf16.msra.mxu0 %v2232
        %3016 = vmatprep.subr.bf16.mxu0 %v2229
        %3017 = vmatpush2.bf16.msra.mxu0 %v2228
        %3018 = vmatprep.subr.bf16.mxu0 %v2225
        %3019 = vmatpush2.bf16.msra.mxu0 %v2224
        %3020 = vmatprep.subr.bf16.mxu0 %v2221
        %3021 = vmatpush2.bf16.msra.mxu0 %v2220
        %3022 = vmatprep.mubr.bf16.mxu0 %v1355
        %3023 = vmatmul.mubr.bf16.gmra.mxu0 %v1354
        %v3024 = vpop.f32.mrf.mxu0
        %v3025 = vadd.f32 0.0, %v3024
        %v3026 = vpop.f32.mrf.mxu0
        %v3027 = vadd.f32 0.0, %v3026
        %v3028 = vpop.f32.mrf.mxu0
        %v3029 = vadd.f32 0.0, %v3028
        %v3030 = vpop.f32.mrf.mxu0
        %v3031 = vadd.f32 0.0, %v3030
        %3032 = vmatprep.mubr.bf16.mxu0 %v1363
        %3033 = vmatmul.mubr.bf16.gmra.mxu0 %v1362
        %v3034 = vpop.f32.mrf.mxu0
        %v3035 = vadd.f32 0.0, %v3034
        %v3036 = vpop.f32.mrf.mxu0
        %v3037 = vadd.f32 0.0, %v3036
        %v3038 = vpop.f32.mrf.mxu0
        %v3039 = vadd.f32 0.0, %v3038
        %v3040 = vpop.f32.mrf.mxu0
        %v3041 = vadd.f32 0.0, %v3040
        %3042 = vmatprep.mubr.bf16.mxu0 %v1371
        %3043 = vmatmul.mubr.bf16.gmra.mxu0 %v1370
        %v3044 = vpop.f32.mrf.mxu0
        %v3045 = vadd.f32 0.0, %v3044
        %v3046 = vpop.f32.mrf.mxu0
        %v3047 = vadd.f32 0.0, %v3046
        %v3048 = vpop.f32.mrf.mxu0
        %v3049 = vadd.f32 0.0, %v3048
        %v3050 = vpop.f32.mrf.mxu0
        %v3051 = vadd.f32 0.0, %v3050
        %3052 = vmatprep.mubr.bf16.mxu0 %v1379
        %3053 = vmatmul.mubr.bf16.gmra.mxu0 %v1378
        %v3054 = vpop.f32.mrf.mxu0
        %v3055 = vadd.f32 0.0, %v3054
        %v3056 = vpop.f32.mrf.mxu0
        %v3057 = vadd.f32 0.0, %v3056
        %v3058 = vpop.f32.mrf.mxu0
        %v3059 = vadd.f32 0.0, %v3058
        %v3060 = vpop.f32.mrf.mxu0
        %v3061 = vadd.f32 0.0, %v3060
        %3062 = vdwg.mxu0
        %3063 = vmatprep.subr.bf16.mxu0 %v2281
        %3064 = vmatpush1.bf16.msra.mxu0 %v2280
        %3065 = vmatprep.subr.bf16.mxu0 %v2277
        %3066 = vmatpush1.bf16.msra.mxu0 %v2276
        %3067 = vmatprep.subr.bf16.mxu0 %v2273
        %3068 = vmatpush1.bf16.msra.mxu0 %v2272
        %3069 = vmatprep.subr.bf16.mxu0 %v2269
        %3070 = vmatpush1.bf16.msra.mxu0 %v2268
        %3071 = vmatprep.subr.bf16.mxu0 %v2265
        %3072 = vmatpush1.bf16.msra.mxu0 %v2264
        %3073 = vmatprep.subr.bf16.mxu0 %v2261
        %3074 = vmatpush1.bf16.msra.mxu0 %v2260
        %3075 = vmatprep.subr.bf16.mxu0 %v2257
        %3076 = vmatpush1.bf16.msra.mxu0 %v2256
        %3077 = vmatprep.subr.bf16.mxu0 %v2253
        %3078 = vmatpush1.bf16.msra.mxu0 %v2252
        %3079 = vmatprep.subr.bf16.mxu0 %v2313
        %3080 = vmatpush2.bf16.msra.mxu0 %v2312
        %3081 = vmatprep.subr.bf16.mxu0 %v2309
        %3082 = vmatpush2.bf16.msra.mxu0 %v2308
        %3083 = vmatprep.subr.bf16.mxu0 %v2305
        %3084 = vmatpush2.bf16.msra.mxu0 %v2304
        %3085 = vmatprep.subr.bf16.mxu0 %v2301
        %3086 = vmatpush2.bf16.msra.mxu0 %v2300
        %3087 = vmatprep.subr.bf16.mxu0 %v2297
        %3088 = vmatpush2.bf16.msra.mxu0 %v2296
        %3089 = vmatprep.subr.bf16.mxu0 %v2293
        %3090 = vmatpush2.bf16.msra.mxu0 %v2292
        %3091 = vmatprep.subr.bf16.mxu0 %v2289
        %3092 = vmatpush2.bf16.msra.mxu0 %v2288
        %3093 = vmatprep.subr.bf16.mxu0 %v2285
        %3094 = vmatpush2.bf16.msra.mxu0 %v2284
        %3095 = vmatprep.mubr.bf16.mxu0 %v1357
        %3096 = vmatmul.mubr.bf16.gmra.mxu0 %v1356
        %v3097 = vpop.f32.mrf.mxu0
        %v3098 = vadd.f32 %v3025, %v3097
        %v3099 = vpop.f32.mrf.mxu0
        %v3100 = vadd.f32 %v3027, %v3099
        %v3101 = vpop.f32.mrf.mxu0
        %v3102 = vadd.f32 %v3029, %v3101
        %v3103 = vpop.f32.mrf.mxu0
        %v3104 = vadd.f32 %v3031, %v3103
        %3105 = vmatprep.mubr.bf16.mxu0 %v1365
        %3106 = vmatmul.mubr.bf16.gmra.mxu0 %v1364
        %v3107 = vpop.f32.mrf.mxu0
        %v3108 = vadd.f32 %v3035, %v3107
        %v3109 = vpop.f32.mrf.mxu0
        %v3110 = vadd.f32 %v3037, %v3109
        %v3111 = vpop.f32.mrf.mxu0
        %v3112 = vadd.f32 %v3039, %v3111
        %v3113 = vpop.f32.mrf.mxu0
        %v3114 = vadd.f32 %v3041, %v3113
        %3115 = vmatprep.mubr.bf16.mxu0 %v1373
        %3116 = vmatmul.mubr.bf16.gmra.mxu0 %v1372
        %v3117 = vpop.f32.mrf.mxu0
        %v3118 = vadd.f32 %v3045, %v3117
        %v3119 = vpop.f32.mrf.mxu0
        %v3120 = vadd.f32 %v3047, %v3119
        %v3121 = vpop.f32.mrf.mxu0
        %v3122 = vadd.f32 %v3049, %v3121
        %v3123 = vpop.f32.mrf.mxu0
        %v3124 = vadd.f32 %v3051, %v3123
        %3125 = vmatprep.mubr.bf16.mxu0 %v1381
        %3126 = vmatmul.mubr.bf16.gmra.mxu0 %v1380
        %v3127 = vpop.f32.mrf.mxu0
        %v3128 = vadd.f32 %v3055, %v3127
        %v3129 = vpop.f32.mrf.mxu0
        %v3130 = vadd.f32 %v3057, %v3129
        %v3131 = vpop.f32.mrf.mxu0
        %v3132 = vadd.f32 %v3059, %v3131
        %v3133 = vpop.f32.mrf.mxu0
        %v3134 = vadd.f32 %v3061, %v3133
        %3135 = vdwg.mxu0
        %3136 = vmatprep.subr.bf16.mxu0 %v2345
        %3137 = vmatpush1.bf16.msra.mxu0 %v2344
        %3138 = vmatprep.subr.bf16.mxu0 %v2341
        %3139 = vmatpush1.bf16.msra.mxu0 %v2340
        %3140 = vmatprep.subr.bf16.mxu0 %v2337
        %3141 = vmatpush1.bf16.msra.mxu0 %v2336
        %3142 = vmatprep.subr.bf16.mxu0 %v2333
        %3143 = vmatpush1.bf16.msra.mxu0 %v2332
        %3144 = vmatprep.subr.bf16.mxu0 %v2329
        %3145 = vmatpush1.bf16.msra.mxu0 %v2328
        %3146 = vmatprep.subr.bf16.mxu0 %v2325
        %3147 = vmatpush1.bf16.msra.mxu0 %v2324
        %3148 = vmatprep.subr.bf16.mxu0 %v2321
        %3149 = vmatpush1.bf16.msra.mxu0 %v2320
        %3150 = vmatprep.subr.bf16.mxu0 %v2317
        %3151 = vmatpush1.bf16.msra.mxu0 %v2316
        %3152 = vmatprep.subr.bf16.mxu0 %v2377
        %3153 = vmatpush2.bf16.msra.mxu0 %v2376
        %3154 = vmatprep.subr.bf16.mxu0 %v2373
        %3155 = vmatpush2.bf16.msra.mxu0 %v2372
        %3156 = vmatprep.subr.bf16.mxu0 %v2369
        %3157 = vmatpush2.bf16.msra.mxu0 %v2368
        %3158 = vmatprep.subr.bf16.mxu0 %v2365
        %3159 = vmatpush2.bf16.msra.mxu0 %v2364
        %3160 = vmatprep.subr.bf16.mxu0 %v2361
        %3161 = vmatpush2.bf16.msra.mxu0 %v2360
        %3162 = vmatprep.subr.bf16.mxu0 %v2357
        %3163 = vmatpush2.bf16.msra.mxu0 %v2356
        %3164 = vmatprep.subr.bf16.mxu0 %v2353
        %3165 = vmatpush2.bf16.msra.mxu0 %v2352
        %3166 = vmatprep.subr.bf16.mxu0 %v2349
        %3167 = vmatpush2.bf16.msra.mxu0 %v2348
        %3168 = vmatprep.mubr.bf16.mxu0 %v1359
        %3169 = vmatmul.mubr.bf16.gmra.mxu0 %v1358
        %v3170 = vpop.f32.mrf.mxu0
        %v3171 = vadd.f32 %v3098, %v3170
        %v3172 = vpop.f32.mrf.mxu0
        %v3173 = vadd.f32 %v3100, %v3172
        %v3174 = vpop.f32.mrf.mxu0
        %v3175 = vadd.f32 %v3102, %v3174
        %v3176 = vpop.f32.mrf.mxu0
        %v3177 = vadd.f32 %v3104, %v3176
        %3178 = vmatprep.mubr.bf16.mxu0 %v1367
        %3179 = vmatmul.mubr.bf16.gmra.mxu0 %v1366
        %v3180 = vpop.f32.mrf.mxu0
        %v3181 = vadd.f32 %v3108, %v3180
        %v3182 = vpop.f32.mrf.mxu0
        %v3183 = vadd.f32 %v3110, %v3182
        %v3184 = vpop.f32.mrf.mxu0
        %v3185 = vadd.f32 %v3112, %v3184
        %v3186 = vpop.f32.mrf.mxu0
        %v3187 = vadd.f32 %v3114, %v3186
        %3188 = vmatprep.mubr.bf16.mxu0 %v1375
        %3189 = vmatmul.mubr.bf16.gmra.mxu0 %v1374
        %v3190 = vpop.f32.mrf.mxu0
        %v3191 = vadd.f32 %v3118, %v3190
        %v3192 = vpop.f32.mrf.mxu0
        %v3193 = vadd.f32 %v3120, %v3192
        %v3194 = vpop.f32.mrf.mxu0
        %v3195 = vadd.f32 %v3122, %v3194
        %v3196 = vpop.f32.mrf.mxu0
        %v3197 = vadd.f32 %v3124, %v3196
        %3198 = vmatprep.mubr.bf16.mxu0 %v1383
        %3199 = vmatmul.mubr.bf16.gmra.mxu0 %v1382
        %v3200 = vpop.f32.mrf.mxu0
        %v3201 = vadd.f32 %v3128, %v3200
        %v3202 = vpop.f32.mrf.mxu0
        %v3203 = vadd.f32 %v3130, %v3202
        %v3204 = vpop.f32.mrf.mxu0
        %v3205 = vadd.f32 %v3132, %v3204
        %v3206 = vpop.f32.mrf.mxu0
        %v3207 = vadd.f32 %v3134, %v3206
        %3208 = vdwg.mxu0
        %3209 = vmatprep.subr.bf16.mxu0 %v2409
        %3210 = vmatpush1.bf16.msra.mxu0 %v2408
        %3211 = vmatprep.subr.bf16.mxu0 %v2405
        %3212 = vmatpush1.bf16.msra.mxu0 %v2404
        %3213 = vmatprep.subr.bf16.mxu0 %v2401
        %3214 = vmatpush1.bf16.msra.mxu0 %v2400
        %3215 = vmatprep.subr.bf16.mxu0 %v2397
        %3216 = vmatpush1.bf16.msra.mxu0 %v2396
        %3217 = vmatprep.subr.bf16.mxu0 %v2393
        %3218 = vmatpush1.bf16.msra.mxu0 %v2392
        %3219 = vmatprep.subr.bf16.mxu0 %v2389
        %3220 = vmatpush1.bf16.msra.mxu0 %v2388
        %3221 = vmatprep.subr.bf16.mxu0 %v2385
        %3222 = vmatpush1.bf16.msra.mxu0 %v2384
        %3223 = vmatprep.subr.bf16.mxu0 %v2381
        %3224 = vmatpush1.bf16.msra.mxu0 %v2380
        %3225 = vmatprep.subr.bf16.mxu0 %v2441
        %3226 = vmatpush2.bf16.msra.mxu0 %v2440
        %3227 = vmatprep.subr.bf16.mxu0 %v2437
        %3228 = vmatpush2.bf16.msra.mxu0 %v2436
        %3229 = vmatprep.subr.bf16.mxu0 %v2433
        %3230 = vmatpush2.bf16.msra.mxu0 %v2432
        %3231 = vmatprep.subr.bf16.mxu0 %v2429
        %3232 = vmatpush2.bf16.msra.mxu0 %v2428
        %3233 = vmatprep.subr.bf16.mxu0 %v2425
        %3234 = vmatpush2.bf16.msra.mxu0 %v2424
        %3235 = vmatprep.subr.bf16.mxu0 %v2421
        %3236 = vmatpush2.bf16.msra.mxu0 %v2420
        %3237 = vmatprep.subr.bf16.mxu0 %v2417
        %3238 = vmatpush2.bf16.msra.mxu0 %v2416
        %3239 = vmatprep.subr.bf16.mxu0 %v2413
        %3240 = vmatpush2.bf16.msra.mxu0 %v2412
        %3241 = vmatprep.mubr.bf16.mxu0 %v1361
        %3242 = vmatmul.mubr.bf16.gmra.mxu0 %v1360
        %v3243 = vpop.f32.mrf.mxu0
        %v3244 = vadd.f32 %v3171, %v3243
        %v3245 = vpop.f32.mrf.mxu0
        %v3246 = vadd.f32 %v3173, %v3245
        %v3247 = vpop.f32.mrf.mxu0
        %v3248 = vadd.f32 %v3175, %v3247
        %v3249 = vpop.f32.mrf.mxu0
        %v3250 = vadd.f32 %v3177, %v3249
        %3251 = vmatprep.mubr.bf16.mxu0 %v1369
        %3252 = vmatmul.mubr.bf16.gmra.mxu0 %v1368
        %v3253 = vpop.f32.mrf.mxu0
        %v3254 = vadd.f32 %v3181, %v3253
        %v3255 = vpop.f32.mrf.mxu0
        %v3256 = vadd.f32 %v3183, %v3255
        %v3257 = vpop.f32.mrf.mxu0
        %v3258 = vadd.f32 %v3185, %v3257
        %v3259 = vpop.f32.mrf.mxu0
        %v3260 = vadd.f32 %v3187, %v3259
        %3261 = vmatprep.mubr.bf16.mxu0 %v1377
        %3262 = vmatmul.mubr.bf16.gmra.mxu0 %v1376
        %v3263 = vpop.f32.mrf.mxu0
        %v3264 = vadd.f32 %v3191, %v3263
        %v3265 = vpop.f32.mrf.mxu0
        %v3266 = vadd.f32 %v3193, %v3265
        %v3267 = vpop.f32.mrf.mxu0
        %v3268 = vadd.f32 %v3195, %v3267
        %v3269 = vpop.f32.mrf.mxu0
        %v3270 = vadd.f32 %v3197, %v3269
        %3271 = vmatprep.mubr.bf16.mxu0 %v1385
        %3272 = vmatmul.mubr.bf16.gmra.mxu0 %v1384
        %v3273 = vpop.f32.mrf.mxu0
        %v3274 = vadd.f32 %v3201, %v3273
        %v3275 = vpop.f32.mrf.mxu0
        %v3276 = vadd.f32 %v3203, %v3275
        %v3277 = vpop.f32.mrf.mxu0
        %v3278 = vadd.f32 %v3205, %v3277
        %v3279 = vpop.f32.mrf.mxu0
        %v3280 = vadd.f32 %v3207, %v3279
        %3281 = vdwg.mxu0
        %v3282 = vadd.f32 %v2952, %v2956
        %v3283 = vadd.f32 %v3282, %v2962
        %v3284 = vadd.f32 %v3283, %v2966
        %v3285 = vadd.f32 %v3284, %v2972
        %v3286 = vadd.f32 %v3285, %v2976
        %v3287 = vadd.f32 %v3286, %v2982
        %v3288 = vadd.f32 %v3287, %v2986
        %v3289 = vrot.slane %v3288, 4
        %v3290 = vadd.f32 %v3288, %v3289
        %v3291 = vrot.slane %v3290, 2
        %v3292 = vadd.f32 %v3290, %v3291
        %v3293 = vrot.slane %v3292, 1
        %v3294 = vadd.f32 %v3292, %v3293
        %v3295 = vadd.f32 %v2954, %v2958
        %v3296 = vadd.f32 %v3295, %v2964
        %v3297 = vadd.f32 %v3296, %v2968
        %v3298 = vadd.f32 %v3297, %v2974
        %v3299 = vadd.f32 %v3298, %v2978
        %v3300 = vadd.f32 %v3299, %v2984
        %v3301 = vadd.f32 %v3300, %v2988
        %v3302 = vrot.slane %v3301, 4
        %v3303 = vadd.f32 %v3301, %v3302
        %v3304 = vrot.slane %v3303, 2
        %v3305 = vadd.f32 %v3303, %v3304
        %v3306 = vrot.slane %v3305, 1
        %v3307 = vadd.f32 %v3305, %v3306
        %v3308 = vadd.f32 %v3244, %v3248
        %v3309 = vadd.f32 %v3308, %v3254
        %v3310 = vadd.f32 %v3309, %v3258
        %v3311 = vadd.f32 %v3310, %v3264
        %v3312 = vadd.f32 %v3311, %v3268
        %v3313 = vadd.f32 %v3312, %v3274
        %v3314 = vadd.f32 %v3313, %v3278
        %v3315 = vrot.slane %v3314, 4
        %v3316 = vadd.f32 %v3314, %v3315
        %v3317 = vrot.slane %v3316, 2
        %v3318 = vadd.f32 %v3316, %v3317
        %v3319 = vrot.slane %v3318, 1
        %v3320 = vadd.f32 %v3318, %v3319
        %v3321 = vadd.f32 %v3246, %v3250
        %v3322 = vadd.f32 %v3321, %v3256
        %v3323 = vadd.f32 %v3322, %v3260
        %v3324 = vadd.f32 %v3323, %v3266
        %v3325 = vadd.f32 %v3324, %v3270
        %v3326 = vadd.f32 %v3325, %v3276
        %v3327 = vadd.f32 %v3326, %v3280
        %v3328 = vrot.slane %v3327, 4
        %v3329 = vadd.f32 %v3327, %v3328
        %v3330 = vrot.slane %v3329, 2
        %v3331 = vadd.f32 %v3329, %v3330
        %v3332 = vrot.slane %v3331, 1
        %v3333 = vadd.f32 %v3331, %v3332
        %v3334 = vmul.f32 %v3294, 0.015625
        %v3335 = vmul.f32 %v3307, 0.015625
        %v3336 = vmul.f32 %v3320, 0.015625
        %v3337 = vmul.f32 %v3333, 0.015625
        %v3338 = vmul.f32 %v2952, %v2952
        %v3339 = vmul.f32 %v2954, %v2954
        %v3340 = vmul.f32 %v3244, %v3244
        %v3341 = vmul.f32 %v3246, %v3246
        %v3342 = vmul.f32 %v2956, %v2956
        %v3343 = vmul.f32 %v2958, %v2958
        %v3344 = vmul.f32 %v3248, %v3248
        %v3345 = vmul.f32 %v3250, %v3250
        %v3346 = vmul.f32 %v2962, %v2962
        %v3347 = vmul.f32 %v2964, %v2964
        %v3348 = vmul.f32 %v3254, %v3254
        %v3349 = vmul.f32 %v3256, %v3256
        %v3350 = vmul.f32 %v2966, %v2966
        %v3351 = vmul.f32 %v2968, %v2968
        %v3352 = vmul.f32 %v3258, %v3258
        %v3353 = vmul.f32 %v3260, %v3260
        %v3354 = vmul.f32 %v2972, %v2972
        %v3355 = vmul.f32 %v2974, %v2974
        %v3356 = vmul.f32 %v3264, %v3264
        %v3357 = vmul.f32 %v3266, %v3266
        %v3358 = vmul.f32 %v2976, %v2976
        %v3359 = vmul.f32 %v2978, %v2978
        %v3360 = vmul.f32 %v3268, %v3268
        %v3361 = vmul.f32 %v3270, %v3270
        %v3362 = vmul.f32 %v2982, %v2982
        %v3363 = vmul.f32 %v2984, %v2984
        %v3364 = vmul.f32 %v3274, %v3274
        %v3365 = vmul.f32 %v3276, %v3276
        %v3366 = vmul.f32 %v2986, %v2986
        %v3367 = vmul.f32 %v2988, %v2988
        %v3368 = vmul.f32 %v3278, %v3278
        %v3369 = vmul.f32 %v3280, %v3280
        %v3370 = vadd.f32 %v3338, %v3342
        %v3371 = vadd.f32 %v3370, %v3346
        %v3372 = vadd.f32 %v3371, %v3350
        %v3373 = vadd.f32 %v3372, %v3354
        %v3374 = vadd.f32 %v3373, %v3358
        %v3375 = vadd.f32 %v3374, %v3362
        %v3376 = vadd.f32 %v3375, %v3366
        %v3377 = vrot.slane %v3376, 4
        %v3378 = vadd.f32 %v3376, %v3377
        %v3379 = vrot.slane %v3378, 2
        %v3380 = vadd.f32 %v3378, %v3379
        %v3381 = vrot.slane %v3380, 1
        %v3382 = vadd.f32 %v3380, %v3381
        %v3383 = vadd.f32 %v3339, %v3343
        %v3384 = vadd.f32 %v3383, %v3347
        %v3385 = vadd.f32 %v3384, %v3351
        %v3386 = vadd.f32 %v3385, %v3355
        %v3387 = vadd.f32 %v3386, %v3359
        %v3388 = vadd.f32 %v3387, %v3363
        %v3389 = vadd.f32 %v3388, %v3367
        %v3390 = vrot.slane %v3389, 4
        %v3391 = vadd.f32 %v3389, %v3390
        %v3392 = vrot.slane %v3391, 2
        %v3393 = vadd.f32 %v3391, %v3392
        %v3394 = vrot.slane %v3393, 1
        %v3395 = vadd.f32 %v3393, %v3394
        %v3396 = vadd.f32 %v3340, %v3344
        %v3397 = vadd.f32 %v3396, %v3348
        %v3398 = vadd.f32 %v3397, %v3352
        %v3399 = vadd.f32 %v3398, %v3356
        %v3400 = vadd.f32 %v3399, %v3360
        %v3401 = vadd.f32 %v3400, %v3364
        %v3402 = vadd.f32 %v3401, %v3368
        %v3403 = vrot.slane %v3402, 4
        %v3404 = vadd.f32 %v3402, %v3403
        %v3405 = vrot.slane %v3404, 2
        %v3406 = vadd.f32 %v3404, %v3405
        %v3407 = vrot.slane %v3406, 1
        %v3408 = vadd.f32 %v3406, %v3407
        %v3409 = vadd.f32 %v3341, %v3345
        %v3410 = vadd.f32 %v3409, %v3349
        %v3411 = vadd.f32 %v3410, %v3353
        %v3412 = vadd.f32 %v3411, %v3357
        %v3413 = vadd.f32 %v3412, %v3361
        %v3414 = vadd.f32 %v3413, %v3365
        %v3415 = vadd.f32 %v3414, %v3369
        %v3416 = vrot.slane %v3415, 4
        %v3417 = vadd.f32 %v3415, %v3416
        %v3418 = vrot.slane %v3417, 2
        %v3419 = vadd.f32 %v3417, %v3418
        %v3420 = vrot.slane %v3419, 1
        %v3421 = vadd.f32 %v3419, %v3420
        %v3422 = vmul.f32 %v3382, 0.015625
        %v3423 = vmul.f32 %v3395, 0.015625
        %v3424 = vmul.f32 %v3408, 0.015625
        %v3425 = vmul.f32 %v3421, 0.015625
        %v3426 = vmul.f32 %v3334, %v3334
        %v3427 = vmul.f32 %v3335, %v3335
        %v3428 = vmul.f32 %v3336, %v3336
        %v3429 = vmul.f32 %v3337, %v3337
        %v3430 = vsub.f32 %v3422, %v3426
        %v3431 = vsub.f32 %v3423, %v3427
        %v3432 = vsub.f32 %v3424, %v3428
        %v3433 = vsub.f32 %v3425, %v3429
        %v3434 = vsub.f32 %v2952, %v3334
        %v3435 = vsub.f32 %v2954, %v3335
        %v3436 = vsub.f32 %v3244, %v3336
        %v3437 = vsub.f32 %v3246, %v3337
        %v3438 = vsub.f32 %v2956, %v3334
        %v3439 = vsub.f32 %v2958, %v3335
        %v3440 = vsub.f32 %v3248, %v3336
        %v3441 = vsub.f32 %v3250, %v3337
        %v3442 = vsub.f32 %v2962, %v3334
        %v3443 = vsub.f32 %v2964, %v3335
        %v3444 = vsub.f32 %v3254, %v3336
        %v3445 = vsub.f32 %v3256, %v3337
        %v3446 = vsub.f32 %v2966, %v3334
        %v3447 = vsub.f32 %v2968, %v3335
        %v3448 = vsub.f32 %v3258, %v3336
        %v3449 = vsub.f32 %v3260, %v3337
        %v3450 = vsub.f32 %v2972, %v3334
        %v3451 = vsub.f32 %v2974, %v3335
        %v3452 = vsub.f32 %v3264, %v3336
        %v3453 = vsub.f32 %v3266, %v3337
        %v3454 = vsub.f32 %v2976, %v3334
        %v3455 = vsub.f32 %v2978, %v3335
        %v3456 = vsub.f32 %v3268, %v3336
        %v3457 = vsub.f32 %v3270, %v3337
        %v3458 = vsub.f32 %v2982, %v3334
        %v3459 = vsub.f32 %v2984, %v3335
        %v3460 = vsub.f32 %v3274, %v3336
        %v3461 = vsub.f32 %v3276, %v3337
        %v3462 = vsub.f32 %v2986, %v3334
        %v3463 = vsub.f32 %v2988, %v3335
        %v3464 = vsub.f32 %v3278, %v3336
        %v3465 = vsub.f32 %v3280, %v3337
        %v3466 = vadd.f32 %v3430, 1e-05
        %v3467 = vadd.f32 %v3431, 1e-05
        %v3468 = vadd.f32 %v3432, 1e-05
        %v3469 = vadd.f32 %v3433, 1e-05
        %v3470 = vrsqrt.pop %v3466
        %v3471 = vrsqrt.pop %v3467
        %v3472 = vrsqrt.pop %v3468
        %v3473 = vrsqrt.pop %v3469
        %v3474 = vmul.f32 %v3434, %v3470
        %v3475 = vmul.f32 %v3435, %v3471
        %v3476 = vmul.f32 %v3436, %v3472
        %v3477 = vmul.f32 %v3437, %v3473
        %v3478 = vmul.f32 %v3438, %v3470
        %v3479 = vmul.f32 %v3439, %v3471
        %v3480 = vmul.f32 %v3440, %v3472
        %v3481 = vmul.f32 %v3441, %v3473
        %v3482 = vmul.f32 %v3442, %v3470
        %v3483 = vmul.f32 %v3443, %v3471
        %v3484 = vmul.f32 %v3444, %v3472
        %v3485 = vmul.f32 %v3445, %v3473
        %v3486 = vmul.f32 %v3446, %v3470
        %v3487 = vmul.f32 %v3447, %v3471
        %v3488 = vmul.f32 %v3448, %v3472
        %v3489 = vmul.f32 %v3449, %v3473
        %v3490 = vmul.f32 %v3450, %v3470
        %v3491 = vmul.f32 %v3451, %v3471
        %v3492 = vmul.f32 %v3452, %v3472
        %v3493 = vmul.f32 %v3453, %v3473
        %v3494 = vmul.f32 %v3454, %v3470
        %v3495 = vmul.f32 %v3455, %v3471
        %v3496 = vmul.f32 %v3456, %v3472
        %v3497 = vmul.f32 %v3457, %v3473
        %v3498 = vmul.f32 %v3458, %v3470
        %v3499 = vmul.f32 %v3459, %v3471
        %v3500 = vmul.f32 %v3460, %v3472
        %v3501 = vmul.f32 %v3461, %v3473
        %v3502 = vmul.f32 %v3462, %v3470
        %v3503 = vmul.f32 %v3463, %v3471
        %v3504 = vmul.f32 %v3464, %v3472
        %v3505 = vmul.f32 %v3465, %v3473
        %v3506 = vld [vmem:[%s912] sm:$0xf]
        %v3508 = vlaneseq
        %v3509 = vshrl.u32 %v3508, 7
        %v3510 = vsub.s32 0, %v3509
        %v3511 = vrot.slane %v3506, %v3510
        %v3512 = vlaneseq
        %v3513 = vshrl.u32 %v3512, 7
        %v3514 = vsub.s32 1, %v3513
        %v3515 = vrot.slane %v3506, %v3514
        %v3516 = vlaneseq
        %v3517 = vshrl.u32 %v3516, 7
        %v3518 = vsub.s32 2, %v3517
        %v3519 = vrot.slane %v3506, %v3518
        %v3520 = vlaneseq
        %v3521 = vshrl.u32 %v3520, 7
        %v3522 = vsub.s32 3, %v3521
        %v3523 = vrot.slane %v3506, %v3522
        %v3528 = vmul.f32 %v3474, %v3511
        %v3529 = vmul.f32 %v3475, %v3515
        %v3530 = vmul.f32 %v3476, %v3519
        %v3531 = vmul.f32 %v3477, %v3523
        %v3532 = vmul.f32 %v3478, %v3511
        %v3533 = vmul.f32 %v3479, %v3515
        %v3534 = vmul.f32 %v3480, %v3519
        %v3535 = vmul.f32 %v3481, %v3523
        %v3536 = vmul.f32 %v3482, %v3511
        %v3537 = vmul.f32 %v3483, %v3515
        %v3538 = vmul.f32 %v3484, %v3519
        %v3539 = vmul.f32 %v3485, %v3523
        %v3540 = vmul.f32 %v3486, %v3511
        %v3541 = vmul.f32 %v3487, %v3515
        %v3542 = vmul.f32 %v3488, %v3519
        %v3543 = vmul.f32 %v3489, %v3523
        %v3544 = vmul.f32 %v3490, %v3511
        %v3545 = vmul.f32 %v3491, %v3515
        %v3546 = vmul.f32 %v3492, %v3519
        %v3547 = vmul.f32 %v3493, %v3523
        %v3548 = vmul.f32 %v3494, %v3511
        %v3549 = vmul.f32 %v3495, %v3515
        %v3550 = vmul.f32 %v3496, %v3519
        %v3551 = vmul.f32 %v3497, %v3523
        %v3552 = vmul.f32 %v3498, %v3511
        %v3553 = vmul.f32 %v3499, %v3515
        %v3554 = vmul.f32 %v3500, %v3519
        %v3555 = vmul.f32 %v3501, %v3523
        %v3556 = vmul.f32 %v3502, %v3511
        %v3557 = vmul.f32 %v3503, %v3515
        %v3558 = vmul.f32 %v3504, %v3519
        %v3559 = vmul.f32 %v3505, %v3523
        %v3560 = vld [vmem:[%s917] sm:$0xf]
        %v3562 = vlaneseq
        %v3563 = vshrl.u32 %v3562, 7
        %v3564 = vsub.s32 0, %v3563
        %v3565 = vrot.slane %v3560, %v3564
        %v3566 = vlaneseq
        %v3567 = vshrl.u32 %v3566, 7
        %v3568 = vsub.s32 1, %v3567
        %v3569 = vrot.slane %v3560, %v3568
        %v3570 = vlaneseq
        %v3571 = vshrl.u32 %v3570, 7
        %v3572 = vsub.s32 2, %v3571
        %v3573 = vrot.slane %v3560, %v3572
        %v3574 = vlaneseq
        %v3575 = vshrl.u32 %v3574, 7
        %v3576 = vsub.s32 3, %v3575
        %v3577 = vrot.slane %v3560, %v3576
        %v3582 = vadd.f32 %v3528, %v3565
        %v3583 = vadd.f32 %v3529, %v3569
        %v3584 = vadd.f32 %v3530, %v3573
        %v3585 = vadd.f32 %v3531, %v3577
        %v3586 = vadd.f32 %v3532, %v3565
        %v3587 = vadd.f32 %v3533, %v3569
        %v3588 = vadd.f32 %v3534, %v3573
        %v3589 = vadd.f32 %v3535, %v3577
        %v3590 = vadd.f32 %v3536, %v3565
        %v3591 = vadd.f32 %v3537, %v3569
        %v3592 = vadd.f32 %v3538, %v3573
        %v3593 = vadd.f32 %v3539, %v3577
        %v3594 = vadd.f32 %v3540, %v3565
        %v3595 = vadd.f32 %v3541, %v3569
        %v3596 = vadd.f32 %v3542, %v3573
        %v3597 = vadd.f32 %v3543, %v3577
        %v3598 = vadd.f32 %v3544, %v3565
        %v3599 = vadd.f32 %v3545, %v3569
        %v3600 = vadd.f32 %v3546, %v3573
        %v3601 = vadd.f32 %v3547, %v3577
        %v3602 = vadd.f32 %v3548, %v3565
        %v3603 = vadd.f32 %v3549, %v3569
        %v3604 = vadd.f32 %v3550, %v3573
        %v3605 = vadd.f32 %v3551, %v3577
        %v3606 = vadd.f32 %v3552, %v3565
        %v3607 = vadd.f32 %v3553, %v3569
        %v3608 = vadd.f32 %v3554, %v3573
        %v3609 = vadd.f32 %v3555, %v3577
        %v3610 = vadd.f32 %v3556, %v3565
        %v3611 = vadd.f32 %v3557, %v3569
        %v3612 = vadd.f32 %v3558, %v3573
        %v3613 = vadd.f32 %v3559, %v3577
        %v3614 = vmax.f32 %v3582, 0.0
        %v3615 = vmax.f32 %v3583, 0.0
        %v3616 = vmax.f32 %v3584, 0.0
        %v3617 = vmax.f32 %v3585, 0.0
        %v3618 = vmax.f32 %v3586, 0.0
        %v3619 = vmax.f32 %v3587, 0.0
        %v3620 = vmax.f32 %v3588, 0.0
        %v3621 = vmax.f32 %v3589, 0.0
        %v3622 = vmax.f32 %v3590, 0.0
        %v3623 = vmax.f32 %v3591, 0.0
        %v3624 = vmax.f32 %v3592, 0.0
        %v3625 = vmax.f32 %v3593, 0.0
        %v3626 = vmax.f32 %v3594, 0.0
        %v3627 = vmax.f32 %v3595, 0.0
        %v3628 = vmax.f32 %v3596, 0.0
        %v3629 = vmax.f32 %v3597, 0.0
        %v3630 = vmax.f32 %v3598, 0.0
        %v3631 = vmax.f32 %v3599, 0.0
        %v3632 = vmax.f32 %v3600, 0.0
        %v3633 = vmax.f32 %v3601, 0.0
        %v3634 = vmax.f32 %v3602, 0.0
        %v3635 = vmax.f32 %v3603, 0.0
        %v3636 = vmax.f32 %v3604, 0.0
        %v3637 = vmax.f32 %v3605, 0.0
        %v3638 = vmax.f32 %v3606, 0.0
        %v3639 = vmax.f32 %v3607, 0.0
        %v3640 = vmax.f32 %v3608, 0.0
        %v3641 = vmax.f32 %v3609, 0.0
        %v3642 = vmax.f32 %v3610, 0.0
        %v3643 = vmax.f32 %v3611, 0.0
        %v3644 = vmax.f32 %v3612, 0.0
        %v3645 = vmax.f32 %v3613, 0.0
        %v3646 = vpack.c.bf16 %v3618, %v3614
        %v3647 = vpack.c.bf16 %v3619, %v3615
        %v3648 = vpack.c.bf16 %v3620, %v3616
        %v3649 = vpack.c.bf16 %v3621, %v3617
        %v3650 = vpack.c.bf16 %v3626, %v3622
        %v3651 = vpack.c.bf16 %v3627, %v3623
        %v3652 = vpack.c.bf16 %v3628, %v3624
        %v3653 = vpack.c.bf16 %v3629, %v3625
        %v3654 = vpack.c.bf16 %v3634, %v3630
        %v3655 = vpack.c.bf16 %v3635, %v3631
        %v3656 = vpack.c.bf16 %v3636, %v3632
        %v3657 = vpack.c.bf16 %v3637, %v3633
        %v3658 = vpack.c.bf16 %v3642, %v3638
        %v3659 = vpack.c.bf16 %v3643, %v3639
        %v3660 = vpack.c.bf16 %v3644, %v3640
        %v3661 = vpack.c.bf16 %v3645, %v3641
        %v3662 = vld [vmem:[%s4] sm:$0xf]
        %v3663 = vld [vmem:[%s4 + $0x4] sm:$0xf]
        %v3664 = vld [vmem:[%s4 + $0x8] sm:$0xf]
        %v3665 = vld [vmem:[%s4 + $0xc] sm:$0xf]
        %v3666 = vld [vmem:[%s4 + $0x10] sm:$0xf]
        %v3667 = vld [vmem:[%s4 + $0x14] sm:$0xf]
        %v3668 = vld [vmem:[%s4 + $0x18] sm:$0xf]
        %v3669 = vld [vmem:[%s4 + $0x1c] sm:$0xf]
        %v3678 = vunpack.c.l.b16 %v3662
        %v3679 = vunpack.c.l.b16 %v3663
        %v3680 = vunpack.c.l.b16 %v3664
        %v3681 = vunpack.c.l.b16 %v3665
        %v3682 = vunpack.c.l.b16 %v3666
        %v3683 = vunpack.c.l.b16 %v3667
        %v3684 = vunpack.c.l.b16 %v3668
        %v3685 = vunpack.c.l.b16 %v3669
        %v3686 = vpack.c.b16 %v3679, %v3678
        %v3687 = vpack.c.b16 %v3681, %v3680
        %v3688 = vpack.c.b16 %v3683, %v3682
        %v3689 = vpack.c.b16 %v3685, %v3684
        %vm3690 = vcmask 523264
        %v3692 = vsel %vm3690, %v3686, 0
        %v3695 = vsel %vm3690, %v3687, 0
        %v3698 = vsel %vm3690, %v3688, 0
        %v3701 = vsel %vm3690, %v3689, 0
        %3703 = vmatprep.subr.bf16.mxu0 0
        %3704 = vmatpush1.bf16.msra.mxu0 0
        %3705 = vmatprep.subr.bf16.mxu0 0
        %3706 = vmatpush1.bf16.msra.mxu0 0
        %3707 = vmatprep.subr.bf16.mxu0 0
        %3708 = vmatpush1.bf16.msra.mxu0 0
        %3709 = vmatprep.subr.bf16.mxu0 0
        %3710 = vmatpush1.bf16.msra.mxu0 0
        %3711 = vmatprep.subr.bf16.mxu0 %v3659
        %3712 = vmatpush1.bf16.msra.mxu0 %v3658
        %3713 = vmatprep.subr.bf16.mxu0 %v3655
        %3714 = vmatpush1.bf16.msra.mxu0 %v3654
        %3715 = vmatprep.subr.bf16.mxu0 %v3651
        %3716 = vmatpush1.bf16.msra.mxu0 %v3650
        %3717 = vmatprep.subr.bf16.mxu0 %v3647
        %3718 = vmatpush1.bf16.msra.mxu0 %v3646
        %3719 = vmatprep.subr.bf16.mxu0 0
        %3720 = vmatpush2.bf16.msra.mxu0 0
        %3721 = vmatprep.subr.bf16.mxu0 0
        %3722 = vmatpush2.bf16.msra.mxu0 0
        %3723 = vmatprep.subr.bf16.mxu0 0
        %3724 = vmatpush2.bf16.msra.mxu0 0
        %3725 = vmatprep.subr.bf16.mxu0 0
        %3726 = vmatpush2.bf16.msra.mxu0 0
        %3727 = vmatprep.subr.bf16.mxu0 0
        %3728 = vmatpush2.bf16.msra.mxu0 0
        %3729 = vmatprep.subr.bf16.mxu0 0
        %3730 = vmatpush2.bf16.msra.mxu0 0
        %3731 = vmatprep.subr.bf16.mxu0 0
        %3732 = vmatpush2.bf16.msra.mxu0 0
        %3733 = vmatprep.subr.bf16.mxu0 0
        %3734 = vmatpush2.bf16.msra.mxu0 0
        %3735 = vmatprep.mubr.bf16.mxu0 0
        %3736 = vmatmul.mubr.bf16.gmra.mxu0 %v3692
        %v3737 = vpop.f32.mrf.mxu0
        %v3738 = vadd.f32 0.0, %v3737
        %v3739 = vpop.f32.mrf.mxu0
        %v3740 = vadd.f32 0.0, %v3739
        %v3741 = vpop.f32.mrf.mxu0
        %v3742 = vadd.f32 0.0, %v3741
        %v3743 = vpop.f32.mrf.mxu0
        %v3744 = vadd.f32 0.0, %v3743
        %3745 = vmatprep.mubr.bf16.mxu0 0
        %3746 = vmatmul.mubr.bf16.gmra.mxu0 %v3695
        %v3747 = vpop.f32.mrf.mxu0
        %v3748 = vadd.f32 0.0, %v3747
        %v3749 = vpop.f32.mrf.mxu0
        %v3750 = vadd.f32 0.0, %v3749
        %v3751 = vpop.f32.mrf.mxu0
        %v3752 = vadd.f32 0.0, %v3751
        %v3753 = vpop.f32.mrf.mxu0
        %v3754 = vadd.f32 0.0, %v3753
        %3755 = vmatprep.mubr.bf16.mxu0 0
        %3756 = vmatmul.mubr.bf16.gmra.mxu0 %v3698
        %v3757 = vpop.f32.mrf.mxu0
        %v3758 = vadd.f32 0.0, %v3757
        %v3759 = vpop.f32.mrf.mxu0
        %v3760 = vadd.f32 0.0, %v3759
        %v3761 = vpop.f32.mrf.mxu0
        %v3762 = vadd.f32 0.0, %v3761
        %v3763 = vpop.f32.mrf.mxu0
        %v3764 = vadd.f32 0.0, %v3763
        %3765 = vmatprep.mubr.bf16.mxu0 0
        %3766 = vmatmul.mubr.bf16.gmra.mxu0 %v3701
        %v3767 = vpop.f32.mrf.mxu0
        %v3768 = vadd.f32 0.0, %v3767
        %v3769 = vpop.f32.mrf.mxu0
        %v3770 = vadd.f32 0.0, %v3769
        %v3771 = vpop.f32.mrf.mxu0
        %v3772 = vadd.f32 0.0, %v3771
        %v3773 = vpop.f32.mrf.mxu0
        %v3774 = vadd.f32 0.0, %v3773
        %3775 = vdwg.mxu0
        %3776 = vmatprep.subr.bf16.mxu0 0
        %3777 = vmatpush1.bf16.msra.mxu0 0
        %3778 = vmatprep.subr.bf16.mxu0 0
        %3779 = vmatpush1.bf16.msra.mxu0 0
        %3780 = vmatprep.subr.bf16.mxu0 0
        %3781 = vmatpush1.bf16.msra.mxu0 0
        %3782 = vmatprep.subr.bf16.mxu0 0
        %3783 = vmatpush1.bf16.msra.mxu0 0
        %3784 = vmatprep.subr.bf16.mxu0 %v3661
        %3785 = vmatpush1.bf16.msra.mxu0 %v3660
        %3786 = vmatprep.subr.bf16.mxu0 %v3657
        %3787 = vmatpush1.bf16.msra.mxu0 %v3656
        %3788 = vmatprep.subr.bf16.mxu0 %v3653
        %3789 = vmatpush1.bf16.msra.mxu0 %v3652
        %3790 = vmatprep.subr.bf16.mxu0 %v3649
        %3791 = vmatpush1.bf16.msra.mxu0 %v3648
        %3792 = vmatprep.subr.bf16.mxu0 0
        %3793 = vmatpush2.bf16.msra.mxu0 0
        %3794 = vmatprep.subr.bf16.mxu0 0
        %3795 = vmatpush2.bf16.msra.mxu0 0
        %3796 = vmatprep.subr.bf16.mxu0 0
        %3797 = vmatpush2.bf16.msra.mxu0 0
        %3798 = vmatprep.subr.bf16.mxu0 0
        %3799 = vmatpush2.bf16.msra.mxu0 0
        %3800 = vmatprep.subr.bf16.mxu0 0
        %3801 = vmatpush2.bf16.msra.mxu0 0
        %3802 = vmatprep.subr.bf16.mxu0 0
        %3803 = vmatpush2.bf16.msra.mxu0 0
        %3804 = vmatprep.subr.bf16.mxu0 0
        %3805 = vmatpush2.bf16.msra.mxu0 0
        %3806 = vmatprep.subr.bf16.mxu0 0
        %3807 = vmatpush2.bf16.msra.mxu0 0
        %3808 = vmatprep.mubr.bf16.mxu0 0
        %3809 = vmatmul.mubr.bf16.gmra.mxu0 %v3692
        %v3810 = vpop.f32.mrf.mxu0
        %v3811 = vadd.f32 0.0, %v3810
        %v3812 = vpop.f32.mrf.mxu0
        %v3813 = vadd.f32 0.0, %v3812
        %v3814 = vpop.f32.mrf.mxu0
        %v3815 = vadd.f32 0.0, %v3814
        %v3816 = vpop.f32.mrf.mxu0
        %v3817 = vadd.f32 0.0, %v3816
        %3818 = vmatprep.mubr.bf16.mxu0 0
        %3819 = vmatmul.mubr.bf16.gmra.mxu0 %v3695
        %v3820 = vpop.f32.mrf.mxu0
        %v3821 = vadd.f32 0.0, %v3820
        %v3822 = vpop.f32.mrf.mxu0
        %v3823 = vadd.f32 0.0, %v3822
        %v3824 = vpop.f32.mrf.mxu0
        %v3825 = vadd.f32 0.0, %v3824
        %v3826 = vpop.f32.mrf.mxu0
        %v3827 = vadd.f32 0.0, %v3826
        %3828 = vmatprep.mubr.bf16.mxu0 0
        %3829 = vmatmul.mubr.bf16.gmra.mxu0 %v3698
        %v3830 = vpop.f32.mrf.mxu0
        %v3831 = vadd.f32 0.0, %v3830
        %v3832 = vpop.f32.mrf.mxu0
        %v3833 = vadd.f32 0.0, %v3832
        %v3834 = vpop.f32.mrf.mxu0
        %v3835 = vadd.f32 0.0, %v3834
        %v3836 = vpop.f32.mrf.mxu0
        %v3837 = vadd.f32 0.0, %v3836
        %3838 = vmatprep.mubr.bf16.mxu0 0
        %3839 = vmatmul.mubr.bf16.gmra.mxu0 %v3701
        %v3840 = vpop.f32.mrf.mxu0
        %v3841 = vadd.f32 0.0, %v3840
        %v3842 = vpop.f32.mrf.mxu0
        %v3843 = vadd.f32 0.0, %v3842
        %v3844 = vpop.f32.mrf.mxu0
        %v3845 = vadd.f32 0.0, %v3844
        %v3846 = vpop.f32.mrf.mxu0
        %v3847 = vadd.f32 0.0, %v3846
        %3848 = vdwg.mxu0
        %v3849 = vpack.c.bf16 %v3742, %v3738
        %v3850 = vpack.c.bf16 %v3744, %v3740
        %v3851 = vpack.c.bf16 %v3815, %v3811
        %v3852 = vpack.c.bf16 %v3817, %v3813
        %v3853 = vpack.c.bf16 %v3752, %v3748
        %v3854 = vpack.c.bf16 %v3754, %v3750
        %v3855 = vpack.c.bf16 %v3825, %v3821
        %v3856 = vpack.c.bf16 %v3827, %v3823
        %v3857 = vpack.c.bf16 %v3762, %v3758
        %v3858 = vpack.c.bf16 %v3764, %v3760
        %v3859 = vpack.c.bf16 %v3835, %v3831
        %v3860 = vpack.c.bf16 %v3837, %v3833
        %v3861 = vpack.c.bf16 %v3772, %v3768
        %v3862 = vpack.c.bf16 %v3774, %v3770
        %v3863 = vpack.c.bf16 %v3845, %v3841
        %v3864 = vpack.c.bf16 %v3847, %v3843
        %s3865 = scalar_lea.vmem %s4, 32
        %v3866 = vld [vmem:[%s3865] sm:$0xf]
        %v3867 = vld [vmem:[%s3865 + $0x4] sm:$0xf]
        %v3868 = vld [vmem:[%s3865 + $0x8] sm:$0xf]
        %v3869 = vld [vmem:[%s3865 + $0xc] sm:$0xf]
        %v3870 = vld [vmem:[%s3865 + $0x10] sm:$0xf]
        %v3871 = vld [vmem:[%s3865 + $0x14] sm:$0xf]
        %v3872 = vld [vmem:[%s3865 + $0x18] sm:$0xf]
        %v3873 = vld [vmem:[%s3865 + $0x1c] sm:$0xf]
        %v3882 = vunpack.c.l.b16 %v3866
        %v3883 = vunpack.c.l.b16 %v3867
        %v3884 = vunpack.c.l.b16 %v3868
        %v3885 = vunpack.c.l.b16 %v3869
        %v3886 = vunpack.c.l.b16 %v3870
        %v3887 = vunpack.c.l.b16 %v3871
        %v3888 = vunpack.c.l.b16 %v3872
        %v3889 = vunpack.c.l.b16 %v3873
        %v3890 = vpack.c.b16 %v3883, %v3882
        %v3891 = vpack.c.b16 %v3885, %v3884
        %v3892 = vpack.c.b16 %v3887, %v3886
        %v3893 = vpack.c.b16 %v3889, %v3888
        %v3895 = vsel %vm3690, %v3890, 0
        %v3898 = vsel %vm3690, %v3891, 0
        %v3901 = vsel %vm3690, %v3892, 0
        %v3904 = vsel %vm3690, %v3893, 0
        %3906 = vmatprep.subr.bf16.mxu0 0
        %3907 = vmatpush1.bf16.msra.mxu0 0
        %3908 = vmatprep.subr.bf16.mxu0 0
        %3909 = vmatpush1.bf16.msra.mxu0 0
        %3910 = vmatprep.subr.bf16.mxu0 0
        %3911 = vmatpush1.bf16.msra.mxu0 0
        %3912 = vmatprep.subr.bf16.mxu0 0
        %3913 = vmatpush1.bf16.msra.mxu0 0
        %3914 = vmatprep.subr.bf16.mxu0 %v3659
        %3915 = vmatpush1.bf16.msra.mxu0 %v3658
        %3916 = vmatprep.subr.bf16.mxu0 %v3655
        %3917 = vmatpush1.bf16.msra.mxu0 %v3654
        %3918 = vmatprep.subr.bf16.mxu0 %v3651
        %3919 = vmatpush1.bf16.msra.mxu0 %v3650
        %3920 = vmatprep.subr.bf16.mxu0 %v3647
        %3921 = vmatpush1.bf16.msra.mxu0 %v3646
        %3922 = vmatprep.subr.bf16.mxu0 0
        %3923 = vmatpush2.bf16.msra.mxu0 0
        %3924 = vmatprep.subr.bf16.mxu0 0
        %3925 = vmatpush2.bf16.msra.mxu0 0
        %3926 = vmatprep.subr.bf16.mxu0 0
        %3927 = vmatpush2.bf16.msra.mxu0 0
        %3928 = vmatprep.subr.bf16.mxu0 0
        %3929 = vmatpush2.bf16.msra.mxu0 0
        %3930 = vmatprep.subr.bf16.mxu0 0
        %3931 = vmatpush2.bf16.msra.mxu0 0
        %3932 = vmatprep.subr.bf16.mxu0 0
        %3933 = vmatpush2.bf16.msra.mxu0 0
        %3934 = vmatprep.subr.bf16.mxu0 0
        %3935 = vmatpush2.bf16.msra.mxu0 0
        %3936 = vmatprep.subr.bf16.mxu0 0
        %3937 = vmatpush2.bf16.msra.mxu0 0
        %3938 = vmatprep.mubr.bf16.mxu0 0
        %3939 = vmatmul.mubr.bf16.gmra.mxu0 %v3895
        %v3940 = vpop.f32.mrf.mxu0
        %v3941 = vadd.f32 0.0, %v3940
        %v3942 = vpop.f32.mrf.mxu0
        %v3943 = vadd.f32 0.0, %v3942
        %v3944 = vpop.f32.mrf.mxu0
        %v3945 = vadd.f32 0.0, %v3944
        %v3946 = vpop.f32.mrf.mxu0
        %v3947 = vadd.f32 0.0, %v3946
        %3948 = vmatprep.mubr.bf16.mxu0 0
        %3949 = vmatmul.mubr.bf16.gmra.mxu0 %v3898
        %v3950 = vpop.f32.mrf.mxu0
        %v3951 = vadd.f32 0.0, %v3950
        %v3952 = vpop.f32.mrf.mxu0
        %v3953 = vadd.f32 0.0, %v3952
        %v3954 = vpop.f32.mrf.mxu0
        %v3955 = vadd.f32 0.0, %v3954
        %v3956 = vpop.f32.mrf.mxu0
        %v3957 = vadd.f32 0.0, %v3956
        %3958 = vmatprep.mubr.bf16.mxu0 0
        %3959 = vmatmul.mubr.bf16.gmra.mxu0 %v3901
        %v3960 = vpop.f32.mrf.mxu0
        %v3961 = vadd.f32 0.0, %v3960
        %v3962 = vpop.f32.mrf.mxu0
        %v3963 = vadd.f32 0.0, %v3962
        %v3964 = vpop.f32.mrf.mxu0
        %v3965 = vadd.f32 0.0, %v3964
        %v3966 = vpop.f32.mrf.mxu0
        %v3967 = vadd.f32 0.0, %v3966
        %3968 = vmatprep.mubr.bf16.mxu0 0
        %3969 = vmatmul.mubr.bf16.gmra.mxu0 %v3904
        %v3970 = vpop.f32.mrf.mxu0
        %v3971 = vadd.f32 0.0, %v3970
        %v3972 = vpop.f32.mrf.mxu0
        %v3973 = vadd.f32 0.0, %v3972
        %v3974 = vpop.f32.mrf.mxu0
        %v3975 = vadd.f32 0.0, %v3974
        %v3976 = vpop.f32.mrf.mxu0
        %v3977 = vadd.f32 0.0, %v3976
        %3978 = vdwg.mxu0
        %3979 = vmatprep.subr.bf16.mxu0 0
        %3980 = vmatpush1.bf16.msra.mxu0 0
        %3981 = vmatprep.subr.bf16.mxu0 0
        %3982 = vmatpush1.bf16.msra.mxu0 0
        %3983 = vmatprep.subr.bf16.mxu0 0
        %3984 = vmatpush1.bf16.msra.mxu0 0
        %3985 = vmatprep.subr.bf16.mxu0 0
        %3986 = vmatpush1.bf16.msra.mxu0 0
        %3987 = vmatprep.subr.bf16.mxu0 %v3661
        %3988 = vmatpush1.bf16.msra.mxu0 %v3660
        %3989 = vmatprep.subr.bf16.mxu0 %v3657
        %3990 = vmatpush1.bf16.msra.mxu0 %v3656
        %3991 = vmatprep.subr.bf16.mxu0 %v3653
        %3992 = vmatpush1.bf16.msra.mxu0 %v3652
        %3993 = vmatprep.subr.bf16.mxu0 %v3649
        %3994 = vmatpush1.bf16.msra.mxu0 %v3648
        %3995 = vmatprep.subr.bf16.mxu0 0
        %3996 = vmatpush2.bf16.msra.mxu0 0
        %3997 = vmatprep.subr.bf16.mxu0 0
        %3998 = vmatpush2.bf16.msra.mxu0 0
        %3999 = vmatprep.subr.bf16.mxu0 0
        %4000 = vmatpush2.bf16.msra.mxu0 0
        %4001 = vmatprep.subr.bf16.mxu0 0
        %4002 = vmatpush2.bf16.msra.mxu0 0
        %4003 = vmatprep.subr.bf16.mxu0 0
        %4004 = vmatpush2.bf16.msra.mxu0 0
        %4005 = vmatprep.subr.bf16.mxu0 0
        %4006 = vmatpush2.bf16.msra.mxu0 0
        %4007 = vmatprep.subr.bf16.mxu0 0
        %4008 = vmatpush2.bf16.msra.mxu0 0
        %4009 = vmatprep.subr.bf16.mxu0 0
        %4010 = vmatpush2.bf16.msra.mxu0 0
        %4011 = vmatprep.mubr.bf16.mxu0 0
        %4012 = vmatmul.mubr.bf16.gmra.mxu0 %v3895
        %v4013 = vpop.f32.mrf.mxu0
        %v4014 = vadd.f32 0.0, %v4013
        %v4015 = vpop.f32.mrf.mxu0
        %v4016 = vadd.f32 0.0, %v4015
        %v4017 = vpop.f32.mrf.mxu0
        %v4018 = vadd.f32 0.0, %v4017
        %v4019 = vpop.f32.mrf.mxu0
        %v4020 = vadd.f32 0.0, %v4019
        %4021 = vmatprep.mubr.bf16.mxu0 0
        %4022 = vmatmul.mubr.bf16.gmra.mxu0 %v3898
        %v4023 = vpop.f32.mrf.mxu0
        %v4024 = vadd.f32 0.0, %v4023
        %v4025 = vpop.f32.mrf.mxu0
        %v4026 = vadd.f32 0.0, %v4025
        %v4027 = vpop.f32.mrf.mxu0
        %v4028 = vadd.f32 0.0, %v4027
        %v4029 = vpop.f32.mrf.mxu0
        %v4030 = vadd.f32 0.0, %v4029
        %4031 = vmatprep.mubr.bf16.mxu0 0
        %4032 = vmatmul.mubr.bf16.gmra.mxu0 %v3901
        %v4033 = vpop.f32.mrf.mxu0
        %v4034 = vadd.f32 0.0, %v4033
        %v4035 = vpop.f32.mrf.mxu0
        %v4036 = vadd.f32 0.0, %v4035
        %v4037 = vpop.f32.mrf.mxu0
        %v4038 = vadd.f32 0.0, %v4037
        %v4039 = vpop.f32.mrf.mxu0
        %v4040 = vadd.f32 0.0, %v4039
        %4041 = vmatprep.mubr.bf16.mxu0 0
        %4042 = vmatmul.mubr.bf16.gmra.mxu0 %v3904
        %v4043 = vpop.f32.mrf.mxu0
        %v4044 = vadd.f32 0.0, %v4043
        %v4045 = vpop.f32.mrf.mxu0
        %v4046 = vadd.f32 0.0, %v4045
        %v4047 = vpop.f32.mrf.mxu0
        %v4048 = vadd.f32 0.0, %v4047
        %v4049 = vpop.f32.mrf.mxu0
        %v4050 = vadd.f32 0.0, %v4049
        %4051 = vdwg.mxu0
        %v4052 = vpack.c.bf16 %v3945, %v3941
        %v4053 = vpack.c.bf16 %v3947, %v3943
        %v4054 = vpack.c.bf16 %v4018, %v4014
        %v4055 = vpack.c.bf16 %v4020, %v4016
        %v4056 = vpack.c.bf16 %v3955, %v3951
        %v4057 = vpack.c.bf16 %v3957, %v3953
        %v4058 = vpack.c.bf16 %v4028, %v4024
        %v4059 = vpack.c.bf16 %v4030, %v4026
        %v4060 = vpack.c.bf16 %v3965, %v3961
        %v4061 = vpack.c.bf16 %v3967, %v3963
        %v4062 = vpack.c.bf16 %v4038, %v4034
        %v4063 = vpack.c.bf16 %v4040, %v4036
        %v4064 = vpack.c.bf16 %v3975, %v3971
        %v4065 = vpack.c.bf16 %v3977, %v3973
        %v4066 = vpack.c.bf16 %v4048, %v4044
        %v4067 = vpack.c.bf16 %v4050, %v4046
        %s4068 = scalar_lea.vmem %s4, 64
        %v4069 = vld [vmem:[%s4068] sm:$0xf]
        %v4070 = vld [vmem:[%s4068 + $0x4] sm:$0xf]
        %v4071 = vld [vmem:[%s4068 + $0x8] sm:$0xf]
        %v4072 = vld [vmem:[%s4068 + $0xc] sm:$0xf]
        %v4073 = vld [vmem:[%s4068 + $0x10] sm:$0xf]
        %v4074 = vld [vmem:[%s4068 + $0x14] sm:$0xf]
        %v4075 = vld [vmem:[%s4068 + $0x18] sm:$0xf]
        %v4076 = vld [vmem:[%s4068 + $0x1c] sm:$0xf]
        %v4085 = vunpack.c.l.b16 %v4069
        %v4086 = vunpack.c.l.b16 %v4070
        %v4087 = vunpack.c.l.b16 %v4071
        %v4088 = vunpack.c.l.b16 %v4072
        %v4089 = vunpack.c.l.b16 %v4073
        %v4090 = vunpack.c.l.b16 %v4074
        %v4091 = vunpack.c.l.b16 %v4075
        %v4092 = vunpack.c.l.b16 %v4076
        %v4093 = vpack.c.b16 %v4086, %v4085
        %v4094 = vpack.c.b16 %v4088, %v4087
        %v4095 = vpack.c.b16 %v4090, %v4089
        %v4096 = vpack.c.b16 %v4092, %v4091
        %v4098 = vsel %vm3690, %v4093, 0
        %v4101 = vsel %vm3690, %v4094, 0
        %v4104 = vsel %vm3690, %v4095, 0
        %v4107 = vsel %vm3690, %v4096, 0
        %4109 = vmatprep.subr.bf16.mxu0 0
        %4110 = vmatpush1.bf16.msra.mxu0 0
        %4111 = vmatprep.subr.bf16.mxu0 0
        %4112 = vmatpush1.bf16.msra.mxu0 0
        %4113 = vmatprep.subr.bf16.mxu0 0
        %4114 = vmatpush1.bf16.msra.mxu0 0
        %4115 = vmatprep.subr.bf16.mxu0 0
        %4116 = vmatpush1.bf16.msra.mxu0 0
        %4117 = vmatprep.subr.bf16.mxu0 %v3659
        %4118 = vmatpush1.bf16.msra.mxu0 %v3658
        %4119 = vmatprep.subr.bf16.mxu0 %v3655
        %4120 = vmatpush1.bf16.msra.mxu0 %v3654
        %4121 = vmatprep.subr.bf16.mxu0 %v3651
        %4122 = vmatpush1.bf16.msra.mxu0 %v3650
        %4123 = vmatprep.subr.bf16.mxu0 %v3647
        %4124 = vmatpush1.bf16.msra.mxu0 %v3646
        %4125 = vmatprep.subr.bf16.mxu0 0
        %4126 = vmatpush2.bf16.msra.mxu0 0
        %4127 = vmatprep.subr.bf16.mxu0 0
        %4128 = vmatpush2.bf16.msra.mxu0 0
        %4129 = vmatprep.subr.bf16.mxu0 0
        %4130 = vmatpush2.bf16.msra.mxu0 0
        %4131 = vmatprep.subr.bf16.mxu0 0
        %4132 = vmatpush2.bf16.msra.mxu0 0
        %4133 = vmatprep.subr.bf16.mxu0 0
        %4134 = vmatpush2.bf16.msra.mxu0 0
        %4135 = vmatprep.subr.bf16.mxu0 0
        %4136 = vmatpush2.bf16.msra.mxu0 0
        %4137 = vmatprep.subr.bf16.mxu0 0
        %4138 = vmatpush2.bf16.msra.mxu0 0
        %4139 = vmatprep.subr.bf16.mxu0 0
        %4140 = vmatpush2.bf16.msra.mxu0 0
        %4141 = vmatprep.mubr.bf16.mxu0 0
        %4142 = vmatmul.mubr.bf16.gmra.mxu0 %v4098
        %v4143 = vpop.f32.mrf.mxu0
        %v4144 = vadd.f32 0.0, %v4143
        %v4145 = vpop.f32.mrf.mxu0
        %v4146 = vadd.f32 0.0, %v4145
        %v4147 = vpop.f32.mrf.mxu0
        %v4148 = vadd.f32 0.0, %v4147
        %v4149 = vpop.f32.mrf.mxu0
        %v4150 = vadd.f32 0.0, %v4149
        %4151 = vmatprep.mubr.bf16.mxu0 0
        %4152 = vmatmul.mubr.bf16.gmra.mxu0 %v4101
        %v4153 = vpop.f32.mrf.mxu0
        %v4154 = vadd.f32 0.0, %v4153
        %v4155 = vpop.f32.mrf.mxu0
        %v4156 = vadd.f32 0.0, %v4155
        %v4157 = vpop.f32.mrf.mxu0
        %v4158 = vadd.f32 0.0, %v4157
        %v4159 = vpop.f32.mrf.mxu0
        %v4160 = vadd.f32 0.0, %v4159
        %4161 = vmatprep.mubr.bf16.mxu0 0
        %4162 = vmatmul.mubr.bf16.gmra.mxu0 %v4104
        %v4163 = vpop.f32.mrf.mxu0
        %v4164 = vadd.f32 0.0, %v4163
        %v4165 = vpop.f32.mrf.mxu0
        %v4166 = vadd.f32 0.0, %v4165
        %v4167 = vpop.f32.mrf.mxu0
        %v4168 = vadd.f32 0.0, %v4167
        %v4169 = vpop.f32.mrf.mxu0
        %v4170 = vadd.f32 0.0, %v4169
        %4171 = vmatprep.mubr.bf16.mxu0 0
        %4172 = vmatmul.mubr.bf16.gmra.mxu0 %v4107
        %v4173 = vpop.f32.mrf.mxu0
        %v4174 = vadd.f32 0.0, %v4173
        %v4175 = vpop.f32.mrf.mxu0
        %v4176 = vadd.f32 0.0, %v4175
        %v4177 = vpop.f32.mrf.mxu0
        %v4178 = vadd.f32 0.0, %v4177
        %v4179 = vpop.f32.mrf.mxu0
        %v4180 = vadd.f32 0.0, %v4179
        %4181 = vdwg.mxu0
        %4182 = vmatprep.subr.bf16.mxu0 0
        %4183 = vmatpush1.bf16.msra.mxu0 0
        %4184 = vmatprep.subr.bf16.mxu0 0
        %4185 = vmatpush1.bf16.msra.mxu0 0
        %4186 = vmatprep.subr.bf16.mxu0 0
        %4187 = vmatpush1.bf16.msra.mxu0 0
        %4188 = vmatprep.subr.bf16.mxu0 0
        %4189 = vmatpush1.bf16.msra.mxu0 0
        %4190 = vmatprep.subr.bf16.mxu0 %v3661
        %4191 = vmatpush1.bf16.msra.mxu0 %v3660
        %4192 = vmatprep.subr.bf16.mxu0 %v3657
        %4193 = vmatpush1.bf16.msra.mxu0 %v3656
        %4194 = vmatprep.subr.bf16.mxu0 %v3653
        %4195 = vmatpush1.bf16.msra.mxu0 %v3652
        %4196 = vmatprep.subr.bf16.mxu0 %v3649
        %4197 = vmatpush1.bf16.msra.mxu0 %v3648
        %4198 = vmatprep.subr.bf16.mxu0 0
        %4199 = vmatpush2.bf16.msra.mxu0 0
        %4200 = vmatprep.subr.bf16.mxu0 0
        %4201 = vmatpush2.bf16.msra.mxu0 0
        %4202 = vmatprep.subr.bf16.mxu0 0
        %4203 = vmatpush2.bf16.msra.mxu0 0
        %4204 = vmatprep.subr.bf16.mxu0 0
        %4205 = vmatpush2.bf16.msra.mxu0 0
        %4206 = vmatprep.subr.bf16.mxu0 0
        %4207 = vmatpush2.bf16.msra.mxu0 0
        %4208 = vmatprep.subr.bf16.mxu0 0
        %4209 = vmatpush2.bf16.msra.mxu0 0
        %4210 = vmatprep.subr.bf16.mxu0 0
        %4211 = vmatpush2.bf16.msra.mxu0 0
        %4212 = vmatprep.subr.bf16.mxu0 0
        %4213 = vmatpush2.bf16.msra.mxu0 0
        %4214 = vmatprep.mubr.bf16.mxu0 0
        %4215 = vmatmul.mubr.bf16.gmra.mxu0 %v4098
        %v4216 = vpop.f32.mrf.mxu0
        %v4217 = vadd.f32 0.0, %v4216
        %v4218 = vpop.f32.mrf.mxu0
        %v4219 = vadd.f32 0.0, %v4218
        %v4220 = vpop.f32.mrf.mxu0
        %v4221 = vadd.f32 0.0, %v4220
        %v4222 = vpop.f32.mrf.mxu0
        %v4223 = vadd.f32 0.0, %v4222
        %4224 = vmatprep.mubr.bf16.mxu0 0
        %4225 = vmatmul.mubr.bf16.gmra.mxu0 %v4101
        %v4226 = vpop.f32.mrf.mxu0
        %v4227 = vadd.f32 0.0, %v4226
        %v4228 = vpop.f32.mrf.mxu0
        %v4229 = vadd.f32 0.0, %v4228
        %v4230 = vpop.f32.mrf.mxu0
        %v4231 = vadd.f32 0.0, %v4230
        %v4232 = vpop.f32.mrf.mxu0
        %v4233 = vadd.f32 0.0, %v4232
        %4234 = vmatprep.mubr.bf16.mxu0 0
        %4235 = vmatmul.mubr.bf16.gmra.mxu0 %v4104
        %v4236 = vpop.f32.mrf.mxu0
        %v4237 = vadd.f32 0.0, %v4236
        %v4238 = vpop.f32.mrf.mxu0
        %v4239 = vadd.f32 0.0, %v4238
        %v4240 = vpop.f32.mrf.mxu0
        %v4241 = vadd.f32 0.0, %v4240
        %v4242 = vpop.f32.mrf.mxu0
        %v4243 = vadd.f32 0.0, %v4242
        %4244 = vmatprep.mubr.bf16.mxu0 0
        %4245 = vmatmul.mubr.bf16.gmra.mxu0 %v4107
        %v4246 = vpop.f32.mrf.mxu0
        %v4247 = vadd.f32 0.0, %v4246
        %v4248 = vpop.f32.mrf.mxu0
        %v4249 = vadd.f32 0.0, %v4248
        %v4250 = vpop.f32.mrf.mxu0
        %v4251 = vadd.f32 0.0, %v4250
        %v4252 = vpop.f32.mrf.mxu0
        %v4253 = vadd.f32 0.0, %v4252
        %4254 = vdwg.mxu0
        %v4255 = vpack.c.bf16 %v4148, %v4144
        %v4256 = vpack.c.bf16 %v4150, %v4146
        %v4257 = vpack.c.bf16 %v4221, %v4217
        %v4258 = vpack.c.bf16 %v4223, %v4219
        %v4259 = vpack.c.bf16 %v4158, %v4154
        %v4260 = vpack.c.bf16 %v4160, %v4156
        %v4261 = vpack.c.bf16 %v4231, %v4227
        %v4262 = vpack.c.bf16 %v4233, %v4229
        %v4263 = vpack.c.bf16 %v4168, %v4164
        %v4264 = vpack.c.bf16 %v4170, %v4166
        %v4265 = vpack.c.bf16 %v4241, %v4237
        %v4266 = vpack.c.bf16 %v4243, %v4239
        %v4267 = vpack.c.bf16 %v4178, %v4174
        %v4268 = vpack.c.bf16 %v4180, %v4176
        %v4269 = vpack.c.bf16 %v4251, %v4247
        %v4270 = vpack.c.bf16 %v4253, %v4249
        %s4271 = scalar_lea.vmem %s4, 96
        %v4272 = vld [vmem:[%s4271] sm:$0xf]
        %v4273 = vld [vmem:[%s4271 + $0x4] sm:$0xf]
        %v4274 = vld [vmem:[%s4271 + $0x8] sm:$0xf]
        %v4275 = vld [vmem:[%s4271 + $0xc] sm:$0xf]
        %v4276 = vld [vmem:[%s4271 + $0x10] sm:$0xf]
        %v4277 = vld [vmem:[%s4271 + $0x14] sm:$0xf]
        %v4278 = vld [vmem:[%s4271 + $0x18] sm:$0xf]
        %v4279 = vld [vmem:[%s4271 + $0x1c] sm:$0xf]
        %v4288 = vunpack.c.l.b16 %v4272
        %v4289 = vunpack.c.l.b16 %v4273
        %v4290 = vunpack.c.l.b16 %v4274
        %v4291 = vunpack.c.l.b16 %v4275
        %v4292 = vunpack.c.l.b16 %v4276
        %v4293 = vunpack.c.l.b16 %v4277
        %v4294 = vunpack.c.l.b16 %v4278
        %v4295 = vunpack.c.l.b16 %v4279
        %v4296 = vpack.c.b16 %v4289, %v4288
        %v4297 = vpack.c.b16 %v4291, %v4290
        %v4298 = vpack.c.b16 %v4293, %v4292
        %v4299 = vpack.c.b16 %v4295, %v4294
        %v4301 = vsel %vm3690, %v4296, 0
        %v4304 = vsel %vm3690, %v4297, 0
        %v4307 = vsel %vm3690, %v4298, 0
        %v4310 = vsel %vm3690, %v4299, 0
        %4312 = vmatprep.subr.bf16.mxu0 0
        %4313 = vmatpush1.bf16.msra.mxu0 0
        %4314 = vmatprep.subr.bf16.mxu0 0
        %4315 = vmatpush1.bf16.msra.mxu0 0
        %4316 = vmatprep.subr.bf16.mxu0 0
        %4317 = vmatpush1.bf16.msra.mxu0 0
        %4318 = vmatprep.subr.bf16.mxu0 0
        %4319 = vmatpush1.bf16.msra.mxu0 0
        %4320 = vmatprep.subr.bf16.mxu0 %v3659
        %4321 = vmatpush1.bf16.msra.mxu0 %v3658
        %4322 = vmatprep.subr.bf16.mxu0 %v3655
        %4323 = vmatpush1.bf16.msra.mxu0 %v3654
        %4324 = vmatprep.subr.bf16.mxu0 %v3651
        %4325 = vmatpush1.bf16.msra.mxu0 %v3650
        %4326 = vmatprep.subr.bf16.mxu0 %v3647
        %4327 = vmatpush1.bf16.msra.mxu0 %v3646
        %4328 = vmatprep.subr.bf16.mxu0 0
        %4329 = vmatpush2.bf16.msra.mxu0 0
        %4330 = vmatprep.subr.bf16.mxu0 0
        %4331 = vmatpush2.bf16.msra.mxu0 0
        %4332 = vmatprep.subr.bf16.mxu0 0
        %4333 = vmatpush2.bf16.msra.mxu0 0
        %4334 = vmatprep.subr.bf16.mxu0 0
        %4335 = vmatpush2.bf16.msra.mxu0 0
        %4336 = vmatprep.subr.bf16.mxu0 0
        %4337 = vmatpush2.bf16.msra.mxu0 0
        %4338 = vmatprep.subr.bf16.mxu0 0
        %4339 = vmatpush2.bf16.msra.mxu0 0
        %4340 = vmatprep.subr.bf16.mxu0 0
        %4341 = vmatpush2.bf16.msra.mxu0 0
        %4342 = vmatprep.subr.bf16.mxu0 0
        %4343 = vmatpush2.bf16.msra.mxu0 0
        %4344 = vmatprep.mubr.bf16.mxu0 0
        %4345 = vmatmul.mubr.bf16.gmra.mxu0 %v4301
        %v4346 = vpop.f32.mrf.mxu0
        %v4347 = vadd.f32 0.0, %v4346
        %v4348 = vpop.f32.mrf.mxu0
        %v4349 = vadd.f32 0.0, %v4348
        %v4350 = vpop.f32.mrf.mxu0
        %v4351 = vadd.f32 0.0, %v4350
        %v4352 = vpop.f32.mrf.mxu0
        %v4353 = vadd.f32 0.0, %v4352
        %4354 = vmatprep.mubr.bf16.mxu0 0
        %4355 = vmatmul.mubr.bf16.gmra.mxu0 %v4304
        %v4356 = vpop.f32.mrf.mxu0
        %v4357 = vadd.f32 0.0, %v4356
        %v4358 = vpop.f32.mrf.mxu0
        %v4359 = vadd.f32 0.0, %v4358
        %v4360 = vpop.f32.mrf.mxu0
        %v4361 = vadd.f32 0.0, %v4360
        %v4362 = vpop.f32.mrf.mxu0
        %v4363 = vadd.f32 0.0, %v4362
        %4364 = vmatprep.mubr.bf16.mxu0 0
        %4365 = vmatmul.mubr.bf16.gmra.mxu0 %v4307
        %v4366 = vpop.f32.mrf.mxu0
        %v4367 = vadd.f32 0.0, %v4366
        %v4368 = vpop.f32.mrf.mxu0
        %v4369 = vadd.f32 0.0, %v4368
        %v4370 = vpop.f32.mrf.mxu0
        %v4371 = vadd.f32 0.0, %v4370
        %v4372 = vpop.f32.mrf.mxu0
        %v4373 = vadd.f32 0.0, %v4372
        %4374 = vmatprep.mubr.bf16.mxu0 0
        %4375 = vmatmul.mubr.bf16.gmra.mxu0 %v4310
        %v4376 = vpop.f32.mrf.mxu0
        %v4377 = vadd.f32 0.0, %v4376
        %v4378 = vpop.f32.mrf.mxu0
        %v4379 = vadd.f32 0.0, %v4378
        %v4380 = vpop.f32.mrf.mxu0
        %v4381 = vadd.f32 0.0, %v4380
        %v4382 = vpop.f32.mrf.mxu0
        %v4383 = vadd.f32 0.0, %v4382
        %4384 = vdwg.mxu0
        %4385 = vmatprep.subr.bf16.mxu0 0
        %4386 = vmatpush1.bf16.msra.mxu0 0
        %4387 = vmatprep.subr.bf16.mxu0 0
        %4388 = vmatpush1.bf16.msra.mxu0 0
        %4389 = vmatprep.subr.bf16.mxu0 0
        %4390 = vmatpush1.bf16.msra.mxu0 0
        %4391 = vmatprep.subr.bf16.mxu0 0
        %4392 = vmatpush1.bf16.msra.mxu0 0
        %4393 = vmatprep.subr.bf16.mxu0 %v3661
        %4394 = vmatpush1.bf16.msra.mxu0 %v3660
        %4395 = vmatprep.subr.bf16.mxu0 %v3657
        %4396 = vmatpush1.bf16.msra.mxu0 %v3656
        %4397 = vmatprep.subr.bf16.mxu0 %v3653
        %4398 = vmatpush1.bf16.msra.mxu0 %v3652
        %4399 = vmatprep.subr.bf16.mxu0 %v3649
        %4400 = vmatpush1.bf16.msra.mxu0 %v3648
        %4401 = vmatprep.subr.bf16.mxu0 0
        %4402 = vmatpush2.bf16.msra.mxu0 0
        %4403 = vmatprep.subr.bf16.mxu0 0
        %4404 = vmatpush2.bf16.msra.mxu0 0
        %4405 = vmatprep.subr.bf16.mxu0 0
        %4406 = vmatpush2.bf16.msra.mxu0 0
        %4407 = vmatprep.subr.bf16.mxu0 0
        %4408 = vmatpush2.bf16.msra.mxu0 0
        %4409 = vmatprep.subr.bf16.mxu0 0
        %4410 = vmatpush2.bf16.msra.mxu0 0
        %4411 = vmatprep.subr.bf16.mxu0 0
        %4412 = vmatpush2.bf16.msra.mxu0 0
        %4413 = vmatprep.subr.bf16.mxu0 0
        %4414 = vmatpush2.bf16.msra.mxu0 0
        %4415 = vmatprep.subr.bf16.mxu0 0
        %4416 = vmatpush2.bf16.msra.mxu0 0
        %4417 = vmatprep.mubr.bf16.mxu0 0
        %4418 = vmatmul.mubr.bf16.gmra.mxu0 %v4301
        %v4419 = vpop.f32.mrf.mxu0
        %v4420 = vadd.f32 0.0, %v4419
        %v4421 = vpop.f32.mrf.mxu0
        %v4422 = vadd.f32 0.0, %v4421
        %v4423 = vpop.f32.mrf.mxu0
        %v4424 = vadd.f32 0.0, %v4423
        %v4425 = vpop.f32.mrf.mxu0
        %v4426 = vadd.f32 0.0, %v4425
        %4427 = vmatprep.mubr.bf16.mxu0 0
        %4428 = vmatmul.mubr.bf16.gmra.mxu0 %v4304
        %v4429 = vpop.f32.mrf.mxu0
        %v4430 = vadd.f32 0.0, %v4429
        %v4431 = vpop.f32.mrf.mxu0
        %v4432 = vadd.f32 0.0, %v4431
        %v4433 = vpop.f32.mrf.mxu0
        %v4434 = vadd.f32 0.0, %v4433
        %v4435 = vpop.f32.mrf.mxu0
        %v4436 = vadd.f32 0.0, %v4435
        %4437 = vmatprep.mubr.bf16.mxu0 0
        %4438 = vmatmul.mubr.bf16.gmra.mxu0 %v4307
        %v4439 = vpop.f32.mrf.mxu0
        %v4440 = vadd.f32 0.0, %v4439
        %v4441 = vpop.f32.mrf.mxu0
        %v4442 = vadd.f32 0.0, %v4441
        %v4443 = vpop.f32.mrf.mxu0
        %v4444 = vadd.f32 0.0, %v4443
        %v4445 = vpop.f32.mrf.mxu0
        %v4446 = vadd.f32 0.0, %v4445
        %4447 = vmatprep.mubr.bf16.mxu0 0
        %4448 = vmatmul.mubr.bf16.gmra.mxu0 %v4310
        %v4449 = vpop.f32.mrf.mxu0
        %v4450 = vadd.f32 0.0, %v4449
        %v4451 = vpop.f32.mrf.mxu0
        %v4452 = vadd.f32 0.0, %v4451
        %v4453 = vpop.f32.mrf.mxu0
        %v4454 = vadd.f32 0.0, %v4453
        %v4455 = vpop.f32.mrf.mxu0
        %v4456 = vadd.f32 0.0, %v4455
        %4457 = vdwg.mxu0
        %v4458 = vpack.c.bf16 %v4351, %v4347
        %v4459 = vpack.c.bf16 %v4353, %v4349
        %v4460 = vpack.c.bf16 %v4424, %v4420
        %v4461 = vpack.c.bf16 %v4426, %v4422
        %v4462 = vpack.c.bf16 %v4361, %v4357
        %v4463 = vpack.c.bf16 %v4363, %v4359
        %v4464 = vpack.c.bf16 %v4434, %v4430
        %v4465 = vpack.c.bf16 %v4436, %v4432
        %v4466 = vpack.c.bf16 %v4371, %v4367
        %v4467 = vpack.c.bf16 %v4373, %v4369
        %v4468 = vpack.c.bf16 %v4444, %v4440
        %v4469 = vpack.c.bf16 %v4446, %v4442
        %v4470 = vpack.c.bf16 %v4381, %v4377
        %v4471 = vpack.c.bf16 %v4383, %v4379
        %v4472 = vpack.c.bf16 %v4454, %v4450
        %v4473 = vpack.c.bf16 %v4456, %v4452
        %s4474 = scalar_lea.vmem %s4, 128
        %v4475 = vld [vmem:[%s4474] sm:$0xf]
        %v4476 = vld [vmem:[%s4474 + $0x4] sm:$0xf]
        %v4477 = vld [vmem:[%s4474 + $0x8] sm:$0xf]
        %v4478 = vld [vmem:[%s4474 + $0xc] sm:$0xf]
        %v4479 = vld [vmem:[%s4474 + $0x10] sm:$0xf]
        %v4480 = vld [vmem:[%s4474 + $0x14] sm:$0xf]
        %v4481 = vld [vmem:[%s4474 + $0x18] sm:$0xf]
        %v4482 = vld [vmem:[%s4474 + $0x1c] sm:$0xf]
        %v4491 = vunpack.c.l.b16 %v4475
        %v4492 = vunpack.c.l.b16 %v4476
        %v4493 = vunpack.c.l.b16 %v4477
        %v4494 = vunpack.c.l.b16 %v4478
        %v4495 = vunpack.c.l.b16 %v4479
        %v4496 = vunpack.c.l.b16 %v4480
        %v4497 = vunpack.c.l.b16 %v4481
        %v4498 = vunpack.c.l.b16 %v4482
        %v4499 = vpack.c.b16 %v4492, %v4491
        %v4500 = vpack.c.b16 %v4494, %v4493
        %v4501 = vpack.c.b16 %v4496, %v4495
        %v4502 = vpack.c.b16 %v4498, %v4497
        %v4504 = vsel %vm3690, %v4499, 0
        %v4507 = vsel %vm3690, %v4500, 0
        %v4510 = vsel %vm3690, %v4501, 0
        %v4513 = vsel %vm3690, %v4502, 0
        %4515 = vmatprep.subr.bf16.mxu0 0
        %4516 = vmatpush1.bf16.msra.mxu0 0
        %4517 = vmatprep.subr.bf16.mxu0 0
        %4518 = vmatpush1.bf16.msra.mxu0 0
        %4519 = vmatprep.subr.bf16.mxu0 0
        %4520 = vmatpush1.bf16.msra.mxu0 0
        %4521 = vmatprep.subr.bf16.mxu0 0
        %4522 = vmatpush1.bf16.msra.mxu0 0
        %4523 = vmatprep.subr.bf16.mxu0 %v3659
        %4524 = vmatpush1.bf16.msra.mxu0 %v3658
        %4525 = vmatprep.subr.bf16.mxu0 %v3655
        %4526 = vmatpush1.bf16.msra.mxu0 %v3654
        %4527 = vmatprep.subr.bf16.mxu0 %v3651
        %4528 = vmatpush1.bf16.msra.mxu0 %v3650
        %4529 = vmatprep.subr.bf16.mxu0 %v3647
        %4530 = vmatpush1.bf16.msra.mxu0 %v3646
        %4531 = vmatprep.subr.bf16.mxu0 0
        %4532 = vmatpush2.bf16.msra.mxu0 0
        %4533 = vmatprep.subr.bf16.mxu0 0
        %4534 = vmatpush2.bf16.msra.mxu0 0
        %4535 = vmatprep.subr.bf16.mxu0 0
        %4536 = vmatpush2.bf16.msra.mxu0 0
        %4537 = vmatprep.subr.bf16.mxu0 0
        %4538 = vmatpush2.bf16.msra.mxu0 0
        %4539 = vmatprep.subr.bf16.mxu0 0
        %4540 = vmatpush2.bf16.msra.mxu0 0
        %4541 = vmatprep.subr.bf16.mxu0 0
        %4542 = vmatpush2.bf16.msra.mxu0 0
        %4543 = vmatprep.subr.bf16.mxu0 0
        %4544 = vmatpush2.bf16.msra.mxu0 0
        %4545 = vmatprep.subr.bf16.mxu0 0
        %4546 = vmatpush2.bf16.msra.mxu0 0
        %4547 = vmatprep.mubr.bf16.mxu0 0
        %4548 = vmatmul.mubr.bf16.gmra.mxu0 %v4504
        %v4549 = vpop.f32.mrf.mxu0
        %v4550 = vadd.f32 0.0, %v4549
        %v4551 = vpop.f32.mrf.mxu0
        %v4552 = vadd.f32 0.0, %v4551
        %v4553 = vpop.f32.mrf.mxu0
        %v4554 = vadd.f32 0.0, %v4553
        %v4555 = vpop.f32.mrf.mxu0
        %v4556 = vadd.f32 0.0, %v4555
        %4557 = vmatprep.mubr.bf16.mxu0 0
        %4558 = vmatmul.mubr.bf16.gmra.mxu0 %v4507
        %v4559 = vpop.f32.mrf.mxu0
        %v4560 = vadd.f32 0.0, %v4559
        %v4561 = vpop.f32.mrf.mxu0
        %v4562 = vadd.f32 0.0, %v4561
        %v4563 = vpop.f32.mrf.mxu0
        %v4564 = vadd.f32 0.0, %v4563
        %v4565 = vpop.f32.mrf.mxu0
        %v4566 = vadd.f32 0.0, %v4565
        %4567 = vmatprep.mubr.bf16.mxu0 0
        %4568 = vmatmul.mubr.bf16.gmra.mxu0 %v4510
        %v4569 = vpop.f32.mrf.mxu0
        %v4570 = vadd.f32 0.0, %v4569
        %v4571 = vpop.f32.mrf.mxu0
        %v4572 = vadd.f32 0.0, %v4571
        %v4573 = vpop.f32.mrf.mxu0
        %v4574 = vadd.f32 0.0, %v4573
        %v4575 = vpop.f32.mrf.mxu0
        %v4576 = vadd.f32 0.0, %v4575
        %4577 = vmatprep.mubr.bf16.mxu0 0
        %4578 = vmatmul.mubr.bf16.gmra.mxu0 %v4513
        %v4579 = vpop.f32.mrf.mxu0
        %v4580 = vadd.f32 0.0, %v4579
        %v4581 = vpop.f32.mrf.mxu0
        %v4582 = vadd.f32 0.0, %v4581
        %v4583 = vpop.f32.mrf.mxu0
        %v4584 = vadd.f32 0.0, %v4583
        %v4585 = vpop.f32.mrf.mxu0
        %v4586 = vadd.f32 0.0, %v4585
        %4587 = vdwg.mxu0
        %4588 = vmatprep.subr.bf16.mxu0 0
        %4589 = vmatpush1.bf16.msra.mxu0 0
        %4590 = vmatprep.subr.bf16.mxu0 0
        %4591 = vmatpush1.bf16.msra.mxu0 0
        %4592 = vmatprep.subr.bf16.mxu0 0
        %4593 = vmatpush1.bf16.msra.mxu0 0
        %4594 = vmatprep.subr.bf16.mxu0 0
        %4595 = vmatpush1.bf16.msra.mxu0 0
        %4596 = vmatprep.subr.bf16.mxu0 %v3661
        %4597 = vmatpush1.bf16.msra.mxu0 %v3660
        %4598 = vmatprep.subr.bf16.mxu0 %v3657
        %4599 = vmatpush1.bf16.msra.mxu0 %v3656
        %4600 = vmatprep.subr.bf16.mxu0 %v3653
        %4601 = vmatpush1.bf16.msra.mxu0 %v3652
        %4602 = vmatprep.subr.bf16.mxu0 %v3649
        %4603 = vmatpush1.bf16.msra.mxu0 %v3648
        %4604 = vmatprep.subr.bf16.mxu0 0
        %4605 = vmatpush2.bf16.msra.mxu0 0
        %4606 = vmatprep.subr.bf16.mxu0 0
        %4607 = vmatpush2.bf16.msra.mxu0 0
        %4608 = vmatprep.subr.bf16.mxu0 0
        %4609 = vmatpush2.bf16.msra.mxu0 0
        %4610 = vmatprep.subr.bf16.mxu0 0
        %4611 = vmatpush2.bf16.msra.mxu0 0
        %4612 = vmatprep.subr.bf16.mxu0 0
        %4613 = vmatpush2.bf16.msra.mxu0 0
        %4614 = vmatprep.subr.bf16.mxu0 0
        %4615 = vmatpush2.bf16.msra.mxu0 0
        %4616 = vmatprep.subr.bf16.mxu0 0
        %4617 = vmatpush2.bf16.msra.mxu0 0
        %4618 = vmatprep.subr.bf16.mxu0 0
        %4619 = vmatpush2.bf16.msra.mxu0 0
        %4620 = vmatprep.mubr.bf16.mxu0 0
        %4621 = vmatmul.mubr.bf16.gmra.mxu0 %v4504
        %v4622 = vpop.f32.mrf.mxu0
        %v4623 = vadd.f32 0.0, %v4622
        %v4624 = vpop.f32.mrf.mxu0
        %v4625 = vadd.f32 0.0, %v4624
        %v4626 = vpop.f32.mrf.mxu0
        %v4627 = vadd.f32 0.0, %v4626
        %v4628 = vpop.f32.mrf.mxu0
        %v4629 = vadd.f32 0.0, %v4628
        %4630 = vmatprep.mubr.bf16.mxu0 0
        %4631 = vmatmul.mubr.bf16.gmra.mxu0 %v4507
        %v4632 = vpop.f32.mrf.mxu0
        %v4633 = vadd.f32 0.0, %v4632
        %v4634 = vpop.f32.mrf.mxu0
        %v4635 = vadd.f32 0.0, %v4634
        %v4636 = vpop.f32.mrf.mxu0
        %v4637 = vadd.f32 0.0, %v4636
        %v4638 = vpop.f32.mrf.mxu0
        %v4639 = vadd.f32 0.0, %v4638
        %4640 = vmatprep.mubr.bf16.mxu0 0
        %4641 = vmatmul.mubr.bf16.gmra.mxu0 %v4510
        %v4642 = vpop.f32.mrf.mxu0
        %v4643 = vadd.f32 0.0, %v4642
        %v4644 = vpop.f32.mrf.mxu0
        %v4645 = vadd.f32 0.0, %v4644
        %v4646 = vpop.f32.mrf.mxu0
        %v4647 = vadd.f32 0.0, %v4646
        %v4648 = vpop.f32.mrf.mxu0
        %v4649 = vadd.f32 0.0, %v4648
        %4650 = vmatprep.mubr.bf16.mxu0 0
        %4651 = vmatmul.mubr.bf16.gmra.mxu0 %v4513
        %v4652 = vpop.f32.mrf.mxu0
        %v4653 = vadd.f32 0.0, %v4652
        %v4654 = vpop.f32.mrf.mxu0
        %v4655 = vadd.f32 0.0, %v4654
        %v4656 = vpop.f32.mrf.mxu0
        %v4657 = vadd.f32 0.0, %v4656
        %v4658 = vpop.f32.mrf.mxu0
        %v4659 = vadd.f32 0.0, %v4658
        %4660 = vdwg.mxu0
        %v4661 = vpack.c.bf16 %v4554, %v4550
        %v4662 = vpack.c.bf16 %v4556, %v4552
        %v4663 = vpack.c.bf16 %v4627, %v4623
        %v4664 = vpack.c.bf16 %v4629, %v4625
        %v4665 = vpack.c.bf16 %v4564, %v4560
        %v4666 = vpack.c.bf16 %v4566, %v4562
        %v4667 = vpack.c.bf16 %v4637, %v4633
        %v4668 = vpack.c.bf16 %v4639, %v4635
        %v4669 = vpack.c.bf16 %v4574, %v4570
        %v4670 = vpack.c.bf16 %v4576, %v4572
        %v4671 = vpack.c.bf16 %v4647, %v4643
        %v4672 = vpack.c.bf16 %v4649, %v4645
        %v4673 = vpack.c.bf16 %v4584, %v4580
        %v4674 = vpack.c.bf16 %v4586, %v4582
        %v4675 = vpack.c.bf16 %v4657, %v4653
        %v4676 = vpack.c.bf16 %v4659, %v4655
        %s4677 = scalar_lea.vmem %s4, 160
        %v4678 = vld [vmem:[%s4677] sm:$0xf]
        %v4679 = vld [vmem:[%s4677 + $0x4] sm:$0xf]
        %v4680 = vld [vmem:[%s4677 + $0x8] sm:$0xf]
        %v4681 = vld [vmem:[%s4677 + $0xc] sm:$0xf]
        %v4682 = vld [vmem:[%s4677 + $0x10] sm:$0xf]
        %v4683 = vld [vmem:[%s4677 + $0x14] sm:$0xf]
        %v4684 = vld [vmem:[%s4677 + $0x18] sm:$0xf]
        %v4685 = vld [vmem:[%s4677 + $0x1c] sm:$0xf]
        %v4694 = vunpack.c.l.b16 %v4678
        %v4695 = vunpack.c.l.b16 %v4679
        %v4696 = vunpack.c.l.b16 %v4680
        %v4697 = vunpack.c.l.b16 %v4681
        %v4698 = vunpack.c.l.b16 %v4682
        %v4699 = vunpack.c.l.b16 %v4683
        %v4700 = vunpack.c.l.b16 %v4684
        %v4701 = vunpack.c.l.b16 %v4685
        %v4702 = vpack.c.b16 %v4695, %v4694
        %v4703 = vpack.c.b16 %v4697, %v4696
        %v4704 = vpack.c.b16 %v4699, %v4698
        %v4705 = vpack.c.b16 %v4701, %v4700
        %v4707 = vsel %vm3690, %v4702, 0
        %v4710 = vsel %vm3690, %v4703, 0
        %v4713 = vsel %vm3690, %v4704, 0
        %v4716 = vsel %vm3690, %v4705, 0
        %4718 = vmatprep.subr.bf16.mxu0 0
        %4719 = vmatpush1.bf16.msra.mxu0 0
        %4720 = vmatprep.subr.bf16.mxu0 0
        %4721 = vmatpush1.bf16.msra.mxu0 0
        %4722 = vmatprep.subr.bf16.mxu0 0
        %4723 = vmatpush1.bf16.msra.mxu0 0
        %4724 = vmatprep.subr.bf16.mxu0 0
        %4725 = vmatpush1.bf16.msra.mxu0 0
        %4726 = vmatprep.subr.bf16.mxu0 %v3659
        %4727 = vmatpush1.bf16.msra.mxu0 %v3658
        %4728 = vmatprep.subr.bf16.mxu0 %v3655
        %4729 = vmatpush1.bf16.msra.mxu0 %v3654
        %4730 = vmatprep.subr.bf16.mxu0 %v3651
        %4731 = vmatpush1.bf16.msra.mxu0 %v3650
        %4732 = vmatprep.subr.bf16.mxu0 %v3647
        %4733 = vmatpush1.bf16.msra.mxu0 %v3646
        %4734 = vmatprep.subr.bf16.mxu0 0
        %4735 = vmatpush2.bf16.msra.mxu0 0
        %4736 = vmatprep.subr.bf16.mxu0 0
        %4737 = vmatpush2.bf16.msra.mxu0 0
        %4738 = vmatprep.subr.bf16.mxu0 0
        %4739 = vmatpush2.bf16.msra.mxu0 0
        %4740 = vmatprep.subr.bf16.mxu0 0
        %4741 = vmatpush2.bf16.msra.mxu0 0
        %4742 = vmatprep.subr.bf16.mxu0 0
        %4743 = vmatpush2.bf16.msra.mxu0 0
        %4744 = vmatprep.subr.bf16.mxu0 0
        %4745 = vmatpush2.bf16.msra.mxu0 0
        %4746 = vmatprep.subr.bf16.mxu0 0
        %4747 = vmatpush2.bf16.msra.mxu0 0
        %4748 = vmatprep.subr.bf16.mxu0 0
        %4749 = vmatpush2.bf16.msra.mxu0 0
        %4750 = vmatprep.mubr.bf16.mxu0 0
        %4751 = vmatmul.mubr.bf16.gmra.mxu0 %v4707
        %v4752 = vpop.f32.mrf.mxu0
        %v4753 = vadd.f32 0.0, %v4752
        %v4754 = vpop.f32.mrf.mxu0
        %v4755 = vadd.f32 0.0, %v4754
        %v4756 = vpop.f32.mrf.mxu0
        %v4757 = vadd.f32 0.0, %v4756
        %v4758 = vpop.f32.mrf.mxu0
        %v4759 = vadd.f32 0.0, %v4758
        %4760 = vmatprep.mubr.bf16.mxu0 0
        %4761 = vmatmul.mubr.bf16.gmra.mxu0 %v4710
        %v4762 = vpop.f32.mrf.mxu0
        %v4763 = vadd.f32 0.0, %v4762
        %v4764 = vpop.f32.mrf.mxu0
        %v4765 = vadd.f32 0.0, %v4764
        %v4766 = vpop.f32.mrf.mxu0
        %v4767 = vadd.f32 0.0, %v4766
        %v4768 = vpop.f32.mrf.mxu0
        %v4769 = vadd.f32 0.0, %v4768
        %4770 = vmatprep.mubr.bf16.mxu0 0
        %4771 = vmatmul.mubr.bf16.gmra.mxu0 %v4713
        %v4772 = vpop.f32.mrf.mxu0
        %v4773 = vadd.f32 0.0, %v4772
        %v4774 = vpop.f32.mrf.mxu0
        %v4775 = vadd.f32 0.0, %v4774
        %v4776 = vpop.f32.mrf.mxu0
        %v4777 = vadd.f32 0.0, %v4776
        %v4778 = vpop.f32.mrf.mxu0
        %v4779 = vadd.f32 0.0, %v4778
        %4780 = vmatprep.mubr.bf16.mxu0 0
        %4781 = vmatmul.mubr.bf16.gmra.mxu0 %v4716
        %v4782 = vpop.f32.mrf.mxu0
        %v4783 = vadd.f32 0.0, %v4782
        %v4784 = vpop.f32.mrf.mxu0
        %v4785 = vadd.f32 0.0, %v4784
        %v4786 = vpop.f32.mrf.mxu0
        %v4787 = vadd.f32 0.0, %v4786
        %v4788 = vpop.f32.mrf.mxu0
        %v4789 = vadd.f32 0.0, %v4788
        %4790 = vdwg.mxu0
        %4791 = vmatprep.subr.bf16.mxu0 0
        %4792 = vmatpush1.bf16.msra.mxu0 0
        %4793 = vmatprep.subr.bf16.mxu0 0
        %4794 = vmatpush1.bf16.msra.mxu0 0
        %4795 = vmatprep.subr.bf16.mxu0 0
        %4796 = vmatpush1.bf16.msra.mxu0 0
        %4797 = vmatprep.subr.bf16.mxu0 0
        %4798 = vmatpush1.bf16.msra.mxu0 0
        %4799 = vmatprep.subr.bf16.mxu0 %v3661
        %4800 = vmatpush1.bf16.msra.mxu0 %v3660
        %4801 = vmatprep.subr.bf16.mxu0 %v3657
        %4802 = vmatpush1.bf16.msra.mxu0 %v3656
        %4803 = vmatprep.subr.bf16.mxu0 %v3653
        %4804 = vmatpush1.bf16.msra.mxu0 %v3652
        %4805 = vmatprep.subr.bf16.mxu0 %v3649
        %4806 = vmatpush1.bf16.msra.mxu0 %v3648
        %4807 = vmatprep.subr.bf16.mxu0 0
        %4808 = vmatpush2.bf16.msra.mxu0 0
        %4809 = vmatprep.subr.bf16.mxu0 0
        %4810 = vmatpush2.bf16.msra.mxu0 0
        %4811 = vmatprep.subr.bf16.mxu0 0
        %4812 = vmatpush2.bf16.msra.mxu0 0
        %4813 = vmatprep.subr.bf16.mxu0 0
        %4814 = vmatpush2.bf16.msra.mxu0 0
        %4815 = vmatprep.subr.bf16.mxu0 0
        %4816 = vmatpush2.bf16.msra.mxu0 0
        %4817 = vmatprep.subr.bf16.mxu0 0
        %4818 = vmatpush2.bf16.msra.mxu0 0
        %4819 = vmatprep.subr.bf16.mxu0 0
        %4820 = vmatpush2.bf16.msra.mxu0 0
        %4821 = vmatprep.subr.bf16.mxu0 0
        %4822 = vmatpush2.bf16.msra.mxu0 0
        %4823 = vmatprep.mubr.bf16.mxu0 0
        %4824 = vmatmul.mubr.bf16.gmra.mxu0 %v4707
        %v4825 = vpop.f32.mrf.mxu0
        %v4826 = vadd.f32 0.0, %v4825
        %v4827 = vpop.f32.mrf.mxu0
        %v4828 = vadd.f32 0.0, %v4827
        %v4829 = vpop.f32.mrf.mxu0
        %v4830 = vadd.f32 0.0, %v4829
        %v4831 = vpop.f32.mrf.mxu0
        %v4832 = vadd.f32 0.0, %v4831
        %4833 = vmatprep.mubr.bf16.mxu0 0
        %4834 = vmatmul.mubr.bf16.gmra.mxu0 %v4710
        %v4835 = vpop.f32.mrf.mxu0
        %v4836 = vadd.f32 0.0, %v4835
        %v4837 = vpop.f32.mrf.mxu0
        %v4838 = vadd.f32 0.0, %v4837
        %v4839 = vpop.f32.mrf.mxu0
        %v4840 = vadd.f32 0.0, %v4839
        %v4841 = vpop.f32.mrf.mxu0
        %v4842 = vadd.f32 0.0, %v4841
        %4843 = vmatprep.mubr.bf16.mxu0 0
        %4844 = vmatmul.mubr.bf16.gmra.mxu0 %v4713
        %v4845 = vpop.f32.mrf.mxu0
        %v4846 = vadd.f32 0.0, %v4845
        %v4847 = vpop.f32.mrf.mxu0
        %v4848 = vadd.f32 0.0, %v4847
        %v4849 = vpop.f32.mrf.mxu0
        %v4850 = vadd.f32 0.0, %v4849
        %v4851 = vpop.f32.mrf.mxu0
        %v4852 = vadd.f32 0.0, %v4851
        %4853 = vmatprep.mubr.bf16.mxu0 0
        %4854 = vmatmul.mubr.bf16.gmra.mxu0 %v4716
        %v4855 = vpop.f32.mrf.mxu0
        %v4856 = vadd.f32 0.0, %v4855
        %v4857 = vpop.f32.mrf.mxu0
        %v4858 = vadd.f32 0.0, %v4857
        %v4859 = vpop.f32.mrf.mxu0
        %v4860 = vadd.f32 0.0, %v4859
        %v4861 = vpop.f32.mrf.mxu0
        %v4862 = vadd.f32 0.0, %v4861
        %4863 = vdwg.mxu0
        %v4864 = vpack.c.bf16 %v4757, %v4753
        %v4865 = vpack.c.bf16 %v4759, %v4755
        %v4866 = vpack.c.bf16 %v4830, %v4826
        %v4867 = vpack.c.bf16 %v4832, %v4828
        %v4868 = vpack.c.bf16 %v4767, %v4763
        %v4869 = vpack.c.bf16 %v4769, %v4765
        %v4870 = vpack.c.bf16 %v4840, %v4836
        %v4871 = vpack.c.bf16 %v4842, %v4838
        %v4872 = vpack.c.bf16 %v4777, %v4773
        %v4873 = vpack.c.bf16 %v4779, %v4775
        %v4874 = vpack.c.bf16 %v4850, %v4846
        %v4875 = vpack.c.bf16 %v4852, %v4848
        %v4876 = vpack.c.bf16 %v4787, %v4783
        %v4877 = vpack.c.bf16 %v4789, %v4785
        %v4878 = vpack.c.bf16 %v4860, %v4856
        %v4879 = vpack.c.bf16 %v4862, %v4858
        %s4880 = scalar_lea.vmem %s4, 192
        %v4881 = vld [vmem:[%s4880] sm:$0xf]
        %v4882 = vld [vmem:[%s4880 + $0x4] sm:$0xf]
        %v4883 = vld [vmem:[%s4880 + $0x8] sm:$0xf]
        %v4884 = vld [vmem:[%s4880 + $0xc] sm:$0xf]
        %v4885 = vld [vmem:[%s4880 + $0x10] sm:$0xf]
        %v4886 = vld [vmem:[%s4880 + $0x14] sm:$0xf]
        %v4887 = vld [vmem:[%s4880 + $0x18] sm:$0xf]
        %v4888 = vld [vmem:[%s4880 + $0x1c] sm:$0xf]
        %v4897 = vunpack.c.l.b16 %v4881
        %v4898 = vunpack.c.l.b16 %v4882
        %v4899 = vunpack.c.l.b16 %v4883
        %v4900 = vunpack.c.l.b16 %v4884
        %v4901 = vunpack.c.l.b16 %v4885
        %v4902 = vunpack.c.l.b16 %v4886
        %v4903 = vunpack.c.l.b16 %v4887
        %v4904 = vunpack.c.l.b16 %v4888
        %v4905 = vpack.c.b16 %v4898, %v4897
        %v4906 = vpack.c.b16 %v4900, %v4899
        %v4907 = vpack.c.b16 %v4902, %v4901
        %v4908 = vpack.c.b16 %v4904, %v4903
        %v4910 = vsel %vm3690, %v4905, 0
        %v4913 = vsel %vm3690, %v4906, 0
        %v4916 = vsel %vm3690, %v4907, 0
        %v4919 = vsel %vm3690, %v4908, 0
        %4921 = vmatprep.subr.bf16.mxu0 0
        %4922 = vmatpush1.bf16.msra.mxu0 0
        %4923 = vmatprep.subr.bf16.mxu0 0
        %4924 = vmatpush1.bf16.msra.mxu0 0
        %4925 = vmatprep.subr.bf16.mxu0 0
        %4926 = vmatpush1.bf16.msra.mxu0 0
        %4927 = vmatprep.subr.bf16.mxu0 0
        %4928 = vmatpush1.bf16.msra.mxu0 0
        %4929 = vmatprep.subr.bf16.mxu0 %v3659
        %4930 = vmatpush1.bf16.msra.mxu0 %v3658
        %4931 = vmatprep.subr.bf16.mxu0 %v3655
        %4932 = vmatpush1.bf16.msra.mxu0 %v3654
        %4933 = vmatprep.subr.bf16.mxu0 %v3651
        %4934 = vmatpush1.bf16.msra.mxu0 %v3650
        %4935 = vmatprep.subr.bf16.mxu0 %v3647
        %4936 = vmatpush1.bf16.msra.mxu0 %v3646
        %4937 = vmatprep.subr.bf16.mxu0 0
        %4938 = vmatpush2.bf16.msra.mxu0 0
        %4939 = vmatprep.subr.bf16.mxu0 0
        %4940 = vmatpush2.bf16.msra.mxu0 0
        %4941 = vmatprep.subr.bf16.mxu0 0
        %4942 = vmatpush2.bf16.msra.mxu0 0
        %4943 = vmatprep.subr.bf16.mxu0 0
        %4944 = vmatpush2.bf16.msra.mxu0 0
        %4945 = vmatprep.subr.bf16.mxu0 0
        %4946 = vmatpush2.bf16.msra.mxu0 0
        %4947 = vmatprep.subr.bf16.mxu0 0
        %4948 = vmatpush2.bf16.msra.mxu0 0
        %4949 = vmatprep.subr.bf16.mxu0 0
        %4950 = vmatpush2.bf16.msra.mxu0 0
        %4951 = vmatprep.subr.bf16.mxu0 0
        %4952 = vmatpush2.bf16.msra.mxu0 0
        %4953 = vmatprep.mubr.bf16.mxu0 0
        %4954 = vmatmul.mubr.bf16.gmra.mxu0 %v4910
        %v4955 = vpop.f32.mrf.mxu0
        %v4956 = vadd.f32 0.0, %v4955
        %v4957 = vpop.f32.mrf.mxu0
        %v4958 = vadd.f32 0.0, %v4957
        %v4959 = vpop.f32.mrf.mxu0
        %v4960 = vadd.f32 0.0, %v4959
        %v4961 = vpop.f32.mrf.mxu0
        %v4962 = vadd.f32 0.0, %v4961
        %4963 = vmatprep.mubr.bf16.mxu0 0
        %4964 = vmatmul.mubr.bf16.gmra.mxu0 %v4913
        %v4965 = vpop.f32.mrf.mxu0
        %v4966 = vadd.f32 0.0, %v4965
        %v4967 = vpop.f32.mrf.mxu0
        %v4968 = vadd.f32 0.0, %v4967
        %v4969 = vpop.f32.mrf.mxu0
        %v4970 = vadd.f32 0.0, %v4969
        %v4971 = vpop.f32.mrf.mxu0
        %v4972 = vadd.f32 0.0, %v4971
        %4973 = vmatprep.mubr.bf16.mxu0 0
        %4974 = vmatmul.mubr.bf16.gmra.mxu0 %v4916
        %v4975 = vpop.f32.mrf.mxu0
        %v4976 = vadd.f32 0.0, %v4975
        %v4977 = vpop.f32.mrf.mxu0
        %v4978 = vadd.f32 0.0, %v4977
        %v4979 = vpop.f32.mrf.mxu0
        %v4980 = vadd.f32 0.0, %v4979
        %v4981 = vpop.f32.mrf.mxu0
        %v4982 = vadd.f32 0.0, %v4981
        %4983 = vmatprep.mubr.bf16.mxu0 0
        %4984 = vmatmul.mubr.bf16.gmra.mxu0 %v4919
        %v4985 = vpop.f32.mrf.mxu0
        %v4986 = vadd.f32 0.0, %v4985
        %v4987 = vpop.f32.mrf.mxu0
        %v4988 = vadd.f32 0.0, %v4987
        %v4989 = vpop.f32.mrf.mxu0
        %v4990 = vadd.f32 0.0, %v4989
        %v4991 = vpop.f32.mrf.mxu0
        %v4992 = vadd.f32 0.0, %v4991
        %4993 = vdwg.mxu0
        %4994 = vmatprep.subr.bf16.mxu0 0
        %4995 = vmatpush1.bf16.msra.mxu0 0
        %4996 = vmatprep.subr.bf16.mxu0 0
        %4997 = vmatpush1.bf16.msra.mxu0 0
        %4998 = vmatprep.subr.bf16.mxu0 0
        %4999 = vmatpush1.bf16.msra.mxu0 0
        %5000 = vmatprep.subr.bf16.mxu0 0
        %5001 = vmatpush1.bf16.msra.mxu0 0
        %5002 = vmatprep.subr.bf16.mxu0 %v3661
        %5003 = vmatpush1.bf16.msra.mxu0 %v3660
        %5004 = vmatprep.subr.bf16.mxu0 %v3657
        %5005 = vmatpush1.bf16.msra.mxu0 %v3656
        %5006 = vmatprep.subr.bf16.mxu0 %v3653
        %5007 = vmatpush1.bf16.msra.mxu0 %v3652
        %5008 = vmatprep.subr.bf16.mxu0 %v3649
        %5009 = vmatpush1.bf16.msra.mxu0 %v3648
        %5010 = vmatprep.subr.bf16.mxu0 0
        %5011 = vmatpush2.bf16.msra.mxu0 0
        %5012 = vmatprep.subr.bf16.mxu0 0
        %5013 = vmatpush2.bf16.msra.mxu0 0
        %5014 = vmatprep.subr.bf16.mxu0 0
        %5015 = vmatpush2.bf16.msra.mxu0 0
        %5016 = vmatprep.subr.bf16.mxu0 0
        %5017 = vmatpush2.bf16.msra.mxu0 0
        %5018 = vmatprep.subr.bf16.mxu0 0
        %5019 = vmatpush2.bf16.msra.mxu0 0
        %5020 = vmatprep.subr.bf16.mxu0 0
        %5021 = vmatpush2.bf16.msra.mxu0 0
        %5022 = vmatprep.subr.bf16.mxu0 0
        %5023 = vmatpush2.bf16.msra.mxu0 0
        %5024 = vmatprep.subr.bf16.mxu0 0
        %5025 = vmatpush2.bf16.msra.mxu0 0
        %5026 = vmatprep.mubr.bf16.mxu0 0
        %5027 = vmatmul.mubr.bf16.gmra.mxu0 %v4910
        %v5028 = vpop.f32.mrf.mxu0
        %v5029 = vadd.f32 0.0, %v5028
        %v5030 = vpop.f32.mrf.mxu0
        %v5031 = vadd.f32 0.0, %v5030
        %v5032 = vpop.f32.mrf.mxu0
        %v5033 = vadd.f32 0.0, %v5032
        %v5034 = vpop.f32.mrf.mxu0
        %v5035 = vadd.f32 0.0, %v5034
        %5036 = vmatprep.mubr.bf16.mxu0 0
        %5037 = vmatmul.mubr.bf16.gmra.mxu0 %v4913
        %v5038 = vpop.f32.mrf.mxu0
        %v5039 = vadd.f32 0.0, %v5038
        %v5040 = vpop.f32.mrf.mxu0
        %v5041 = vadd.f32 0.0, %v5040
        %v5042 = vpop.f32.mrf.mxu0
        %v5043 = vadd.f32 0.0, %v5042
        %v5044 = vpop.f32.mrf.mxu0
        %v5045 = vadd.f32 0.0, %v5044
        %5046 = vmatprep.mubr.bf16.mxu0 0
        %5047 = vmatmul.mubr.bf16.gmra.mxu0 %v4916
        %v5048 = vpop.f32.mrf.mxu0
        %v5049 = vadd.f32 0.0, %v5048
        %v5050 = vpop.f32.mrf.mxu0
        %v5051 = vadd.f32 0.0, %v5050
        %v5052 = vpop.f32.mrf.mxu0
        %v5053 = vadd.f32 0.0, %v5052
        %v5054 = vpop.f32.mrf.mxu0
        %v5055 = vadd.f32 0.0, %v5054
        %5056 = vmatprep.mubr.bf16.mxu0 0
        %5057 = vmatmul.mubr.bf16.gmra.mxu0 %v4919
        %v5058 = vpop.f32.mrf.mxu0
        %v5059 = vadd.f32 0.0, %v5058
        %v5060 = vpop.f32.mrf.mxu0
        %v5061 = vadd.f32 0.0, %v5060
        %v5062 = vpop.f32.mrf.mxu0
        %v5063 = vadd.f32 0.0, %v5062
        %v5064 = vpop.f32.mrf.mxu0
        %v5065 = vadd.f32 0.0, %v5064
        %5066 = vdwg.mxu0
        %v5067 = vpack.c.bf16 %v4960, %v4956
        %v5068 = vpack.c.bf16 %v4962, %v4958
        %v5069 = vpack.c.bf16 %v5033, %v5029
        %v5070 = vpack.c.bf16 %v5035, %v5031
        %v5071 = vpack.c.bf16 %v4970, %v4966
        %v5072 = vpack.c.bf16 %v4972, %v4968
        %v5073 = vpack.c.bf16 %v5043, %v5039
        %v5074 = vpack.c.bf16 %v5045, %v5041
        %v5075 = vpack.c.bf16 %v4980, %v4976
        %v5076 = vpack.c.bf16 %v4982, %v4978
        %v5077 = vpack.c.bf16 %v5053, %v5049
        %v5078 = vpack.c.bf16 %v5055, %v5051
        %v5079 = vpack.c.bf16 %v4990, %v4986
        %v5080 = vpack.c.bf16 %v4992, %v4988
        %v5081 = vpack.c.bf16 %v5063, %v5059
        %v5082 = vpack.c.bf16 %v5065, %v5061
        %s5083 = scalar_lea.vmem %s4, 224
        %v5084 = vld [vmem:[%s5083] sm:$0xf]
        %v5085 = vld [vmem:[%s5083 + $0x4] sm:$0xf]
        %v5086 = vld [vmem:[%s5083 + $0x8] sm:$0xf]
        %v5087 = vld [vmem:[%s5083 + $0xc] sm:$0xf]
        %v5088 = vld [vmem:[%s5083 + $0x10] sm:$0xf]
        %v5089 = vld [vmem:[%s5083 + $0x14] sm:$0xf]
        %v5090 = vld [vmem:[%s5083 + $0x18] sm:$0xf]
        %v5091 = vld [vmem:[%s5083 + $0x1c] sm:$0xf]
        %v5100 = vunpack.c.l.b16 %v5084
        %v5101 = vunpack.c.l.b16 %v5085
        %v5102 = vunpack.c.l.b16 %v5086
        %v5103 = vunpack.c.l.b16 %v5087
        %v5104 = vunpack.c.l.b16 %v5088
        %v5105 = vunpack.c.l.b16 %v5089
        %v5106 = vunpack.c.l.b16 %v5090
        %v5107 = vunpack.c.l.b16 %v5091
        %v5108 = vpack.c.b16 %v5101, %v5100
        %v5109 = vpack.c.b16 %v5103, %v5102
        %v5110 = vpack.c.b16 %v5105, %v5104
        %v5111 = vpack.c.b16 %v5107, %v5106
        %v5113 = vsel %vm3690, %v5108, 0
        %v5116 = vsel %vm3690, %v5109, 0
        %v5119 = vsel %vm3690, %v5110, 0
        %v5122 = vsel %vm3690, %v5111, 0
        %5124 = vmatprep.subr.bf16.mxu0 0
        %5125 = vmatpush1.bf16.msra.mxu0 0
        %5126 = vmatprep.subr.bf16.mxu0 0
        %5127 = vmatpush1.bf16.msra.mxu0 0
        %5128 = vmatprep.subr.bf16.mxu0 0
        %5129 = vmatpush1.bf16.msra.mxu0 0
        %5130 = vmatprep.subr.bf16.mxu0 0
        %5131 = vmatpush1.bf16.msra.mxu0 0
        %5132 = vmatprep.subr.bf16.mxu0 %v3659
        %5133 = vmatpush1.bf16.msra.mxu0 %v3658
        %5134 = vmatprep.subr.bf16.mxu0 %v3655
        %5135 = vmatpush1.bf16.msra.mxu0 %v3654
        %5136 = vmatprep.subr.bf16.mxu0 %v3651
        %5137 = vmatpush1.bf16.msra.mxu0 %v3650
        %5138 = vmatprep.subr.bf16.mxu0 %v3647
        %5139 = vmatpush1.bf16.msra.mxu0 %v3646
        %5140 = vmatprep.subr.bf16.mxu0 0
        %5141 = vmatpush2.bf16.msra.mxu0 0
        %5142 = vmatprep.subr.bf16.mxu0 0
        %5143 = vmatpush2.bf16.msra.mxu0 0
        %5144 = vmatprep.subr.bf16.mxu0 0
        %5145 = vmatpush2.bf16.msra.mxu0 0
        %5146 = vmatprep.subr.bf16.mxu0 0
        %5147 = vmatpush2.bf16.msra.mxu0 0
        %5148 = vmatprep.subr.bf16.mxu0 0
        %5149 = vmatpush2.bf16.msra.mxu0 0
        %5150 = vmatprep.subr.bf16.mxu0 0
        %5151 = vmatpush2.bf16.msra.mxu0 0
        %5152 = vmatprep.subr.bf16.mxu0 0
        %5153 = vmatpush2.bf16.msra.mxu0 0
        %5154 = vmatprep.subr.bf16.mxu0 0
        %5155 = vmatpush2.bf16.msra.mxu0 0
        %5156 = vmatprep.mubr.bf16.mxu0 0
        %5157 = vmatmul.mubr.bf16.gmra.mxu0 %v5113
        %v5158 = vpop.f32.mrf.mxu0
        %v5159 = vadd.f32 0.0, %v5158
        %v5160 = vpop.f32.mrf.mxu0
        %v5161 = vadd.f32 0.0, %v5160
        %v5162 = vpop.f32.mrf.mxu0
        %v5163 = vadd.f32 0.0, %v5162
        %v5164 = vpop.f32.mrf.mxu0
        %v5165 = vadd.f32 0.0, %v5164
        %5166 = vmatprep.mubr.bf16.mxu0 0
        %5167 = vmatmul.mubr.bf16.gmra.mxu0 %v5116
        %v5168 = vpop.f32.mrf.mxu0
        %v5169 = vadd.f32 0.0, %v5168
        %v5170 = vpop.f32.mrf.mxu0
        %v5171 = vadd.f32 0.0, %v5170
        %v5172 = vpop.f32.mrf.mxu0
        %v5173 = vadd.f32 0.0, %v5172
        %v5174 = vpop.f32.mrf.mxu0
        %v5175 = vadd.f32 0.0, %v5174
        %5176 = vmatprep.mubr.bf16.mxu0 0
        %5177 = vmatmul.mubr.bf16.gmra.mxu0 %v5119
        %v5178 = vpop.f32.mrf.mxu0
        %v5179 = vadd.f32 0.0, %v5178
        %v5180 = vpop.f32.mrf.mxu0
        %v5181 = vadd.f32 0.0, %v5180
        %v5182 = vpop.f32.mrf.mxu0
        %v5183 = vadd.f32 0.0, %v5182
        %v5184 = vpop.f32.mrf.mxu0
        %v5185 = vadd.f32 0.0, %v5184
        %5186 = vmatprep.mubr.bf16.mxu0 0
        %5187 = vmatmul.mubr.bf16.gmra.mxu0 %v5122
        %v5188 = vpop.f32.mrf.mxu0
        %v5189 = vadd.f32 0.0, %v5188
        %v5190 = vpop.f32.mrf.mxu0
        %v5191 = vadd.f32 0.0, %v5190
        %v5192 = vpop.f32.mrf.mxu0
        %v5193 = vadd.f32 0.0, %v5192
        %v5194 = vpop.f32.mrf.mxu0
        %v5195 = vadd.f32 0.0, %v5194
        %5196 = vdwg.mxu0
        %5197 = vmatprep.subr.bf16.mxu0 0
        %5198 = vmatpush1.bf16.msra.mxu0 0
        %5199 = vmatprep.subr.bf16.mxu0 0
        %5200 = vmatpush1.bf16.msra.mxu0 0
        %5201 = vmatprep.subr.bf16.mxu0 0
        %5202 = vmatpush1.bf16.msra.mxu0 0
        %5203 = vmatprep.subr.bf16.mxu0 0
        %5204 = vmatpush1.bf16.msra.mxu0 0
        %5205 = vmatprep.subr.bf16.mxu0 %v3661
        %5206 = vmatpush1.bf16.msra.mxu0 %v3660
        %5207 = vmatprep.subr.bf16.mxu0 %v3657
        %5208 = vmatpush1.bf16.msra.mxu0 %v3656
        %5209 = vmatprep.subr.bf16.mxu0 %v3653
        %5210 = vmatpush1.bf16.msra.mxu0 %v3652
        %5211 = vmatprep.subr.bf16.mxu0 %v3649
        %5212 = vmatpush1.bf16.msra.mxu0 %v3648
        %5213 = vmatprep.subr.bf16.mxu0 0
        %5214 = vmatpush2.bf16.msra.mxu0 0
        %5215 = vmatprep.subr.bf16.mxu0 0
        %5216 = vmatpush2.bf16.msra.mxu0 0
        %5217 = vmatprep.subr.bf16.mxu0 0
        %5218 = vmatpush2.bf16.msra.mxu0 0
        %5219 = vmatprep.subr.bf16.mxu0 0
        %5220 = vmatpush2.bf16.msra.mxu0 0
        %5221 = vmatprep.subr.bf16.mxu0 0
        %5222 = vmatpush2.bf16.msra.mxu0 0
        %5223 = vmatprep.subr.bf16.mxu0 0
        %5224 = vmatpush2.bf16.msra.mxu0 0
        %5225 = vmatprep.subr.bf16.mxu0 0
        %5226 = vmatpush2.bf16.msra.mxu0 0
        %5227 = vmatprep.subr.bf16.mxu0 0
        %5228 = vmatpush2.bf16.msra.mxu0 0
        %5229 = vmatprep.mubr.bf16.mxu0 0
        %5230 = vmatmul.mubr.bf16.gmra.mxu0 %v5113
        %v5231 = vpop.f32.mrf.mxu0
        %v5232 = vadd.f32 0.0, %v5231
        %v5233 = vpop.f32.mrf.mxu0
        %v5234 = vadd.f32 0.0, %v5233
        %v5235 = vpop.f32.mrf.mxu0
        %v5236 = vadd.f32 0.0, %v5235
        %v5237 = vpop.f32.mrf.mxu0
        %v5238 = vadd.f32 0.0, %v5237
        %5239 = vmatprep.mubr.bf16.mxu0 0
        %5240 = vmatmul.mubr.bf16.gmra.mxu0 %v5116
        %v5241 = vpop.f32.mrf.mxu0
        %v5242 = vadd.f32 0.0, %v5241
        %v5243 = vpop.f32.mrf.mxu0
        %v5244 = vadd.f32 0.0, %v5243
        %v5245 = vpop.f32.mrf.mxu0
        %v5246 = vadd.f32 0.0, %v5245
        %v5247 = vpop.f32.mrf.mxu0
        %v5248 = vadd.f32 0.0, %v5247
        %5249 = vmatprep.mubr.bf16.mxu0 0
        %5250 = vmatmul.mubr.bf16.gmra.mxu0 %v5119
        %v5251 = vpop.f32.mrf.mxu0
        %v5252 = vadd.f32 0.0, %v5251
        %v5253 = vpop.f32.mrf.mxu0
        %v5254 = vadd.f32 0.0, %v5253
        %v5255 = vpop.f32.mrf.mxu0
        %v5256 = vadd.f32 0.0, %v5255
        %v5257 = vpop.f32.mrf.mxu0
        %v5258 = vadd.f32 0.0, %v5257
        %5259 = vmatprep.mubr.bf16.mxu0 0
        %5260 = vmatmul.mubr.bf16.gmra.mxu0 %v5122
        %v5261 = vpop.f32.mrf.mxu0
        %v5262 = vadd.f32 0.0, %v5261
        %v5263 = vpop.f32.mrf.mxu0
        %v5264 = vadd.f32 0.0, %v5263
        %v5265 = vpop.f32.mrf.mxu0
        %v5266 = vadd.f32 0.0, %v5265
        %v5267 = vpop.f32.mrf.mxu0
        %v5268 = vadd.f32 0.0, %v5267
        %5269 = vdwg.mxu0
        %v5270 = vpack.c.bf16 %v5163, %v5159
        %v5271 = vpack.c.bf16 %v5165, %v5161
        %v5272 = vpack.c.bf16 %v5236, %v5232
        %v5273 = vpack.c.bf16 %v5238, %v5234
        %v5274 = vpack.c.bf16 %v5173, %v5169
        %v5275 = vpack.c.bf16 %v5175, %v5171
        %v5276 = vpack.c.bf16 %v5246, %v5242
        %v5277 = vpack.c.bf16 %v5248, %v5244
        %v5278 = vpack.c.bf16 %v5183, %v5179
        %v5279 = vpack.c.bf16 %v5185, %v5181
        %v5280 = vpack.c.bf16 %v5256, %v5252
        %v5281 = vpack.c.bf16 %v5258, %v5254
        %v5282 = vpack.c.bf16 %v5193, %v5189
        %v5283 = vpack.c.bf16 %v5195, %v5191
        %v5284 = vpack.c.bf16 %v5266, %v5262
        %v5285 = vpack.c.bf16 %v5268, %v5264
        %s5286 = scalar_lea.vmem %s4, 256
        %v5287 = vld [vmem:[%s5286] sm:$0xf]
        %v5288 = vld [vmem:[%s5286 + $0x4] sm:$0xf]
        %v5289 = vld [vmem:[%s5286 + $0x8] sm:$0xf]
        %v5290 = vld [vmem:[%s5286 + $0xc] sm:$0xf]
        %v5291 = vld [vmem:[%s5286 + $0x10] sm:$0xf]
        %v5292 = vld [vmem:[%s5286 + $0x14] sm:$0xf]
        %v5293 = vld [vmem:[%s5286 + $0x18] sm:$0xf]
        %v5294 = vld [vmem:[%s5286 + $0x1c] sm:$0xf]
        %v5303 = vunpack.c.l.b16 %v5287
        %v5304 = vunpack.c.l.b16 %v5288
        %v5305 = vunpack.c.l.b16 %v5289
        %v5306 = vunpack.c.l.b16 %v5290
        %v5307 = vunpack.c.l.b16 %v5291
        %v5308 = vunpack.c.l.b16 %v5292
        %v5309 = vunpack.c.l.b16 %v5293
        %v5310 = vunpack.c.l.b16 %v5294
        %v5311 = vpack.c.b16 %v5304, %v5303
        %v5312 = vpack.c.b16 %v5306, %v5305
        %v5313 = vpack.c.b16 %v5308, %v5307
        %v5314 = vpack.c.b16 %v5310, %v5309
        %v5316 = vsel %vm3690, %v5311, 0
        %v5319 = vsel %vm3690, %v5312, 0
        %v5322 = vsel %vm3690, %v5313, 0
        %v5325 = vsel %vm3690, %v5314, 0
        %5327 = vmatprep.subr.bf16.mxu0 0
        %5328 = vmatpush1.bf16.msra.mxu0 0
        %5329 = vmatprep.subr.bf16.mxu0 0
        %5330 = vmatpush1.bf16.msra.mxu0 0
        %5331 = vmatprep.subr.bf16.mxu0 0
        %5332 = vmatpush1.bf16.msra.mxu0 0
        %5333 = vmatprep.subr.bf16.mxu0 0
        %5334 = vmatpush1.bf16.msra.mxu0 0
        %5335 = vmatprep.subr.bf16.mxu0 %v3659
        %5336 = vmatpush1.bf16.msra.mxu0 %v3658
        %5337 = vmatprep.subr.bf16.mxu0 %v3655
        %5338 = vmatpush1.bf16.msra.mxu0 %v3654
        %5339 = vmatprep.subr.bf16.mxu0 %v3651
        %5340 = vmatpush1.bf16.msra.mxu0 %v3650
        %5341 = vmatprep.subr.bf16.mxu0 %v3647
        %5342 = vmatpush1.bf16.msra.mxu0 %v3646
        %5343 = vmatprep.subr.bf16.mxu0 0
        %5344 = vmatpush2.bf16.msra.mxu0 0
        %5345 = vmatprep.subr.bf16.mxu0 0
        %5346 = vmatpush2.bf16.msra.mxu0 0
        %5347 = vmatprep.subr.bf16.mxu0 0
        %5348 = vmatpush2.bf16.msra.mxu0 0
        %5349 = vmatprep.subr.bf16.mxu0 0
        %5350 = vmatpush2.bf16.msra.mxu0 0
        %5351 = vmatprep.subr.bf16.mxu0 0
        %5352 = vmatpush2.bf16.msra.mxu0 0
        %5353 = vmatprep.subr.bf16.mxu0 0
        %5354 = vmatpush2.bf16.msra.mxu0 0
        %5355 = vmatprep.subr.bf16.mxu0 0
        %5356 = vmatpush2.bf16.msra.mxu0 0
        %5357 = vmatprep.subr.bf16.mxu0 0
        %5358 = vmatpush2.bf16.msra.mxu0 0
        %5359 = vmatprep.mubr.bf16.mxu0 0
        %5360 = vmatmul.mubr.bf16.gmra.mxu0 %v5316
        %v5361 = vpop.f32.mrf.mxu0
        %v5362 = vadd.f32 0.0, %v5361
        %v5363 = vpop.f32.mrf.mxu0
        %v5364 = vadd.f32 0.0, %v5363
        %v5365 = vpop.f32.mrf.mxu0
        %v5366 = vadd.f32 0.0, %v5365
        %v5367 = vpop.f32.mrf.mxu0
        %v5368 = vadd.f32 0.0, %v5367
        %5369 = vmatprep.mubr.bf16.mxu0 0
        %5370 = vmatmul.mubr.bf16.gmra.mxu0 %v5319
        %v5371 = vpop.f32.mrf.mxu0
        %v5372 = vadd.f32 0.0, %v5371
        %v5373 = vpop.f32.mrf.mxu0
        %v5374 = vadd.f32 0.0, %v5373
        %v5375 = vpop.f32.mrf.mxu0
        %v5376 = vadd.f32 0.0, %v5375
        %v5377 = vpop.f32.mrf.mxu0
        %v5378 = vadd.f32 0.0, %v5377
        %5379 = vmatprep.mubr.bf16.mxu0 0
        %5380 = vmatmul.mubr.bf16.gmra.mxu0 %v5322
        %v5381 = vpop.f32.mrf.mxu0
        %v5382 = vadd.f32 0.0, %v5381
        %v5383 = vpop.f32.mrf.mxu0
        %v5384 = vadd.f32 0.0, %v5383
        %v5385 = vpop.f32.mrf.mxu0
        %v5386 = vadd.f32 0.0, %v5385
        %v5387 = vpop.f32.mrf.mxu0
        %v5388 = vadd.f32 0.0, %v5387
        %5389 = vmatprep.mubr.bf16.mxu0 0
        %5390 = vmatmul.mubr.bf16.gmra.mxu0 %v5325
        %v5391 = vpop.f32.mrf.mxu0
        %v5392 = vadd.f32 0.0, %v5391
        %v5393 = vpop.f32.mrf.mxu0
        %v5394 = vadd.f32 0.0, %v5393
        %v5395 = vpop.f32.mrf.mxu0
        %v5396 = vadd.f32 0.0, %v5395
        %v5397 = vpop.f32.mrf.mxu0
        %v5398 = vadd.f32 0.0, %v5397
        %5399 = vdwg.mxu0
        %5400 = vmatprep.subr.bf16.mxu0 0
        %5401 = vmatpush1.bf16.msra.mxu0 0
        %5402 = vmatprep.subr.bf16.mxu0 0
        %5403 = vmatpush1.bf16.msra.mxu0 0
        %5404 = vmatprep.subr.bf16.mxu0 0
        %5405 = vmatpush1.bf16.msra.mxu0 0
        %5406 = vmatprep.subr.bf16.mxu0 0
        %5407 = vmatpush1.bf16.msra.mxu0 0
        %5408 = vmatprep.subr.bf16.mxu0 %v3661
        %5409 = vmatpush1.bf16.msra.mxu0 %v3660
        %5410 = vmatprep.subr.bf16.mxu0 %v3657
        %5411 = vmatpush1.bf16.msra.mxu0 %v3656
        %5412 = vmatprep.subr.bf16.mxu0 %v3653
        %5413 = vmatpush1.bf16.msra.mxu0 %v3652
        %5414 = vmatprep.subr.bf16.mxu0 %v3649
        %5415 = vmatpush1.bf16.msra.mxu0 %v3648
        %5416 = vmatprep.subr.bf16.mxu0 0
        %5417 = vmatpush2.bf16.msra.mxu0 0
        %5418 = vmatprep.subr.bf16.mxu0 0
        %5419 = vmatpush2.bf16.msra.mxu0 0
        %5420 = vmatprep.subr.bf16.mxu0 0
        %5421 = vmatpush2.bf16.msra.mxu0 0
        %5422 = vmatprep.subr.bf16.mxu0 0
        %5423 = vmatpush2.bf16.msra.mxu0 0
        %5424 = vmatprep.subr.bf16.mxu0 0
        %5425 = vmatpush2.bf16.msra.mxu0 0
        %5426 = vmatprep.subr.bf16.mxu0 0
        %5427 = vmatpush2.bf16.msra.mxu0 0
        %5428 = vmatprep.subr.bf16.mxu0 0
        %5429 = vmatpush2.bf16.msra.mxu0 0
        %5430 = vmatprep.subr.bf16.mxu0 0
        %5431 = vmatpush2.bf16.msra.mxu0 0
        %5432 = vmatprep.mubr.bf16.mxu0 0
        %5433 = vmatmul.mubr.bf16.gmra.mxu0 %v5316
        %v5434 = vpop.f32.mrf.mxu0
        %v5435 = vadd.f32 0.0, %v5434
        %v5436 = vpop.f32.mrf.mxu0
        %v5437 = vadd.f32 0.0, %v5436
        %v5438 = vpop.f32.mrf.mxu0
        %v5439 = vadd.f32 0.0, %v5438
        %v5440 = vpop.f32.mrf.mxu0
        %v5441 = vadd.f32 0.0, %v5440
        %5442 = vmatprep.mubr.bf16.mxu0 0
        %5443 = vmatmul.mubr.bf16.gmra.mxu0 %v5319
        %v5444 = vpop.f32.mrf.mxu0
        %v5445 = vadd.f32 0.0, %v5444
        %v5446 = vpop.f32.mrf.mxu0
        %v5447 = vadd.f32 0.0, %v5446
        %v5448 = vpop.f32.mrf.mxu0
        %v5449 = vadd.f32 0.0, %v5448
        %v5450 = vpop.f32.mrf.mxu0
        %v5451 = vadd.f32 0.0, %v5450
        %5452 = vmatprep.mubr.bf16.mxu0 0
        %5453 = vmatmul.mubr.bf16.gmra.mxu0 %v5322
        %v5454 = vpop.f32.mrf.mxu0
        %v5455 = vadd.f32 0.0, %v5454
        %v5456 = vpop.f32.mrf.mxu0
        %v5457 = vadd.f32 0.0, %v5456
        %v5458 = vpop.f32.mrf.mxu0
        %v5459 = vadd.f32 0.0, %v5458
        %v5460 = vpop.f32.mrf.mxu0
        %v5461 = vadd.f32 0.0, %v5460
        %5462 = vmatprep.mubr.bf16.mxu0 0
        %5463 = vmatmul.mubr.bf16.gmra.mxu0 %v5325
        %v5464 = vpop.f32.mrf.mxu0
        %v5465 = vadd.f32 0.0, %v5464
        %v5466 = vpop.f32.mrf.mxu0
        %v5467 = vadd.f32 0.0, %v5466
        %v5468 = vpop.f32.mrf.mxu0
        %v5469 = vadd.f32 0.0, %v5468
        %v5470 = vpop.f32.mrf.mxu0
        %v5471 = vadd.f32 0.0, %v5470
        %5472 = vdwg.mxu0
        %v5473 = vpack.c.bf16 %v5366, %v5362
        %v5474 = vpack.c.bf16 %v5368, %v5364
        %v5475 = vpack.c.bf16 %v5439, %v5435
        %v5476 = vpack.c.bf16 %v5441, %v5437
        %v5477 = vpack.c.bf16 %v5376, %v5372
        %v5478 = vpack.c.bf16 %v5378, %v5374
        %v5479 = vpack.c.bf16 %v5449, %v5445
        %v5480 = vpack.c.bf16 %v5451, %v5447
        %v5481 = vpack.c.bf16 %v5386, %v5382
        %v5482 = vpack.c.bf16 %v5388, %v5384
        %v5483 = vpack.c.bf16 %v5459, %v5455
        %v5484 = vpack.c.bf16 %v5461, %v5457
        %v5485 = vpack.c.bf16 %v5396, %v5392
        %v5486 = vpack.c.bf16 %v5398, %v5394
        %v5487 = vpack.c.bf16 %v5469, %v5465
        %v5488 = vpack.c.bf16 %v5471, %v5467
        %v5489 = vld [vmem:[%s924] sm:$0xf]
        %v5490 = vld [vmem:[%s924 + $0x4] sm:$0xf]
        %v5491 = vld [vmem:[%s924 + $0x8] sm:$0xf]
        %v5492 = vld [vmem:[%s924 + $0xc] sm:$0xf]
        %v5493 = vld [vmem:[%s924 + $0x10] sm:$0xf]
        %v5494 = vld [vmem:[%s924 + $0x14] sm:$0xf]
        %v5495 = vld [vmem:[%s924 + $0x18] sm:$0xf]
        %v5496 = vld [vmem:[%s924 + $0x1c] sm:$0xf]
        %v5497 = vld [vmem:[%s924 + $0x20] sm:$0xf]
        %v5498 = vld [vmem:[%s924 + $0x24] sm:$0xf]
        %v5499 = vld [vmem:[%s924 + $0x28] sm:$0xf]
        %v5500 = vld [vmem:[%s924 + $0x2c] sm:$0xf]
        %v5501 = vld [vmem:[%s924 + $0x30] sm:$0xf]
        %v5502 = vld [vmem:[%s924 + $0x34] sm:$0xf]
        %v5503 = vld [vmem:[%s924 + $0x38] sm:$0xf]
        %v5504 = vld [vmem:[%s924 + $0x3c] sm:$0xf]
        %v5505 = vld [vmem:[%s924 + $0x40] sm:$0xf]
        %v5506 = vld [vmem:[%s924 + $0x44] sm:$0xf]
        %v5507 = vld [vmem:[%s924 + $0x48] sm:$0xf]
        %v5508 = vld [vmem:[%s924 + $0x4c] sm:$0xf]
        %v5509 = vld [vmem:[%s924 + $0x50] sm:$0xf]
        %v5510 = vld [vmem:[%s924 + $0x54] sm:$0xf]
        %v5511 = vld [vmem:[%s924 + $0x58] sm:$0xf]
        %v5512 = vld [vmem:[%s924 + $0x5c] sm:$0xf]
        %v5513 = vld [vmem:[%s924 + $0x60] sm:$0xf]
        %v5514 = vld [vmem:[%s924 + $0x64] sm:$0xf]
        %v5515 = vld [vmem:[%s924 + $0x68] sm:$0xf]
        %v5516 = vld [vmem:[%s924 + $0x6c] sm:$0xf]
        %v5517 = vld [vmem:[%s924 + $0x70] sm:$0xf]
        %v5518 = vld [vmem:[%s924 + $0x74] sm:$0xf]
        %v5519 = vld [vmem:[%s924 + $0x78] sm:$0xf]
        %v5520 = vld [vmem:[%s924 + $0x7c] sm:$0xf]
        %v5521 = vld [vmem:[%s924 + $0x80] sm:$0xf]
        %v5522 = vld [vmem:[%s924 + $0x84] sm:$0xf]
        %v5523 = vld [vmem:[%s924 + $0x88] sm:$0xf]
        %v5524 = vld [vmem:[%s924 + $0x8c] sm:$0xf]
        %v5525 = vld [vmem:[%s924 + $0x90] sm:$0xf]
        %v5526 = vld [vmem:[%s924 + $0x94] sm:$0xf]
        %v5527 = vld [vmem:[%s924 + $0x98] sm:$0xf]
        %v5528 = vld [vmem:[%s924 + $0x9c] sm:$0xf]
        %v5529 = vld [vmem:[%s924 + $0xa0] sm:$0xf]
        %v5530 = vld [vmem:[%s924 + $0xa4] sm:$0xf]
        %v5531 = vld [vmem:[%s924 + $0xa8] sm:$0xf]
        %v5532 = vld [vmem:[%s924 + $0xac] sm:$0xf]
        %v5533 = vld [vmem:[%s924 + $0xb0] sm:$0xf]
        %v5534 = vld [vmem:[%s924 + $0xb4] sm:$0xf]
        %v5535 = vld [vmem:[%s924 + $0xb8] sm:$0xf]
        %v5536 = vld [vmem:[%s924 + $0xbc] sm:$0xf]
        %v5537 = vld [vmem:[%s924 + $0xc0] sm:$0xf]
        %v5538 = vld [vmem:[%s924 + $0xc4] sm:$0xf]
        %v5539 = vld [vmem:[%s924 + $0xc8] sm:$0xf]
        %v5540 = vld [vmem:[%s924 + $0xcc] sm:$0xf]
        %v5541 = vld [vmem:[%s924 + $0xd0] sm:$0xf]
        %v5542 = vld [vmem:[%s924 + $0xd4] sm:$0xf]
        %v5543 = vld [vmem:[%s924 + $0xd8] sm:$0xf]
        %v5544 = vld [vmem:[%s924 + $0xdc] sm:$0xf]
        %v5545 = vld [vmem:[%s924 + $0xe0] sm:$0xf]
        %v5546 = vld [vmem:[%s924 + $0xe4] sm:$0xf]
        %v5547 = vld [vmem:[%s924 + $0xe8] sm:$0xf]
        %v5548 = vld [vmem:[%s924 + $0xec] sm:$0xf]
        %v5549 = vld [vmem:[%s924 + $0xf0] sm:$0xf]
        %v5550 = vld [vmem:[%s924 + $0xf4] sm:$0xf]
        %v5551 = vld [vmem:[%s924 + $0xf8] sm:$0xf]
        %v5552 = vld [vmem:[%s924 + $0xfc] sm:$0xf]
        %v5553 = vld [vmem:[%s924 + $0x100] sm:$0xf]
        %v5554 = vld [vmem:[%s924 + $0x104] sm:$0xf]
        %v5555 = vld [vmem:[%s924 + $0x108] sm:$0xf]
        %v5556 = vld [vmem:[%s924 + $0x10c] sm:$0xf]
        %v5557 = vld [vmem:[%s924 + $0x110] sm:$0xf]
        %v5558 = vld [vmem:[%s924 + $0x114] sm:$0xf]
        %v5559 = vld [vmem:[%s924 + $0x118] sm:$0xf]
        %v5560 = vld [vmem:[%s924 + $0x11c] sm:$0xf]
        %v5561 = vld [vmem:[%s924 + $0x120] sm:$0xf]
        %v5562 = vld [vmem:[%s924 + $0x124] sm:$0xf]
        %v5563 = vld [vmem:[%s924 + $0x128] sm:$0xf]
        %v5564 = vld [vmem:[%s924 + $0x12c] sm:$0xf]
        %v5565 = vld [vmem:[%s924 + $0x130] sm:$0xf]
        %v5566 = vld [vmem:[%s924 + $0x134] sm:$0xf]
        %v5567 = vld [vmem:[%s924 + $0x138] sm:$0xf]
        %v5568 = vld [vmem:[%s924 + $0x13c] sm:$0xf]
        %v5569 = vld [vmem:[%s924 + $0x140] sm:$0xf]
        %v5570 = vld [vmem:[%s924 + $0x144] sm:$0xf]
        %v5571 = vld [vmem:[%s924 + $0x148] sm:$0xf]
        %v5572 = vld [vmem:[%s924 + $0x14c] sm:$0xf]
        %v5573 = vld [vmem:[%s924 + $0x150] sm:$0xf]
        %v5574 = vld [vmem:[%s924 + $0x154] sm:$0xf]
        %v5575 = vld [vmem:[%s924 + $0x158] sm:$0xf]
        %v5576 = vld [vmem:[%s924 + $0x15c] sm:$0xf]
        %v5577 = vld [vmem:[%s924 + $0x160] sm:$0xf]
        %v5578 = vld [vmem:[%s924 + $0x164] sm:$0xf]
        %v5579 = vld [vmem:[%s924 + $0x168] sm:$0xf]
        %v5580 = vld [vmem:[%s924 + $0x16c] sm:$0xf]
        %v5581 = vld [vmem:[%s924 + $0x170] sm:$0xf]
        %v5582 = vld [vmem:[%s924 + $0x174] sm:$0xf]
        %v5583 = vld [vmem:[%s924 + $0x178] sm:$0xf]
        %v5584 = vld [vmem:[%s924 + $0x17c] sm:$0xf]
        %v5585 = vld [vmem:[%s924 + $0x180] sm:$0xf]
        %v5586 = vld [vmem:[%s924 + $0x184] sm:$0xf]
        %v5587 = vld [vmem:[%s924 + $0x188] sm:$0xf]
        %v5588 = vld [vmem:[%s924 + $0x18c] sm:$0xf]
        %v5589 = vld [vmem:[%s924 + $0x190] sm:$0xf]
        %v5590 = vld [vmem:[%s924 + $0x194] sm:$0xf]
        %v5591 = vld [vmem:[%s924 + $0x198] sm:$0xf]
        %v5592 = vld [vmem:[%s924 + $0x19c] sm:$0xf]
        %v5593 = vld [vmem:[%s924 + $0x1a0] sm:$0xf]
        %v5594 = vld [vmem:[%s924 + $0x1a4] sm:$0xf]
        %v5595 = vld [vmem:[%s924 + $0x1a8] sm:$0xf]
        %v5596 = vld [vmem:[%s924 + $0x1ac] sm:$0xf]
        %v5597 = vld [vmem:[%s924 + $0x1b0] sm:$0xf]
        %v5598 = vld [vmem:[%s924 + $0x1b4] sm:$0xf]
        %v5599 = vld [vmem:[%s924 + $0x1b8] sm:$0xf]
        %v5600 = vld [vmem:[%s924 + $0x1bc] sm:$0xf]
        %v5601 = vld [vmem:[%s924 + $0x1c0] sm:$0xf]
        %v5602 = vld [vmem:[%s924 + $0x1c4] sm:$0xf]
        %v5603 = vld [vmem:[%s924 + $0x1c8] sm:$0xf]
        %v5604 = vld [vmem:[%s924 + $0x1cc] sm:$0xf]
        %v5605 = vld [vmem:[%s924 + $0x1d0] sm:$0xf]
        %v5606 = vld [vmem:[%s924 + $0x1d4] sm:$0xf]
        %v5607 = vld [vmem:[%s924 + $0x1d8] sm:$0xf]
        %v5608 = vld [vmem:[%s924 + $0x1dc] sm:$0xf]
        %v5609 = vld [vmem:[%s924 + $0x1e0] sm:$0xf]
        %v5610 = vld [vmem:[%s924 + $0x1e4] sm:$0xf]
        %v5611 = vld [vmem:[%s924 + $0x1e8] sm:$0xf]
        %v5612 = vld [vmem:[%s924 + $0x1ec] sm:$0xf]
        %v5613 = vld [vmem:[%s924 + $0x1f0] sm:$0xf]
        %v5614 = vld [vmem:[%s924 + $0x1f4] sm:$0xf]
        %v5615 = vld [vmem:[%s924 + $0x1f8] sm:$0xf]
        %v5616 = vld [vmem:[%s924 + $0x1fc] sm:$0xf]
        %v5617 = vld [vmem:[%s924 + $0x200] sm:$0xf]
        %v5618 = vld [vmem:[%s924 + $0x204] sm:$0xf]
        %v5619 = vld [vmem:[%s924 + $0x208] sm:$0xf]
        %v5620 = vld [vmem:[%s924 + $0x20c] sm:$0xf]
        %v5621 = vld [vmem:[%s924 + $0x210] sm:$0xf]
        %v5622 = vld [vmem:[%s924 + $0x214] sm:$0xf]
        %v5623 = vld [vmem:[%s924 + $0x218] sm:$0xf]
        %v5624 = vld [vmem:[%s924 + $0x21c] sm:$0xf]
        %v5625 = vld [vmem:[%s924 + $0x220] sm:$0xf]
        %v5626 = vld [vmem:[%s924 + $0x224] sm:$0xf]
        %v5627 = vld [vmem:[%s924 + $0x228] sm:$0xf]
        %v5628 = vld [vmem:[%s924 + $0x22c] sm:$0xf]
        %v5629 = vld [vmem:[%s924 + $0x230] sm:$0xf]
        %v5630 = vld [vmem:[%s924 + $0x234] sm:$0xf]
        %v5631 = vld [vmem:[%s924 + $0x238] sm:$0xf]
        %v5632 = vld [vmem:[%s924 + $0x23c] sm:$0xf]
        %v5777 = vunpack.c.l.b16 %v5489
        %v5778 = vunpack.c.l.b16 %v5490
        %v5779 = vunpack.c.l.b16 %v5491
        %v5780 = vunpack.c.l.b16 %v5492
        %v5781 = vunpack.c.l.b16 %v5493
        %v5782 = vunpack.c.l.b16 %v5494
        %v5783 = vunpack.c.l.b16 %v5495
        %v5784 = vunpack.c.l.b16 %v5496
        %v5785 = vunpack.c.l.b16 %v5497
        %v5786 = vunpack.c.l.b16 %v5498
        %v5787 = vunpack.c.l.b16 %v5499
        %v5788 = vunpack.c.l.b16 %v5500
        %v5789 = vunpack.c.l.b16 %v5501
        %v5790 = vunpack.c.l.b16 %v5502
        %v5791 = vunpack.c.l.b16 %v5503
        %v5792 = vunpack.c.l.b16 %v5504
        %v5793 = vunpack.c.l.b16 %v5505
        %v5794 = vunpack.c.l.b16 %v5506
        %v5795 = vunpack.c.l.b16 %v5507
        %v5796 = vunpack.c.l.b16 %v5508
        %v5797 = vunpack.c.l.b16 %v5509
        %v5798 = vunpack.c.l.b16 %v5510
        %v5799 = vunpack.c.l.b16 %v5511
        %v5800 = vunpack.c.l.b16 %v5512
        %v5801 = vunpack.c.l.b16 %v5513
        %v5802 = vunpack.c.l.b16 %v5514
        %v5803 = vunpack.c.l.b16 %v5515
        %v5804 = vunpack.c.l.b16 %v5516
        %v5805 = vunpack.c.l.b16 %v5517
        %v5806 = vunpack.c.l.b16 %v5518
        %v5807 = vunpack.c.l.b16 %v5519
        %v5808 = vunpack.c.l.b16 %v5520
        %v5809 = vunpack.c.l.b16 %v5521
        %v5810 = vunpack.c.l.b16 %v5522
        %v5811 = vunpack.c.l.b16 %v5523
        %v5812 = vunpack.c.l.b16 %v5524
        %v5813 = vunpack.c.l.b16 %v5525
        %v5814 = vunpack.c.l.b16 %v5526
        %v5815 = vunpack.c.l.b16 %v5527
        %v5816 = vunpack.c.l.b16 %v5528
        %v5817 = vunpack.c.l.b16 %v5529
        %v5818 = vunpack.c.l.b16 %v5530
        %v5819 = vunpack.c.l.b16 %v5531
        %v5820 = vunpack.c.l.b16 %v5532
        %v5821 = vunpack.c.l.b16 %v5533
        %v5822 = vunpack.c.l.b16 %v5534
        %v5823 = vunpack.c.l.b16 %v5535
        %v5824 = vunpack.c.l.b16 %v5536
        %v5825 = vunpack.c.l.b16 %v5537
        %v5826 = vunpack.c.l.b16 %v5538
        %v5827 = vunpack.c.l.b16 %v5539
        %v5828 = vunpack.c.l.b16 %v5540
        %v5829 = vunpack.c.l.b16 %v5541
        %v5830 = vunpack.c.l.b16 %v5542
        %v5831 = vunpack.c.l.b16 %v5543
        %v5832 = vunpack.c.l.b16 %v5544
        %v5833 = vunpack.c.l.b16 %v5545
        %v5834 = vunpack.c.l.b16 %v5546
        %v5835 = vunpack.c.l.b16 %v5547
        %v5836 = vunpack.c.l.b16 %v5548
        %v5837 = vunpack.c.l.b16 %v5549
        %v5838 = vunpack.c.l.b16 %v5550
        %v5839 = vunpack.c.l.b16 %v5551
        %v5840 = vunpack.c.l.b16 %v5552
        %v5841 = vunpack.c.l.b16 %v5553
        %v5842 = vunpack.c.l.b16 %v5554
        %v5843 = vunpack.c.l.b16 %v5555
        %v5844 = vunpack.c.l.b16 %v5556
        %v5845 = vunpack.c.l.b16 %v5557
        %v5846 = vunpack.c.l.b16 %v5558
        %v5847 = vunpack.c.l.b16 %v5559
        %v5848 = vunpack.c.l.b16 %v5560
        %v5849 = vunpack.c.l.b16 %v5561
        %v5850 = vunpack.c.l.b16 %v5562
        %v5851 = vunpack.c.l.b16 %v5563
        %v5852 = vunpack.c.l.b16 %v5564
        %v5853 = vunpack.c.l.b16 %v5565
        %v5854 = vunpack.c.l.b16 %v5566
        %v5855 = vunpack.c.l.b16 %v5567
        %v5856 = vunpack.c.l.b16 %v5568
        %v5857 = vunpack.c.l.b16 %v5569
        %v5858 = vunpack.c.l.b16 %v5570
        %v5859 = vunpack.c.l.b16 %v5571
        %v5860 = vunpack.c.l.b16 %v5572
        %v5861 = vunpack.c.l.b16 %v5573
        %v5862 = vunpack.c.l.b16 %v5574
        %v5863 = vunpack.c.l.b16 %v5575
        %v5864 = vunpack.c.l.b16 %v5576
        %v5865 = vunpack.c.l.b16 %v5577
        %v5866 = vunpack.c.l.b16 %v5578
        %v5867 = vunpack.c.l.b16 %v5579
        %v5868 = vunpack.c.l.b16 %v5580
        %v5869 = vunpack.c.l.b16 %v5581
        %v5870 = vunpack.c.l.b16 %v5582
        %v5871 = vunpack.c.l.b16 %v5583
        %v5872 = vunpack.c.l.b16 %v5584
        %v5873 = vunpack.c.l.b16 %v5585
        %v5874 = vunpack.c.l.b16 %v5586
        %v5875 = vunpack.c.l.b16 %v5587
        %v5876 = vunpack.c.l.b16 %v5588
        %v5877 = vunpack.c.l.b16 %v5589
        %v5878 = vunpack.c.l.b16 %v5590
        %v5879 = vunpack.c.l.b16 %v5591
        %v5880 = vunpack.c.l.b16 %v5592
        %v5881 = vunpack.c.l.b16 %v5593
        %v5882 = vunpack.c.l.b16 %v5594
        %v5883 = vunpack.c.l.b16 %v5595
        %v5884 = vunpack.c.l.b16 %v5596
        %v5885 = vunpack.c.l.b16 %v5597
        %v5886 = vunpack.c.l.b16 %v5598
        %v5887 = vunpack.c.l.b16 %v5599
        %v5888 = vunpack.c.l.b16 %v5600
        %v5889 = vunpack.c.l.b16 %v5601
        %v5890 = vunpack.c.l.b16 %v5602
        %v5891 = vunpack.c.l.b16 %v5603
        %v5892 = vunpack.c.l.b16 %v5604
        %v5893 = vunpack.c.l.b16 %v5605
        %v5894 = vunpack.c.l.b16 %v5606
        %v5895 = vunpack.c.l.b16 %v5607
        %v5896 = vunpack.c.l.b16 %v5608
        %v5897 = vunpack.c.l.b16 %v5609
        %v5898 = vunpack.c.l.b16 %v5610
        %v5899 = vunpack.c.l.b16 %v5611
        %v5900 = vunpack.c.l.b16 %v5612
        %v5901 = vunpack.c.l.b16 %v5613
        %v5902 = vunpack.c.l.b16 %v5614
        %v5903 = vunpack.c.l.b16 %v5615
        %v5904 = vunpack.c.l.b16 %v5616
        %v5905 = vunpack.c.l.b16 %v5617
        %v5906 = vunpack.c.l.b16 %v5618
        %v5907 = vunpack.c.l.b16 %v5619
        %v5908 = vunpack.c.l.b16 %v5620
        %v5909 = vunpack.c.l.b16 %v5621
        %v5910 = vunpack.c.l.b16 %v5622
        %v5911 = vunpack.c.l.b16 %v5623
        %v5912 = vunpack.c.l.b16 %v5624
        %v5913 = vunpack.c.l.b16 %v5625
        %v5914 = vunpack.c.l.b16 %v5626
        %v5915 = vunpack.c.l.b16 %v5627
        %v5916 = vunpack.c.l.b16 %v5628
        %v5917 = vunpack.c.l.b16 %v5629
        %v5918 = vunpack.c.l.b16 %v5630
        %v5919 = vunpack.c.l.b16 %v5631
        %v5920 = vunpack.c.l.b16 %v5632
        %v5921 = vpack.c.b16 %v5778, %v5777
        %v5922 = vpack.c.b16 %v5780, %v5779
        %v5923 = vpack.c.b16 %v5782, %v5781
        %v5924 = vpack.c.b16 %v5784, %v5783
        %v5925 = vpack.c.b16 %v5786, %v5785
        %v5926 = vpack.c.b16 %v5788, %v5787
        %v5927 = vpack.c.b16 %v5790, %v5789
        %v5928 = vpack.c.b16 %v5792, %v5791
        %v5929 = vpack.c.b16 %v5794, %v5793
        %v5930 = vpack.c.b16 %v5796, %v5795
        %v5931 = vpack.c.b16 %v5798, %v5797
        %v5932 = vpack.c.b16 %v5800, %v5799
        %v5933 = vpack.c.b16 %v5802, %v5801
        %v5934 = vpack.c.b16 %v5804, %v5803
        %v5935 = vpack.c.b16 %v5806, %v5805
        %v5936 = vpack.c.b16 %v5808, %v5807
        %v5937 = vpack.c.b16 %v5810, %v5809
        %v5938 = vpack.c.b16 %v5812, %v5811
        %v5939 = vpack.c.b16 %v5814, %v5813
        %v5940 = vpack.c.b16 %v5816, %v5815
        %v5941 = vpack.c.b16 %v5818, %v5817
        %v5942 = vpack.c.b16 %v5820, %v5819
        %v5943 = vpack.c.b16 %v5822, %v5821
        %v5944 = vpack.c.b16 %v5824, %v5823
        %v5945 = vpack.c.b16 %v5826, %v5825
        %v5946 = vpack.c.b16 %v5828, %v5827
        %v5947 = vpack.c.b16 %v5830, %v5829
        %v5948 = vpack.c.b16 %v5832, %v5831
        %v5949 = vpack.c.b16 %v5834, %v5833
        %v5950 = vpack.c.b16 %v5836, %v5835
        %v5951 = vpack.c.b16 %v5838, %v5837
        %v5952 = vpack.c.b16 %v5840, %v5839
        %v5953 = vpack.c.b16 %v5842, %v5841
        %v5954 = vpack.c.b16 %v5844, %v5843
        %v5955 = vpack.c.b16 %v5846, %v5845
        %v5956 = vpack.c.b16 %v5848, %v5847
        %v5957 = vpack.c.b16 %v5850, %v5849
        %v5958 = vpack.c.b16 %v5852, %v5851
        %v5959 = vpack.c.b16 %v5854, %v5853
        %v5960 = vpack.c.b16 %v5856, %v5855
        %v5961 = vpack.c.b16 %v5858, %v5857
        %v5962 = vpack.c.b16 %v5860, %v5859
        %v5963 = vpack.c.b16 %v5862, %v5861
        %v5964 = vpack.c.b16 %v5864, %v5863
        %v5965 = vpack.c.b16 %v5866, %v5865
        %v5966 = vpack.c.b16 %v5868, %v5867
        %v5967 = vpack.c.b16 %v5870, %v5869
        %v5968 = vpack.c.b16 %v5872, %v5871
        %v5969 = vpack.c.b16 %v5874, %v5873
        %v5970 = vpack.c.b16 %v5876, %v5875
        %v5971 = vpack.c.b16 %v5878, %v5877
        %v5972 = vpack.c.b16 %v5880, %v5879
        %v5973 = vpack.c.b16 %v5882, %v5881
        %v5974 = vpack.c.b16 %v5884, %v5883
        %v5975 = vpack.c.b16 %v5886, %v5885
        %v5976 = vpack.c.b16 %v5888, %v5887
        %v5977 = vpack.c.b16 %v5890, %v5889
        %v5978 = vpack.c.b16 %v5892, %v5891
        %v5979 = vpack.c.b16 %v5894, %v5893
        %v5980 = vpack.c.b16 %v5896, %v5895
        %v5981 = vpack.c.b16 %v5898, %v5897
        %v5982 = vpack.c.b16 %v5900, %v5899
        %v5983 = vpack.c.b16 %v5902, %v5901
        %v5984 = vpack.c.b16 %v5904, %v5903
        %v5985 = vpack.c.b16 %v5906, %v5905
        %v5986 = vpack.c.b16 %v5908, %v5907
        %v5987 = vpack.c.b16 %v5910, %v5909
        %v5988 = vpack.c.b16 %v5912, %v5911
        %v5989 = vpack.c.b16 %v5914, %v5913
        %v5990 = vpack.c.b16 %v5916, %v5915
        %v5991 = vpack.c.b16 %v5918, %v5917
        %v5992 = vpack.c.b16 %v5920, %v5919
        %6065 = vmatprep.subr.bf16.mxu0 0
        %6066 = vmatpush1.bf16.msra.mxu0 %v5928
        %6067 = vmatprep.subr.bf16.mxu0 0
        %6068 = vmatpush1.bf16.msra.mxu0 %v5927
        %6069 = vmatprep.subr.bf16.mxu0 0
        %6070 = vmatpush1.bf16.msra.mxu0 %v5926
        %6071 = vmatprep.subr.bf16.mxu0 0
        %6072 = vmatpush1.bf16.msra.mxu0 %v5925
        %6073 = vmatprep.subr.bf16.mxu0 0
        %6074 = vmatpush1.bf16.msra.mxu0 %v5924
        %6075 = vmatprep.subr.bf16.mxu0 0
        %6076 = vmatpush1.bf16.msra.mxu0 %v5923
        %6077 = vmatprep.subr.bf16.mxu0 0
        %6078 = vmatpush1.bf16.msra.mxu0 %v5922
        %6079 = vmatprep.subr.bf16.mxu0 0
        %6080 = vmatpush1.bf16.msra.mxu0 %v5921
        %6081 = vmatprep.subr.bf16.mxu0 0
        %6082 = vmatpush2.bf16.msra.mxu0 %v5936
        %6083 = vmatprep.subr.bf16.mxu0 0
        %6084 = vmatpush2.bf16.msra.mxu0 %v5935
        %6085 = vmatprep.subr.bf16.mxu0 0
        %6086 = vmatpush2.bf16.msra.mxu0 %v5934
        %6087 = vmatprep.subr.bf16.mxu0 0
        %6088 = vmatpush2.bf16.msra.mxu0 %v5933
        %6089 = vmatprep.subr.bf16.mxu0 0
        %6090 = vmatpush2.bf16.msra.mxu0 %v5932
        %6091 = vmatprep.subr.bf16.mxu0 0
        %6092 = vmatpush2.bf16.msra.mxu0 %v5931
        %6093 = vmatprep.subr.bf16.mxu0 0
        %6094 = vmatpush2.bf16.msra.mxu0 %v5930
        %6095 = vmatprep.subr.bf16.mxu0 0
        %6096 = vmatpush2.bf16.msra.mxu0 %v5929
        %6097 = vmatprep.mubr.bf16.mxu0 %v4052
        %6098 = vmatmul.mubr.bf16.gmra.mxu0 %v3849
        %v6099 = vpop.f32.mrf.mxu0
        %v6100 = vadd.f32 0.0, %v6099
        %v6101 = vpop.f32.mrf.mxu0
        %v6102 = vpop.f32.mrf.mxu0
        %v6103 = vadd.f32 0.0, %v6102
        %v6104 = vpop.f32.mrf.mxu0
        %6105 = vmatprep.mubr.bf16.mxu0 %v4056
        %6106 = vmatmul.mubr.bf16.gmra.mxu0 %v3853
        %v6107 = vpop.f32.mrf.mxu0
        %v6108 = vadd.f32 0.0, %v6107
        %v6109 = vpop.f32.mrf.mxu0
        %v6110 = vpop.f32.mrf.mxu0
        %v6111 = vadd.f32 0.0, %v6110
        %v6112 = vpop.f32.mrf.mxu0
        %6113 = vmatprep.mubr.bf16.mxu0 %v4060
        %6114 = vmatmul.mubr.bf16.gmra.mxu0 %v3857
        %v6115 = vpop.f32.mrf.mxu0
        %v6116 = vadd.f32 0.0, %v6115
        %v6117 = vpop.f32.mrf.mxu0
        %v6118 = vpop.f32.mrf.mxu0
        %v6119 = vadd.f32 0.0, %v6118
        %v6120 = vpop.f32.mrf.mxu0
        %6121 = vmatprep.mubr.bf16.mxu0 %v4064
        %6122 = vmatmul.mubr.bf16.gmra.mxu0 %v3861
        %v6123 = vpop.f32.mrf.mxu0
        %v6124 = vadd.f32 0.0, %v6123
        %v6125 = vpop.f32.mrf.mxu0
        %v6126 = vpop.f32.mrf.mxu0
        %v6127 = vadd.f32 0.0, %v6126
        %v6128 = vpop.f32.mrf.mxu0
        %6129 = vdwg.mxu0
        %6130 = vmatprep.subr.bf16.mxu0 0
        %6131 = vmatpush1.bf16.msra.mxu0 %v5944
        %6132 = vmatprep.subr.bf16.mxu0 0
        %6133 = vmatpush1.bf16.msra.mxu0 %v5943
        %6134 = vmatprep.subr.bf16.mxu0 0
        %6135 = vmatpush1.bf16.msra.mxu0 %v5942
        %6136 = vmatprep.subr.bf16.mxu0 0
        %6137 = vmatpush1.bf16.msra.mxu0 %v5941
        %6138 = vmatprep.subr.bf16.mxu0 0
        %6139 = vmatpush1.bf16.msra.mxu0 %v5940
        %6140 = vmatprep.subr.bf16.mxu0 0
        %6141 = vmatpush1.bf16.msra.mxu0 %v5939
        %6142 = vmatprep.subr.bf16.mxu0 0
        %6143 = vmatpush1.bf16.msra.mxu0 %v5938
        %6144 = vmatprep.subr.bf16.mxu0 0
        %6145 = vmatpush1.bf16.msra.mxu0 %v5937
        %6146 = vmatprep.subr.bf16.mxu0 0
        %6147 = vmatpush2.bf16.msra.mxu0 %v5952
        %6148 = vmatprep.subr.bf16.mxu0 0
        %6149 = vmatpush2.bf16.msra.mxu0 %v5951
        %6150 = vmatprep.subr.bf16.mxu0 0
        %6151 = vmatpush2.bf16.msra.mxu0 %v5950
        %6152 = vmatprep.subr.bf16.mxu0 0
        %6153 = vmatpush2.bf16.msra.mxu0 %v5949
        %6154 = vmatprep.subr.bf16.mxu0 0
        %6155 = vmatpush2.bf16.msra.mxu0 %v5948
        %6156 = vmatprep.subr.bf16.mxu0 0
        %6157 = vmatpush2.bf16.msra.mxu0 %v5947
        %6158 = vmatprep.subr.bf16.mxu0 0
        %6159 = vmatpush2.bf16.msra.mxu0 %v5946
        %6160 = vmatprep.subr.bf16.mxu0 0
        %6161 = vmatpush2.bf16.msra.mxu0 %v5945
        %6162 = vmatprep.mubr.bf16.mxu0 %v4458
        %6163 = vmatmul.mubr.bf16.gmra.mxu0 %v4255
        %v6164 = vpop.f32.mrf.mxu0
        %v6165 = vadd.f32 %v6100, %v6164
        %v6166 = vpop.f32.mrf.mxu0
        %v6167 = vpop.f32.mrf.mxu0
        %v6168 = vadd.f32 %v6103, %v6167
        %v6169 = vpop.f32.mrf.mxu0
        %6170 = vmatprep.mubr.bf16.mxu0 %v4462
        %6171 = vmatmul.mubr.bf16.gmra.mxu0 %v4259
        %v6172 = vpop.f32.mrf.mxu0
        %v6173 = vadd.f32 %v6108, %v6172
        %v6174 = vpop.f32.mrf.mxu0
        %v6175 = vpop.f32.mrf.mxu0
        %v6176 = vadd.f32 %v6111, %v6175
        %v6177 = vpop.f32.mrf.mxu0
        %6178 = vmatprep.mubr.bf16.mxu0 %v4466
        %6179 = vmatmul.mubr.bf16.gmra.mxu0 %v4263
        %v6180 = vpop.f32.mrf.mxu0
        %v6181 = vadd.f32 %v6116, %v6180
        %v6182 = vpop.f32.mrf.mxu0
        %v6183 = vpop.f32.mrf.mxu0
        %v6184 = vadd.f32 %v6119, %v6183
        %v6185 = vpop.f32.mrf.mxu0
        %6186 = vmatprep.mubr.bf16.mxu0 %v4470
        %6187 = vmatmul.mubr.bf16.gmra.mxu0 %v4267
        %v6188 = vpop.f32.mrf.mxu0
        %v6189 = vadd.f32 %v6124, %v6188
        %v6190 = vpop.f32.mrf.mxu0
        %v6191 = vpop.f32.mrf.mxu0
        %v6192 = vadd.f32 %v6127, %v6191
        %v6193 = vpop.f32.mrf.mxu0
        %6194 = vdwg.mxu0
        %6195 = vmatprep.subr.bf16.mxu0 0
        %6196 = vmatpush1.bf16.msra.mxu0 %v5960
        %6197 = vmatprep.subr.bf16.mxu0 0
        %6198 = vmatpush1.bf16.msra.mxu0 %v5959
        %6199 = vmatprep.subr.bf16.mxu0 0
        %6200 = vmatpush1.bf16.msra.mxu0 %v5958
        %6201 = vmatprep.subr.bf16.mxu0 0
        %6202 = vmatpush1.bf16.msra.mxu0 %v5957
        %6203 = vmatprep.subr.bf16.mxu0 0
        %6204 = vmatpush1.bf16.msra.mxu0 %v5956
        %6205 = vmatprep.subr.bf16.mxu0 0
        %6206 = vmatpush1.bf16.msra.mxu0 %v5955
        %6207 = vmatprep.subr.bf16.mxu0 0
        %6208 = vmatpush1.bf16.msra.mxu0 %v5954
        %6209 = vmatprep.subr.bf16.mxu0 0
        %6210 = vmatpush1.bf16.msra.mxu0 %v5953
        %6211 = vmatprep.subr.bf16.mxu0 0
        %6212 = vmatpush2.bf16.msra.mxu0 %v5968
        %6213 = vmatprep.subr.bf16.mxu0 0
        %6214 = vmatpush2.bf16.msra.mxu0 %v5967
        %6215 = vmatprep.subr.bf16.mxu0 0
        %6216 = vmatpush2.bf16.msra.mxu0 %v5966
        %6217 = vmatprep.subr.bf16.mxu0 0
        %6218 = vmatpush2.bf16.msra.mxu0 %v5965
        %6219 = vmatprep.subr.bf16.mxu0 0
        %6220 = vmatpush2.bf16.msra.mxu0 %v5964
        %6221 = vmatprep.subr.bf16.mxu0 0
        %6222 = vmatpush2.bf16.msra.mxu0 %v5963
        %6223 = vmatprep.subr.bf16.mxu0 0
        %6224 = vmatpush2.bf16.msra.mxu0 %v5962
        %6225 = vmatprep.subr.bf16.mxu0 0
        %6226 = vmatpush2.bf16.msra.mxu0 %v5961
        %6227 = vmatprep.mubr.bf16.mxu0 %v4864
        %6228 = vmatmul.mubr.bf16.gmra.mxu0 %v4661
        %v6229 = vpop.f32.mrf.mxu0
        %v6230 = vadd.f32 %v6165, %v6229
        %v6231 = vpop.f32.mrf.mxu0
        %v6232 = vpop.f32.mrf.mxu0
        %v6233 = vadd.f32 %v6168, %v6232
        %v6234 = vpop.f32.mrf.mxu0
        %6235 = vmatprep.mubr.bf16.mxu0 %v4868
        %6236 = vmatmul.mubr.bf16.gmra.mxu0 %v4665
        %v6237 = vpop.f32.mrf.mxu0
        %v6238 = vadd.f32 %v6173, %v6237
        %v6239 = vpop.f32.mrf.mxu0
        %v6240 = vpop.f32.mrf.mxu0
        %v6241 = vadd.f32 %v6176, %v6240
        %v6242 = vpop.f32.mrf.mxu0
        %6243 = vmatprep.mubr.bf16.mxu0 %v4872
        %6244 = vmatmul.mubr.bf16.gmra.mxu0 %v4669
        %v6245 = vpop.f32.mrf.mxu0
        %v6246 = vadd.f32 %v6181, %v6245
        %v6247 = vpop.f32.mrf.mxu0
        %v6248 = vpop.f32.mrf.mxu0
        %v6249 = vadd.f32 %v6184, %v6248
        %v6250 = vpop.f32.mrf.mxu0
        %6251 = vmatprep.mubr.bf16.mxu0 %v4876
        %6252 = vmatmul.mubr.bf16.gmra.mxu0 %v4673
        %v6253 = vpop.f32.mrf.mxu0
        %v6254 = vadd.f32 %v6189, %v6253
        %v6255 = vpop.f32.mrf.mxu0
        %v6256 = vpop.f32.mrf.mxu0
        %v6257 = vadd.f32 %v6192, %v6256
        %v6258 = vpop.f32.mrf.mxu0
        %6259 = vdwg.mxu0
        %6260 = vmatprep.subr.bf16.mxu0 0
        %6261 = vmatpush1.bf16.msra.mxu0 %v5976
        %6262 = vmatprep.subr.bf16.mxu0 0
        %6263 = vmatpush1.bf16.msra.mxu0 %v5975
        %6264 = vmatprep.subr.bf16.mxu0 0
        %6265 = vmatpush1.bf16.msra.mxu0 %v5974
        %6266 = vmatprep.subr.bf16.mxu0 0
        %6267 = vmatpush1.bf16.msra.mxu0 %v5973
        %6268 = vmatprep.subr.bf16.mxu0 0
        %6269 = vmatpush1.bf16.msra.mxu0 %v5972
        %6270 = vmatprep.subr.bf16.mxu0 0
        %6271 = vmatpush1.bf16.msra.mxu0 %v5971
        %6272 = vmatprep.subr.bf16.mxu0 0
        %6273 = vmatpush1.bf16.msra.mxu0 %v5970
        %6274 = vmatprep.subr.bf16.mxu0 0
        %6275 = vmatpush1.bf16.msra.mxu0 %v5969
        %6276 = vmatprep.subr.bf16.mxu0 0
        %6277 = vmatpush2.bf16.msra.mxu0 %v5984
        %6278 = vmatprep.subr.bf16.mxu0 0
        %6279 = vmatpush2.bf16.msra.mxu0 %v5983
        %6280 = vmatprep.subr.bf16.mxu0 0
        %6281 = vmatpush2.bf16.msra.mxu0 %v5982
        %6282 = vmatprep.subr.bf16.mxu0 0
        %6283 = vmatpush2.bf16.msra.mxu0 %v5981
        %6284 = vmatprep.subr.bf16.mxu0 0
        %6285 = vmatpush2.bf16.msra.mxu0 %v5980
        %6286 = vmatprep.subr.bf16.mxu0 0
        %6287 = vmatpush2.bf16.msra.mxu0 %v5979
        %6288 = vmatprep.subr.bf16.mxu0 0
        %6289 = vmatpush2.bf16.msra.mxu0 %v5978
        %6290 = vmatprep.subr.bf16.mxu0 0
        %6291 = vmatpush2.bf16.msra.mxu0 %v5977
        %6292 = vmatprep.mubr.bf16.mxu0 %v5270
        %6293 = vmatmul.mubr.bf16.gmra.mxu0 %v5067
        %v6294 = vpop.f32.mrf.mxu0
        %v6295 = vadd.f32 %v6230, %v6294
        %v6296 = vpop.f32.mrf.mxu0
        %v6297 = vpop.f32.mrf.mxu0
        %v6298 = vadd.f32 %v6233, %v6297
        %v6299 = vpop.f32.mrf.mxu0
        %6300 = vmatprep.mubr.bf16.mxu0 %v5274
        %6301 = vmatmul.mubr.bf16.gmra.mxu0 %v5071
        %v6302 = vpop.f32.mrf.mxu0
        %v6303 = vadd.f32 %v6238, %v6302
        %v6304 = vpop.f32.mrf.mxu0
        %v6305 = vpop.f32.mrf.mxu0
        %v6306 = vadd.f32 %v6241, %v6305
        %v6307 = vpop.f32.mrf.mxu0
        %6308 = vmatprep.mubr.bf16.mxu0 %v5278
        %6309 = vmatmul.mubr.bf16.gmra.mxu0 %v5075
        %v6310 = vpop.f32.mrf.mxu0
        %v6311 = vadd.f32 %v6246, %v6310
        %v6312 = vpop.f32.mrf.mxu0
        %v6313 = vpop.f32.mrf.mxu0
        %v6314 = vadd.f32 %v6249, %v6313
        %v6315 = vpop.f32.mrf.mxu0
        %6316 = vmatprep.mubr.bf16.mxu0 %v5282
        %6317 = vmatmul.mubr.bf16.gmra.mxu0 %v5079
        %v6318 = vpop.f32.mrf.mxu0
        %v6319 = vadd.f32 %v6254, %v6318
        %v6320 = vpop.f32.mrf.mxu0
        %v6321 = vpop.f32.mrf.mxu0
        %v6322 = vadd.f32 %v6257, %v6321
        %v6323 = vpop.f32.mrf.mxu0
        %6324 = vdwg.mxu0
        %6325 = vmatprep.subr.bf16.mxu0 0
        %6326 = vmatpush1.bf16.msra.mxu0 %v5992
        %6327 = vmatprep.subr.bf16.mxu0 0
        %6328 = vmatpush1.bf16.msra.mxu0 %v5991
        %6329 = vmatprep.subr.bf16.mxu0 0
        %6330 = vmatpush1.bf16.msra.mxu0 %v5990
        %6331 = vmatprep.subr.bf16.mxu0 0
        %6332 = vmatpush1.bf16.msra.mxu0 %v5989
        %6333 = vmatprep.subr.bf16.mxu0 0
        %6334 = vmatpush1.bf16.msra.mxu0 %v5988
        %6335 = vmatprep.subr.bf16.mxu0 0
        %6336 = vmatpush1.bf16.msra.mxu0 %v5987
        %6337 = vmatprep.subr.bf16.mxu0 0
        %6338 = vmatpush1.bf16.msra.mxu0 %v5986
        %6339 = vmatprep.subr.bf16.mxu0 0
        %6340 = vmatpush1.bf16.msra.mxu0 %v5985
        %6341 = vmatprep.subr.bf16.mxu0 0
        %6342 = vmatpush2.bf16.msra.mxu0 0
        %6343 = vmatprep.subr.bf16.mxu0 0
        %6344 = vmatpush2.bf16.msra.mxu0 0
        %6345 = vmatprep.subr.bf16.mxu0 0
        %6346 = vmatpush2.bf16.msra.mxu0 0
        %6347 = vmatprep.subr.bf16.mxu0 0
        %6348 = vmatpush2.bf16.msra.mxu0 0
        %6349 = vmatprep.subr.bf16.mxu0 0
        %6350 = vmatpush2.bf16.msra.mxu0 0
        %6351 = vmatprep.subr.bf16.mxu0 0
        %6352 = vmatpush2.bf16.msra.mxu0 0
        %6353 = vmatprep.subr.bf16.mxu0 0
        %6354 = vmatpush2.bf16.msra.mxu0 0
        %6355 = vmatprep.subr.bf16.mxu0 0
        %6356 = vmatpush2.bf16.msra.mxu0 0
        %6357 = vmatprep.mubr.bf16.mxu0 0
        %6358 = vmatmul.mubr.bf16.gmra.mxu0 %v5473
        %v6359 = vpop.f32.mrf.mxu0
        %v6360 = vadd.f32 %v6295, %v6359
        %v6361 = vpop.f32.mrf.mxu0
        %v6362 = vpop.f32.mrf.mxu0
        %v6363 = vadd.f32 %v6298, %v6362
        %v6364 = vpop.f32.mrf.mxu0
        %6365 = vmatprep.mubr.bf16.mxu0 0
        %6366 = vmatmul.mubr.bf16.gmra.mxu0 %v5477
        %v6367 = vpop.f32.mrf.mxu0
        %v6368 = vadd.f32 %v6303, %v6367
        %v6369 = vpop.f32.mrf.mxu0
        %v6370 = vpop.f32.mrf.mxu0
        %v6371 = vadd.f32 %v6306, %v6370
        %v6372 = vpop.f32.mrf.mxu0
        %6373 = vmatprep.mubr.bf16.mxu0 0
        %6374 = vmatmul.mubr.bf16.gmra.mxu0 %v5481
        %v6375 = vpop.f32.mrf.mxu0
        %v6376 = vadd.f32 %v6311, %v6375
        %v6377 = vpop.f32.mrf.mxu0
        %v6378 = vpop.f32.mrf.mxu0
        %v6379 = vadd.f32 %v6314, %v6378
        %v6380 = vpop.f32.mrf.mxu0
        %6381 = vmatprep.mubr.bf16.mxu0 0
        %6382 = vmatmul.mubr.bf16.gmra.mxu0 %v5485
        %v6383 = vpop.f32.mrf.mxu0
        %v6384 = vadd.f32 %v6319, %v6383
        %v6385 = vpop.f32.mrf.mxu0
        %v6386 = vpop.f32.mrf.mxu0
        %v6387 = vadd.f32 %v6322, %v6386
        %v6388 = vpop.f32.mrf.mxu0
        %6389 = vdwg.mxu0
        %v6390 = vadd.f32 %v6360, %v6363
        %v6391 = vadd.f32 %v6390, %v6368
        %v6392 = vadd.f32 %v6391, %v6371
        %v6393 = vadd.f32 %v6392, %v6376
        %v6394 = vadd.f32 %v6393, %v6379
        %v6395 = vadd.f32 %v6394, %v6384
        %v6396 = vadd.f32 %v6395, %v6387
        %v6397 = vrot.slane %v6396, 4
        %v6398 = vadd.f32 %v6396, %v6397
        %v6399 = vrot.slane %v6398, 2
        %v6400 = vadd.f32 %v6398, %v6399
        %v6401 = vrot.slane %v6400, 1
        %v6402 = vadd.f32 %v6400, %v6401
        %v6403 = vmul.f32 %v6402, 0.015625
        %v6404 = vmul.f32 %v6360, %v6360
        %v6405 = vmul.f32 %v6363, %v6363
        %v6406 = vmul.f32 %v6368, %v6368
        %v6407 = vmul.f32 %v6371, %v6371
        %v6408 = vmul.f32 %v6376, %v6376
        %v6409 = vmul.f32 %v6379, %v6379
        %v6410 = vmul.f32 %v6384, %v6384
        %v6411 = vmul.f32 %v6387, %v6387
        %v6412 = vadd.f32 %v6404, %v6405
        %v6413 = vadd.f32 %v6412, %v6406
        %v6414 = vadd.f32 %v6413, %v6407
        %v6415 = vadd.f32 %v6414, %v6408
        %v6416 = vadd.f32 %v6415, %v6409
        %v6417 = vadd.f32 %v6416, %v6410
        %v6418 = vadd.f32 %v6417, %v6411
        %v6419 = vrot.slane %v6418, 4
        %v6420 = vadd.f32 %v6418, %v6419
        %v6421 = vrot.slane %v6420, 2
        %v6422 = vadd.f32 %v6420, %v6421
        %v6423 = vrot.slane %v6422, 1
        %v6424 = vadd.f32 %v6422, %v6423
        %v6425 = vmul.f32 %v6424, 0.015625
        %v6426 = vmul.f32 %v6403, %v6403
        %v6427 = vsub.f32 %v6425, %v6426
        %v6428 = vsub.f32 %v6360, %v6403
        %v6429 = vsub.f32 %v6363, %v6403
        %v6430 = vsub.f32 %v6368, %v6403
        %v6431 = vsub.f32 %v6371, %v6403
        %v6432 = vsub.f32 %v6376, %v6403
        %v6433 = vsub.f32 %v6379, %v6403
        %v6434 = vsub.f32 %v6384, %v6403
        %v6435 = vsub.f32 %v6387, %v6403
        %v6436 = vadd.f32 %v6427, 1e-05
        %v6437 = vrsqrt.pop %v6436
        %v6438 = vmul.f32 %v6428, %v6437
        %v6439 = vmul.f32 %v6429, %v6437
        %v6440 = vmul.f32 %v6430, %v6437
        %v6441 = vmul.f32 %v6431, %v6437
        %v6442 = vmul.f32 %v6432, %v6437
        %v6443 = vmul.f32 %v6433, %v6437
        %v6444 = vmul.f32 %v6434, %v6437
        %v6445 = vmul.f32 %v6435, %v6437
        %v6446 = vld [vmem:[%s929] sm:$0x1]
        %v6448 = vlaneseq
        %v6449 = vshrl.u32 %v6448, 7
        %v6450 = vsub.s32 0, %v6449
        %v6451 = vrot.slane %v6446, %v6450
        %v6453 = vmul.f32 %v6438, %v6451
        %v6454 = vmul.f32 %v6439, %v6451
        %v6455 = vmul.f32 %v6440, %v6451
        %v6456 = vmul.f32 %v6441, %v6451
        %v6457 = vmul.f32 %v6442, %v6451
        %v6458 = vmul.f32 %v6443, %v6451
        %v6459 = vmul.f32 %v6444, %v6451
        %v6460 = vmul.f32 %v6445, %v6451
        %v6461 = vld [vmem:[%s934] sm:$0x1]
        %v6463 = vlaneseq
        %v6464 = vshrl.u32 %v6463, 7
        %v6465 = vsub.s32 0, %v6464
        %v6466 = vrot.slane %v6461, %v6465
        %v6468 = vadd.f32 %v6453, %v6466
        %v6469 = vadd.f32 %v6454, %v6466
        %v6470 = vadd.f32 %v6455, %v6466
        %v6471 = vadd.f32 %v6456, %v6466
        %v6472 = vadd.f32 %v6457, %v6466
        %v6473 = vadd.f32 %v6458, %v6466
        %v6474 = vadd.f32 %v6459, %v6466
        %v6475 = vadd.f32 %v6460, %v6466
        %6476 = vst [vmem:[%s907] sm:$0xff] %v6468
        %6477 = vst [vmem:[%s907 + $0x20] sm:$0xff] %v6469
        %6478 = vst [vmem:[%s907 + $0x40] sm:$0xff] %v6470
        %6479 = vst [vmem:[%s907 + $0x60] sm:$0xff] %v6471
        %6480 = vst [vmem:[%s907 + $0x80] sm:$0xff] %v6472
        %6481 = vst [vmem:[%s907 + $0xa0] sm:$0xff] %v6473
        %6482 = vst [vmem:[%s907 + $0xc0] sm:$0xff] %v6474
        %6483 = vst [vmem:[%s907 + $0xe0] sm:$0xff] %v6475
        %s6484 = scalar_lea.vmem %s924, 576
        %v6485 = vld [vmem:[%s6484] sm:$0xf]
        %v6486 = vld [vmem:[%s6484 + $0x4] sm:$0xf]
        %v6487 = vld [vmem:[%s6484 + $0x8] sm:$0xf]
        %v6488 = vld [vmem:[%s6484 + $0xc] sm:$0xf]
        %v6489 = vld [vmem:[%s6484 + $0x10] sm:$0xf]
        %v6490 = vld [vmem:[%s6484 + $0x14] sm:$0xf]
        %v6491 = vld [vmem:[%s6484 + $0x18] sm:$0xf]
        %v6492 = vld [vmem:[%s6484 + $0x1c] sm:$0xf]
        %v6493 = vld [vmem:[%s6484 + $0x20] sm:$0xf]
        %v6494 = vld [vmem:[%s6484 + $0x24] sm:$0xf]
        %v6495 = vld [vmem:[%s6484 + $0x28] sm:$0xf]
        %v6496 = vld [vmem:[%s6484 + $0x2c] sm:$0xf]
        %v6497 = vld [vmem:[%s6484 + $0x30] sm:$0xf]
        %v6498 = vld [vmem:[%s6484 + $0x34] sm:$0xf]
        %v6499 = vld [vmem:[%s6484 + $0x38] sm:$0xf]
        %v6500 = vld [vmem:[%s6484 + $0x3c] sm:$0xf]
        %v6501 = vld [vmem:[%s6484 + $0x40] sm:$0xf]
        %v6502 = vld [vmem:[%s6484 + $0x44] sm:$0xf]
        %v6503 = vld [vmem:[%s6484 + $0x48] sm:$0xf]
        %v6504 = vld [vmem:[%s6484 + $0x4c] sm:$0xf]
        %v6505 = vld [vmem:[%s6484 + $0x50] sm:$0xf]
        %v6506 = vld [vmem:[%s6484 + $0x54] sm:$0xf]
        %v6507 = vld [vmem:[%s6484 + $0x58] sm:$0xf]
        %v6508 = vld [vmem:[%s6484 + $0x5c] sm:$0xf]
        %v6509 = vld [vmem:[%s6484 + $0x60] sm:$0xf]
        %v6510 = vld [vmem:[%s6484 + $0x64] sm:$0xf]
        %v6511 = vld [vmem:[%s6484 + $0x68] sm:$0xf]
        %v6512 = vld [vmem:[%s6484 + $0x6c] sm:$0xf]
        %v6513 = vld [vmem:[%s6484 + $0x70] sm:$0xf]
        %v6514 = vld [vmem:[%s6484 + $0x74] sm:$0xf]
        %v6515 = vld [vmem:[%s6484 + $0x78] sm:$0xf]
        %v6516 = vld [vmem:[%s6484 + $0x7c] sm:$0xf]
        %v6517 = vld [vmem:[%s6484 + $0x80] sm:$0xf]
        %v6518 = vld [vmem:[%s6484 + $0x84] sm:$0xf]
        %v6519 = vld [vmem:[%s6484 + $0x88] sm:$0xf]
        %v6520 = vld [vmem:[%s6484 + $0x8c] sm:$0xf]
        %v6521 = vld [vmem:[%s6484 + $0x90] sm:$0xf]
        %v6522 = vld [vmem:[%s6484 + $0x94] sm:$0xf]
        %v6523 = vld [vmem:[%s6484 + $0x98] sm:$0xf]
        %v6524 = vld [vmem:[%s6484 + $0x9c] sm:$0xf]
        %v6525 = vld [vmem:[%s6484 + $0xa0] sm:$0xf]
        %v6526 = vld [vmem:[%s6484 + $0xa4] sm:$0xf]
        %v6527 = vld [vmem:[%s6484 + $0xa8] sm:$0xf]
        %v6528 = vld [vmem:[%s6484 + $0xac] sm:$0xf]
        %v6529 = vld [vmem:[%s6484 + $0xb0] sm:$0xf]
        %v6530 = vld [vmem:[%s6484 + $0xb4] sm:$0xf]
        %v6531 = vld [vmem:[%s6484 + $0xb8] sm:$0xf]
        %v6532 = vld [vmem:[%s6484 + $0xbc] sm:$0xf]
        %v6533 = vld [vmem:[%s6484 + $0xc0] sm:$0xf]
        %v6534 = vld [vmem:[%s6484 + $0xc4] sm:$0xf]
        %v6535 = vld [vmem:[%s6484 + $0xc8] sm:$0xf]
        %v6536 = vld [vmem:[%s6484 + $0xcc] sm:$0xf]
        %v6537 = vld [vmem:[%s6484 + $0xd0] sm:$0xf]
        %v6538 = vld [vmem:[%s6484 + $0xd4] sm:$0xf]
        %v6539 = vld [vmem:[%s6484 + $0xd8] sm:$0xf]
        %v6540 = vld [vmem:[%s6484 + $0xdc] sm:$0xf]
        %v6541 = vld [vmem:[%s6484 + $0xe0] sm:$0xf]
        %v6542 = vld [vmem:[%s6484 + $0xe4] sm:$0xf]
        %v6543 = vld [vmem:[%s6484 + $0xe8] sm:$0xf]
        %v6544 = vld [vmem:[%s6484 + $0xec] sm:$0xf]
        %v6545 = vld [vmem:[%s6484 + $0xf0] sm:$0xf]
        %v6546 = vld [vmem:[%s6484 + $0xf4] sm:$0xf]
        %v6547 = vld [vmem:[%s6484 + $0xf8] sm:$0xf]
        %v6548 = vld [vmem:[%s6484 + $0xfc] sm:$0xf]
        %v6549 = vld [vmem:[%s6484 + $0x100] sm:$0xf]
        %v6550 = vld [vmem:[%s6484 + $0x104] sm:$0xf]
        %v6551 = vld [vmem:[%s6484 + $0x108] sm:$0xf]
        %v6552 = vld [vmem:[%s6484 + $0x10c] sm:$0xf]
        %v6553 = vld [vmem:[%s6484 + $0x110] sm:$0xf]
        %v6554 = vld [vmem:[%s6484 + $0x114] sm:$0xf]
        %v6555 = vld [vmem:[%s6484 + $0x118] sm:$0xf]
        %v6556 = vld [vmem:[%s6484 + $0x11c] sm:$0xf]
        %v6557 = vld [vmem:[%s6484 + $0x120] sm:$0xf]
        %v6558 = vld [vmem:[%s6484 + $0x124] sm:$0xf]
        %v6559 = vld [vmem:[%s6484 + $0x128] sm:$0xf]
        %v6560 = vld [vmem:[%s6484 + $0x12c] sm:$0xf]
        %v6561 = vld [vmem:[%s6484 + $0x130] sm:$0xf]
        %v6562 = vld [vmem:[%s6484 + $0x134] sm:$0xf]
        %v6563 = vld [vmem:[%s6484 + $0x138] sm:$0xf]
        %v6564 = vld [vmem:[%s6484 + $0x13c] sm:$0xf]
        %v6565 = vld [vmem:[%s6484 + $0x140] sm:$0xf]
        %v6566 = vld [vmem:[%s6484 + $0x144] sm:$0xf]
        %v6567 = vld [vmem:[%s6484 + $0x148] sm:$0xf]
        %v6568 = vld [vmem:[%s6484 + $0x14c] sm:$0xf]
        %v6569 = vld [vmem:[%s6484 + $0x150] sm:$0xf]
        %v6570 = vld [vmem:[%s6484 + $0x154] sm:$0xf]
        %v6571 = vld [vmem:[%s6484 + $0x158] sm:$0xf]
        %v6572 = vld [vmem:[%s6484 + $0x15c] sm:$0xf]
        %v6573 = vld [vmem:[%s6484 + $0x160] sm:$0xf]
        %v6574 = vld [vmem:[%s6484 + $0x164] sm:$0xf]
        %v6575 = vld [vmem:[%s6484 + $0x168] sm:$0xf]
        %v6576 = vld [vmem:[%s6484 + $0x16c] sm:$0xf]
        %v6577 = vld [vmem:[%s6484 + $0x170] sm:$0xf]
        %v6578 = vld [vmem:[%s6484 + $0x174] sm:$0xf]
        %v6579 = vld [vmem:[%s6484 + $0x178] sm:$0xf]
        %v6580 = vld [vmem:[%s6484 + $0x17c] sm:$0xf]
        %v6581 = vld [vmem:[%s6484 + $0x180] sm:$0xf]
        %v6582 = vld [vmem:[%s6484 + $0x184] sm:$0xf]
        %v6583 = vld [vmem:[%s6484 + $0x188] sm:$0xf]
        %v6584 = vld [vmem:[%s6484 + $0x18c] sm:$0xf]
        %v6585 = vld [vmem:[%s6484 + $0x190] sm:$0xf]
        %v6586 = vld [vmem:[%s6484 + $0x194] sm:$0xf]
        %v6587 = vld [vmem:[%s6484 + $0x198] sm:$0xf]
        %v6588 = vld [vmem:[%s6484 + $0x19c] sm:$0xf]
        %v6589 = vld [vmem:[%s6484 + $0x1a0] sm:$0xf]
        %v6590 = vld [vmem:[%s6484 + $0x1a4] sm:$0xf]
        %v6591 = vld [vmem:[%s6484 + $0x1a8] sm:$0xf]
        %v6592 = vld [vmem:[%s6484 + $0x1ac] sm:$0xf]
        %v6593 = vld [vmem:[%s6484 + $0x1b0] sm:$0xf]
        %v6594 = vld [vmem:[%s6484 + $0x1b4] sm:$0xf]
        %v6595 = vld [vmem:[%s6484 + $0x1b8] sm:$0xf]
        %v6596 = vld [vmem:[%s6484 + $0x1bc] sm:$0xf]
        %v6597 = vld [vmem:[%s6484 + $0x1c0] sm:$0xf]
        %v6598 = vld [vmem:[%s6484 + $0x1c4] sm:$0xf]
        %v6599 = vld [vmem:[%s6484 + $0x1c8] sm:$0xf]
        %v6600 = vld [vmem:[%s6484 + $0x1cc] sm:$0xf]
        %v6601 = vld [vmem:[%s6484 + $0x1d0] sm:$0xf]
        %v6602 = vld [vmem:[%s6484 + $0x1d4] sm:$0xf]
        %v6603 = vld [vmem:[%s6484 + $0x1d8] sm:$0xf]
        %v6604 = vld [vmem:[%s6484 + $0x1dc] sm:$0xf]
        %v6605 = vld [vmem:[%s6484 + $0x1e0] sm:$0xf]
        %v6606 = vld [vmem:[%s6484 + $0x1e4] sm:$0xf]
        %v6607 = vld [vmem:[%s6484 + $0x1e8] sm:$0xf]
        %v6608 = vld [vmem:[%s6484 + $0x1ec] sm:$0xf]
        %v6609 = vld [vmem:[%s6484 + $0x1f0] sm:$0xf]
        %v6610 = vld [vmem:[%s6484 + $0x1f4] sm:$0xf]
        %v6611 = vld [vmem:[%s6484 + $0x1f8] sm:$0xf]
        %v6612 = vld [vmem:[%s6484 + $0x1fc] sm:$0xf]
        %v6613 = vld [vmem:[%s6484 + $0x200] sm:$0xf]
        %v6614 = vld [vmem:[%s6484 + $0x204] sm:$0xf]
        %v6615 = vld [vmem:[%s6484 + $0x208] sm:$0xf]
        %v6616 = vld [vmem:[%s6484 + $0x20c] sm:$0xf]
        %v6617 = vld [vmem:[%s6484 + $0x210] sm:$0xf]
        %v6618 = vld [vmem:[%s6484 + $0x214] sm:$0xf]
        %v6619 = vld [vmem:[%s6484 + $0x218] sm:$0xf]
        %v6620 = vld [vmem:[%s6484 + $0x21c] sm:$0xf]
        %v6621 = vld [vmem:[%s6484 + $0x220] sm:$0xf]
        %v6622 = vld [vmem:[%s6484 + $0x224] sm:$0xf]
        %v6623 = vld [vmem:[%s6484 + $0x228] sm:$0xf]
        %v6624 = vld [vmem:[%s6484 + $0x22c] sm:$0xf]
        %v6625 = vld [vmem:[%s6484 + $0x230] sm:$0xf]
        %v6626 = vld [vmem:[%s6484 + $0x234] sm:$0xf]
        %v6627 = vld [vmem:[%s6484 + $0x238] sm:$0xf]
        %v6628 = vld [vmem:[%s6484 + $0x23c] sm:$0xf]
        %v6773 = vunpack.c.l.b16 %v6485
        %v6774 = vunpack.c.l.b16 %v6486
        %v6775 = vunpack.c.l.b16 %v6487
        %v6776 = vunpack.c.l.b16 %v6488
        %v6777 = vunpack.c.l.b16 %v6489
        %v6778 = vunpack.c.l.b16 %v6490
        %v6779 = vunpack.c.l.b16 %v6491
        %v6780 = vunpack.c.l.b16 %v6492
        %v6781 = vunpack.c.l.b16 %v6493
        %v6782 = vunpack.c.l.b16 %v6494
        %v6783 = vunpack.c.l.b16 %v6495
        %v6784 = vunpack.c.l.b16 %v6496
        %v6785 = vunpack.c.l.b16 %v6497
        %v6786 = vunpack.c.l.b16 %v6498
        %v6787 = vunpack.c.l.b16 %v6499
        %v6788 = vunpack.c.l.b16 %v6500
        %v6789 = vunpack.c.l.b16 %v6501
        %v6790 = vunpack.c.l.b16 %v6502
        %v6791 = vunpack.c.l.b16 %v6503
        %v6792 = vunpack.c.l.b16 %v6504
        %v6793 = vunpack.c.l.b16 %v6505
        %v6794 = vunpack.c.l.b16 %v6506
        %v6795 = vunpack.c.l.b16 %v6507
        %v6796 = vunpack.c.l.b16 %v6508
        %v6797 = vunpack.c.l.b16 %v6509
        %v6798 = vunpack.c.l.b16 %v6510
        %v6799 = vunpack.c.l.b16 %v6511
        %v6800 = vunpack.c.l.b16 %v6512
        %v6801 = vunpack.c.l.b16 %v6513
        %v6802 = vunpack.c.l.b16 %v6514
        %v6803 = vunpack.c.l.b16 %v6515
        %v6804 = vunpack.c.l.b16 %v6516
        %v6805 = vunpack.c.l.b16 %v6517
        %v6806 = vunpack.c.l.b16 %v6518
        %v6807 = vunpack.c.l.b16 %v6519
        %v6808 = vunpack.c.l.b16 %v6520
        %v6809 = vunpack.c.l.b16 %v6521
        %v6810 = vunpack.c.l.b16 %v6522
        %v6811 = vunpack.c.l.b16 %v6523
        %v6812 = vunpack.c.l.b16 %v6524
        %v6813 = vunpack.c.l.b16 %v6525
        %v6814 = vunpack.c.l.b16 %v6526
        %v6815 = vunpack.c.l.b16 %v6527
        %v6816 = vunpack.c.l.b16 %v6528
        %v6817 = vunpack.c.l.b16 %v6529
        %v6818 = vunpack.c.l.b16 %v6530
        %v6819 = vunpack.c.l.b16 %v6531
        %v6820 = vunpack.c.l.b16 %v6532
        %v6821 = vunpack.c.l.b16 %v6533
        %v6822 = vunpack.c.l.b16 %v6534
        %v6823 = vunpack.c.l.b16 %v6535
        %v6824 = vunpack.c.l.b16 %v6536
        %v6825 = vunpack.c.l.b16 %v6537
        %v6826 = vunpack.c.l.b16 %v6538
        %v6827 = vunpack.c.l.b16 %v6539
        %v6828 = vunpack.c.l.b16 %v6540
        %v6829 = vunpack.c.l.b16 %v6541
        %v6830 = vunpack.c.l.b16 %v6542
        %v6831 = vunpack.c.l.b16 %v6543
        %v6832 = vunpack.c.l.b16 %v6544
        %v6833 = vunpack.c.l.b16 %v6545
        %v6834 = vunpack.c.l.b16 %v6546
        %v6835 = vunpack.c.l.b16 %v6547
        %v6836 = vunpack.c.l.b16 %v6548
        %v6837 = vunpack.c.l.b16 %v6549
        %v6838 = vunpack.c.l.b16 %v6550
        %v6839 = vunpack.c.l.b16 %v6551
        %v6840 = vunpack.c.l.b16 %v6552
        %v6841 = vunpack.c.l.b16 %v6553
        %v6842 = vunpack.c.l.b16 %v6554
        %v6843 = vunpack.c.l.b16 %v6555
        %v6844 = vunpack.c.l.b16 %v6556
        %v6845 = vunpack.c.l.b16 %v6557
        %v6846 = vunpack.c.l.b16 %v6558
        %v6847 = vunpack.c.l.b16 %v6559
        %v6848 = vunpack.c.l.b16 %v6560
        %v6849 = vunpack.c.l.b16 %v6561
        %v6850 = vunpack.c.l.b16 %v6562
        %v6851 = vunpack.c.l.b16 %v6563
        %v6852 = vunpack.c.l.b16 %v6564
        %v6853 = vunpack.c.l.b16 %v6565
        %v6854 = vunpack.c.l.b16 %v6566
        %v6855 = vunpack.c.l.b16 %v6567
        %v6856 = vunpack.c.l.b16 %v6568
        %v6857 = vunpack.c.l.b16 %v6569
        %v6858 = vunpack.c.l.b16 %v6570
        %v6859 = vunpack.c.l.b16 %v6571
        %v6860 = vunpack.c.l.b16 %v6572
        %v6861 = vunpack.c.l.b16 %v6573
        %v6862 = vunpack.c.l.b16 %v6574
        %v6863 = vunpack.c.l.b16 %v6575
        %v6864 = vunpack.c.l.b16 %v6576
        %v6865 = vunpack.c.l.b16 %v6577
        %v6866 = vunpack.c.l.b16 %v6578
        %v6867 = vunpack.c.l.b16 %v6579
        %v6868 = vunpack.c.l.b16 %v6580
        %v6869 = vunpack.c.l.b16 %v6581
        %v6870 = vunpack.c.l.b16 %v6582
        %v6871 = vunpack.c.l.b16 %v6583
        %v6872 = vunpack.c.l.b16 %v6584
        %v6873 = vunpack.c.l.b16 %v6585
        %v6874 = vunpack.c.l.b16 %v6586
        %v6875 = vunpack.c.l.b16 %v6587
        %v6876 = vunpack.c.l.b16 %v6588
        %v6877 = vunpack.c.l.b16 %v6589
        %v6878 = vunpack.c.l.b16 %v6590
        %v6879 = vunpack.c.l.b16 %v6591
        %v6880 = vunpack.c.l.b16 %v6592
        %v6881 = vunpack.c.l.b16 %v6593
        %v6882 = vunpack.c.l.b16 %v6594
        %v6883 = vunpack.c.l.b16 %v6595
        %v6884 = vunpack.c.l.b16 %v6596
        %v6885 = vunpack.c.l.b16 %v6597
        %v6886 = vunpack.c.l.b16 %v6598
        %v6887 = vunpack.c.l.b16 %v6599
        %v6888 = vunpack.c.l.b16 %v6600
        %v6889 = vunpack.c.l.b16 %v6601
        %v6890 = vunpack.c.l.b16 %v6602
        %v6891 = vunpack.c.l.b16 %v6603
        %v6892 = vunpack.c.l.b16 %v6604
        %v6893 = vunpack.c.l.b16 %v6605
        %v6894 = vunpack.c.l.b16 %v6606
        %v6895 = vunpack.c.l.b16 %v6607
        %v6896 = vunpack.c.l.b16 %v6608
        %v6897 = vunpack.c.l.b16 %v6609
        %v6898 = vunpack.c.l.b16 %v6610
        %v6899 = vunpack.c.l.b16 %v6611
        %v6900 = vunpack.c.l.b16 %v6612
        %v6901 = vunpack.c.l.b16 %v6613
        %v6902 = vunpack.c.l.b16 %v6614
        %v6903 = vunpack.c.l.b16 %v6615
        %v6904 = vunpack.c.l.b16 %v6616
        %v6905 = vunpack.c.l.b16 %v6617
        %v6906 = vunpack.c.l.b16 %v6618
        %v6907 = vunpack.c.l.b16 %v6619
        %v6908 = vunpack.c.l.b16 %v6620
        %v6909 = vunpack.c.l.b16 %v6621
        %v6910 = vunpack.c.l.b16 %v6622
        %v6911 = vunpack.c.l.b16 %v6623
        %v6912 = vunpack.c.l.b16 %v6624
        %v6913 = vunpack.c.l.b16 %v6625
        %v6914 = vunpack.c.l.b16 %v6626
        %v6915 = vunpack.c.l.b16 %v6627
        %v6916 = vunpack.c.l.b16 %v6628
        %v6917 = vpack.c.b16 %v6774, %v6773
        %v6918 = vpack.c.b16 %v6776, %v6775
        %v6919 = vpack.c.b16 %v6778, %v6777
        %v6920 = vpack.c.b16 %v6780, %v6779
        %v6921 = vpack.c.b16 %v6782, %v6781
        %v6922 = vpack.c.b16 %v6784, %v6783
        %v6923 = vpack.c.b16 %v6786, %v6785
        %v6924 = vpack.c.b16 %v6788, %v6787
        %v6925 = vpack.c.b16 %v6790, %v6789
        %v6926 = vpack.c.b16 %v6792, %v6791
        %v6927 = vpack.c.b16 %v6794, %v6793
        %v6928 = vpack.c.b16 %v6796, %v6795
        %v6929 = vpack.c.b16 %v6798, %v6797
        %v6930 = vpack.c.b16 %v6800, %v6799
        %v6931 = vpack.c.b16 %v6802, %v6801
        %v6932 = vpack.c.b16 %v6804, %v6803
        %v6933 = vpack.c.b16 %v6806, %v6805
        %v6934 = vpack.c.b16 %v6808, %v6807
        %v6935 = vpack.c.b16 %v6810, %v6809
        %v6936 = vpack.c.b16 %v6812, %v6811
        %v6937 = vpack.c.b16 %v6814, %v6813
        %v6938 = vpack.c.b16 %v6816, %v6815
        %v6939 = vpack.c.b16 %v6818, %v6817
        %v6940 = vpack.c.b16 %v6820, %v6819
        %v6941 = vpack.c.b16 %v6822, %v6821
        %v6942 = vpack.c.b16 %v6824, %v6823
        %v6943 = vpack.c.b16 %v6826, %v6825
        %v6944 = vpack.c.b16 %v6828, %v6827
        %v6945 = vpack.c.b16 %v6830, %v6829
        %v6946 = vpack.c.b16 %v6832, %v6831
        %v6947 = vpack.c.b16 %v6834, %v6833
        %v6948 = vpack.c.b16 %v6836, %v6835
        %v6949 = vpack.c.b16 %v6838, %v6837
        %v6950 = vpack.c.b16 %v6840, %v6839
        %v6951 = vpack.c.b16 %v6842, %v6841
        %v6952 = vpack.c.b16 %v6844, %v6843
        %v6953 = vpack.c.b16 %v6846, %v6845
        %v6954 = vpack.c.b16 %v6848, %v6847
        %v6955 = vpack.c.b16 %v6850, %v6849
        %v6956 = vpack.c.b16 %v6852, %v6851
        %v6957 = vpack.c.b16 %v6854, %v6853
        %v6958 = vpack.c.b16 %v6856, %v6855
        %v6959 = vpack.c.b16 %v6858, %v6857
        %v6960 = vpack.c.b16 %v6860, %v6859
        %v6961 = vpack.c.b16 %v6862, %v6861
        %v6962 = vpack.c.b16 %v6864, %v6863
        %v6963 = vpack.c.b16 %v6866, %v6865
        %v6964 = vpack.c.b16 %v6868, %v6867
        %v6965 = vpack.c.b16 %v6870, %v6869
        %v6966 = vpack.c.b16 %v6872, %v6871
        %v6967 = vpack.c.b16 %v6874, %v6873
        %v6968 = vpack.c.b16 %v6876, %v6875
        %v6969 = vpack.c.b16 %v6878, %v6877
        %v6970 = vpack.c.b16 %v6880, %v6879
        %v6971 = vpack.c.b16 %v6882, %v6881
        %v6972 = vpack.c.b16 %v6884, %v6883
        %v6973 = vpack.c.b16 %v6886, %v6885
        %v6974 = vpack.c.b16 %v6888, %v6887
        %v6975 = vpack.c.b16 %v6890, %v6889
        %v6976 = vpack.c.b16 %v6892, %v6891
        %v6977 = vpack.c.b16 %v6894, %v6893
        %v6978 = vpack.c.b16 %v6896, %v6895
        %v6979 = vpack.c.b16 %v6898, %v6897
        %v6980 = vpack.c.b16 %v6900, %v6899
        %v6981 = vpack.c.b16 %v6902, %v6901
        %v6982 = vpack.c.b16 %v6904, %v6903
        %v6983 = vpack.c.b16 %v6906, %v6905
        %v6984 = vpack.c.b16 %v6908, %v6907
        %v6985 = vpack.c.b16 %v6910, %v6909
        %v6986 = vpack.c.b16 %v6912, %v6911
        %v6987 = vpack.c.b16 %v6914, %v6913
        %v6988 = vpack.c.b16 %v6916, %v6915
        %7061 = vmatprep.subr.bf16.mxu0 0
        %7062 = vmatpush1.bf16.msra.mxu0 %v6924
        %7063 = vmatprep.subr.bf16.mxu0 0
        %7064 = vmatpush1.bf16.msra.mxu0 %v6923
        %7065 = vmatprep.subr.bf16.mxu0 0
        %7066 = vmatpush1.bf16.msra.mxu0 %v6922
        %7067 = vmatprep.subr.bf16.mxu0 0
        %7068 = vmatpush1.bf16.msra.mxu0 %v6921
        %7069 = vmatprep.subr.bf16.mxu0 0
        %7070 = vmatpush1.bf16.msra.mxu0 %v6920
        %7071 = vmatprep.subr.bf16.mxu0 0
        %7072 = vmatpush1.bf16.msra.mxu0 %v6919
        %7073 = vmatprep.subr.bf16.mxu0 0
        %7074 = vmatpush1.bf16.msra.mxu0 %v6918
        %7075 = vmatprep.subr.bf16.mxu0 0
        %7076 = vmatpush1.bf16.msra.mxu0 %v6917
        %7077 = vmatprep.subr.bf16.mxu0 0
        %7078 = vmatpush2.bf16.msra.mxu0 %v6932
        %7079 = vmatprep.subr.bf16.mxu0 0
        %7080 = vmatpush2.bf16.msra.mxu0 %v6931
        %7081 = vmatprep.subr.bf16.mxu0 0
        %7082 = vmatpush2.bf16.msra.mxu0 %v6930
        %7083 = vmatprep.subr.bf16.mxu0 0
        %7084 = vmatpush2.bf16.msra.mxu0 %v6929
        %7085 = vmatprep.subr.bf16.mxu0 0
        %7086 = vmatpush2.bf16.msra.mxu0 %v6928
        %7087 = vmatprep.subr.bf16.mxu0 0
        %7088 = vmatpush2.bf16.msra.mxu0 %v6927
        %7089 = vmatprep.subr.bf16.mxu0 0
        %7090 = vmatpush2.bf16.msra.mxu0 %v6926
        %7091 = vmatprep.subr.bf16.mxu0 0
        %7092 = vmatpush2.bf16.msra.mxu0 %v6925
        %7093 = vmatprep.mubr.bf16.mxu0 %v4053
        %7094 = vmatmul.mubr.bf16.gmra.mxu0 %v3850
        %v7095 = vpop.f32.mrf.mxu0
        %v7096 = vadd.f32 0.0, %v7095
        %v7097 = vpop.f32.mrf.mxu0
        %v7098 = vpop.f32.mrf.mxu0
        %v7099 = vadd.f32 0.0, %v7098
        %v7100 = vpop.f32.mrf.mxu0
        %7101 = vmatprep.mubr.bf16.mxu0 %v4057
        %7102 = vmatmul.mubr.bf16.gmra.mxu0 %v3854
        %v7103 = vpop.f32.mrf.mxu0
        %v7104 = vadd.f32 0.0, %v7103
        %v7105 = vpop.f32.mrf.mxu0
        %v7106 = vpop.f32.mrf.mxu0
        %v7107 = vadd.f32 0.0, %v7106
        %v7108 = vpop.f32.mrf.mxu0
        %7109 = vmatprep.mubr.bf16.mxu0 %v4061
        %7110 = vmatmul.mubr.bf16.gmra.mxu0 %v3858
        %v7111 = vpop.f32.mrf.mxu0
        %v7112 = vadd.f32 0.0, %v7111
        %v7113 = vpop.f32.mrf.mxu0
        %v7114 = vpop.f32.mrf.mxu0
        %v7115 = vadd.f32 0.0, %v7114
        %v7116 = vpop.f32.mrf.mxu0
        %7117 = vmatprep.mubr.bf16.mxu0 %v4065
        %7118 = vmatmul.mubr.bf16.gmra.mxu0 %v3862
        %v7119 = vpop.f32.mrf.mxu0
        %v7120 = vadd.f32 0.0, %v7119
        %v7121 = vpop.f32.mrf.mxu0
        %v7122 = vpop.f32.mrf.mxu0
        %v7123 = vadd.f32 0.0, %v7122
        %v7124 = vpop.f32.mrf.mxu0
        %7125 = vdwg.mxu0
        %7126 = vmatprep.subr.bf16.mxu0 0
        %7127 = vmatpush1.bf16.msra.mxu0 %v6940
        %7128 = vmatprep.subr.bf16.mxu0 0
        %7129 = vmatpush1.bf16.msra.mxu0 %v6939
        %7130 = vmatprep.subr.bf16.mxu0 0
        %7131 = vmatpush1.bf16.msra.mxu0 %v6938
        %7132 = vmatprep.subr.bf16.mxu0 0
        %7133 = vmatpush1.bf16.msra.mxu0 %v6937
        %7134 = vmatprep.subr.bf16.mxu0 0
        %7135 = vmatpush1.bf16.msra.mxu0 %v6936
        %7136 = vmatprep.subr.bf16.mxu0 0
        %7137 = vmatpush1.bf16.msra.mxu0 %v6935
        %7138 = vmatprep.subr.bf16.mxu0 0
        %7139 = vmatpush1.bf16.msra.mxu0 %v6934
        %7140 = vmatprep.subr.bf16.mxu0 0
        %7141 = vmatpush1.bf16.msra.mxu0 %v6933
        %7142 = vmatprep.subr.bf16.mxu0 0
        %7143 = vmatpush2.bf16.msra.mxu0 %v6948
        %7144 = vmatprep.subr.bf16.mxu0 0
        %7145 = vmatpush2.bf16.msra.mxu0 %v6947
        %7146 = vmatprep.subr.bf16.mxu0 0
        %7147 = vmatpush2.bf16.msra.mxu0 %v6946
        %7148 = vmatprep.subr.bf16.mxu0 0
        %7149 = vmatpush2.bf16.msra.mxu0 %v6945
        %7150 = vmatprep.subr.bf16.mxu0 0
        %7151 = vmatpush2.bf16.msra.mxu0 %v6944
        %7152 = vmatprep.subr.bf16.mxu0 0
        %7153 = vmatpush2.bf16.msra.mxu0 %v6943
        %7154 = vmatprep.subr.bf16.mxu0 0
        %7155 = vmatpush2.bf16.msra.mxu0 %v6942
        %7156 = vmatprep.subr.bf16.mxu0 0
        %7157 = vmatpush2.bf16.msra.mxu0 %v6941
        %7158 = vmatprep.mubr.bf16.mxu0 %v4459
        %7159 = vmatmul.mubr.bf16.gmra.mxu0 %v4256
        %v7160 = vpop.f32.mrf.mxu0
        %v7161 = vadd.f32 %v7096, %v7160
        %v7162 = vpop.f32.mrf.mxu0
        %v7163 = vpop.f32.mrf.mxu0
        %v7164 = vadd.f32 %v7099, %v7163
        %v7165 = vpop.f32.mrf.mxu0
        %7166 = vmatprep.mubr.bf16.mxu0 %v4463
        %7167 = vmatmul.mubr.bf16.gmra.mxu0 %v4260
        %v7168 = vpop.f32.mrf.mxu0
        %v7169 = vadd.f32 %v7104, %v7168
        %v7170 = vpop.f32.mrf.mxu0
        %v7171 = vpop.f32.mrf.mxu0
        %v7172 = vadd.f32 %v7107, %v7171
        %v7173 = vpop.f32.mrf.mxu0
        %7174 = vmatprep.mubr.bf16.mxu0 %v4467
        %7175 = vmatmul.mubr.bf16.gmra.mxu0 %v4264
        %v7176 = vpop.f32.mrf.mxu0
        %v7177 = vadd.f32 %v7112, %v7176
        %v7178 = vpop.f32.mrf.mxu0
        %v7179 = vpop.f32.mrf.mxu0
        %v7180 = vadd.f32 %v7115, %v7179
        %v7181 = vpop.f32.mrf.mxu0
        %7182 = vmatprep.mubr.bf16.mxu0 %v4471
        %7183 = vmatmul.mubr.bf16.gmra.mxu0 %v4268
        %v7184 = vpop.f32.mrf.mxu0
        %v7185 = vadd.f32 %v7120, %v7184
        %v7186 = vpop.f32.mrf.mxu0
        %v7187 = vpop.f32.mrf.mxu0
        %v7188 = vadd.f32 %v7123, %v7187
        %v7189 = vpop.f32.mrf.mxu0
        %7190 = vdwg.mxu0
        %7191 = vmatprep.subr.bf16.mxu0 0
        %7192 = vmatpush1.bf16.msra.mxu0 %v6956
        %7193 = vmatprep.subr.bf16.mxu0 0
        %7194 = vmatpush1.bf16.msra.mxu0 %v6955
        %7195 = vmatprep.subr.bf16.mxu0 0
        %7196 = vmatpush1.bf16.msra.mxu0 %v6954
        %7197 = vmatprep.subr.bf16.mxu0 0
        %7198 = vmatpush1.bf16.msra.mxu0 %v6953
        %7199 = vmatprep.subr.bf16.mxu0 0
        %7200 = vmatpush1.bf16.msra.mxu0 %v6952
        %7201 = vmatprep.subr.bf16.mxu0 0
        %7202 = vmatpush1.bf16.msra.mxu0 %v6951
        %7203 = vmatprep.subr.bf16.mxu0 0
        %7204 = vmatpush1.bf16.msra.mxu0 %v6950
        %7205 = vmatprep.subr.bf16.mxu0 0
        %7206 = vmatpush1.bf16.msra.mxu0 %v6949
        %7207 = vmatprep.subr.bf16.mxu0 0
        %7208 = vmatpush2.bf16.msra.mxu0 %v6964
        %7209 = vmatprep.subr.bf16.mxu0 0
        %7210 = vmatpush2.bf16.msra.mxu0 %v6963
        %7211 = vmatprep.subr.bf16.mxu0 0
        %7212 = vmatpush2.bf16.msra.mxu0 %v6962
        %7213 = vmatprep.subr.bf16.mxu0 0
        %7214 = vmatpush2.bf16.msra.mxu0 %v6961
        %7215 = vmatprep.subr.bf16.mxu0 0
        %7216 = vmatpush2.bf16.msra.mxu0 %v6960
        %7217 = vmatprep.subr.bf16.mxu0 0
        %7218 = vmatpush2.bf16.msra.mxu0 %v6959
        %7219 = vmatprep.subr.bf16.mxu0 0
        %7220 = vmatpush2.bf16.msra.mxu0 %v6958
        %7221 = vmatprep.subr.bf16.mxu0 0
        %7222 = vmatpush2.bf16.msra.mxu0 %v6957
        %7223 = vmatprep.mubr.bf16.mxu0 %v4865
        %7224 = vmatmul.mubr.bf16.gmra.mxu0 %v4662
        %v7225 = vpop.f32.mrf.mxu0
        %v7226 = vadd.f32 %v7161, %v7225
        %v7227 = vpop.f32.mrf.mxu0
        %v7228 = vpop.f32.mrf.mxu0
        %v7229 = vadd.f32 %v7164, %v7228
        %v7230 = vpop.f32.mrf.mxu0
        %7231 = vmatprep.mubr.bf16.mxu0 %v4869
        %7232 = vmatmul.mubr.bf16.gmra.mxu0 %v4666
        %v7233 = vpop.f32.mrf.mxu0
        %v7234 = vadd.f32 %v7169, %v7233
        %v7235 = vpop.f32.mrf.mxu0
        %v7236 = vpop.f32.mrf.mxu0
        %v7237 = vadd.f32 %v7172, %v7236
        %v7238 = vpop.f32.mrf.mxu0
        %7239 = vmatprep.mubr.bf16.mxu0 %v4873
        %7240 = vmatmul.mubr.bf16.gmra.mxu0 %v4670
        %v7241 = vpop.f32.mrf.mxu0
        %v7242 = vadd.f32 %v7177, %v7241
        %v7243 = vpop.f32.mrf.mxu0
        %v7244 = vpop.f32.mrf.mxu0
        %v7245 = vadd.f32 %v7180, %v7244
        %v7246 = vpop.f32.mrf.mxu0
        %7247 = vmatprep.mubr.bf16.mxu0 %v4877
        %7248 = vmatmul.mubr.bf16.gmra.mxu0 %v4674
        %v7249 = vpop.f32.mrf.mxu0
        %v7250 = vadd.f32 %v7185, %v7249
        %v7251 = vpop.f32.mrf.mxu0
        %v7252 = vpop.f32.mrf.mxu0
        %v7253 = vadd.f32 %v7188, %v7252
        %v7254 = vpop.f32.mrf.mxu0
        %7255 = vdwg.mxu0
        %7256 = vmatprep.subr.bf16.mxu0 0
        %7257 = vmatpush1.bf16.msra.mxu0 %v6972
        %7258 = vmatprep.subr.bf16.mxu0 0
        %7259 = vmatpush1.bf16.msra.mxu0 %v6971
        %7260 = vmatprep.subr.bf16.mxu0 0
        %7261 = vmatpush1.bf16.msra.mxu0 %v6970
        %7262 = vmatprep.subr.bf16.mxu0 0
        %7263 = vmatpush1.bf16.msra.mxu0 %v6969
        %7264 = vmatprep.subr.bf16.mxu0 0
        %7265 = vmatpush1.bf16.msra.mxu0 %v6968
        %7266 = vmatprep.subr.bf16.mxu0 0
        %7267 = vmatpush1.bf16.msra.mxu0 %v6967
        %7268 = vmatprep.subr.bf16.mxu0 0
        %7269 = vmatpush1.bf16.msra.mxu0 %v6966
        %7270 = vmatprep.subr.bf16.mxu0 0
        %7271 = vmatpush1.bf16.msra.mxu0 %v6965
        %7272 = vmatprep.subr.bf16.mxu0 0
        %7273 = vmatpush2.bf16.msra.mxu0 %v6980
        %7274 = vmatprep.subr.bf16.mxu0 0
        %7275 = vmatpush2.bf16.msra.mxu0 %v6979
        %7276 = vmatprep.subr.bf16.mxu0 0
        %7277 = vmatpush2.bf16.msra.mxu0 %v6978
        %7278 = vmatprep.subr.bf16.mxu0 0
        %7279 = vmatpush2.bf16.msra.mxu0 %v6977
        %7280 = vmatprep.subr.bf16.mxu0 0
        %7281 = vmatpush2.bf16.msra.mxu0 %v6976
        %7282 = vmatprep.subr.bf16.mxu0 0
        %7283 = vmatpush2.bf16.msra.mxu0 %v6975
        %7284 = vmatprep.subr.bf16.mxu0 0
        %7285 = vmatpush2.bf16.msra.mxu0 %v6974
        %7286 = vmatprep.subr.bf16.mxu0 0
        %7287 = vmatpush2.bf16.msra.mxu0 %v6973
        %7288 = vmatprep.mubr.bf16.mxu0 %v5271
        %7289 = vmatmul.mubr.bf16.gmra.mxu0 %v5068
        %v7290 = vpop.f32.mrf.mxu0
        %v7291 = vadd.f32 %v7226, %v7290
        %v7292 = vpop.f32.mrf.mxu0
        %v7293 = vpop.f32.mrf.mxu0
        %v7294 = vadd.f32 %v7229, %v7293
        %v7295 = vpop.f32.mrf.mxu0
        %7296 = vmatprep.mubr.bf16.mxu0 %v5275
        %7297 = vmatmul.mubr.bf16.gmra.mxu0 %v5072
        %v7298 = vpop.f32.mrf.mxu0
        %v7299 = vadd.f32 %v7234, %v7298
        %v7300 = vpop.f32.mrf.mxu0
        %v7301 = vpop.f32.mrf.mxu0
        %v7302 = vadd.f32 %v7237, %v7301
        %v7303 = vpop.f32.mrf.mxu0
        %7304 = vmatprep.mubr.bf16.mxu0 %v5279
        %7305 = vmatmul.mubr.bf16.gmra.mxu0 %v5076
        %v7306 = vpop.f32.mrf.mxu0
        %v7307 = vadd.f32 %v7242, %v7306
        %v7308 = vpop.f32.mrf.mxu0
        %v7309 = vpop.f32.mrf.mxu0
        %v7310 = vadd.f32 %v7245, %v7309
        %v7311 = vpop.f32.mrf.mxu0
        %7312 = vmatprep.mubr.bf16.mxu0 %v5283
        %7313 = vmatmul.mubr.bf16.gmra.mxu0 %v5080
        %v7314 = vpop.f32.mrf.mxu0
        %v7315 = vadd.f32 %v7250, %v7314
        %v7316 = vpop.f32.mrf.mxu0
        %v7317 = vpop.f32.mrf.mxu0
        %v7318 = vadd.f32 %v7253, %v7317
        %v7319 = vpop.f32.mrf.mxu0
        %7320 = vdwg.mxu0
        %7321 = vmatprep.subr.bf16.mxu0 0
        %7322 = vmatpush1.bf16.msra.mxu0 %v6988
        %7323 = vmatprep.subr.bf16.mxu0 0
        %7324 = vmatpush1.bf16.msra.mxu0 %v6987
        %7325 = vmatprep.subr.bf16.mxu0 0
        %7326 = vmatpush1.bf16.msra.mxu0 %v6986
        %7327 = vmatprep.subr.bf16.mxu0 0
        %7328 = vmatpush1.bf16.msra.mxu0 %v6985
        %7329 = vmatprep.subr.bf16.mxu0 0
        %7330 = vmatpush1.bf16.msra.mxu0 %v6984
        %7331 = vmatprep.subr.bf16.mxu0 0
        %7332 = vmatpush1.bf16.msra.mxu0 %v6983
        %7333 = vmatprep.subr.bf16.mxu0 0
        %7334 = vmatpush1.bf16.msra.mxu0 %v6982
        %7335 = vmatprep.subr.bf16.mxu0 0
        %7336 = vmatpush1.bf16.msra.mxu0 %v6981
        %7337 = vmatprep.subr.bf16.mxu0 0
        %7338 = vmatpush2.bf16.msra.mxu0 0
        %7339 = vmatprep.subr.bf16.mxu0 0
        %7340 = vmatpush2.bf16.msra.mxu0 0
        %7341 = vmatprep.subr.bf16.mxu0 0
        %7342 = vmatpush2.bf16.msra.mxu0 0
        %7343 = vmatprep.subr.bf16.mxu0 0
        %7344 = vmatpush2.bf16.msra.mxu0 0
        %7345 = vmatprep.subr.bf16.mxu0 0
        %7346 = vmatpush2.bf16.msra.mxu0 0
        %7347 = vmatprep.subr.bf16.mxu0 0
        %7348 = vmatpush2.bf16.msra.mxu0 0
        %7349 = vmatprep.subr.bf16.mxu0 0
        %7350 = vmatpush2.bf16.msra.mxu0 0
        %7351 = vmatprep.subr.bf16.mxu0 0
        %7352 = vmatpush2.bf16.msra.mxu0 0
        %7353 = vmatprep.mubr.bf16.mxu0 0
        %7354 = vmatmul.mubr.bf16.gmra.mxu0 %v5474
        %v7355 = vpop.f32.mrf.mxu0
        %v7356 = vadd.f32 %v7291, %v7355
        %v7357 = vpop.f32.mrf.mxu0
        %v7358 = vpop.f32.mrf.mxu0
        %v7359 = vadd.f32 %v7294, %v7358
        %v7360 = vpop.f32.mrf.mxu0
        %7361 = vmatprep.mubr.bf16.mxu0 0
        %7362 = vmatmul.mubr.bf16.gmra.mxu0 %v5478
        %v7363 = vpop.f32.mrf.mxu0
        %v7364 = vadd.f32 %v7299, %v7363
        %v7365 = vpop.f32.mrf.mxu0
        %v7366 = vpop.f32.mrf.mxu0
        %v7367 = vadd.f32 %v7302, %v7366
        %v7368 = vpop.f32.mrf.mxu0
        %7369 = vmatprep.mubr.bf16.mxu0 0
        %7370 = vmatmul.mubr.bf16.gmra.mxu0 %v5482
        %v7371 = vpop.f32.mrf.mxu0
        %v7372 = vadd.f32 %v7307, %v7371
        %v7373 = vpop.f32.mrf.mxu0
        %v7374 = vpop.f32.mrf.mxu0
        %v7375 = vadd.f32 %v7310, %v7374
        %v7376 = vpop.f32.mrf.mxu0
        %7377 = vmatprep.mubr.bf16.mxu0 0
        %7378 = vmatmul.mubr.bf16.gmra.mxu0 %v5486
        %v7379 = vpop.f32.mrf.mxu0
        %v7380 = vadd.f32 %v7315, %v7379
        %v7381 = vpop.f32.mrf.mxu0
        %v7382 = vpop.f32.mrf.mxu0
        %v7383 = vadd.f32 %v7318, %v7382
        %v7384 = vpop.f32.mrf.mxu0
        %7385 = vdwg.mxu0
        %v7386 = vadd.f32 %v7356, %v7359
        %v7387 = vadd.f32 %v7386, %v7364
        %v7388 = vadd.f32 %v7387, %v7367
        %v7389 = vadd.f32 %v7388, %v7372
        %v7390 = vadd.f32 %v7389, %v7375
        %v7391 = vadd.f32 %v7390, %v7380
        %v7392 = vadd.f32 %v7391, %v7383
        %v7393 = vrot.slane %v7392, 4
        %v7394 = vadd.f32 %v7392, %v7393
        %v7395 = vrot.slane %v7394, 2
        %v7396 = vadd.f32 %v7394, %v7395
        %v7397 = vrot.slane %v7396, 1
        %v7398 = vadd.f32 %v7396, %v7397
        %v7399 = vmul.f32 %v7398, 0.015625
        %v7400 = vmul.f32 %v7356, %v7356
        %v7401 = vmul.f32 %v7359, %v7359
        %v7402 = vmul.f32 %v7364, %v7364
        %v7403 = vmul.f32 %v7367, %v7367
        %v7404 = vmul.f32 %v7372, %v7372
        %v7405 = vmul.f32 %v7375, %v7375
        %v7406 = vmul.f32 %v7380, %v7380
        %v7407 = vmul.f32 %v7383, %v7383
        %v7408 = vadd.f32 %v7400, %v7401
        %v7409 = vadd.f32 %v7408, %v7402
        %v7410 = vadd.f32 %v7409, %v7403
        %v7411 = vadd.f32 %v7410, %v7404
        %v7412 = vadd.f32 %v7411, %v7405
        %v7413 = vadd.f32 %v7412, %v7406
        %v7414 = vadd.f32 %v7413, %v7407
        %v7415 = vrot.slane %v7414, 4
        %v7416 = vadd.f32 %v7414, %v7415
        %v7417 = vrot.slane %v7416, 2
        %v7418 = vadd.f32 %v7416, %v7417
        %v7419 = vrot.slane %v7418, 1
        %v7420 = vadd.f32 %v7418, %v7419
        %v7421 = vmul.f32 %v7420, 0.015625
        %v7422 = vmul.f32 %v7399, %v7399
        %v7423 = vsub.f32 %v7421, %v7422
        %v7424 = vsub.f32 %v7356, %v7399
        %v7425 = vsub.f32 %v7359, %v7399
        %v7426 = vsub.f32 %v7364, %v7399
        %v7427 = vsub.f32 %v7367, %v7399
        %v7428 = vsub.f32 %v7372, %v7399
        %v7429 = vsub.f32 %v7375, %v7399
        %v7430 = vsub.f32 %v7380, %v7399
        %v7431 = vsub.f32 %v7383, %v7399
        %v7432 = vadd.f32 %v7423, 1e-05
        %v7433 = vrsqrt.pop %v7432
        %v7434 = vmul.f32 %v7424, %v7433
        %v7435 = vmul.f32 %v7425, %v7433
        %v7436 = vmul.f32 %v7426, %v7433
        %v7437 = vmul.f32 %v7427, %v7433
        %v7438 = vmul.f32 %v7428, %v7433
        %v7439 = vmul.f32 %v7429, %v7433
        %v7440 = vmul.f32 %v7430, %v7433
        %v7441 = vmul.f32 %v7431, %v7433
        %v7442 = vld [vmem:[%s929 + $0x1] sm:$0x1]
        %v7444 = vlaneseq
        %v7445 = vshrl.u32 %v7444, 7
        %v7446 = vsub.s32 0, %v7445
        %v7447 = vrot.slane %v7442, %v7446
        %v7449 = vmul.f32 %v7434, %v7447
        %v7450 = vmul.f32 %v7435, %v7447
        %v7451 = vmul.f32 %v7436, %v7447
        %v7452 = vmul.f32 %v7437, %v7447
        %v7453 = vmul.f32 %v7438, %v7447
        %v7454 = vmul.f32 %v7439, %v7447
        %v7455 = vmul.f32 %v7440, %v7447
        %v7456 = vmul.f32 %v7441, %v7447
        %v7457 = vld [vmem:[%s934 + $0x1] sm:$0x1]
        %v7459 = vlaneseq
        %v7460 = vshrl.u32 %v7459, 7
        %v7461 = vsub.s32 0, %v7460
        %v7462 = vrot.slane %v7457, %v7461
        %v7464 = vadd.f32 %v7449, %v7462
        %v7465 = vadd.f32 %v7450, %v7462
        %v7466 = vadd.f32 %v7451, %v7462
        %v7467 = vadd.f32 %v7452, %v7462
        %v7468 = vadd.f32 %v7453, %v7462
        %v7469 = vadd.f32 %v7454, %v7462
        %v7470 = vadd.f32 %v7455, %v7462
        %v7471 = vadd.f32 %v7456, %v7462
        %7472 = vst [vmem:[%s907 + $0x8] sm:$0xff] %v7464
        %7473 = vst [vmem:[%s907 + $0x28] sm:$0xff] %v7465
        %7474 = vst [vmem:[%s907 + $0x48] sm:$0xff] %v7466
        %7475 = vst [vmem:[%s907 + $0x68] sm:$0xff] %v7467
        %7476 = vst [vmem:[%s907 + $0x88] sm:$0xff] %v7468
        %7477 = vst [vmem:[%s907 + $0xa8] sm:$0xff] %v7469
        %7478 = vst [vmem:[%s907 + $0xc8] sm:$0xff] %v7470
        %7479 = vst [vmem:[%s907 + $0xe8] sm:$0xff] %v7471
        %s7480 = scalar_lea.vmem %s924, 1152
        %v7481 = vld [vmem:[%s7480] sm:$0xf]
        %v7482 = vld [vmem:[%s7480 + $0x4] sm:$0xf]
        %v7483 = vld [vmem:[%s7480 + $0x8] sm:$0xf]
        %v7484 = vld [vmem:[%s7480 + $0xc] sm:$0xf]
        %v7485 = vld [vmem:[%s7480 + $0x10] sm:$0xf]
        %v7486 = vld [vmem:[%s7480 + $0x14] sm:$0xf]
        %v7487 = vld [vmem:[%s7480 + $0x18] sm:$0xf]
        %v7488 = vld [vmem:[%s7480 + $0x1c] sm:$0xf]
        %v7489 = vld [vmem:[%s7480 + $0x20] sm:$0xf]
        %v7490 = vld [vmem:[%s7480 + $0x24] sm:$0xf]
        %v7491 = vld [vmem:[%s7480 + $0x28] sm:$0xf]
        %v7492 = vld [vmem:[%s7480 + $0x2c] sm:$0xf]
        %v7493 = vld [vmem:[%s7480 + $0x30] sm:$0xf]
        %v7494 = vld [vmem:[%s7480 + $0x34] sm:$0xf]
        %v7495 = vld [vmem:[%s7480 + $0x38] sm:$0xf]
        %v7496 = vld [vmem:[%s7480 + $0x3c] sm:$0xf]
        %v7497 = vld [vmem:[%s7480 + $0x40] sm:$0xf]
        %v7498 = vld [vmem:[%s7480 + $0x44] sm:$0xf]
        %v7499 = vld [vmem:[%s7480 + $0x48] sm:$0xf]
        %v7500 = vld [vmem:[%s7480 + $0x4c] sm:$0xf]
        %v7501 = vld [vmem:[%s7480 + $0x50] sm:$0xf]
        %v7502 = vld [vmem:[%s7480 + $0x54] sm:$0xf]
        %v7503 = vld [vmem:[%s7480 + $0x58] sm:$0xf]
        %v7504 = vld [vmem:[%s7480 + $0x5c] sm:$0xf]
        %v7505 = vld [vmem:[%s7480 + $0x60] sm:$0xf]
        %v7506 = vld [vmem:[%s7480 + $0x64] sm:$0xf]
        %v7507 = vld [vmem:[%s7480 + $0x68] sm:$0xf]
        %v7508 = vld [vmem:[%s7480 + $0x6c] sm:$0xf]
        %v7509 = vld [vmem:[%s7480 + $0x70] sm:$0xf]
        %v7510 = vld [vmem:[%s7480 + $0x74] sm:$0xf]
        %v7511 = vld [vmem:[%s7480 + $0x78] sm:$0xf]
        %v7512 = vld [vmem:[%s7480 + $0x7c] sm:$0xf]
        %v7513 = vld [vmem:[%s7480 + $0x80] sm:$0xf]
        %v7514 = vld [vmem:[%s7480 + $0x84] sm:$0xf]
        %v7515 = vld [vmem:[%s7480 + $0x88] sm:$0xf]
        %v7516 = vld [vmem:[%s7480 + $0x8c] sm:$0xf]
        %v7517 = vld [vmem:[%s7480 + $0x90] sm:$0xf]
        %v7518 = vld [vmem:[%s7480 + $0x94] sm:$0xf]
        %v7519 = vld [vmem:[%s7480 + $0x98] sm:$0xf]
        %v7520 = vld [vmem:[%s7480 + $0x9c] sm:$0xf]
        %v7521 = vld [vmem:[%s7480 + $0xa0] sm:$0xf]
        %v7522 = vld [vmem:[%s7480 + $0xa4] sm:$0xf]
        %v7523 = vld [vmem:[%s7480 + $0xa8] sm:$0xf]
        %v7524 = vld [vmem:[%s7480 + $0xac] sm:$0xf]
        %v7525 = vld [vmem:[%s7480 + $0xb0] sm:$0xf]
        %v7526 = vld [vmem:[%s7480 + $0xb4] sm:$0xf]
        %v7527 = vld [vmem:[%s7480 + $0xb8] sm:$0xf]
        %v7528 = vld [vmem:[%s7480 + $0xbc] sm:$0xf]
        %v7529 = vld [vmem:[%s7480 + $0xc0] sm:$0xf]
        %v7530 = vld [vmem:[%s7480 + $0xc4] sm:$0xf]
        %v7531 = vld [vmem:[%s7480 + $0xc8] sm:$0xf]
        %v7532 = vld [vmem:[%s7480 + $0xcc] sm:$0xf]
        %v7533 = vld [vmem:[%s7480 + $0xd0] sm:$0xf]
        %v7534 = vld [vmem:[%s7480 + $0xd4] sm:$0xf]
        %v7535 = vld [vmem:[%s7480 + $0xd8] sm:$0xf]
        %v7536 = vld [vmem:[%s7480 + $0xdc] sm:$0xf]
        %v7537 = vld [vmem:[%s7480 + $0xe0] sm:$0xf]
        %v7538 = vld [vmem:[%s7480 + $0xe4] sm:$0xf]
        %v7539 = vld [vmem:[%s7480 + $0xe8] sm:$0xf]
        %v7540 = vld [vmem:[%s7480 + $0xec] sm:$0xf]
        %v7541 = vld [vmem:[%s7480 + $0xf0] sm:$0xf]
        %v7542 = vld [vmem:[%s7480 + $0xf4] sm:$0xf]
        %v7543 = vld [vmem:[%s7480 + $0xf8] sm:$0xf]
        %v7544 = vld [vmem:[%s7480 + $0xfc] sm:$0xf]
        %v7545 = vld [vmem:[%s7480 + $0x100] sm:$0xf]
        %v7546 = vld [vmem:[%s7480 + $0x104] sm:$0xf]
        %v7547 = vld [vmem:[%s7480 + $0x108] sm:$0xf]
        %v7548 = vld [vmem:[%s7480 + $0x10c] sm:$0xf]
        %v7549 = vld [vmem:[%s7480 + $0x110] sm:$0xf]
        %v7550 = vld [vmem:[%s7480 + $0x114] sm:$0xf]
        %v7551 = vld [vmem:[%s7480 + $0x118] sm:$0xf]
        %v7552 = vld [vmem:[%s7480 + $0x11c] sm:$0xf]
        %v7553 = vld [vmem:[%s7480 + $0x120] sm:$0xf]
        %v7554 = vld [vmem:[%s7480 + $0x124] sm:$0xf]
        %v7555 = vld [vmem:[%s7480 + $0x128] sm:$0xf]
        %v7556 = vld [vmem:[%s7480 + $0x12c] sm:$0xf]
        %v7557 = vld [vmem:[%s7480 + $0x130] sm:$0xf]
        %v7558 = vld [vmem:[%s7480 + $0x134] sm:$0xf]
        %v7559 = vld [vmem:[%s7480 + $0x138] sm:$0xf]
        %v7560 = vld [vmem:[%s7480 + $0x13c] sm:$0xf]
        %v7561 = vld [vmem:[%s7480 + $0x140] sm:$0xf]
        %v7562 = vld [vmem:[%s7480 + $0x144] sm:$0xf]
        %v7563 = vld [vmem:[%s7480 + $0x148] sm:$0xf]
        %v7564 = vld [vmem:[%s7480 + $0x14c] sm:$0xf]
        %v7565 = vld [vmem:[%s7480 + $0x150] sm:$0xf]
        %v7566 = vld [vmem:[%s7480 + $0x154] sm:$0xf]
        %v7567 = vld [vmem:[%s7480 + $0x158] sm:$0xf]
        %v7568 = vld [vmem:[%s7480 + $0x15c] sm:$0xf]
        %v7569 = vld [vmem:[%s7480 + $0x160] sm:$0xf]
        %v7570 = vld [vmem:[%s7480 + $0x164] sm:$0xf]
        %v7571 = vld [vmem:[%s7480 + $0x168] sm:$0xf]
        %v7572 = vld [vmem:[%s7480 + $0x16c] sm:$0xf]
        %v7573 = vld [vmem:[%s7480 + $0x170] sm:$0xf]
        %v7574 = vld [vmem:[%s7480 + $0x174] sm:$0xf]
        %v7575 = vld [vmem:[%s7480 + $0x178] sm:$0xf]
        %v7576 = vld [vmem:[%s7480 + $0x17c] sm:$0xf]
        %v7577 = vld [vmem:[%s7480 + $0x180] sm:$0xf]
        %v7578 = vld [vmem:[%s7480 + $0x184] sm:$0xf]
        %v7579 = vld [vmem:[%s7480 + $0x188] sm:$0xf]
        %v7580 = vld [vmem:[%s7480 + $0x18c] sm:$0xf]
        %v7581 = vld [vmem:[%s7480 + $0x190] sm:$0xf]
        %v7582 = vld [vmem:[%s7480 + $0x194] sm:$0xf]
        %v7583 = vld [vmem:[%s7480 + $0x198] sm:$0xf]
        %v7584 = vld [vmem:[%s7480 + $0x19c] sm:$0xf]
        %v7585 = vld [vmem:[%s7480 + $0x1a0] sm:$0xf]
        %v7586 = vld [vmem:[%s7480 + $0x1a4] sm:$0xf]
        %v7587 = vld [vmem:[%s7480 + $0x1a8] sm:$0xf]
        %v7588 = vld [vmem:[%s7480 + $0x1ac] sm:$0xf]
        %v7589 = vld [vmem:[%s7480 + $0x1b0] sm:$0xf]
        %v7590 = vld [vmem:[%s7480 + $0x1b4] sm:$0xf]
        %v7591 = vld [vmem:[%s7480 + $0x1b8] sm:$0xf]
        %v7592 = vld [vmem:[%s7480 + $0x1bc] sm:$0xf]
        %v7593 = vld [vmem:[%s7480 + $0x1c0] sm:$0xf]
        %v7594 = vld [vmem:[%s7480 + $0x1c4] sm:$0xf]
        %v7595 = vld [vmem:[%s7480 + $0x1c8] sm:$0xf]
        %v7596 = vld [vmem:[%s7480 + $0x1cc] sm:$0xf]
        %v7597 = vld [vmem:[%s7480 + $0x1d0] sm:$0xf]
        %v7598 = vld [vmem:[%s7480 + $0x1d4] sm:$0xf]
        %v7599 = vld [vmem:[%s7480 + $0x1d8] sm:$0xf]
        %v7600 = vld [vmem:[%s7480 + $0x1dc] sm:$0xf]
        %v7601 = vld [vmem:[%s7480 + $0x1e0] sm:$0xf]
        %v7602 = vld [vmem:[%s7480 + $0x1e4] sm:$0xf]
        %v7603 = vld [vmem:[%s7480 + $0x1e8] sm:$0xf]
        %v7604 = vld [vmem:[%s7480 + $0x1ec] sm:$0xf]
        %v7605 = vld [vmem:[%s7480 + $0x1f0] sm:$0xf]
        %v7606 = vld [vmem:[%s7480 + $0x1f4] sm:$0xf]
        %v7607 = vld [vmem:[%s7480 + $0x1f8] sm:$0xf]
        %v7608 = vld [vmem:[%s7480 + $0x1fc] sm:$0xf]
        %v7609 = vld [vmem:[%s7480 + $0x200] sm:$0xf]
        %v7610 = vld [vmem:[%s7480 + $0x204] sm:$0xf]
        %v7611 = vld [vmem:[%s7480 + $0x208] sm:$0xf]
        %v7612 = vld [vmem:[%s7480 + $0x20c] sm:$0xf]
        %v7613 = vld [vmem:[%s7480 + $0x210] sm:$0xf]
        %v7614 = vld [vmem:[%s7480 + $0x214] sm:$0xf]
        %v7615 = vld [vmem:[%s7480 + $0x218] sm:$0xf]
        %v7616 = vld [vmem:[%s7480 + $0x21c] sm:$0xf]
        %v7617 = vld [vmem:[%s7480 + $0x220] sm:$0xf]
        %v7618 = vld [vmem:[%s7480 + $0x224] sm:$0xf]
        %v7619 = vld [vmem:[%s7480 + $0x228] sm:$0xf]
        %v7620 = vld [vmem:[%s7480 + $0x22c] sm:$0xf]
        %v7621 = vld [vmem:[%s7480 + $0x230] sm:$0xf]
        %v7622 = vld [vmem:[%s7480 + $0x234] sm:$0xf]
        %v7623 = vld [vmem:[%s7480 + $0x238] sm:$0xf]
        %v7624 = vld [vmem:[%s7480 + $0x23c] sm:$0xf]
        %v7769 = vunpack.c.l.b16 %v7481
        %v7770 = vunpack.c.l.b16 %v7482
        %v7771 = vunpack.c.l.b16 %v7483
        %v7772 = vunpack.c.l.b16 %v7484
        %v7773 = vunpack.c.l.b16 %v7485
        %v7774 = vunpack.c.l.b16 %v7486
        %v7775 = vunpack.c.l.b16 %v7487
        %v7776 = vunpack.c.l.b16 %v7488
        %v7777 = vunpack.c.l.b16 %v7489
        %v7778 = vunpack.c.l.b16 %v7490
        %v7779 = vunpack.c.l.b16 %v7491
        %v7780 = vunpack.c.l.b16 %v7492
        %v7781 = vunpack.c.l.b16 %v7493
        %v7782 = vunpack.c.l.b16 %v7494
        %v7783 = vunpack.c.l.b16 %v7495
        %v7784 = vunpack.c.l.b16 %v7496
        %v7785 = vunpack.c.l.b16 %v7497
        %v7786 = vunpack.c.l.b16 %v7498
        %v7787 = vunpack.c.l.b16 %v7499
        %v7788 = vunpack.c.l.b16 %v7500
        %v7789 = vunpack.c.l.b16 %v7501
        %v7790 = vunpack.c.l.b16 %v7502
        %v7791 = vunpack.c.l.b16 %v7503
        %v7792 = vunpack.c.l.b16 %v7504
        %v7793 = vunpack.c.l.b16 %v7505
        %v7794 = vunpack.c.l.b16 %v7506
        %v7795 = vunpack.c.l.b16 %v7507
        %v7796 = vunpack.c.l.b16 %v7508
        %v7797 = vunpack.c.l.b16 %v7509
        %v7798 = vunpack.c.l.b16 %v7510
        %v7799 = vunpack.c.l.b16 %v7511
        %v7800 = vunpack.c.l.b16 %v7512
        %v7801 = vunpack.c.l.b16 %v7513
        %v7802 = vunpack.c.l.b16 %v7514
        %v7803 = vunpack.c.l.b16 %v7515
        %v7804 = vunpack.c.l.b16 %v7516
        %v7805 = vunpack.c.l.b16 %v7517
        %v7806 = vunpack.c.l.b16 %v7518
        %v7807 = vunpack.c.l.b16 %v7519
        %v7808 = vunpack.c.l.b16 %v7520
        %v7809 = vunpack.c.l.b16 %v7521
        %v7810 = vunpack.c.l.b16 %v7522
        %v7811 = vunpack.c.l.b16 %v7523
        %v7812 = vunpack.c.l.b16 %v7524
        %v7813 = vunpack.c.l.b16 %v7525
        %v7814 = vunpack.c.l.b16 %v7526
        %v7815 = vunpack.c.l.b16 %v7527
        %v7816 = vunpack.c.l.b16 %v7528
        %v7817 = vunpack.c.l.b16 %v7529
        %v7818 = vunpack.c.l.b16 %v7530
        %v7819 = vunpack.c.l.b16 %v7531
        %v7820 = vunpack.c.l.b16 %v7532
        %v7821 = vunpack.c.l.b16 %v7533
        %v7822 = vunpack.c.l.b16 %v7534
        %v7823 = vunpack.c.l.b16 %v7535
        %v7824 = vunpack.c.l.b16 %v7536
        %v7825 = vunpack.c.l.b16 %v7537
        %v7826 = vunpack.c.l.b16 %v7538
        %v7827 = vunpack.c.l.b16 %v7539
        %v7828 = vunpack.c.l.b16 %v7540
        %v7829 = vunpack.c.l.b16 %v7541
        %v7830 = vunpack.c.l.b16 %v7542
        %v7831 = vunpack.c.l.b16 %v7543
        %v7832 = vunpack.c.l.b16 %v7544
        %v7833 = vunpack.c.l.b16 %v7545
        %v7834 = vunpack.c.l.b16 %v7546
        %v7835 = vunpack.c.l.b16 %v7547
        %v7836 = vunpack.c.l.b16 %v7548
        %v7837 = vunpack.c.l.b16 %v7549
        %v7838 = vunpack.c.l.b16 %v7550
        %v7839 = vunpack.c.l.b16 %v7551
        %v7840 = vunpack.c.l.b16 %v7552
        %v7841 = vunpack.c.l.b16 %v7553
        %v7842 = vunpack.c.l.b16 %v7554
        %v7843 = vunpack.c.l.b16 %v7555
        %v7844 = vunpack.c.l.b16 %v7556
        %v7845 = vunpack.c.l.b16 %v7557
        %v7846 = vunpack.c.l.b16 %v7558
        %v7847 = vunpack.c.l.b16 %v7559
        %v7848 = vunpack.c.l.b16 %v7560
        %v7849 = vunpack.c.l.b16 %v7561
        %v7850 = vunpack.c.l.b16 %v7562
        %v7851 = vunpack.c.l.b16 %v7563
        %v7852 = vunpack.c.l.b16 %v7564
        %v7853 = vunpack.c.l.b16 %v7565
        %v7854 = vunpack.c.l.b16 %v7566
        %v7855 = vunpack.c.l.b16 %v7567
        %v7856 = vunpack.c.l.b16 %v7568
        %v7857 = vunpack.c.l.b16 %v7569
        %v7858 = vunpack.c.l.b16 %v7570
        %v7859 = vunpack.c.l.b16 %v7571
        %v7860 = vunpack.c.l.b16 %v7572
        %v7861 = vunpack.c.l.b16 %v7573
        %v7862 = vunpack.c.l.b16 %v7574
        %v7863 = vunpack.c.l.b16 %v7575
        %v7864 = vunpack.c.l.b16 %v7576
        %v7865 = vunpack.c.l.b16 %v7577
        %v7866 = vunpack.c.l.b16 %v7578
        %v7867 = vunpack.c.l.b16 %v7579
        %v7868 = vunpack.c.l.b16 %v7580
        %v7869 = vunpack.c.l.b16 %v7581
        %v7870 = vunpack.c.l.b16 %v7582
        %v7871 = vunpack.c.l.b16 %v7583
        %v7872 = vunpack.c.l.b16 %v7584
        %v7873 = vunpack.c.l.b16 %v7585
        %v7874 = vunpack.c.l.b16 %v7586
        %v7875 = vunpack.c.l.b16 %v7587
        %v7876 = vunpack.c.l.b16 %v7588
        %v7877 = vunpack.c.l.b16 %v7589
        %v7878 = vunpack.c.l.b16 %v7590
        %v7879 = vunpack.c.l.b16 %v7591
        %v7880 = vunpack.c.l.b16 %v7592
        %v7881 = vunpack.c.l.b16 %v7593
        %v7882 = vunpack.c.l.b16 %v7594
        %v7883 = vunpack.c.l.b16 %v7595
        %v7884 = vunpack.c.l.b16 %v7596
        %v7885 = vunpack.c.l.b16 %v7597
        %v7886 = vunpack.c.l.b16 %v7598
        %v7887 = vunpack.c.l.b16 %v7599
        %v7888 = vunpack.c.l.b16 %v7600
        %v7889 = vunpack.c.l.b16 %v7601
        %v7890 = vunpack.c.l.b16 %v7602
        %v7891 = vunpack.c.l.b16 %v7603
        %v7892 = vunpack.c.l.b16 %v7604
        %v7893 = vunpack.c.l.b16 %v7605
        %v7894 = vunpack.c.l.b16 %v7606
        %v7895 = vunpack.c.l.b16 %v7607
        %v7896 = vunpack.c.l.b16 %v7608
        %v7897 = vunpack.c.l.b16 %v7609
        %v7898 = vunpack.c.l.b16 %v7610
        %v7899 = vunpack.c.l.b16 %v7611
        %v7900 = vunpack.c.l.b16 %v7612
        %v7901 = vunpack.c.l.b16 %v7613
        %v7902 = vunpack.c.l.b16 %v7614
        %v7903 = vunpack.c.l.b16 %v7615
        %v7904 = vunpack.c.l.b16 %v7616
        %v7905 = vunpack.c.l.b16 %v7617
        %v7906 = vunpack.c.l.b16 %v7618
        %v7907 = vunpack.c.l.b16 %v7619
        %v7908 = vunpack.c.l.b16 %v7620
        %v7909 = vunpack.c.l.b16 %v7621
        %v7910 = vunpack.c.l.b16 %v7622
        %v7911 = vunpack.c.l.b16 %v7623
        %v7912 = vunpack.c.l.b16 %v7624
        %v7913 = vpack.c.b16 %v7770, %v7769
        %v7914 = vpack.c.b16 %v7772, %v7771
        %v7915 = vpack.c.b16 %v7774, %v7773
        %v7916 = vpack.c.b16 %v7776, %v7775
        %v7917 = vpack.c.b16 %v7778, %v7777
        %v7918 = vpack.c.b16 %v7780, %v7779
        %v7919 = vpack.c.b16 %v7782, %v7781
        %v7920 = vpack.c.b16 %v7784, %v7783
        %v7921 = vpack.c.b16 %v7786, %v7785
        %v7922 = vpack.c.b16 %v7788, %v7787
        %v7923 = vpack.c.b16 %v7790, %v7789
        %v7924 = vpack.c.b16 %v7792, %v7791
        %v7925 = vpack.c.b16 %v7794, %v7793
        %v7926 = vpack.c.b16 %v7796, %v7795
        %v7927 = vpack.c.b16 %v7798, %v7797
        %v7928 = vpack.c.b16 %v7800, %v7799
        %v7929 = vpack.c.b16 %v7802, %v7801
        %v7930 = vpack.c.b16 %v7804, %v7803
        %v7931 = vpack.c.b16 %v7806, %v7805
        %v7932 = vpack.c.b16 %v7808, %v7807
        %v7933 = vpack.c.b16 %v7810, %v7809
        %v7934 = vpack.c.b16 %v7812, %v7811
        %v7935 = vpack.c.b16 %v7814, %v7813
        %v7936 = vpack.c.b16 %v7816, %v7815
        %v7937 = vpack.c.b16 %v7818, %v7817
        %v7938 = vpack.c.b16 %v7820, %v7819
        %v7939 = vpack.c.b16 %v7822, %v7821
        %v7940 = vpack.c.b16 %v7824, %v7823
        %v7941 = vpack.c.b16 %v7826, %v7825
        %v7942 = vpack.c.b16 %v7828, %v7827
        %v7943 = vpack.c.b16 %v7830, %v7829
        %v7944 = vpack.c.b16 %v7832, %v7831
        %v7945 = vpack.c.b16 %v7834, %v7833
        %v7946 = vpack.c.b16 %v7836, %v7835
        %v7947 = vpack.c.b16 %v7838, %v7837
        %v7948 = vpack.c.b16 %v7840, %v7839
        %v7949 = vpack.c.b16 %v7842, %v7841
        %v7950 = vpack.c.b16 %v7844, %v7843
        %v7951 = vpack.c.b16 %v7846, %v7845
        %v7952 = vpack.c.b16 %v7848, %v7847
        %v7953 = vpack.c.b16 %v7850, %v7849
        %v7954 = vpack.c.b16 %v7852, %v7851
        %v7955 = vpack.c.b16 %v7854, %v7853
        %v7956 = vpack.c.b16 %v7856, %v7855
        %v7957 = vpack.c.b16 %v7858, %v7857
        %v7958 = vpack.c.b16 %v7860, %v7859
        %v7959 = vpack.c.b16 %v7862, %v7861
        %v7960 = vpack.c.b16 %v7864, %v7863
        %v7961 = vpack.c.b16 %v7866, %v7865
        %v7962 = vpack.c.b16 %v7868, %v7867
        %v7963 = vpack.c.b16 %v7870, %v7869
        %v7964 = vpack.c.b16 %v7872, %v7871
        %v7965 = vpack.c.b16 %v7874, %v7873
        %v7966 = vpack.c.b16 %v7876, %v7875
        %v7967 = vpack.c.b16 %v7878, %v7877
        %v7968 = vpack.c.b16 %v7880, %v7879
        %v7969 = vpack.c.b16 %v7882, %v7881
        %v7970 = vpack.c.b16 %v7884, %v7883
        %v7971 = vpack.c.b16 %v7886, %v7885
        %v7972 = vpack.c.b16 %v7888, %v7887
        %v7973 = vpack.c.b16 %v7890, %v7889
        %v7974 = vpack.c.b16 %v7892, %v7891
        %v7975 = vpack.c.b16 %v7894, %v7893
        %v7976 = vpack.c.b16 %v7896, %v7895
        %v7977 = vpack.c.b16 %v7898, %v7897
        %v7978 = vpack.c.b16 %v7900, %v7899
        %v7979 = vpack.c.b16 %v7902, %v7901
        %v7980 = vpack.c.b16 %v7904, %v7903
        %v7981 = vpack.c.b16 %v7906, %v7905
        %v7982 = vpack.c.b16 %v7908, %v7907
        %v7983 = vpack.c.b16 %v7910, %v7909
        %v7984 = vpack.c.b16 %v7912, %v7911
        %8057 = vmatprep.subr.bf16.mxu0 0
        %8058 = vmatpush1.bf16.msra.mxu0 %v7920
        %8059 = vmatprep.subr.bf16.mxu0 0
        %8060 = vmatpush1.bf16.msra.mxu0 %v7919
        %8061 = vmatprep.subr.bf16.mxu0 0
        %8062 = vmatpush1.bf16.msra.mxu0 %v7918
        %8063 = vmatprep.subr.bf16.mxu0 0
        %8064 = vmatpush1.bf16.msra.mxu0 %v7917
        %8065 = vmatprep.subr.bf16.mxu0 0
        %8066 = vmatpush1.bf16.msra.mxu0 %v7916
        %8067 = vmatprep.subr.bf16.mxu0 0
        %8068 = vmatpush1.bf16.msra.mxu0 %v7915
        %8069 = vmatprep.subr.bf16.mxu0 0
        %8070 = vmatpush1.bf16.msra.mxu0 %v7914
        %8071 = vmatprep.subr.bf16.mxu0 0
        %8072 = vmatpush1.bf16.msra.mxu0 %v7913
        %8073 = vmatprep.subr.bf16.mxu0 0
        %8074 = vmatpush2.bf16.msra.mxu0 %v7928
        %8075 = vmatprep.subr.bf16.mxu0 0
        %8076 = vmatpush2.bf16.msra.mxu0 %v7927
        %8077 = vmatprep.subr.bf16.mxu0 0
        %8078 = vmatpush2.bf16.msra.mxu0 %v7926
        %8079 = vmatprep.subr.bf16.mxu0 0
        %8080 = vmatpush2.bf16.msra.mxu0 %v7925
        %8081 = vmatprep.subr.bf16.mxu0 0
        %8082 = vmatpush2.bf16.msra.mxu0 %v7924
        %8083 = vmatprep.subr.bf16.mxu0 0
        %8084 = vmatpush2.bf16.msra.mxu0 %v7923
        %8085 = vmatprep.subr.bf16.mxu0 0
        %8086 = vmatpush2.bf16.msra.mxu0 %v7922
        %8087 = vmatprep.subr.bf16.mxu0 0
        %8088 = vmatpush2.bf16.msra.mxu0 %v7921
        %8089 = vmatprep.mubr.bf16.mxu0 %v4054
        %8090 = vmatmul.mubr.bf16.gmra.mxu0 %v3851
        %v8091 = vpop.f32.mrf.mxu0
        %v8092 = vadd.f32 0.0, %v8091
        %v8093 = vpop.f32.mrf.mxu0
        %v8094 = vpop.f32.mrf.mxu0
        %v8095 = vadd.f32 0.0, %v8094
        %v8096 = vpop.f32.mrf.mxu0
        %8097 = vmatprep.mubr.bf16.mxu0 %v4058
        %8098 = vmatmul.mubr.bf16.gmra.mxu0 %v3855
        %v8099 = vpop.f32.mrf.mxu0
        %v8100 = vadd.f32 0.0, %v8099
        %v8101 = vpop.f32.mrf.mxu0
        %v8102 = vpop.f32.mrf.mxu0
        %v8103 = vadd.f32 0.0, %v8102
        %v8104 = vpop.f32.mrf.mxu0
        %8105 = vmatprep.mubr.bf16.mxu0 %v4062
        %8106 = vmatmul.mubr.bf16.gmra.mxu0 %v3859
        %v8107 = vpop.f32.mrf.mxu0
        %v8108 = vadd.f32 0.0, %v8107
        %v8109 = vpop.f32.mrf.mxu0
        %v8110 = vpop.f32.mrf.mxu0
        %v8111 = vadd.f32 0.0, %v8110
        %v8112 = vpop.f32.mrf.mxu0
        %8113 = vmatprep.mubr.bf16.mxu0 %v4066
        %8114 = vmatmul.mubr.bf16.gmra.mxu0 %v3863
        %v8115 = vpop.f32.mrf.mxu0
        %v8116 = vadd.f32 0.0, %v8115
        %v8117 = vpop.f32.mrf.mxu0
        %v8118 = vpop.f32.mrf.mxu0
        %v8119 = vadd.f32 0.0, %v8118
        %v8120 = vpop.f32.mrf.mxu0
        %8121 = vdwg.mxu0
        %8122 = vmatprep.subr.bf16.mxu0 0
        %8123 = vmatpush1.bf16.msra.mxu0 %v7936
        %8124 = vmatprep.subr.bf16.mxu0 0
        %8125 = vmatpush1.bf16.msra.mxu0 %v7935
        %8126 = vmatprep.subr.bf16.mxu0 0
        %8127 = vmatpush1.bf16.msra.mxu0 %v7934
        %8128 = vmatprep.subr.bf16.mxu0 0
        %8129 = vmatpush1.bf16.msra.mxu0 %v7933
        %8130 = vmatprep.subr.bf16.mxu0 0
        %8131 = vmatpush1.bf16.msra.mxu0 %v7932
        %8132 = vmatprep.subr.bf16.mxu0 0
        %8133 = vmatpush1.bf16.msra.mxu0 %v7931
        %8134 = vmatprep.subr.bf16.mxu0 0
        %8135 = vmatpush1.bf16.msra.mxu0 %v7930
        %8136 = vmatprep.subr.bf16.mxu0 0
        %8137 = vmatpush1.bf16.msra.mxu0 %v7929
        %8138 = vmatprep.subr.bf16.mxu0 0
        %8139 = vmatpush2.bf16.msra.mxu0 %v7944
        %8140 = vmatprep.subr.bf16.mxu0 0
        %8141 = vmatpush2.bf16.msra.mxu0 %v7943
        %8142 = vmatprep.subr.bf16.mxu0 0
        %8143 = vmatpush2.bf16.msra.mxu0 %v7942
        %8144 = vmatprep.subr.bf16.mxu0 0
        %8145 = vmatpush2.bf16.msra.mxu0 %v7941
        %8146 = vmatprep.subr.bf16.mxu0 0
        %8147 = vmatpush2.bf16.msra.mxu0 %v7940
        %8148 = vmatprep.subr.bf16.mxu0 0
        %8149 = vmatpush2.bf16.msra.mxu0 %v7939
        %8150 = vmatprep.subr.bf16.mxu0 0
        %8151 = vmatpush2.bf16.msra.mxu0 %v7938
        %8152 = vmatprep.subr.bf16.mxu0 0
        %8153 = vmatpush2.bf16.msra.mxu0 %v7937
        %8154 = vmatprep.mubr.bf16.mxu0 %v4460
        %8155 = vmatmul.mubr.bf16.gmra.mxu0 %v4257
        %v8156 = vpop.f32.mrf.mxu0
        %v8157 = vadd.f32 %v8092, %v8156
        %v8158 = vpop.f32.mrf.mxu0
        %v8159 = vpop.f32.mrf.mxu0
        %v8160 = vadd.f32 %v8095, %v8159
        %v8161 = vpop.f32.mrf.mxu0
        %8162 = vmatprep.mubr.bf16.mxu0 %v4464
        %8163 = vmatmul.mubr.bf16.gmra.mxu0 %v4261
        %v8164 = vpop.f32.mrf.mxu0
        %v8165 = vadd.f32 %v8100, %v8164
        %v8166 = vpop.f32.mrf.mxu0
        %v8167 = vpop.f32.mrf.mxu0
        %v8168 = vadd.f32 %v8103, %v8167
        %v8169 = vpop.f32.mrf.mxu0
        %8170 = vmatprep.mubr.bf16.mxu0 %v4468
        %8171 = vmatmul.mubr.bf16.gmra.mxu0 %v4265
        %v8172 = vpop.f32.mrf.mxu0
        %v8173 = vadd.f32 %v8108, %v8172
        %v8174 = vpop.f32.mrf.mxu0
        %v8175 = vpop.f32.mrf.mxu0
        %v8176 = vadd.f32 %v8111, %v8175
        %v8177 = vpop.f32.mrf.mxu0
        %8178 = vmatprep.mubr.bf16.mxu0 %v4472
        %8179 = vmatmul.mubr.bf16.gmra.mxu0 %v4269
        %v8180 = vpop.f32.mrf.mxu0
        %v8181 = vadd.f32 %v8116, %v8180
        %v8182 = vpop.f32.mrf.mxu0
        %v8183 = vpop.f32.mrf.mxu0
        %v8184 = vadd.f32 %v8119, %v8183
        %v8185 = vpop.f32.mrf.mxu0
        %8186 = vdwg.mxu0
        %8187 = vmatprep.subr.bf16.mxu0 0
        %8188 = vmatpush1.bf16.msra.mxu0 %v7952
        %8189 = vmatprep.subr.bf16.mxu0 0
        %8190 = vmatpush1.bf16.msra.mxu0 %v7951
        %8191 = vmatprep.subr.bf16.mxu0 0
        %8192 = vmatpush1.bf16.msra.mxu0 %v7950
        %8193 = vmatprep.subr.bf16.mxu0 0
        %8194 = vmatpush1.bf16.msra.mxu0 %v7949
        %8195 = vmatprep.subr.bf16.mxu0 0
        %8196 = vmatpush1.bf16.msra.mxu0 %v7948
        %8197 = vmatprep.subr.bf16.mxu0 0
        %8198 = vmatpush1.bf16.msra.mxu0 %v7947
        %8199 = vmatprep.subr.bf16.mxu0 0
        %8200 = vmatpush1.bf16.msra.mxu0 %v7946
        %8201 = vmatprep.subr.bf16.mxu0 0
        %8202 = vmatpush1.bf16.msra.mxu0 %v7945
        %8203 = vmatprep.subr.bf16.mxu0 0
        %8204 = vmatpush2.bf16.msra.mxu0 %v7960
        %8205 = vmatprep.subr.bf16.mxu0 0
        %8206 = vmatpush2.bf16.msra.mxu0 %v7959
        %8207 = vmatprep.subr.bf16.mxu0 0
        %8208 = vmatpush2.bf16.msra.mxu0 %v7958
        %8209 = vmatprep.subr.bf16.mxu0 0
        %8210 = vmatpush2.bf16.msra.mxu0 %v7957
        %8211 = vmatprep.subr.bf16.mxu0 0
        %8212 = vmatpush2.bf16.msra.mxu0 %v7956
        %8213 = vmatprep.subr.bf16.mxu0 0
        %8214 = vmatpush2.bf16.msra.mxu0 %v7955
        %8215 = vmatprep.subr.bf16.mxu0 0
        %8216 = vmatpush2.bf16.msra.mxu0 %v7954
        %8217 = vmatprep.subr.bf16.mxu0 0
        %8218 = vmatpush2.bf16.msra.mxu0 %v7953
        %8219 = vmatprep.mubr.bf16.mxu0 %v4866
        %8220 = vmatmul.mubr.bf16.gmra.mxu0 %v4663
        %v8221 = vpop.f32.mrf.mxu0
        %v8222 = vadd.f32 %v8157, %v8221
        %v8223 = vpop.f32.mrf.mxu0
        %v8224 = vpop.f32.mrf.mxu0
        %v8225 = vadd.f32 %v8160, %v8224
        %v8226 = vpop.f32.mrf.mxu0
        %8227 = vmatprep.mubr.bf16.mxu0 %v4870
        %8228 = vmatmul.mubr.bf16.gmra.mxu0 %v4667
        %v8229 = vpop.f32.mrf.mxu0
        %v8230 = vadd.f32 %v8165, %v8229
        %v8231 = vpop.f32.mrf.mxu0
        %v8232 = vpop.f32.mrf.mxu0
        %v8233 = vadd.f32 %v8168, %v8232
        %v8234 = vpop.f32.mrf.mxu0
        %8235 = vmatprep.mubr.bf16.mxu0 %v4874
        %8236 = vmatmul.mubr.bf16.gmra.mxu0 %v4671
        %v8237 = vpop.f32.mrf.mxu0
        %v8238 = vadd.f32 %v8173, %v8237
        %v8239 = vpop.f32.mrf.mxu0
        %v8240 = vpop.f32.mrf.mxu0
        %v8241 = vadd.f32 %v8176, %v8240
        %v8242 = vpop.f32.mrf.mxu0
        %8243 = vmatprep.mubr.bf16.mxu0 %v4878
        %8244 = vmatmul.mubr.bf16.gmra.mxu0 %v4675
        %v8245 = vpop.f32.mrf.mxu0
        %v8246 = vadd.f32 %v8181, %v8245
        %v8247 = vpop.f32.mrf.mxu0
        %v8248 = vpop.f32.mrf.mxu0
        %v8249 = vadd.f32 %v8184, %v8248
        %v8250 = vpop.f32.mrf.mxu0
        %8251 = vdwg.mxu0
        %8252 = vmatprep.subr.bf16.mxu0 0
        %8253 = vmatpush1.bf16.msra.mxu0 %v7968
        %8254 = vmatprep.subr.bf16.mxu0 0
        %8255 = vmatpush1.bf16.msra.mxu0 %v7967
        %8256 = vmatprep.subr.bf16.mxu0 0
        %8257 = vmatpush1.bf16.msra.mxu0 %v7966
        %8258 = vmatprep.subr.bf16.mxu0 0
        %8259 = vmatpush1.bf16.msra.mxu0 %v7965
        %8260 = vmatprep.subr.bf16.mxu0 0
        %8261 = vmatpush1.bf16.msra.mxu0 %v7964
        %8262 = vmatprep.subr.bf16.mxu0 0
        %8263 = vmatpush1.bf16.msra.mxu0 %v7963
        %8264 = vmatprep.subr.bf16.mxu0 0
        %8265 = vmatpush1.bf16.msra.mxu0 %v7962
        %8266 = vmatprep.subr.bf16.mxu0 0
        %8267 = vmatpush1.bf16.msra.mxu0 %v7961
        %8268 = vmatprep.subr.bf16.mxu0 0
        %8269 = vmatpush2.bf16.msra.mxu0 %v7976
        %8270 = vmatprep.subr.bf16.mxu0 0
        %8271 = vmatpush2.bf16.msra.mxu0 %v7975
        %8272 = vmatprep.subr.bf16.mxu0 0
        %8273 = vmatpush2.bf16.msra.mxu0 %v7974
        %8274 = vmatprep.subr.bf16.mxu0 0
        %8275 = vmatpush2.bf16.msra.mxu0 %v7973
        %8276 = vmatprep.subr.bf16.mxu0 0
        %8277 = vmatpush2.bf16.msra.mxu0 %v7972
        %8278 = vmatprep.subr.bf16.mxu0 0
        %8279 = vmatpush2.bf16.msra.mxu0 %v7971
        %8280 = vmatprep.subr.bf16.mxu0 0
        %8281 = vmatpush2.bf16.msra.mxu0 %v7970
        %8282 = vmatprep.subr.bf16.mxu0 0
        %8283 = vmatpush2.bf16.msra.mxu0 %v7969
        %8284 = vmatprep.mubr.bf16.mxu0 %v5272
        %8285 = vmatmul.mubr.bf16.gmra.mxu0 %v5069
        %v8286 = vpop.f32.mrf.mxu0
        %v8287 = vadd.f32 %v8222, %v8286
        %v8288 = vpop.f32.mrf.mxu0
        %v8289 = vpop.f32.mrf.mxu0
        %v8290 = vadd.f32 %v8225, %v8289
        %v8291 = vpop.f32.mrf.mxu0
        %8292 = vmatprep.mubr.bf16.mxu0 %v5276
        %8293 = vmatmul.mubr.bf16.gmra.mxu0 %v5073
        %v8294 = vpop.f32.mrf.mxu0
        %v8295 = vadd.f32 %v8230, %v8294
        %v8296 = vpop.f32.mrf.mxu0
        %v8297 = vpop.f32.mrf.mxu0
        %v8298 = vadd.f32 %v8233, %v8297
        %v8299 = vpop.f32.mrf.mxu0
        %8300 = vmatprep.mubr.bf16.mxu0 %v5280
        %8301 = vmatmul.mubr.bf16.gmra.mxu0 %v5077
        %v8302 = vpop.f32.mrf.mxu0
        %v8303 = vadd.f32 %v8238, %v8302
        %v8304 = vpop.f32.mrf.mxu0
        %v8305 = vpop.f32.mrf.mxu0
        %v8306 = vadd.f32 %v8241, %v8305
        %v8307 = vpop.f32.mrf.mxu0
        %8308 = vmatprep.mubr.bf16.mxu0 %v5284
        %8309 = vmatmul.mubr.bf16.gmra.mxu0 %v5081
        %v8310 = vpop.f32.mrf.mxu0
        %v8311 = vadd.f32 %v8246, %v8310
        %v8312 = vpop.f32.mrf.mxu0
        %v8313 = vpop.f32.mrf.mxu0
        %v8314 = vadd.f32 %v8249, %v8313
        %v8315 = vpop.f32.mrf.mxu0
        %8316 = vdwg.mxu0
        %8317 = vmatprep.subr.bf16.mxu0 0
        %8318 = vmatpush1.bf16.msra.mxu0 %v7984
        %8319 = vmatprep.subr.bf16.mxu0 0
        %8320 = vmatpush1.bf16.msra.mxu0 %v7983
        %8321 = vmatprep.subr.bf16.mxu0 0
        %8322 = vmatpush1.bf16.msra.mxu0 %v7982
        %8323 = vmatprep.subr.bf16.mxu0 0
        %8324 = vmatpush1.bf16.msra.mxu0 %v7981
        %8325 = vmatprep.subr.bf16.mxu0 0
        %8326 = vmatpush1.bf16.msra.mxu0 %v7980
        %8327 = vmatprep.subr.bf16.mxu0 0
        %8328 = vmatpush1.bf16.msra.mxu0 %v7979
        %8329 = vmatprep.subr.bf16.mxu0 0
        %8330 = vmatpush1.bf16.msra.mxu0 %v7978
        %8331 = vmatprep.subr.bf16.mxu0 0
        %8332 = vmatpush1.bf16.msra.mxu0 %v7977
        %8333 = vmatprep.subr.bf16.mxu0 0
        %8334 = vmatpush2.bf16.msra.mxu0 0
        %8335 = vmatprep.subr.bf16.mxu0 0
        %8336 = vmatpush2.bf16.msra.mxu0 0
        %8337 = vmatprep.subr.bf16.mxu0 0
        %8338 = vmatpush2.bf16.msra.mxu0 0
        %8339 = vmatprep.subr.bf16.mxu0 0
        %8340 = vmatpush2.bf16.msra.mxu0 0
        %8341 = vmatprep.subr.bf16.mxu0 0
        %8342 = vmatpush2.bf16.msra.mxu0 0
        %8343 = vmatprep.subr.bf16.mxu0 0
        %8344 = vmatpush2.bf16.msra.mxu0 0
        %8345 = vmatprep.subr.bf16.mxu0 0
        %8346 = vmatpush2.bf16.msra.mxu0 0
        %8347 = vmatprep.subr.bf16.mxu0 0
        %8348 = vmatpush2.bf16.msra.mxu0 0
        %8349 = vmatprep.mubr.bf16.mxu0 0
        %8350 = vmatmul.mubr.bf16.gmra.mxu0 %v5475
        %v8351 = vpop.f32.mrf.mxu0
        %v8352 = vadd.f32 %v8287, %v8351
        %v8353 = vpop.f32.mrf.mxu0
        %v8354 = vpop.f32.mrf.mxu0
        %v8355 = vadd.f32 %v8290, %v8354
        %v8356 = vpop.f32.mrf.mxu0
        %8357 = vmatprep.mubr.bf16.mxu0 0
        %8358 = vmatmul.mubr.bf16.gmra.mxu0 %v5479
        %v8359 = vpop.f32.mrf.mxu0
        %v8360 = vadd.f32 %v8295, %v8359
        %v8361 = vpop.f32.mrf.mxu0
        %v8362 = vpop.f32.mrf.mxu0
        %v8363 = vadd.f32 %v8298, %v8362
        %v8364 = vpop.f32.mrf.mxu0
        %8365 = vmatprep.mubr.bf16.mxu0 0
        %8366 = vmatmul.mubr.bf16.gmra.mxu0 %v5483
        %v8367 = vpop.f32.mrf.mxu0
        %v8368 = vadd.f32 %v8303, %v8367
        %v8369 = vpop.f32.mrf.mxu0
        %v8370 = vpop.f32.mrf.mxu0
        %v8371 = vadd.f32 %v8306, %v8370
        %v8372 = vpop.f32.mrf.mxu0
        %8373 = vmatprep.mubr.bf16.mxu0 0
        %8374 = vmatmul.mubr.bf16.gmra.mxu0 %v5487
        %v8375 = vpop.f32.mrf.mxu0
        %v8376 = vadd.f32 %v8311, %v8375
        %v8377 = vpop.f32.mrf.mxu0
        %v8378 = vpop.f32.mrf.mxu0
        %v8379 = vadd.f32 %v8314, %v8378
        %v8380 = vpop.f32.mrf.mxu0
        %8381 = vdwg.mxu0
        %v8382 = vadd.f32 %v8352, %v8355
        %v8383 = vadd.f32 %v8382, %v8360
        %v8384 = vadd.f32 %v8383, %v8363
        %v8385 = vadd.f32 %v8384, %v8368
        %v8386 = vadd.f32 %v8385, %v8371
        %v8387 = vadd.f32 %v8386, %v8376
        %v8388 = vadd.f32 %v8387, %v8379
        %v8389 = vrot.slane %v8388, 4
        %v8390 = vadd.f32 %v8388, %v8389
        %v8391 = vrot.slane %v8390, 2
        %v8392 = vadd.f32 %v8390, %v8391
        %v8393 = vrot.slane %v8392, 1
        %v8394 = vadd.f32 %v8392, %v8393
        %v8395 = vmul.f32 %v8394, 0.015625
        %v8396 = vmul.f32 %v8352, %v8352
        %v8397 = vmul.f32 %v8355, %v8355
        %v8398 = vmul.f32 %v8360, %v8360
        %v8399 = vmul.f32 %v8363, %v8363
        %v8400 = vmul.f32 %v8368, %v8368
        %v8401 = vmul.f32 %v8371, %v8371
        %v8402 = vmul.f32 %v8376, %v8376
        %v8403 = vmul.f32 %v8379, %v8379
        %v8404 = vadd.f32 %v8396, %v8397
        %v8405 = vadd.f32 %v8404, %v8398
        %v8406 = vadd.f32 %v8405, %v8399
        %v8407 = vadd.f32 %v8406, %v8400
        %v8408 = vadd.f32 %v8407, %v8401
        %v8409 = vadd.f32 %v8408, %v8402
        %v8410 = vadd.f32 %v8409, %v8403
        %v8411 = vrot.slane %v8410, 4
        %v8412 = vadd.f32 %v8410, %v8411
        %v8413 = vrot.slane %v8412, 2
        %v8414 = vadd.f32 %v8412, %v8413
        %v8415 = vrot.slane %v8414, 1
        %v8416 = vadd.f32 %v8414, %v8415
        %v8417 = vmul.f32 %v8416, 0.015625
        %v8418 = vmul.f32 %v8395, %v8395
        %v8419 = vsub.f32 %v8417, %v8418
        %v8420 = vsub.f32 %v8352, %v8395
        %v8421 = vsub.f32 %v8355, %v8395
        %v8422 = vsub.f32 %v8360, %v8395
        %v8423 = vsub.f32 %v8363, %v8395
        %v8424 = vsub.f32 %v8368, %v8395
        %v8425 = vsub.f32 %v8371, %v8395
        %v8426 = vsub.f32 %v8376, %v8395
        %v8427 = vsub.f32 %v8379, %v8395
        %v8428 = vadd.f32 %v8419, 1e-05
        %v8429 = vrsqrt.pop %v8428
        %v8430 = vmul.f32 %v8420, %v8429
        %v8431 = vmul.f32 %v8421, %v8429
        %v8432 = vmul.f32 %v8422, %v8429
        %v8433 = vmul.f32 %v8423, %v8429
        %v8434 = vmul.f32 %v8424, %v8429
        %v8435 = vmul.f32 %v8425, %v8429
        %v8436 = vmul.f32 %v8426, %v8429
        %v8437 = vmul.f32 %v8427, %v8429
        %v8438 = vld [vmem:[%s929 + $0x2] sm:$0x1]
        %v8440 = vlaneseq
        %v8441 = vshrl.u32 %v8440, 7
        %v8442 = vsub.s32 0, %v8441
        %v8443 = vrot.slane %v8438, %v8442
        %v8445 = vmul.f32 %v8430, %v8443
        %v8446 = vmul.f32 %v8431, %v8443
        %v8447 = vmul.f32 %v8432, %v8443
        %v8448 = vmul.f32 %v8433, %v8443
        %v8449 = vmul.f32 %v8434, %v8443
        %v8450 = vmul.f32 %v8435, %v8443
        %v8451 = vmul.f32 %v8436, %v8443
        %v8452 = vmul.f32 %v8437, %v8443
        %v8453 = vld [vmem:[%s934 + $0x2] sm:$0x1]
        %v8455 = vlaneseq
        %v8456 = vshrl.u32 %v8455, 7
        %v8457 = vsub.s32 0, %v8456
        %v8458 = vrot.slane %v8453, %v8457
        %v8460 = vadd.f32 %v8445, %v8458
        %v8461 = vadd.f32 %v8446, %v8458
        %v8462 = vadd.f32 %v8447, %v8458
        %v8463 = vadd.f32 %v8448, %v8458
        %v8464 = vadd.f32 %v8449, %v8458
        %v8465 = vadd.f32 %v8450, %v8458
        %v8466 = vadd.f32 %v8451, %v8458
        %v8467 = vadd.f32 %v8452, %v8458
        %8468 = vst [vmem:[%s907 + $0x10] sm:$0xff] %v8460
        %8469 = vst [vmem:[%s907 + $0x30] sm:$0xff] %v8461
        %8470 = vst [vmem:[%s907 + $0x50] sm:$0xff] %v8462
        %8471 = vst [vmem:[%s907 + $0x70] sm:$0xff] %v8463
        %8472 = vst [vmem:[%s907 + $0x90] sm:$0xff] %v8464
        %8473 = vst [vmem:[%s907 + $0xb0] sm:$0xff] %v8465
        %8474 = vst [vmem:[%s907 + $0xd0] sm:$0xff] %v8466
        %8475 = vst [vmem:[%s907 + $0xf0] sm:$0xff] %v8467
        %s8476 = scalar_lea.vmem %s924, 1728
        %v8477 = vld [vmem:[%s8476] sm:$0xf]
        %v8478 = vld [vmem:[%s8476 + $0x4] sm:$0xf]
        %v8479 = vld [vmem:[%s8476 + $0x8] sm:$0xf]
        %v8480 = vld [vmem:[%s8476 + $0xc] sm:$0xf]
        %v8481 = vld [vmem:[%s8476 + $0x10] sm:$0xf]
        %v8482 = vld [vmem:[%s8476 + $0x14] sm:$0xf]
        %v8483 = vld [vmem:[%s8476 + $0x18] sm:$0xf]
        %v8484 = vld [vmem:[%s8476 + $0x1c] sm:$0xf]
        %v8485 = vld [vmem:[%s8476 + $0x20] sm:$0xf]
        %v8486 = vld [vmem:[%s8476 + $0x24] sm:$0xf]
        %v8487 = vld [vmem:[%s8476 + $0x28] sm:$0xf]
        %v8488 = vld [vmem:[%s8476 + $0x2c] sm:$0xf]
        %v8489 = vld [vmem:[%s8476 + $0x30] sm:$0xf]
        %v8490 = vld [vmem:[%s8476 + $0x34] sm:$0xf]
        %v8491 = vld [vmem:[%s8476 + $0x38] sm:$0xf]
        %v8492 = vld [vmem:[%s8476 + $0x3c] sm:$0xf]
        %v8493 = vld [vmem:[%s8476 + $0x40] sm:$0xf]
        %v8494 = vld [vmem:[%s8476 + $0x44] sm:$0xf]
        %v8495 = vld [vmem:[%s8476 + $0x48] sm:$0xf]
        %v8496 = vld [vmem:[%s8476 + $0x4c] sm:$0xf]
        %v8497 = vld [vmem:[%s8476 + $0x50] sm:$0xf]
        %v8498 = vld [vmem:[%s8476 + $0x54] sm:$0xf]
        %v8499 = vld [vmem:[%s8476 + $0x58] sm:$0xf]
        %v8500 = vld [vmem:[%s8476 + $0x5c] sm:$0xf]
        %v8501 = vld [vmem:[%s8476 + $0x60] sm:$0xf]
        %v8502 = vld [vmem:[%s8476 + $0x64] sm:$0xf]
        %v8503 = vld [vmem:[%s8476 + $0x68] sm:$0xf]
        %v8504 = vld [vmem:[%s8476 + $0x6c] sm:$0xf]
        %v8505 = vld [vmem:[%s8476 + $0x70] sm:$0xf]
        %v8506 = vld [vmem:[%s8476 + $0x74] sm:$0xf]
        %v8507 = vld [vmem:[%s8476 + $0x78] sm:$0xf]
        %v8508 = vld [vmem:[%s8476 + $0x7c] sm:$0xf]
        %v8509 = vld [vmem:[%s8476 + $0x80] sm:$0xf]
        %v8510 = vld [vmem:[%s8476 + $0x84] sm:$0xf]
        %v8511 = vld [vmem:[%s8476 + $0x88] sm:$0xf]
        %v8512 = vld [vmem:[%s8476 + $0x8c] sm:$0xf]
        %v8513 = vld [vmem:[%s8476 + $0x90] sm:$0xf]
        %v8514 = vld [vmem:[%s8476 + $0x94] sm:$0xf]
        %v8515 = vld [vmem:[%s8476 + $0x98] sm:$0xf]
        %v8516 = vld [vmem:[%s8476 + $0x9c] sm:$0xf]
        %v8517 = vld [vmem:[%s8476 + $0xa0] sm:$0xf]
        %v8518 = vld [vmem:[%s8476 + $0xa4] sm:$0xf]
        %v8519 = vld [vmem:[%s8476 + $0xa8] sm:$0xf]
        %v8520 = vld [vmem:[%s8476 + $0xac] sm:$0xf]
        %v8521 = vld [vmem:[%s8476 + $0xb0] sm:$0xf]
        %v8522 = vld [vmem:[%s8476 + $0xb4] sm:$0xf]
        %v8523 = vld [vmem:[%s8476 + $0xb8] sm:$0xf]
        %v8524 = vld [vmem:[%s8476 + $0xbc] sm:$0xf]
        %v8525 = vld [vmem:[%s8476 + $0xc0] sm:$0xf]
        %v8526 = vld [vmem:[%s8476 + $0xc4] sm:$0xf]
        %v8527 = vld [vmem:[%s8476 + $0xc8] sm:$0xf]
        %v8528 = vld [vmem:[%s8476 + $0xcc] sm:$0xf]
        %v8529 = vld [vmem:[%s8476 + $0xd0] sm:$0xf]
        %v8530 = vld [vmem:[%s8476 + $0xd4] sm:$0xf]
        %v8531 = vld [vmem:[%s8476 + $0xd8] sm:$0xf]
        %v8532 = vld [vmem:[%s8476 + $0xdc] sm:$0xf]
        %v8533 = vld [vmem:[%s8476 + $0xe0] sm:$0xf]
        %v8534 = vld [vmem:[%s8476 + $0xe4] sm:$0xf]
        %v8535 = vld [vmem:[%s8476 + $0xe8] sm:$0xf]
        %v8536 = vld [vmem:[%s8476 + $0xec] sm:$0xf]
        %v8537 = vld [vmem:[%s8476 + $0xf0] sm:$0xf]
        %v8538 = vld [vmem:[%s8476 + $0xf4] sm:$0xf]
        %v8539 = vld [vmem:[%s8476 + $0xf8] sm:$0xf]
        %v8540 = vld [vmem:[%s8476 + $0xfc] sm:$0xf]
        %v8541 = vld [vmem:[%s8476 + $0x100] sm:$0xf]
        %v8542 = vld [vmem:[%s8476 + $0x104] sm:$0xf]
        %v8543 = vld [vmem:[%s8476 + $0x108] sm:$0xf]
        %v8544 = vld [vmem:[%s8476 + $0x10c] sm:$0xf]
        %v8545 = vld [vmem:[%s8476 + $0x110] sm:$0xf]
        %v8546 = vld [vmem:[%s8476 + $0x114] sm:$0xf]
        %v8547 = vld [vmem:[%s8476 + $0x118] sm:$0xf]
        %v8548 = vld [vmem:[%s8476 + $0x11c] sm:$0xf]
        %v8549 = vld [vmem:[%s8476 + $0x120] sm:$0xf]
        %v8550 = vld [vmem:[%s8476 + $0x124] sm:$0xf]
        %v8551 = vld [vmem:[%s8476 + $0x128] sm:$0xf]
        %v8552 = vld [vmem:[%s8476 + $0x12c] sm:$0xf]
        %v8553 = vld [vmem:[%s8476 + $0x130] sm:$0xf]
        %v8554 = vld [vmem:[%s8476 + $0x134] sm:$0xf]
        %v8555 = vld [vmem:[%s8476 + $0x138] sm:$0xf]
        %v8556 = vld [vmem:[%s8476 + $0x13c] sm:$0xf]
        %v8557 = vld [vmem:[%s8476 + $0x140] sm:$0xf]
        %v8558 = vld [vmem:[%s8476 + $0x144] sm:$0xf]
        %v8559 = vld [vmem:[%s8476 + $0x148] sm:$0xf]
        %v8560 = vld [vmem:[%s8476 + $0x14c] sm:$0xf]
        %v8561 = vld [vmem:[%s8476 + $0x150] sm:$0xf]
        %v8562 = vld [vmem:[%s8476 + $0x154] sm:$0xf]
        %v8563 = vld [vmem:[%s8476 + $0x158] sm:$0xf]
        %v8564 = vld [vmem:[%s8476 + $0x15c] sm:$0xf]
        %v8565 = vld [vmem:[%s8476 + $0x160] sm:$0xf]
        %v8566 = vld [vmem:[%s8476 + $0x164] sm:$0xf]
        %v8567 = vld [vmem:[%s8476 + $0x168] sm:$0xf]
        %v8568 = vld [vmem:[%s8476 + $0x16c] sm:$0xf]
        %v8569 = vld [vmem:[%s8476 + $0x170] sm:$0xf]
        %v8570 = vld [vmem:[%s8476 + $0x174] sm:$0xf]
        %v8571 = vld [vmem:[%s8476 + $0x178] sm:$0xf]
        %v8572 = vld [vmem:[%s8476 + $0x17c] sm:$0xf]
        %v8573 = vld [vmem:[%s8476 + $0x180] sm:$0xf]
        %v8574 = vld [vmem:[%s8476 + $0x184] sm:$0xf]
        %v8575 = vld [vmem:[%s8476 + $0x188] sm:$0xf]
        %v8576 = vld [vmem:[%s8476 + $0x18c] sm:$0xf]
        %v8577 = vld [vmem:[%s8476 + $0x190] sm:$0xf]
        %v8578 = vld [vmem:[%s8476 + $0x194] sm:$0xf]
        %v8579 = vld [vmem:[%s8476 + $0x198] sm:$0xf]
        %v8580 = vld [vmem:[%s8476 + $0x19c] sm:$0xf]
        %v8581 = vld [vmem:[%s8476 + $0x1a0] sm:$0xf]
        %v8582 = vld [vmem:[%s8476 + $0x1a4] sm:$0xf]
        %v8583 = vld [vmem:[%s8476 + $0x1a8] sm:$0xf]
        %v8584 = vld [vmem:[%s8476 + $0x1ac] sm:$0xf]
        %v8585 = vld [vmem:[%s8476 + $0x1b0] sm:$0xf]
        %v8586 = vld [vmem:[%s8476 + $0x1b4] sm:$0xf]
        %v8587 = vld [vmem:[%s8476 + $0x1b8] sm:$0xf]
        %v8588 = vld [vmem:[%s8476 + $0x1bc] sm:$0xf]
        %v8589 = vld [vmem:[%s8476 + $0x1c0] sm:$0xf]
        %v8590 = vld [vmem:[%s8476 + $0x1c4] sm:$0xf]
        %v8591 = vld [vmem:[%s8476 + $0x1c8] sm:$0xf]
        %v8592 = vld [vmem:[%s8476 + $0x1cc] sm:$0xf]
        %v8593 = vld [vmem:[%s8476 + $0x1d0] sm:$0xf]
        %v8594 = vld [vmem:[%s8476 + $0x1d4] sm:$0xf]
        %v8595 = vld [vmem:[%s8476 + $0x1d8] sm:$0xf]
        %v8596 = vld [vmem:[%s8476 + $0x1dc] sm:$0xf]
        %v8597 = vld [vmem:[%s8476 + $0x1e0] sm:$0xf]
        %v8598 = vld [vmem:[%s8476 + $0x1e4] sm:$0xf]
        %v8599 = vld [vmem:[%s8476 + $0x1e8] sm:$0xf]
        %v8600 = vld [vmem:[%s8476 + $0x1ec] sm:$0xf]
        %v8601 = vld [vmem:[%s8476 + $0x1f0] sm:$0xf]
        %v8602 = vld [vmem:[%s8476 + $0x1f4] sm:$0xf]
        %v8603 = vld [vmem:[%s8476 + $0x1f8] sm:$0xf]
        %v8604 = vld [vmem:[%s8476 + $0x1fc] sm:$0xf]
        %v8605 = vld [vmem:[%s8476 + $0x200] sm:$0xf]
        %v8606 = vld [vmem:[%s8476 + $0x204] sm:$0xf]
        %v8607 = vld [vmem:[%s8476 + $0x208] sm:$0xf]
        %v8608 = vld [vmem:[%s8476 + $0x20c] sm:$0xf]
        %v8609 = vld [vmem:[%s8476 + $0x210] sm:$0xf]
        %v8610 = vld [vmem:[%s8476 + $0x214] sm:$0xf]
        %v8611 = vld [vmem:[%s8476 + $0x218] sm:$0xf]
        %v8612 = vld [vmem:[%s8476 + $0x21c] sm:$0xf]
        %v8613 = vld [vmem:[%s8476 + $0x220] sm:$0xf]
        %v8614 = vld [vmem:[%s8476 + $0x224] sm:$0xf]
        %v8615 = vld [vmem:[%s8476 + $0x228] sm:$0xf]
        %v8616 = vld [vmem:[%s8476 + $0x22c] sm:$0xf]
        %v8617 = vld [vmem:[%s8476 + $0x230] sm:$0xf]
        %v8618 = vld [vmem:[%s8476 + $0x234] sm:$0xf]
        %v8619 = vld [vmem:[%s8476 + $0x238] sm:$0xf]
        %v8620 = vld [vmem:[%s8476 + $0x23c] sm:$0xf]
        %v8765 = vunpack.c.l.b16 %v8477
        %v8766 = vunpack.c.l.b16 %v8478
        %v8767 = vunpack.c.l.b16 %v8479
        %v8768 = vunpack.c.l.b16 %v8480
        %v8769 = vunpack.c.l.b16 %v8481
        %v8770 = vunpack.c.l.b16 %v8482
        %v8771 = vunpack.c.l.b16 %v8483
        %v8772 = vunpack.c.l.b16 %v8484
        %v8773 = vunpack.c.l.b16 %v8485
        %v8774 = vunpack.c.l.b16 %v8486
        %v8775 = vunpack.c.l.b16 %v8487
        %v8776 = vunpack.c.l.b16 %v8488
        %v8777 = vunpack.c.l.b16 %v8489
        %v8778 = vunpack.c.l.b16 %v8490
        %v8779 = vunpack.c.l.b16 %v8491
        %v8780 = vunpack.c.l.b16 %v8492
        %v8781 = vunpack.c.l.b16 %v8493
        %v8782 = vunpack.c.l.b16 %v8494
        %v8783 = vunpack.c.l.b16 %v8495
        %v8784 = vunpack.c.l.b16 %v8496
        %v8785 = vunpack.c.l.b16 %v8497
        %v8786 = vunpack.c.l.b16 %v8498
        %v8787 = vunpack.c.l.b16 %v8499
        %v8788 = vunpack.c.l.b16 %v8500
        %v8789 = vunpack.c.l.b16 %v8501
        %v8790 = vunpack.c.l.b16 %v8502
        %v8791 = vunpack.c.l.b16 %v8503
        %v8792 = vunpack.c.l.b16 %v8504
        %v8793 = vunpack.c.l.b16 %v8505
        %v8794 = vunpack.c.l.b16 %v8506
        %v8795 = vunpack.c.l.b16 %v8507
        %v8796 = vunpack.c.l.b16 %v8508
        %v8797 = vunpack.c.l.b16 %v8509
        %v8798 = vunpack.c.l.b16 %v8510
        %v8799 = vunpack.c.l.b16 %v8511
        %v8800 = vunpack.c.l.b16 %v8512
        %v8801 = vunpack.c.l.b16 %v8513
        %v8802 = vunpack.c.l.b16 %v8514
        %v8803 = vunpack.c.l.b16 %v8515
        %v8804 = vunpack.c.l.b16 %v8516
        %v8805 = vunpack.c.l.b16 %v8517
        %v8806 = vunpack.c.l.b16 %v8518
        %v8807 = vunpack.c.l.b16 %v8519
        %v8808 = vunpack.c.l.b16 %v8520
        %v8809 = vunpack.c.l.b16 %v8521
        %v8810 = vunpack.c.l.b16 %v8522
        %v8811 = vunpack.c.l.b16 %v8523
        %v8812 = vunpack.c.l.b16 %v8524
        %v8813 = vunpack.c.l.b16 %v8525
        %v8814 = vunpack.c.l.b16 %v8526
        %v8815 = vunpack.c.l.b16 %v8527
        %v8816 = vunpack.c.l.b16 %v8528
        %v8817 = vunpack.c.l.b16 %v8529
        %v8818 = vunpack.c.l.b16 %v8530
        %v8819 = vunpack.c.l.b16 %v8531
        %v8820 = vunpack.c.l.b16 %v8532
        %v8821 = vunpack.c.l.b16 %v8533
        %v8822 = vunpack.c.l.b16 %v8534
        %v8823 = vunpack.c.l.b16 %v8535
        %v8824 = vunpack.c.l.b16 %v8536
        %v8825 = vunpack.c.l.b16 %v8537
        %v8826 = vunpack.c.l.b16 %v8538
        %v8827 = vunpack.c.l.b16 %v8539
        %v8828 = vunpack.c.l.b16 %v8540
        %v8829 = vunpack.c.l.b16 %v8541
        %v8830 = vunpack.c.l.b16 %v8542
        %v8831 = vunpack.c.l.b16 %v8543
        %v8832 = vunpack.c.l.b16 %v8544
        %v8833 = vunpack.c.l.b16 %v8545
        %v8834 = vunpack.c.l.b16 %v8546
        %v8835 = vunpack.c.l.b16 %v8547
        %v8836 = vunpack.c.l.b16 %v8548
        %v8837 = vunpack.c.l.b16 %v8549
        %v8838 = vunpack.c.l.b16 %v8550
        %v8839 = vunpack.c.l.b16 %v8551
        %v8840 = vunpack.c.l.b16 %v8552
        %v8841 = vunpack.c.l.b16 %v8553
        %v8842 = vunpack.c.l.b16 %v8554
        %v8843 = vunpack.c.l.b16 %v8555
        %v8844 = vunpack.c.l.b16 %v8556
        %v8845 = vunpack.c.l.b16 %v8557
        %v8846 = vunpack.c.l.b16 %v8558
        %v8847 = vunpack.c.l.b16 %v8559
        %v8848 = vunpack.c.l.b16 %v8560
        %v8849 = vunpack.c.l.b16 %v8561
        %v8850 = vunpack.c.l.b16 %v8562
        %v8851 = vunpack.c.l.b16 %v8563
        %v8852 = vunpack.c.l.b16 %v8564
        %v8853 = vunpack.c.l.b16 %v8565
        %v8854 = vunpack.c.l.b16 %v8566
        %v8855 = vunpack.c.l.b16 %v8567
        %v8856 = vunpack.c.l.b16 %v8568
        %v8857 = vunpack.c.l.b16 %v8569
        %v8858 = vunpack.c.l.b16 %v8570
        %v8859 = vunpack.c.l.b16 %v8571
        %v8860 = vunpack.c.l.b16 %v8572
        %v8861 = vunpack.c.l.b16 %v8573
        %v8862 = vunpack.c.l.b16 %v8574
        %v8863 = vunpack.c.l.b16 %v8575
        %v8864 = vunpack.c.l.b16 %v8576
        %v8865 = vunpack.c.l.b16 %v8577
        %v8866 = vunpack.c.l.b16 %v8578
        %v8867 = vunpack.c.l.b16 %v8579
        %v8868 = vunpack.c.l.b16 %v8580
        %v8869 = vunpack.c.l.b16 %v8581
        %v8870 = vunpack.c.l.b16 %v8582
        %v8871 = vunpack.c.l.b16 %v8583
        %v8872 = vunpack.c.l.b16 %v8584
        %v8873 = vunpack.c.l.b16 %v8585
        %v8874 = vunpack.c.l.b16 %v8586
        %v8875 = vunpack.c.l.b16 %v8587
        %v8876 = vunpack.c.l.b16 %v8588
        %v8877 = vunpack.c.l.b16 %v8589
        %v8878 = vunpack.c.l.b16 %v8590
        %v8879 = vunpack.c.l.b16 %v8591
        %v8880 = vunpack.c.l.b16 %v8592
        %v8881 = vunpack.c.l.b16 %v8593
        %v8882 = vunpack.c.l.b16 %v8594
        %v8883 = vunpack.c.l.b16 %v8595
        %v8884 = vunpack.c.l.b16 %v8596
        %v8885 = vunpack.c.l.b16 %v8597
        %v8886 = vunpack.c.l.b16 %v8598
        %v8887 = vunpack.c.l.b16 %v8599
        %v8888 = vunpack.c.l.b16 %v8600
        %v8889 = vunpack.c.l.b16 %v8601
        %v8890 = vunpack.c.l.b16 %v8602
        %v8891 = vunpack.c.l.b16 %v8603
        %v8892 = vunpack.c.l.b16 %v8604
        %v8893 = vunpack.c.l.b16 %v8605
        %v8894 = vunpack.c.l.b16 %v8606
        %v8895 = vunpack.c.l.b16 %v8607
        %v8896 = vunpack.c.l.b16 %v8608
        %v8897 = vunpack.c.l.b16 %v8609
        %v8898 = vunpack.c.l.b16 %v8610
        %v8899 = vunpack.c.l.b16 %v8611
        %v8900 = vunpack.c.l.b16 %v8612
        %v8901 = vunpack.c.l.b16 %v8613
        %v8902 = vunpack.c.l.b16 %v8614
        %v8903 = vunpack.c.l.b16 %v8615
        %v8904 = vunpack.c.l.b16 %v8616
        %v8905 = vunpack.c.l.b16 %v8617
        %v8906 = vunpack.c.l.b16 %v8618
        %v8907 = vunpack.c.l.b16 %v8619
        %v8908 = vunpack.c.l.b16 %v8620
        %v8909 = vpack.c.b16 %v8766, %v8765
        %v8910 = vpack.c.b16 %v8768, %v8767
        %v8911 = vpack.c.b16 %v8770, %v8769
        %v8912 = vpack.c.b16 %v8772, %v8771
        %v8913 = vpack.c.b16 %v8774, %v8773
        %v8914 = vpack.c.b16 %v8776, %v8775
        %v8915 = vpack.c.b16 %v8778, %v8777
        %v8916 = vpack.c.b16 %v8780, %v8779
        %v8917 = vpack.c.b16 %v8782, %v8781
        %v8918 = vpack.c.b16 %v8784, %v8783
        %v8919 = vpack.c.b16 %v8786, %v8785
        %v8920 = vpack.c.b16 %v8788, %v8787
        %v8921 = vpack.c.b16 %v8790, %v8789
        %v8922 = vpack.c.b16 %v8792, %v8791
        %v8923 = vpack.c.b16 %v8794, %v8793
        %v8924 = vpack.c.b16 %v8796, %v8795
        %v8925 = vpack.c.b16 %v8798, %v8797
        %v8926 = vpack.c.b16 %v8800, %v8799
        %v8927 = vpack.c.b16 %v8802, %v8801
        %v8928 = vpack.c.b16 %v8804, %v8803
        %v8929 = vpack.c.b16 %v8806, %v8805
        %v8930 = vpack.c.b16 %v8808, %v8807
        %v8931 = vpack.c.b16 %v8810, %v8809
        %v8932 = vpack.c.b16 %v8812, %v8811
        %v8933 = vpack.c.b16 %v8814, %v8813
        %v8934 = vpack.c.b16 %v8816, %v8815
        %v8935 = vpack.c.b16 %v8818, %v8817
        %v8936 = vpack.c.b16 %v8820, %v8819
        %v8937 = vpack.c.b16 %v8822, %v8821
        %v8938 = vpack.c.b16 %v8824, %v8823
        %v8939 = vpack.c.b16 %v8826, %v8825
        %v8940 = vpack.c.b16 %v8828, %v8827
        %v8941 = vpack.c.b16 %v8830, %v8829
        %v8942 = vpack.c.b16 %v8832, %v8831
        %v8943 = vpack.c.b16 %v8834, %v8833
        %v8944 = vpack.c.b16 %v8836, %v8835
        %v8945 = vpack.c.b16 %v8838, %v8837
        %v8946 = vpack.c.b16 %v8840, %v8839
        %v8947 = vpack.c.b16 %v8842, %v8841
        %v8948 = vpack.c.b16 %v8844, %v8843
        %v8949 = vpack.c.b16 %v8846, %v8845
        %v8950 = vpack.c.b16 %v8848, %v8847
        %v8951 = vpack.c.b16 %v8850, %v8849
        %v8952 = vpack.c.b16 %v8852, %v8851
        %v8953 = vpack.c.b16 %v8854, %v8853
        %v8954 = vpack.c.b16 %v8856, %v8855
        %v8955 = vpack.c.b16 %v8858, %v8857
        %v8956 = vpack.c.b16 %v8860, %v8859
        %v8957 = vpack.c.b16 %v8862, %v8861
        %v8958 = vpack.c.b16 %v8864, %v8863
        %v8959 = vpack.c.b16 %v8866, %v8865
        %v8960 = vpack.c.b16 %v8868, %v8867
        %v8961 = vpack.c.b16 %v8870, %v8869
        %v8962 = vpack.c.b16 %v8872, %v8871
        %v8963 = vpack.c.b16 %v8874, %v8873
        %v8964 = vpack.c.b16 %v8876, %v8875
        %v8965 = vpack.c.b16 %v8878, %v8877
        %v8966 = vpack.c.b16 %v8880, %v8879
        %v8967 = vpack.c.b16 %v8882, %v8881
        %v8968 = vpack.c.b16 %v8884, %v8883
        %v8969 = vpack.c.b16 %v8886, %v8885
        %v8970 = vpack.c.b16 %v8888, %v8887
        %v8971 = vpack.c.b16 %v8890, %v8889
        %v8972 = vpack.c.b16 %v8892, %v8891
        %v8973 = vpack.c.b16 %v8894, %v8893
        %v8974 = vpack.c.b16 %v8896, %v8895
        %v8975 = vpack.c.b16 %v8898, %v8897
        %v8976 = vpack.c.b16 %v8900, %v8899
        %v8977 = vpack.c.b16 %v8902, %v8901
        %v8978 = vpack.c.b16 %v8904, %v8903
        %v8979 = vpack.c.b16 %v8906, %v8905
        %v8980 = vpack.c.b16 %v8908, %v8907
        %9053 = vmatprep.subr.bf16.mxu0 0
        %9054 = vmatpush1.bf16.msra.mxu0 %v8916
        %9055 = vmatprep.subr.bf16.mxu0 0
        %9056 = vmatpush1.bf16.msra.mxu0 %v8915
        %9057 = vmatprep.subr.bf16.mxu0 0
        %9058 = vmatpush1.bf16.msra.mxu0 %v8914
        %9059 = vmatprep.subr.bf16.mxu0 0
        %9060 = vmatpush1.bf16.msra.mxu0 %v8913
        %9061 = vmatprep.subr.bf16.mxu0 0
        %9062 = vmatpush1.bf16.msra.mxu0 %v8912
        %9063 = vmatprep.subr.bf16.mxu0 0
        %9064 = vmatpush1.bf16.msra.mxu0 %v8911
        %9065 = vmatprep.subr.bf16.mxu0 0
        %9066 = vmatpush1.bf16.msra.mxu0 %v8910
        %9067 = vmatprep.subr.bf16.mxu0 0
        %9068 = vmatpush1.bf16.msra.mxu0 %v8909
        %9069 = vmatprep.subr.bf16.mxu0 0
        %9070 = vmatpush2.bf16.msra.mxu0 %v8924
        %9071 = vmatprep.subr.bf16.mxu0 0
        %9072 = vmatpush2.bf16.msra.mxu0 %v8923
        %9073 = vmatprep.subr.bf16.mxu0 0
        %9074 = vmatpush2.bf16.msra.mxu0 %v8922
        %9075 = vmatprep.subr.bf16.mxu0 0
        %9076 = vmatpush2.bf16.msra.mxu0 %v8921
        %9077 = vmatprep.subr.bf16.mxu0 0
        %9078 = vmatpush2.bf16.msra.mxu0 %v8920
        %9079 = vmatprep.subr.bf16.mxu0 0
        %9080 = vmatpush2.bf16.msra.mxu0 %v8919
        %9081 = vmatprep.subr.bf16.mxu0 0
        %9082 = vmatpush2.bf16.msra.mxu0 %v8918
        %9083 = vmatprep.subr.bf16.mxu0 0
        %9084 = vmatpush2.bf16.msra.mxu0 %v8917
        %9085 = vmatprep.mubr.bf16.mxu0 %v4055
        %9086 = vmatmul.mubr.bf16.gmra.mxu0 %v3852
        %v9087 = vpop.f32.mrf.mxu0
        %v9088 = vadd.f32 0.0, %v9087
        %v9089 = vpop.f32.mrf.mxu0
        %v9090 = vpop.f32.mrf.mxu0
        %v9091 = vadd.f32 0.0, %v9090
        %v9092 = vpop.f32.mrf.mxu0
        %9093 = vmatprep.mubr.bf16.mxu0 %v4059
        %9094 = vmatmul.mubr.bf16.gmra.mxu0 %v3856
        %v9095 = vpop.f32.mrf.mxu0
        %v9096 = vadd.f32 0.0, %v9095
        %v9097 = vpop.f32.mrf.mxu0
        %v9098 = vpop.f32.mrf.mxu0
        %v9099 = vadd.f32 0.0, %v9098
        %v9100 = vpop.f32.mrf.mxu0
        %9101 = vmatprep.mubr.bf16.mxu0 %v4063
        %9102 = vmatmul.mubr.bf16.gmra.mxu0 %v3860
        %v9103 = vpop.f32.mrf.mxu0
        %v9104 = vadd.f32 0.0, %v9103
        %v9105 = vpop.f32.mrf.mxu0
        %v9106 = vpop.f32.mrf.mxu0
        %v9107 = vadd.f32 0.0, %v9106
        %v9108 = vpop.f32.mrf.mxu0
        %9109 = vmatprep.mubr.bf16.mxu0 %v4067
        %9110 = vmatmul.mubr.bf16.gmra.mxu0 %v3864
        %v9111 = vpop.f32.mrf.mxu0
        %v9112 = vadd.f32 0.0, %v9111
        %v9113 = vpop.f32.mrf.mxu0
        %v9114 = vpop.f32.mrf.mxu0
        %v9115 = vadd.f32 0.0, %v9114
        %v9116 = vpop.f32.mrf.mxu0
        %9117 = vdwg.mxu0
        %9118 = vmatprep.subr.bf16.mxu0 0
        %9119 = vmatpush1.bf16.msra.mxu0 %v8932
        %9120 = vmatprep.subr.bf16.mxu0 0
        %9121 = vmatpush1.bf16.msra.mxu0 %v8931
        %9122 = vmatprep.subr.bf16.mxu0 0
        %9123 = vmatpush1.bf16.msra.mxu0 %v8930
        %9124 = vmatprep.subr.bf16.mxu0 0
        %9125 = vmatpush1.bf16.msra.mxu0 %v8929
        %9126 = vmatprep.subr.bf16.mxu0 0
        %9127 = vmatpush1.bf16.msra.mxu0 %v8928
        %9128 = vmatprep.subr.bf16.mxu0 0
        %9129 = vmatpush1.bf16.msra.mxu0 %v8927
        %9130 = vmatprep.subr.bf16.mxu0 0
        %9131 = vmatpush1.bf16.msra.mxu0 %v8926
        %9132 = vmatprep.subr.bf16.mxu0 0
        %9133 = vmatpush1.bf16.msra.mxu0 %v8925
        %9134 = vmatprep.subr.bf16.mxu0 0
        %9135 = vmatpush2.bf16.msra.mxu0 %v8940
        %9136 = vmatprep.subr.bf16.mxu0 0
        %9137 = vmatpush2.bf16.msra.mxu0 %v8939
        %9138 = vmatprep.subr.bf16.mxu0 0
        %9139 = vmatpush2.bf16.msra.mxu0 %v8938
        %9140 = vmatprep.subr.bf16.mxu0 0
        %9141 = vmatpush2.bf16.msra.mxu0 %v8937
        %9142 = vmatprep.subr.bf16.mxu0 0
        %9143 = vmatpush2.bf16.msra.mxu0 %v8936
        %9144 = vmatprep.subr.bf16.mxu0 0
        %9145 = vmatpush2.bf16.msra.mxu0 %v8935
        %9146 = vmatprep.subr.bf16.mxu0 0
        %9147 = vmatpush2.bf16.msra.mxu0 %v8934
        %9148 = vmatprep.subr.bf16.mxu0 0
        %9149 = vmatpush2.bf16.msra.mxu0 %v8933
        %9150 = vmatprep.mubr.bf16.mxu0 %v4461
        %9151 = vmatmul.mubr.bf16.gmra.mxu0 %v4258
        %v9152 = vpop.f32.mrf.mxu0
        %v9153 = vadd.f32 %v9088, %v9152
        %v9154 = vpop.f32.mrf.mxu0
        %v9155 = vpop.f32.mrf.mxu0
        %v9156 = vadd.f32 %v9091, %v9155
        %v9157 = vpop.f32.mrf.mxu0
        %9158 = vmatprep.mubr.bf16.mxu0 %v4465
        %9159 = vmatmul.mubr.bf16.gmra.mxu0 %v4262
        %v9160 = vpop.f32.mrf.mxu0
        %v9161 = vadd.f32 %v9096, %v9160
        %v9162 = vpop.f32.mrf.mxu0
        %v9163 = vpop.f32.mrf.mxu0
        %v9164 = vadd.f32 %v9099, %v9163
        %v9165 = vpop.f32.mrf.mxu0
        %9166 = vmatprep.mubr.bf16.mxu0 %v4469
        %9167 = vmatmul.mubr.bf16.gmra.mxu0 %v4266
        %v9168 = vpop.f32.mrf.mxu0
        %v9169 = vadd.f32 %v9104, %v9168
        %v9170 = vpop.f32.mrf.mxu0
        %v9171 = vpop.f32.mrf.mxu0
        %v9172 = vadd.f32 %v9107, %v9171
        %v9173 = vpop.f32.mrf.mxu0
        %9174 = vmatprep.mubr.bf16.mxu0 %v4473
        %9175 = vmatmul.mubr.bf16.gmra.mxu0 %v4270
        %v9176 = vpop.f32.mrf.mxu0
        %v9177 = vadd.f32 %v9112, %v9176
        %v9178 = vpop.f32.mrf.mxu0
        %v9179 = vpop.f32.mrf.mxu0
        %v9180 = vadd.f32 %v9115, %v9179
        %v9181 = vpop.f32.mrf.mxu0
        %9182 = vdwg.mxu0
        %9183 = vmatprep.subr.bf16.mxu0 0
        %9184 = vmatpush1.bf16.msra.mxu0 %v8948
        %9185 = vmatprep.subr.bf16.mxu0 0
        %9186 = vmatpush1.bf16.msra.mxu0 %v8947
        %9187 = vmatprep.subr.bf16.mxu0 0
        %9188 = vmatpush1.bf16.msra.mxu0 %v8946
        %9189 = vmatprep.subr.bf16.mxu0 0
        %9190 = vmatpush1.bf16.msra.mxu0 %v8945
        %9191 = vmatprep.subr.bf16.mxu0 0
        %9192 = vmatpush1.bf16.msra.mxu0 %v8944
        %9193 = vmatprep.subr.bf16.mxu0 0
        %9194 = vmatpush1.bf16.msra.mxu0 %v8943
        %9195 = vmatprep.subr.bf16.mxu0 0
        %9196 = vmatpush1.bf16.msra.mxu0 %v8942
        %9197 = vmatprep.subr.bf16.mxu0 0
        %9198 = vmatpush1.bf16.msra.mxu0 %v8941
        %9199 = vmatprep.subr.bf16.mxu0 0
        %9200 = vmatpush2.bf16.msra.mxu0 %v8956
        %9201 = vmatprep.subr.bf16.mxu0 0
        %9202 = vmatpush2.bf16.msra.mxu0 %v8955
        %9203 = vmatprep.subr.bf16.mxu0 0
        %9204 = vmatpush2.bf16.msra.mxu0 %v8954
        %9205 = vmatprep.subr.bf16.mxu0 0
        %9206 = vmatpush2.bf16.msra.mxu0 %v8953
        %9207 = vmatprep.subr.bf16.mxu0 0
        %9208 = vmatpush2.bf16.msra.mxu0 %v8952
        %9209 = vmatprep.subr.bf16.mxu0 0
        %9210 = vmatpush2.bf16.msra.mxu0 %v8951
        %9211 = vmatprep.subr.bf16.mxu0 0
        %9212 = vmatpush2.bf16.msra.mxu0 %v8950
        %9213 = vmatprep.subr.bf16.mxu0 0
        %9214 = vmatpush2.bf16.msra.mxu0 %v8949
        %9215 = vmatprep.mubr.bf16.mxu0 %v4867
        %9216 = vmatmul.mubr.bf16.gmra.mxu0 %v4664
        %v9217 = vpop.f32.mrf.mxu0
        %v9218 = vadd.f32 %v9153, %v9217
        %v9219 = vpop.f32.mrf.mxu0
        %v9220 = vpop.f32.mrf.mxu0
        %v9221 = vadd.f32 %v9156, %v9220
        %v9222 = vpop.f32.mrf.mxu0
        %9223 = vmatprep.mubr.bf16.mxu0 %v4871
        %9224 = vmatmul.mubr.bf16.gmra.mxu0 %v4668
        %v9225 = vpop.f32.mrf.mxu0
        %v9226 = vadd.f32 %v9161, %v9225
        %v9227 = vpop.f32.mrf.mxu0
        %v9228 = vpop.f32.mrf.mxu0
        %v9229 = vadd.f32 %v9164, %v9228
        %v9230 = vpop.f32.mrf.mxu0
        %9231 = vmatprep.mubr.bf16.mxu0 %v4875
        %9232 = vmatmul.mubr.bf16.gmra.mxu0 %v4672
        %v9233 = vpop.f32.mrf.mxu0
        %v9234 = vadd.f32 %v9169, %v9233
        %v9235 = vpop.f32.mrf.mxu0
        %v9236 = vpop.f32.mrf.mxu0
        %v9237 = vadd.f32 %v9172, %v9236
        %v9238 = vpop.f32.mrf.mxu0
        %9239 = vmatprep.mubr.bf16.mxu0 %v4879
        %9240 = vmatmul.mubr.bf16.gmra.mxu0 %v4676
        %v9241 = vpop.f32.mrf.mxu0
        %v9242 = vadd.f32 %v9177, %v9241
        %v9243 = vpop.f32.mrf.mxu0
        %v9244 = vpop.f32.mrf.mxu0
        %v9245 = vadd.f32 %v9180, %v9244
        %v9246 = vpop.f32.mrf.mxu0
        %9247 = vdwg.mxu0
        %9248 = vmatprep.subr.bf16.mxu0 0
        %9249 = vmatpush1.bf16.msra.mxu0 %v8964
        %9250 = vmatprep.subr.bf16.mxu0 0
        %9251 = vmatpush1.bf16.msra.mxu0 %v8963
        %9252 = vmatprep.subr.bf16.mxu0 0
        %9253 = vmatpush1.bf16.msra.mxu0 %v8962
        %9254 = vmatprep.subr.bf16.mxu0 0
        %9255 = vmatpush1.bf16.msra.mxu0 %v8961
        %9256 = vmatprep.subr.bf16.mxu0 0
        %9257 = vmatpush1.bf16.msra.mxu0 %v8960
        %9258 = vmatprep.subr.bf16.mxu0 0
        %9259 = vmatpush1.bf16.msra.mxu0 %v8959
        %9260 = vmatprep.subr.bf16.mxu0 0
        %9261 = vmatpush1.bf16.msra.mxu0 %v8958
        %9262 = vmatprep.subr.bf16.mxu0 0
        %9263 = vmatpush1.bf16.msra.mxu0 %v8957
        %9264 = vmatprep.subr.bf16.mxu0 0
        %9265 = vmatpush2.bf16.msra.mxu0 %v8972
        %9266 = vmatprep.subr.bf16.mxu0 0
        %9267 = vmatpush2.bf16.msra.mxu0 %v8971
        %9268 = vmatprep.subr.bf16.mxu0 0
        %9269 = vmatpush2.bf16.msra.mxu0 %v8970
        %9270 = vmatprep.subr.bf16.mxu0 0
        %9271 = vmatpush2.bf16.msra.mxu0 %v8969
        %9272 = vmatprep.subr.bf16.mxu0 0
        %9273 = vmatpush2.bf16.msra.mxu0 %v8968
        %9274 = vmatprep.subr.bf16.mxu0 0
        %9275 = vmatpush2.bf16.msra.mxu0 %v8967
        %9276 = vmatprep.subr.bf16.mxu0 0
        %9277 = vmatpush2.bf16.msra.mxu0 %v8966
        %9278 = vmatprep.subr.bf16.mxu0 0
        %9279 = vmatpush2.bf16.msra.mxu0 %v8965
        %9280 = vmatprep.mubr.bf16.mxu0 %v5273
        %9281 = vmatmul.mubr.bf16.gmra.mxu0 %v5070
        %v9282 = vpop.f32.mrf.mxu0
        %v9283 = vadd.f32 %v9218, %v9282
        %v9284 = vpop.f32.mrf.mxu0
        %v9285 = vpop.f32.mrf.mxu0
        %v9286 = vadd.f32 %v9221, %v9285
        %v9287 = vpop.f32.mrf.mxu0
        %9288 = vmatprep.mubr.bf16.mxu0 %v5277
        %9289 = vmatmul.mubr.bf16.gmra.mxu0 %v5074
        %v9290 = vpop.f32.mrf.mxu0
        %v9291 = vadd.f32 %v9226, %v9290
        %v9292 = vpop.f32.mrf.mxu0
        %v9293 = vpop.f32.mrf.mxu0
        %v9294 = vadd.f32 %v9229, %v9293
        %v9295 = vpop.f32.mrf.mxu0
        %9296 = vmatprep.mubr.bf16.mxu0 %v5281
        %9297 = vmatmul.mubr.bf16.gmra.mxu0 %v5078
        %v9298 = vpop.f32.mrf.mxu0
        %v9299 = vadd.f32 %v9234, %v9298
        %v9300 = vpop.f32.mrf.mxu0
        %v9301 = vpop.f32.mrf.mxu0
        %v9302 = vadd.f32 %v9237, %v9301
        %v9303 = vpop.f32.mrf.mxu0
        %9304 = vmatprep.mubr.bf16.mxu0 %v5285
        %9305 = vmatmul.mubr.bf16.gmra.mxu0 %v5082
        %v9306 = vpop.f32.mrf.mxu0
        %v9307 = vadd.f32 %v9242, %v9306
        %v9308 = vpop.f32.mrf.mxu0
        %v9309 = vpop.f32.mrf.mxu0
        %v9310 = vadd.f32 %v9245, %v9309
        %v9311 = vpop.f32.mrf.mxu0
        %9312 = vdwg.mxu0
        %9313 = vmatprep.subr.bf16.mxu0 0
        %9314 = vmatpush1.bf16.msra.mxu0 %v8980
        %9315 = vmatprep.subr.bf16.mxu0 0
        %9316 = vmatpush1.bf16.msra.mxu0 %v8979
        %9317 = vmatprep.subr.bf16.mxu0 0
        %9318 = vmatpush1.bf16.msra.mxu0 %v8978
        %9319 = vmatprep.subr.bf16.mxu0 0
        %9320 = vmatpush1.bf16.msra.mxu0 %v8977
        %9321 = vmatprep.subr.bf16.mxu0 0
        %9322 = vmatpush1.bf16.msra.mxu0 %v8976
        %9323 = vmatprep.subr.bf16.mxu0 0
        %9324 = vmatpush1.bf16.msra.mxu0 %v8975
        %9325 = vmatprep.subr.bf16.mxu0 0
        %9326 = vmatpush1.bf16.msra.mxu0 %v8974
        %9327 = vmatprep.subr.bf16.mxu0 0
        %9328 = vmatpush1.bf16.msra.mxu0 %v8973
        %9329 = vmatprep.subr.bf16.mxu0 0
        %9330 = vmatpush2.bf16.msra.mxu0 0
        %9331 = vmatprep.subr.bf16.mxu0 0
        %9332 = vmatpush2.bf16.msra.mxu0 0
        %9333 = vmatprep.subr.bf16.mxu0 0
        %9334 = vmatpush2.bf16.msra.mxu0 0
        %9335 = vmatprep.subr.bf16.mxu0 0
        %9336 = vmatpush2.bf16.msra.mxu0 0
        %9337 = vmatprep.subr.bf16.mxu0 0
        %9338 = vmatpush2.bf16.msra.mxu0 0
        %9339 = vmatprep.subr.bf16.mxu0 0
        %9340 = vmatpush2.bf16.msra.mxu0 0
        %9341 = vmatprep.subr.bf16.mxu0 0
        %9342 = vmatpush2.bf16.msra.mxu0 0
        %9343 = vmatprep.subr.bf16.mxu0 0
        %9344 = vmatpush2.bf16.msra.mxu0 0
        %9345 = vmatprep.mubr.bf16.mxu0 0
        %9346 = vmatmul.mubr.bf16.gmra.mxu0 %v5476
        %v9347 = vpop.f32.mrf.mxu0
        %v9348 = vadd.f32 %v9283, %v9347
        %v9349 = vpop.f32.mrf.mxu0
        %v9350 = vpop.f32.mrf.mxu0
        %v9351 = vadd.f32 %v9286, %v9350
        %v9352 = vpop.f32.mrf.mxu0
        %9353 = vmatprep.mubr.bf16.mxu0 0
        %9354 = vmatmul.mubr.bf16.gmra.mxu0 %v5480
        %v9355 = vpop.f32.mrf.mxu0
        %v9356 = vadd.f32 %v9291, %v9355
        %v9357 = vpop.f32.mrf.mxu0
        %v9358 = vpop.f32.mrf.mxu0
        %v9359 = vadd.f32 %v9294, %v9358
        %v9360 = vpop.f32.mrf.mxu0
        %9361 = vmatprep.mubr.bf16.mxu0 0
        %9362 = vmatmul.mubr.bf16.gmra.mxu0 %v5484
        %v9363 = vpop.f32.mrf.mxu0
        %v9364 = vadd.f32 %v9299, %v9363
        %v9365 = vpop.f32.mrf.mxu0
        %v9366 = vpop.f32.mrf.mxu0
        %v9367 = vadd.f32 %v9302, %v9366
        %v9368 = vpop.f32.mrf.mxu0
        %9369 = vmatprep.mubr.bf16.mxu0 0
        %9370 = vmatmul.mubr.bf16.gmra.mxu0 %v5488
        %v9371 = vpop.f32.mrf.mxu0
        %v9372 = vadd.f32 %v9307, %v9371
        %v9373 = vpop.f32.mrf.mxu0
        %v9374 = vpop.f32.mrf.mxu0
        %v9375 = vadd.f32 %v9310, %v9374
        %v9376 = vpop.f32.mrf.mxu0
        %9377 = vdwg.mxu0
        %v9378 = vadd.f32 %v9348, %v9351
        %v9379 = vadd.f32 %v9378, %v9356
        %v9380 = vadd.f32 %v9379, %v9359
        %v9381 = vadd.f32 %v9380, %v9364
        %v9382 = vadd.f32 %v9381, %v9367
        %v9383 = vadd.f32 %v9382, %v9372
        %v9384 = vadd.f32 %v9383, %v9375
        %v9385 = vrot.slane %v9384, 4
        %v9386 = vadd.f32 %v9384, %v9385
        %v9387 = vrot.slane %v9386, 2
        %v9388 = vadd.f32 %v9386, %v9387
        %v9389 = vrot.slane %v9388, 1
        %v9390 = vadd.f32 %v9388, %v9389
        %v9391 = vmul.f32 %v9390, 0.015625
        %v9392 = vmul.f32 %v9348, %v9348
        %v9393 = vmul.f32 %v9351, %v9351
        %v9394 = vmul.f32 %v9356, %v9356
        %v9395 = vmul.f32 %v9359, %v9359
        %v9396 = vmul.f32 %v9364, %v9364
        %v9397 = vmul.f32 %v9367, %v9367
        %v9398 = vmul.f32 %v9372, %v9372
        %v9399 = vmul.f32 %v9375, %v9375
        %v9400 = vadd.f32 %v9392, %v9393
        %v9401 = vadd.f32 %v9400, %v9394
        %v9402 = vadd.f32 %v9401, %v9395
        %v9403 = vadd.f32 %v9402, %v9396
        %v9404 = vadd.f32 %v9403, %v9397
        %v9405 = vadd.f32 %v9404, %v9398
        %v9406 = vadd.f32 %v9405, %v9399
        %v9407 = vrot.slane %v9406, 4
        %v9408 = vadd.f32 %v9406, %v9407
        %v9409 = vrot.slane %v9408, 2
        %v9410 = vadd.f32 %v9408, %v9409
        %v9411 = vrot.slane %v9410, 1
        %v9412 = vadd.f32 %v9410, %v9411
        %v9413 = vmul.f32 %v9412, 0.015625
        %v9414 = vmul.f32 %v9391, %v9391
        %v9415 = vsub.f32 %v9413, %v9414
        %v9416 = vsub.f32 %v9348, %v9391
        %v9417 = vsub.f32 %v9351, %v9391
        %v9418 = vsub.f32 %v9356, %v9391
        %v9419 = vsub.f32 %v9359, %v9391
        %v9420 = vsub.f32 %v9364, %v9391
        %v9421 = vsub.f32 %v9367, %v9391
        %v9422 = vsub.f32 %v9372, %v9391
        %v9423 = vsub.f32 %v9375, %v9391
        %v9424 = vadd.f32 %v9415, 1e-05
        %v9425 = vrsqrt.pop %v9424
        %v9426 = vmul.f32 %v9416, %v9425
        %v9427 = vmul.f32 %v9417, %v9425
        %v9428 = vmul.f32 %v9418, %v9425
        %v9429 = vmul.f32 %v9419, %v9425
        %v9430 = vmul.f32 %v9420, %v9425
        %v9431 = vmul.f32 %v9421, %v9425
        %v9432 = vmul.f32 %v9422, %v9425
        %v9433 = vmul.f32 %v9423, %v9425
        %v9434 = vld [vmem:[%s929 + $0x3] sm:$0x1]
        %v9436 = vlaneseq
        %v9437 = vshrl.u32 %v9436, 7
        %v9438 = vsub.s32 0, %v9437
        %v9439 = vrot.slane %v9434, %v9438
        %v9441 = vmul.f32 %v9426, %v9439
        %v9442 = vmul.f32 %v9427, %v9439
        %v9443 = vmul.f32 %v9428, %v9439
        %v9444 = vmul.f32 %v9429, %v9439
        %v9445 = vmul.f32 %v9430, %v9439
        %v9446 = vmul.f32 %v9431, %v9439
        %v9447 = vmul.f32 %v9432, %v9439
        %v9448 = vmul.f32 %v9433, %v9439
        %v9449 = vld [vmem:[%s934 + $0x3] sm:$0x1]
        %v9451 = vlaneseq
        %v9452 = vshrl.u32 %v9451, 7
        %v9453 = vsub.s32 0, %v9452
        %v9454 = vrot.slane %v9449, %v9453
        %v9456 = vadd.f32 %v9441, %v9454
        %v9457 = vadd.f32 %v9442, %v9454
        %v9458 = vadd.f32 %v9443, %v9454
        %v9459 = vadd.f32 %v9444, %v9454
        %v9460 = vadd.f32 %v9445, %v9454
        %v9461 = vadd.f32 %v9446, %v9454
        %v9462 = vadd.f32 %v9447, %v9454
        %v9463 = vadd.f32 %v9448, %v9454
        %9464 = vst [vmem:[%s907 + $0x18] sm:$0xff] %v9456
        %9465 = vst [vmem:[%s907 + $0x38] sm:$0xff] %v9457
        %9466 = vst [vmem:[%s907 + $0x58] sm:$0xff] %v9458
        %9467 = vst [vmem:[%s907 + $0x78] sm:$0xff] %v9459
        %9468 = vst [vmem:[%s907 + $0x98] sm:$0xff] %v9460
        %9469 = vst [vmem:[%s907 + $0xb8] sm:$0xff] %v9461
        %9470 = vst [vmem:[%s907 + $0xd8] sm:$0xff] %v9462
        %9471 = vst [vmem:[%s907 + $0xf8] sm:$0xff] %v9463
        %s9472 = sand.u32 %s228, 1
        %s9473 = scalar_lea.sflag [#allocation4], %s9472
        %s9474 = sand.u32 %s228, 1
        %s9475 = smul.addr %s9474, 256
        %s9476 = scalar_lea.vmem [#allocation3], %s9475
        // Predicated region
        $region76: #{forward.1} parent=70 // pred_check
          %p9477 = pneg %p238
        $region77: #{forward.1} parent=70 // pred_check_branch
          %9479 = sbr.rel (%p9477) target = $region79
        $region78: #{forward.1} parent=70 // pred_region
          %s9480 = smul.u32 4, %s22
          %s9482 = ssub.s32 4096, 4096
          %9483 = vsyncadd %s9473, %s9482
          %s9484 = smul.addr %s9480, 128
          %s9485 = scalar_lea.hbm %s8, %s9484
          %s9486 = sshll.u32 %s9476, 4
          %s9487 = int_to_ptr.vmem [resolvable:$true] %s9486
          %9492 = dma.vmem_to_hbm [thread:$0]  %s9487, 4096, %s9485, %s9473, 512, 1024, 32
        $region79: #{forward.1} parent=70 // pred_fallthru
          _
      $region71: #{forward.1} parent=5 // pred_fallthru
        _
      %p9493 = scmp.le.s32.totalorder 2, %s17
      // Predicated region
      $region80: #{forward.1} parent=5 // pred_check
        %p9494 = pneg %p9493
      $region81: #{forward.1} parent=5 // pred_check_branch
        %9496 = sbr.rel (%p9494) target = $region83
      $region82: #{forward.1} parent=5 // pred_region
        %s9497 = ssub.s32 %s17, 2
        // Predicated region
        $region84: #{forward.1} parent=82 // pred_check
          %p9498 = pneg %p244
        $region85: #{forward.1} parent=82 // pred_check_branch
          %9500 = sbr.rel (%p9498) target = $region87
        $region86: #{forward.1} parent=82 // pred_region
          %s9501 = sand.u32 %s229, 1
          %s9502 = scalar_lea.sflag [#allocation4], %s9501
          %s9503 = sand.u32 %s229, 1
          %s9504 = smul.addr %s9503, 256
          %s9505 = scalar_lea.vmem [#allocation3], %s9504
          %9506 = dma.done %s9502, 4096
        $region87: #{forward.1} parent=82 // pred_fallthru
          _
      $region83: #{forward.1} parent=5 // pred_fallthru
        _
    $region6: #{forward.1} parent=1 // loop_footer
      %s21 = sadd.s32 1, %s17
    $region7: #{forward.1} parent=1 // loop_footer_branch
      %16 = sbr.rel target = $region3
    $region8: #{forward.1} parent=1 // loop_exit
      _
    %9507 = vsyncpa [#allocation4], 1
    %s9508 = scalar_lea.sflag [#allocation4], 1
    %9509 = vsyncpa %s9508, 1

</llo_original>
